<compile_context>
chip_gen: v7x
topology: tpu7x:2x2x1
jax: 0.10.0
libtpu: 0.0.40
codegen_flags: <defaults>
</compile_context>

<pallas_src>
import numpy as np

import jax
import jax.numpy as jnp
from jax.experimental import pallas as pl
from jax.experimental.pallas import tpu as pltpu

# ----------------------------------------------------------------------------
# Static configuration (latent_dim = 32 instantiation)
# ----------------------------------------------------------------------------
LATENT = 32
OUT_CH = 3
STAGE_IO = [(32, 16), (16, 8), (8, 4), (4, 4)]      # (cin, cout) per stage
NV = 21                                             # rows in the packed bias/vec array

ROW0 = 8          # interior row origin in the staging buffer (3 zero halo rows above)
PAD_H = 80        # 8 + 64 + 3 rounded up
PAD_L = 256       # max lane width (final 64x64x4 image -> 256 lanes)

_BN_EPS = 1e-5


# ----------------------------------------------------------------------------
# The fused decoder kernel (one grid step == one batch element)
# ----------------------------------------------------------------------------
def _decoder_kernel(x_ref, fcw_ref, vecs_ref, wa_ref, wb_ref, wc_ref, wp_ref, w7_ref,
                    d_ref, r_ref, o_ref, pad_ref):
    f32 = jnp.float32

    # Zero only the rows that are read as halo before being overwritten this step:
    # 3 rows above, 3 rows below the 64-row interior, plus the "one past the image"
    # row at every intermediate size (4, 8, 16, 32).
    zero3 = jnp.zeros((3, PAD_L), f32)
    zero1 = jnp.zeros((1, PAD_L), f32)
    pad_ref[ROW0 - 3:ROW0, :] = zero3
    pad_ref[ROW0 + 64:ROW0 + 67, :] = zero3
    for r in (ROW0 + 4, ROW0 + 8, ROW0 + 16, ROW0 + 32):
        pad_ref[r:r + 1, :] = zero1

    def up2(y2d, di, in_lanes, h):
        """Nearest x2 of a (h, in_lanes) 2-D image: column-dup matmul then row-dup matmul."""
        yc = jnp.dot(y2d, d_ref[di, 0:in_lanes, 0:2 * in_lanes], preferred_element_type=f32)
        return jnp.dot(r_ref[0:2 * h, 0:h], yc, preferred_element_type=f32)

    def wsel(tag, i, ky):
        if tag == 'A':
            return wa_ref[i, ky]
        if tag == 'B':
            return wb_ref[i, ky]
        return wc_ref[i, ky]

    def conv3(sel, h, in_lanes, out_lanes, gi, relu):
        """3x3 'same' conv over the image in pad_ref's interior, banded-matmul form."""
        tag, i = sel
        acc = jnp.zeros((h, out_lanes), f32)
        for ky in range(3):
            r0 = ROW0 + ky - 1
            acc = acc + jnp.dot(pad_ref[r0:r0 + h, 0:in_lanes], wsel(tag, i, ky),
                                preferred_element_type=f32)
        acc = acc + vecs_ref[1 + gi:2 + gi, 0:out_lanes]          # folded BN bias (tiled)
        return jnp.maximum(acc, 0.0) if relu else acc

    # --- fc1 + ReLU -> view(-1, C, 1, 1) -> blocks[0] Upsample(x2) -> 2x2x32 image
    xv = x_ref[...].reshape(1, LATENT)
    y0 = jnp.dot(xv, fcw_ref[...], preferred_element_type=f32) + vecs_ref[0:1, 0:LATENT]
    y0 = jnp.maximum(y0, 0.0)
    row = jnp.concatenate([y0, y0], axis=1)            # (1, 2*32): two identical pixels
    y = jnp.broadcast_to(row, (2, 64))                 # (H=2, W*C=64), all pixels equal
    H, lanes = 2, 64

    # (cout, d_conv, d_id, wp_idx, conv1..conv4 weight slots, gi_base, proj-bias row)
    specs = (
        (16, 0, 1, 0, ('A', 0), ('B', 0), ('B', 1), ('B', 2), 0, 17),
        (8,  1, 2, 1, ('A', 1), ('B', 3), ('B', 4), ('B', 5), 4, 18),
        (4,  2, 3, 2, ('A', 2), ('B', 6), ('B', 7), ('B', 8), 8, 19),
        (4,  3, 0, -1, ('C', 0), ('C', 1), ('C', 2), ('C', 3), 12, 0),
    )

    for (cout, d_conv, d_id, wp_i, c1, c2, c3, c4, gi, pb) in specs:
        H2 = 2 * H
        out_lanes = H2 * cout

        # ---- block 0 (with upsample, optional 1x1 identity projection) ----
        ident = None
        if wp_i >= 0:
            idp = jnp.dot(y, wp_ref[wp_i], preferred_element_type=f32)    # 1x1 proj (+BN)
            idp = idp + vecs_ref[pb:pb + 1, 0:H * cout]
            ident = up2(idp, d_id, H * cout, H)                           # (H2, out_lanes)
        up = up2(y, d_conv, lanes, H)                                     # conv-path input
        if wp_i < 0:
            ident = up
        pad_ref[ROW0:ROW0 + H2, 0:2 * lanes] = up
        h = conv3(c1, H2, 2 * lanes, out_lanes, gi, relu=True)
        pad_ref[ROW0:ROW0 + H2, 0:out_lanes] = h
        h = conv3(c2, H2, out_lanes, out_lanes, gi + 1, relu=False)
        y = jnp.maximum(h + ident, 0.0)

        # ---- block 1 (no upsample, identity = input) ----
        ident = y
        pad_ref[ROW0:ROW0 + H2, 0:out_lanes] = y
        h = conv3(c3, H2, out_lanes, out_lanes, gi + 2, relu=True)
        pad_ref[ROW0:ROW0 + H2, 0:out_lanes] = h
        h = conv3(c4, H2, out_lanes, out_lanes, gi + 3, relu=False)
        y = jnp.maximum(h + ident, 0.0)

        H, lanes = H2, out_lanes

    # --- final Upsample(x2) + last 7x7 conv (+ Identity activation) ---
    up = up2(y, 3, lanes, H)                                  # (64, 256) = 64x64x4
    pad_ref[ROW0:ROW0 + 64, 0:256] = up
    acc = jnp.zeros((64, 192), f32)
    for ky in range(7):
        r0 = ROW0 + ky - 3
        acc = acc + jnp.dot(pad_ref[r0:r0 + 64, 0:256], w7_ref[ky],
                            preferred_element_type=f32)
    acc = acc + vecs_ref[20:21, 0:192]
    o_ref[0, :, :] = acc                                      # lane-dense (64, 192) slab


# ----------------------------------------------------------------------------
# Wrapper: one pallas_call for the whole forward pass
# ----------------------------------------------------------------------------
def resnet18_decoder_pallas(x, fcw, vecs, wa, wb, wc, wp, w7, dmat, rmat):
    """x: (B, latent_dim) -> (B, 3, 64, 64) NCHW, matching the PyTorch module."""
    B = x.shape[0]
    x3 = x.reshape(B, 1, LATENT)
    out = pl.pallas_call(
        _decoder_kernel,
        out_shape=jax.ShapeDtypeStruct((B, 64, 192), jnp.float32),
        grid=(B,),
        in_specs=[
            pl.BlockSpec((1, 1, LATENT), lambda b: (b, 0, 0)),
            pl.BlockSpec((LATENT, LATENT), lambda b: (0, 0)),
            pl.BlockSpec((NV, 192), lambda b: (0, 0)),
            pl.BlockSpec((3, 3, 128, 64), lambda b: (0, 0, 0, 0)),
            pl.BlockSpec((9, 3, 64, 64), lambda b: (0, 0, 0, 0)),
            pl.BlockSpec((4, 3, 128, 128), lambda b: (0, 0, 0, 0)),
            pl.BlockSpec((3, 64, 32), lambda b: (0, 0, 0)),
            pl.BlockSpec((7, 256, 192), lambda b: (0, 0, 0)),
            pl.BlockSpec((4, 128, 256), lambda b: (0, 0, 0)),
            pl.BlockSpec((64, 32), lambda b: (0, 0)),
        ],
        out_specs=pl.BlockSpec((1, 64, 192), lambda b: (b, 0, 0)),
        scratch_shapes=[pltpu.VMEM((PAD_H, PAD_L), jnp.float32)],
        compiler_params=pltpu.CompilerParams(
            dimension_semantics=("parallel",),
            vmem_limit_bytes=32 * 1024 * 1024,
        ),
    )(x3, fcw, vecs, wa, wb, wc, wp, w7, dmat, rmat)
    # cheap layout permute back to the module's NCHW output
    return jnp.transpose(out.reshape(B, 64, 64, OUT_CH), (0, 3, 1, 2))


# ----------------------------------------------------------------------------
# Parameters (raw conv + BatchNorm stats, mirroring the PyTorch module)
# ----------------------------------------------------------------------------
def make_params(key, latent_dim=LATENT, out_ch=OUT_CH):
    assert latent_dim == 32, "kernel packing is specialized to latent_dim=32"
    keys = iter(jax.random.split(key, 160))

    def nk():
        return next(keys)

    def bn_params(c):
        return {"gamma": 1.0 + 0.2 * (jax.random.uniform(nk(), (c,), jnp.float32) - 0.5),
                "beta": 0.1 * (jax.random.uniform(nk(), (c,), jnp.float32) - 0.5),
                "mean": 0.05 * jax.random.normal(nk(), (c,), jnp.float32),
                "var": 1.0 + 0.2 * (jax.random.uniform(nk(), (c,), jnp.float32) - 0.5)}

    def conv_bn(cin, cout, k):
        std = (2.0 / (cout * k * k)) ** 0.5          # kaiming_normal_ fan_out / relu
        w = jax.random.normal(nk(), (k, k, cin, cout), jnp.float32) * std
        b = 0.2 * (jax.random.uniform(nk(), (cout,), jnp.float32) - 0.5)
        return {"w": w, "b": b, "bn": bn_params(cout)}

    fc_std = 1.0 / np.sqrt(latent_dim)
    fc_w = jax.random.uniform(nk(), (latent_dim, latent_dim), jnp.float32, -fc_std, fc_std)
    fc_b = jax.random.uniform(nk(), (latent_dim,), jnp.float32, -fc_std, fc_std)

    stages = []
    for cin, cout in STAGE_IO:
        blk0 = {"conv1": conv_bn(cin, cout, 3), "conv2": conv_bn(cout, cout, 3)}
        if cin != cout:
            blk0["proj"] = conv_bn(cin, cout, 1)
        blk1 = {"conv1": conv_bn(cout, cout, 3), "conv2": conv_bn(cout, cout, 3)}
        stages.append([blk0, blk1])

    cin_last = latent_dim // 8
    xav = (2.0 / ((cin_last + out_ch) * 49)) ** 0.5
    lw = jax.random.normal(nk(), (7, 7, cin_last, out_ch), jnp.float32) * xav
    lb = 0.2 * (jax.random.uniform(nk(), (out_ch,), jnp.float32) - 0.5)

    return {"fc1": {"w": fc_w, "b": fc_b}, "stages": stages,
            "last": {"w": lw, "b": lb}}


# ----------------------------------------------------------------------------
# Host-side packing: fold BN, build banded conv / upsample matrices
# ----------------------------------------------------------------------------
def pack_params(params):
    def fold(bn, conv_b):
        scale = np.asarray(bn["gamma"]) / np.sqrt(np.asarray(bn["var"]) + _BN_EPS)
        bias = np.asarray(bn["beta"]) + (np.asarray(conv_b) - np.asarray(bn["mean"])) * scale
        return scale.astype(np.float32), bias.astype(np.float32)

    def banded3(w, scale, W):
        """(K,K,Cin,Cout) conv -> K banded (W*Cin, W*Cout) matrices; 'same' col padding
        is absorbed by dropping out-of-range taps (halo columns are zero anyway)."""
        w = np.asarray(w)
        K, _, cin, cout = w.shape
        p = (K - 1) // 2
        ws = w * scale[None, None, None, :]
        out = np.zeros((K, W * cin, W * cout), np.float32)
        for ky in range(K):
            for ox in range(W):
                for kx in range(K):
                    wi = ox + kx - p
                    if 0 <= wi < W:
                        out[ky, wi * cin:(wi + 1) * cin, ox * cout:(ox + 1) * cout] = ws[ky, kx]
        return out

    def banded1(w2, scale, W):
        cin, cout = w2.shape
        ws = np.asarray(w2) * scale[None, :]
        out = np.zeros((W * cin, W * cout), np.float32)
        for ox in range(W):
            out[ox * cin:(ox + 1) * cin, ox * cout:(ox + 1) * cout] = ws
        return out

    vecs = np.zeros((NV, 192), np.float32)
    vecs[0, :LATENT] = np.asarray(params["fc1"]["b"])

    wa = np.zeros((3, 3, 128, 64), np.float32)     # block-0 conv1 of stages 0..2
    wb = np.zeros((9, 3, 64, 64), np.float32)      # remaining 3x3 convs of stages 0..2
    wc = np.zeros((4, 3, 128, 128), np.float32)    # stage-3 convs
    wp = np.zeros((3, 64, 32), np.float32)         # 1x1 identity projections

    sizes = [4, 8, 16, 32]                         # post-upsample spatial size per stage
    wb_i, gi = 0, 0
    for s, stage in enumerate(params["stages"]):
        W2 = sizes[s]
        for b, blk in enumerate(stage):
            for ci, name in enumerate(("conv1", "conv2")):
                w = np.asarray(blk[name]["w"])
                cin, cout = w.shape[2], w.shape[3]
                scale, bias = fold(blk[name]["bn"], blk[name]["b"])
                bw = banded3(w, scale, W2)
                if b == 0 and ci == 0 and s < 3:
                    wa[s, :, :W2 * cin, :W2 * cout] = bw
                elif s < 3:
                    wb[wb_i, :, :W2 * cin, :W2 * cout] = bw
                    wb_i += 1
                else:
                    wc[b * 2 + ci, :, :W2 * cin, :W2 * cout] = bw
                vecs[1 + gi, :W2 * cout] = np.tile(bias, W2)
                gi += 1
            if "proj" in blk:
                pw = np.asarray(blk["proj"]["w"])[0, 0]         # (cin, cout)
                scale, bias = fold(blk["proj"]["bn"], blk["proj"]["b"])
                Ws = W2 // 2
                wp[s, :Ws * pw.shape[0], :Ws * pw.shape[1]] = banded1(pw, scale, Ws)
                vecs[17 + s, :Ws * pw.shape[1]] = np.tile(bias, Ws)

    # last 7x7 conv (no BN)
    w7 = banded3(np.asarray(params["last"]["w"]), np.ones((OUT_CH,), np.float32), 64)
    vecs[20, :64 * OUT_CH] = np.tile(np.asarray(params["last"]["b"]), 64)

    # nearest-x2 column-duplication matrices (one per channel width) + row-duplication
    dmat = np.zeros((4, 128, 256), np.float32)
    for di, (wm, c) in enumerate(((2, 32), (4, 16), (8, 8), (32, 4))):
        eye = np.eye(c, dtype=np.float32)
        for w in range(wm):
            for r in range(2):
                dmat[di, w * c:(w + 1) * c, (2 * w + r) * c:(2 * w + r + 1) * c] = eye
    rmat = np.zeros((64, 32), np.float32)
    for i in range(64):
        rmat[i, i // 2] = 1.0

    return tuple(jnp.asarray(a) for a in
                 (params["fc1"]["w"], vecs, wa, wb, wc, wp, w7, dmat, rmat))


# ----------------------------------------------------------------------------
# Pure-JAX reference (for correctness cross-check)
# ----------------------------------------------------------------------------
def _conv_ref(x, w, b):
    k = w.shape[0]
    p = (k - 1) // 2
    y = jax.lax.conv_general_dilated(x, w, (1, 1), [(p, p), (p, p)],
                                     dimension_numbers=("NHWC", "HWIO", "NHWC"),
                                     precision=jax.lax.Precision.HIGHEST)
    return y + b


def _bn_ref(y, bn):
    return (y - bn["mean"]) / jnp.sqrt(bn["var"] + _BN_EPS) * bn["gamma"] + bn["beta"]


def _up2_ref(x):   # nearest x2 on NHWC
    return jnp.repeat(jnp.repeat(x, 2, axis=1), 2, axis=2)


def decoder_forward_ref(x, params):
    y = jnp.maximum(x @ params["fc1"]["w"] + params["fc1"]["b"], 0.0)
    B, C0 = y.shape
    y = y.reshape(B, 1, 1, C0)
    y = _up2_ref(y)                                   # blocks[0], reshape_size=(2, 2)
    for stage in params["stages"]:
        for bi, blk in enumerate(stage):
            identity, out = y, y
            if "proj" in blk:
                identity = _bn_ref(_conv_ref(identity, blk["proj"]["w"], blk["proj"]["b"]),
                                   blk["proj"]["bn"])
            if bi == 0:
                identity = _up2_ref(identity)
                out = _up2_ref(out)
            out = jnp.maximum(_bn_ref(_conv_ref(out, blk["conv1"]["w"], blk["conv1"]["b"]),
                                      blk["conv1"]["bn"]), 0.0)
            out = _bn_ref(_conv_ref(out, blk["conv2"]["w"], blk["conv2"]["b"]),
                          blk["conv2"]["bn"]) + identity
            y = jnp.maximum(out, 0.0)
    y = _up2_ref(y)
    y = _conv_ref(y, params["last"]["w"], params["last"]["b"])
    return jnp.transpose(y, (0, 3, 1, 2))             # NCHW, last_activation = Identity


# ----------------------------------------------------------------------------
if __name__ == "__main__":
    B = 2
    key = jax.random.PRNGKey(0)
    pkey, xkey = jax.random.split(key)

    params = make_params(pkey)
    packed = pack_params(params)
    x = jax.random.normal(xkey, (B, LATENT), jnp.float32)

    fwd = jax.jit(resnet18_decoder_pallas)
    out = jax.block_until_ready(fwd(x, *packed))
    assert out.shape == (B, OUT_CH, 64, 64), out.shape

    ref = jax.block_until_ready(decoder_forward_ref(x, params))
    np.testing.assert_allclose(np.asarray(out), np.asarray(ref), rtol=2e-3, atol=2e-3)

    print("KERNEL_OK")
</pallas_src>

<mosaic_0001>
module attributes {stable_mosaic.version = 11 : i64} {
  func.func @_decoder_kernel(%arg0: i32, %arg1: memref<1x1x32xf32, #tpu.memory_space<vmem>>, %arg2: memref<32x32xf32, #tpu.memory_space<vmem>>, %arg3: memref<21x192xf32, #tpu.memory_space<vmem>>, %arg4: memref<3x3x128x64xf32, #tpu.memory_space<vmem>>, %arg5: memref<9x3x64x64xf32, #tpu.memory_space<vmem>>, %arg6: memref<4x3x128x128xf32, #tpu.memory_space<vmem>>, %arg7: memref<3x64x32xf32, #tpu.memory_space<vmem>>, %arg8: memref<7x256x192xf32, #tpu.memory_space<vmem>>, %arg9: memref<4x128x256xf32, #tpu.memory_space<vmem>>, %arg10: memref<64x32xf32, #tpu.memory_space<vmem>>, %arg11: memref<1x64x192xf32, #tpu.memory_space<vmem>>, %arg12: memref<80x256xf32, #tpu.memory_space<vmem>>) attributes {dimension_semantics = [#tpu.dimension_semantics<parallel>], iteration_bounds = array<i64: 2>, scalar_prefetch = 0 : i64, scratch_operands = 1 : i64, tpu.core_type = #tpu.core_type<tc>, window_params = [{transform_indices = @transform_0, window_bounds = array<i64: 1, 1, 32>}, {pipeline_mode = #tpu.pipeline_mode<synchronous>, transform_indices = @transform_1, window_bounds = array<i64: 32, 32>}, {pipeline_mode = #tpu.pipeline_mode<synchronous>, transform_indices = @transform_2, window_bounds = array<i64: 21, 192>}, {pipeline_mode = #tpu.pipeline_mode<synchronous>, transform_indices = @transform_3, window_bounds = array<i64: 3, 3, 128, 64>}, {pipeline_mode = #tpu.pipeline_mode<synchronous>, transform_indices = @transform_4, window_bounds = array<i64: 9, 3, 64, 64>}, {pipeline_mode = #tpu.pipeline_mode<synchronous>, transform_indices = @transform_5, window_bounds = array<i64: 4, 3, 128, 128>}, {pipeline_mode = #tpu.pipeline_mode<synchronous>, transform_indices = @transform_6, window_bounds = array<i64: 3, 64, 32>}, {pipeline_mode = #tpu.pipeline_mode<synchronous>, transform_indices = @transform_7, window_bounds = array<i64: 7, 256, 192>}, {pipeline_mode = #tpu.pipeline_mode<synchronous>, transform_indices = @transform_8, window_bounds = array<i64: 4, 128, 256>}, {pipeline_mode = #tpu.pipeline_mode<synchronous>, transform_indices = @transform_9, window_bounds = array<i64: 64, 32>}, {transform_indices = @transform_10, window_bounds = array<i64: 1, 64, 192>}]} {
    %cst = arith.constant 0.000000e+00 : f32
    %0 = vector.broadcast %cst : f32 to vector<3x256xf32>
    %cst_0 = arith.constant 0.000000e+00 : f32
    %1 = vector.broadcast %cst_0 : f32 to vector<1x256xf32>
    %c5 = arith.constant 5 : index
    %c0 = arith.constant 0 : index
    %2 = vector.load %arg12[%c5, %c0] : memref<80x256xf32, #tpu.memory_space<vmem>>, vector<3x256xf32>
    tpu.vector_store %arg12[%c5, %c0], %0 {strides = array<i32>} : memref<80x256xf32, #tpu.memory_space<vmem>>, vector<3x256xf32>,
    %c72 = arith.constant 72 : index
    %c0_1 = arith.constant 0 : index
    %3 = vector.load %arg12[%c72, %c0_1] : memref<80x256xf32, #tpu.memory_space<vmem>>, vector<3x256xf32>
    tpu.vector_store %arg12[%c72, %c0_1], %0 {strides = array<i32>} : memref<80x256xf32, #tpu.memory_space<vmem>>, vector<3x256xf32>,
    %c12 = arith.constant 12 : index
    %c0_2 = arith.constant 0 : index
    %4 = vector.load %arg12[%c12, %c0_2] : memref<80x256xf32, #tpu.memory_space<vmem>>, vector<1x256xf32>
    tpu.vector_store %arg12[%c12, %c0_2], %1 {strides = array<i32>} : memref<80x256xf32, #tpu.memory_space<vmem>>, vector<1x256xf32>,
    %c16 = arith.constant 16 : index
    %c0_3 = arith.constant 0 : index
    %5 = vector.load %arg12[%c16, %c0_3] : memref<80x256xf32, #tpu.memory_space<vmem>>, vector<1x256xf32>
    tpu.vector_store %arg12[%c16, %c0_3], %1 {strides = array<i32>} : memref<80x256xf32, #tpu.memory_space<vmem>>, vector<1x256xf32>,
    %c24 = arith.constant 24 : index
    %c0_4 = arith.constant 0 : index
    %6 = vector.load %arg12[%c24, %c0_4] : memref<80x256xf32, #tpu.memory_space<vmem>>, vector<1x256xf32>
    tpu.vector_store %arg12[%c24, %c0_4], %1 {strides = array<i32>} : memref<80x256xf32, #tpu.memory_space<vmem>>, vector<1x256xf32>,
    %c40 = arith.constant 40 : index
    %c0_5 = arith.constant 0 : index
    %7 = vector.load %arg12[%c40, %c0_5] : memref<80x256xf32, #tpu.memory_space<vmem>>, vector<1x256xf32>
    tpu.vector_store %arg12[%c40, %c0_5], %1 {strides = array<i32>} : memref<80x256xf32, #tpu.memory_space<vmem>>, vector<1x256xf32>,
    %c0_6 = arith.constant 0 : index
    %c0_7 = arith.constant 0 : index
    %c0_8 = arith.constant 0 : index
    %8 = vector.load %arg1[%c0_6, %c0_7, %c0_8] : memref<1x1x32xf32, #tpu.memory_space<vmem>>, vector<1x1x32xf32>
    %9 = vector.shape_cast %8 : vector<1x1x32xf32> to vector<1x32xf32>
    %c0_9 = arith.constant 0 : index
    %c0_10 = arith.constant 0 : index
    %10 = vector.load %arg2[%c0_9, %c0_10] : memref<32x32xf32, #tpu.memory_space<vmem>>, vector<32x32xf32>
    %cst_11 = arith.constant dense<0.000000e+00> : vector<1x32xf32>
    %11 = tpu.matmul %9, %10, %cst_11 {dimension_numbers = #tpu.dot_dimension_numbers<[1], [0], [0], [1], [0, 0, 1, 1], [], []>} : vector<1x32xf32>, vector<32x32xf32>, vector<1x32xf32> -> vector<1x32xf32>
    %c0_12 = arith.constant 0 : index
    %c0_13 = arith.constant 0 : index
    %12 = vector.load %arg3[%c0_12, %c0_13] : memref<21x192xf32, #tpu.memory_space<vmem>>, vector<1x32xf32>
    %13 = arith.addf %11, %12 : vector<1x32xf32>
    %cst_14 = arith.constant 0.000000e+00 : f32
    %14 = vector.broadcast %cst_14 : f32 to vector<1x32xf32>
    %15 = arith.maximumf %13, %14 : vector<1x32xf32>
    %16 = tpu.concatenate %15, %15 in 1 : vector<1x32xf32>, vector<1x32xf32> -> vector<1x64xf32>
    %17 = vector.shape_cast %16 : vector<1x64xf32> to vector<1x64xf32>
    %18 = vector.broadcast %17 : vector<1x64xf32> to vector<2x64xf32>
    %c0_15 = arith.constant 0 : index
    %c0_16 = arith.constant 0 : index
    %c0_17 = arith.constant 0 : index
    %19 = vector.load %arg7[%c0_15, %c0_16, %c0_17] : memref<3x64x32xf32, #tpu.memory_space<vmem>>, vector<1x64x32xf32>
    %20 = vector.shape_cast %19 : vector<1x64x32xf32> to vector<64x32xf32>
    %cst_18 = arith.constant dense<0.000000e+00> : vector<2x32xf32>
    %21 = tpu.matmul %18, %20, %cst_18 {dimension_numbers = #tpu.dot_dimension_numbers<[1], [0], [0], [1], [0, 0, 1, 1], [], []>} : vector<2x64xf32>, vector<64x32xf32>, vector<2x32xf32> -> vector<2x32xf32>
    %c17 = arith.constant 17 : index
    %c0_19 = arith.constant 0 : index
    %22 = vector.load %arg3[%c17, %c0_19] : memref<21x192xf32, #tpu.memory_space<vmem>>, vector<1x32xf32>
    %23 = vector.broadcast %22 : vector<1x32xf32> to vector<2x32xf32>
    %24 = arith.addf %21, %23 : vector<2x32xf32>
    %c1 = arith.constant 1 : index
    %c0_20 = arith.constant 0 : index
    %c0_21 = arith.constant 0 : index
    %25 = vector.load %arg9[%c1, %c0_20, %c0_21] : memref<4x128x256xf32, #tpu.memory_space<vmem>>, vector<1x32x64xf32>
    %26 = vector.shape_cast %25 : vector<1x32x64xf32> to vector<32x64xf32>
    %cst_22 = arith.constant dense<0.000000e+00> : vector<2x64xf32>
    %27 = tpu.matmul %24, %26, %cst_22 {dimension_numbers = #tpu.dot_dimension_numbers<[1], [0], [0], [1], [0, 0, 1, 1], [], []>} : vector<2x32xf32>, vector<32x64xf32>, vector<2x64xf32> -> vector<2x64xf32>
    %c0_23 = arith.constant 0 : index
    %c0_24 = arith.constant 0 : index
    %28 = vector.load %arg10[%c0_23, %c0_24] : memref<64x32xf32, #tpu.memory_space<vmem>>, vector<4x2xf32>
    %cst_25 = arith.constant dense<0.000000e+00> : vector<4x64xf32>
    %29 = tpu.matmul %28, %27, %cst_25 {dimension_numbers = #tpu.dot_dimension_numbers<[1], [0], [0], [1], [0, 0, 1, 1], [], []>} : vector<4x2xf32>, vector<2x64xf32>, vector<4x64xf32> -> vector<4x64xf32>
    %c0_26 = arith.constant 0 : index
    %c0_27 = arith.constant 0 : index
    %c0_28 = arith.constant 0 : index
    %30 = vector.load %arg9[%c0_26, %c0_27, %c0_28] : memref<4x128x256xf32, #tpu.memory_space<vmem>>, vector<1x64x128xf32>
    %31 = vector.shape_cast %30 : vector<1x64x128xf32> to vector<64x128xf32>
    %cst_29 = arith.constant dense<0.000000e+00> : vector<2x128xf32>
    %32 = tpu.matmul %18, %31, %cst_29 {dimension_numbers = #tpu.dot_dimension_numbers<[1], [0], [0], [1], [0, 0, 1, 1], [], []>} : vector<2x64xf32>, vector<64x128xf32>, vector<2x128xf32> -> vector<2x128xf32>
    %c0_30 = arith.constant 0 : index
    %c0_31 = arith.constant 0 : index
    %33 = vector.load %arg10[%c0_30, %c0_31] : memref<64x32xf32, #tpu.memory_space<vmem>>, vector<4x2xf32>
    %cst_32 = arith.constant dense<0.000000e+00> : vector<4x128xf32>
    %34 = tpu.matmul %33, %32, %cst_32 {dimension_numbers = #tpu.dot_dimension_numbers<[1], [0], [0], [1], [0, 0, 1, 1], [], []>} : vector<4x2xf32>, vector<2x128xf32>, vector<4x128xf32> -> vector<4x128xf32>
    %c8 = arith.constant 8 : index
    %c0_33 = arith.constant 0 : index
    %35 = vector.load %arg12[%c8, %c0_33] : memref<80x256xf32, #tpu.memory_space<vmem>>, vector<4x128xf32>
    tpu.vector_store %arg12[%c8, %c0_33], %34 {strides = array<i32>} : memref<80x256xf32, #tpu.memory_space<vmem>>, vector<4x128xf32>,
    %cst_34 = arith.constant 0.000000e+00 : f32
    %36 = vector.broadcast %cst_34 : f32 to vector<4x64xf32>
    %c7 = arith.constant 7 : index
    %c0_35 = arith.constant 0 : index
    %37 = vector.load %arg12[%c7, %c0_35] : memref<80x256xf32, #tpu.memory_space<vmem>>, vector<4x128xf32>
    %c0_36 = arith.constant 0 : index
    %c0_37 = arith.constant 0 : index
    %c0_38 = arith.constant 0 : index
    %c0_39 = arith.constant 0 : index
    %38 = vector.load %arg4[%c0_36, %c0_37, %c0_38, %c0_39] : memref<3x3x128x64xf32, #tpu.memory_space<vmem>>, vector<1x1x128x64xf32>
    %39 = vector.shape_cast %38 : vector<1x1x128x64xf32> to vector<128x64xf32>
    %cst_40 = arith.constant dense<0.000000e+00> : vector<4x64xf32>
    %40 = tpu.matmul %37, %39, %cst_40 {dimension_numbers = #tpu.dot_dimension_numbers<[1], [0], [0], [1], [0, 0, 1, 1], [], []>} : vector<4x128xf32>, vector<128x64xf32>, vector<4x64xf32> -> vector<4x64xf32>
    %41 = arith.addf %36, %40 : vector<4x64xf32>
    %c8_41 = arith.constant 8 : index
    %c0_42 = arith.constant 0 : index
    %42 = vector.load %arg12[%c8_41, %c0_42] : memref<80x256xf32, #tpu.memory_space<vmem>>, vector<4x128xf32>
    %c0_43 = arith.constant 0 : index
    %c1_44 = arith.constant 1 : index
    %c0_45 = arith.constant 0 : index
    %c0_46 = arith.constant 0 : index
    %43 = vector.load %arg4[%c0_43, %c1_44, %c0_45, %c0_46] : memref<3x3x128x64xf32, #tpu.memory_space<vmem>>, vector<1x1x128x64xf32>
    %44 = vector.shape_cast %43 : vector<1x1x128x64xf32> to vector<128x64xf32>
    %cst_47 = arith.constant dense<0.000000e+00> : vector<4x64xf32>
    %45 = tpu.matmul %42, %44, %cst_47 {dimension_numbers = #tpu.dot_dimension_numbers<[1], [0], [0], [1], [0, 0, 1, 1], [], []>} : vector<4x128xf32>, vector<128x64xf32>, vector<4x64xf32> -> vector<4x64xf32>
    %46 = arith.addf %41, %45 : vector<4x64xf32>
    %c9 = arith.constant 9 : index
    %c0_48 = arith.constant 0 : index
    %47 = vector.load %arg12[%c9, %c0_48] : memref<80x256xf32, #tpu.memory_space<vmem>>, vector<4x128xf32>
    %c0_49 = arith.constant 0 : index
    %c2 = arith.constant 2 : index
    %c0_50 = arith.constant 0 : index
    %c0_51 = arith.constant 0 : index
    %48 = vector.load %arg4[%c0_49, %c2, %c0_50, %c0_51] : memref<3x3x128x64xf32, #tpu.memory_space<vmem>>, vector<1x1x128x64xf32>
    %49 = vector.shape_cast %48 : vector<1x1x128x64xf32> to vector<128x64xf32>
    %cst_52 = arith.constant dense<0.000000e+00> : vector<4x64xf32>
    %50 = tpu.matmul %47, %49, %cst_52 {dimension_numbers = #tpu.dot_dimension_numbers<[1], [0], [0], [1], [0, 0, 1, 1], [], []>} : vector<4x128xf32>, vector<128x64xf32>, vector<4x64xf32> -> vector<4x64xf32>
    %51 = arith.addf %46, %50 : vector<4x64xf32>
    %c1_53 = arith.constant 1 : index
    %c0_54 = arith.constant 0 : index
    %52 = vector.load %arg3[%c1_53, %c0_54] : memref<21x192xf32, #tpu.memory_space<vmem>>, vector<1x64xf32>
    %53 = vector.broadcast %52 : vector<1x64xf32> to vector<4x64xf32>
    %54 = arith.addf %51, %53 : vector<4x64xf32>
    %cst_55 = arith.constant 0.000000e+00 : f32
    %55 = vector.broadcast %cst_55 : f32 to vector<4x64xf32>
    %56 = arith.maximumf %54, %55 : vector<4x64xf32>
    %c8_56 = arith.constant 8 : index
    %c0_57 = arith.constant 0 : index
    %57 = vector.load %arg12[%c8_56, %c0_57] : memref<80x256xf32, #tpu.memory_space<vmem>>, vector<4x64xf32>
    tpu.vector_store %arg12[%c8_56, %c0_57], %56 {strides = array<i32>} : memref<80x256xf32, #tpu.memory_space<vmem>>, vector<4x64xf32>,
    %cst_58 = arith.constant 0.000000e+00 : f32
    %58 = vector.broadcast %cst_58 : f32 to vector<4x64xf32>
    %c7_59 = arith.constant 7 : index
    %c0_60 = arith.constant 0 : index
    %59 = vector.load %arg12[%c7_59, %c0_60] : memref<80x256xf32, #tpu.memory_space<vmem>>, vector<4x64xf32>
    %c0_61 = arith.constant 0 : index
    %c0_62 = arith.constant 0 : index
    %c0_63 = arith.constant 0 : index
    %c0_64 = arith.constant 0 : index
    %60 = vector.load %arg5[%c0_61, %c0_62, %c0_63, %c0_64] : memref<9x3x64x64xf32, #tpu.memory_space<vmem>>, vector<1x1x64x64xf32>
    %61 = vector.shape_cast %60 : vector<1x1x64x64xf32> to vector<64x64xf32>
    %cst_65 = arith.constant dense<0.000000e+00> : vector<4x64xf32>
    %62 = tpu.matmul %59, %61, %cst_65 {dimension_numbers = #tpu.dot_dimension_numbers<[1], [0], [0], [1], [0, 0, 1, 1], [], []>} : vector<4x64xf32>, vector<64x64xf32>, vector<4x64xf32> -> vector<4x64xf32>
    %63 = arith.addf %58, %62 : vector<4x64xf32>
    %c8_66 = arith.constant 8 : index
    %c0_67 = arith.constant 0 : index
    %64 = vector.load %arg12[%c8_66, %c0_67] : memref<80x256xf32, #tpu.memory_space<vmem>>, vector<4x64xf32>
    %c0_68 = arith.constant 0 : index
    %c1_69 = arith.constant 1 : index
    %c0_70 = arith.constant 0 : index
    %c0_71 = arith.constant 0 : index
    %65 = vector.load %arg5[%c0_68, %c1_69, %c0_70, %c0_71] : memref<9x3x64x64xf32, #tpu.memory_space<vmem>>, vector<1x1x64x64xf32>
    %66 = vector.shape_cast %65 : vector<1x1x64x64xf32> to vector<64x64xf32>
    %cst_72 = arith.constant dense<0.000000e+00> : vector<4x64xf32>
    %67 = tpu.matmul %64, %66, %cst_72 {dimension_numbers = #tpu.dot_dimension_numbers<[1], [0], [0], [1], [0, 0, 1, 1], [], []>} : vector<4x64xf32>, vector<64x64xf32>, vector<4x64xf32> -> vector<4x64xf32>
    %68 = arith.addf %63, %67 : vector<4x64xf32>
    %c9_73 = arith.constant 9 : index
    %c0_74 = arith.constant 0 : index
    %69 = vector.load %arg12[%c9_73, %c0_74] : memref<80x256xf32, #tpu.memory_space<vmem>>, vector<4x64xf32>
    %c0_75 = arith.constant 0 : index
    %c2_76 = arith.constant 2 : index
    %c0_77 = arith.constant 0 : index
    %c0_78 = arith.constant 0 : index
    %70 = vector.load %arg5[%c0_75, %c2_76, %c0_77, %c0_78] : memref<9x3x64x64xf32, #tpu.memory_space<vmem>>, vector<1x1x64x64xf32>
    %71 = vector.shape_cast %70 : vector<1x1x64x64xf32> to vector<64x64xf32>
    %cst_79 = arith.constant dense<0.000000e+00> : vector<4x64xf32>
    %72 = tpu.matmul %69, %71, %cst_79 {dimension_numbers = #tpu.dot_dimension_numbers<[1], [0], [0], [1], [0, 0, 1, 1], [], []>} : vector<4x64xf32>, vector<64x64xf32>, vector<4x64xf32> -> vector<4x64xf32>
    %73 = arith.addf %68, %72 : vector<4x64xf32>
    %c2_80 = arith.constant 2 : index
    %c0_81 = arith.constant 0 : index
    %74 = vector.load %arg3[%c2_80, %c0_81] : memref<21x192xf32, #tpu.memory_space<vmem>>, vector<1x64xf32>
    %75 = vector.broadcast %74 : vector<1x64xf32> to vector<4x64xf32>
    %76 = arith.addf %73, %75 : vector<4x64xf32>
    %77 = arith.addf %76, %29 : vector<4x64xf32>
    %cst_82 = arith.constant 0.000000e+00 : f32
    %78 = vector.broadcast %cst_82 : f32 to vector<4x64xf32>
    %79 = arith.maximumf %77, %78 : vector<4x64xf32>
    %c8_83 = arith.constant 8 : index
    %c0_84 = arith.constant 0 : index
    %80 = vector.load %arg12[%c8_83, %c0_84] : memref<80x256xf32, #tpu.memory_space<vmem>>, vector<4x64xf32>
    tpu.vector_store %arg12[%c8_83, %c0_84], %79 {strides = array<i32>} : memref<80x256xf32, #tpu.memory_space<vmem>>, vector<4x64xf32>,
    %cst_85 = arith.constant 0.000000e+00 : f32
    %81 = vector.broadcast %cst_85 : f32 to vector<4x64xf32>
    %c7_86 = arith.constant 7 : index
    %c0_87 = arith.constant 0 : index
    %82 = vector.load %arg12[%c7_86, %c0_87] : memref<80x256xf32, #tpu.memory_space<vmem>>, vector<4x64xf32>
    %c1_88 = arith.constant 1 : index
    %c0_89 = arith.constant 0 : index
    %c0_90 = arith.constant 0 : index
    %c0_91 = arith.constant 0 : index
    %83 = vector.load %arg5[%c1_88, %c0_89, %c0_90, %c0_91] : memref<9x3x64x64xf32, #tpu.memory_space<vmem>>, vector<1x1x64x64xf32>
    %84 = vector.shape_cast %83 : vector<1x1x64x64xf32> to vector<64x64xf32>
    %cst_92 = arith.constant dense<0.000000e+00> : vector<4x64xf32>
    %85 = tpu.matmul %82, %84, %cst_92 {dimension_numbers = #tpu.dot_dimension_numbers<[1], [0], [0], [1], [0, 0, 1, 1], [], []>} : vector<4x64xf32>, vector<64x64xf32>, vector<4x64xf32> -> vector<4x64xf32>
    %86 = arith.addf %81, %85 : vector<4x64xf32>
    %c8_93 = arith.constant 8 : index
    %c0_94 = arith.constant 0 : index
    %87 = vector.load %arg12[%c8_93, %c0_94] : memref<80x256xf32, #tpu.memory_space<vmem>>, vector<4x64xf32>
    %c1_95 = arith.constant 1 : index
    %c1_96 = arith.constant 1 : index
    %c0_97 = arith.constant 0 : index
    %c0_98 = arith.constant 0 : index
    %88 = vector.load %arg5[%c1_95, %c1_96, %c0_97, %c0_98] : memref<9x3x64x64xf32, #tpu.memory_space<vmem>>, vector<1x1x64x64xf32>
    %89 = vector.shape_cast %88 : vector<1x1x64x64xf32> to vector<64x64xf32>
    %cst_99 = arith.constant dense<0.000000e+00> : vector<4x64xf32>
    %90 = tpu.matmul %87, %89, %cst_99 {dimension_numbers = #tpu.dot_dimension_numbers<[1], [0], [0], [1], [0, 0, 1, 1], [], []>} : vector<4x64xf32>, vector<64x64xf32>, vector<4x64xf32> -> vector<4x64xf32>
    %91 = arith.addf %86, %90 : vector<4x64xf32>
    %c9_100 = arith.constant 9 : index
    %c0_101 = arith.constant 0 : index
    %92 = vector.load %arg12[%c9_100, %c0_101] : memref<80x256xf32, #tpu.memory_space<vmem>>, vector<4x64xf32>
    %c1_102 = arith.constant 1 : index
    %c2_103 = arith.constant 2 : index
    %c0_104 = arith.constant 0 : index
    %c0_105 = arith.constant 0 : index
    %93 = vector.load %arg5[%c1_102, %c2_103, %c0_104, %c0_105] : memref<9x3x64x64xf32, #tpu.memory_space<vmem>>, vector<1x1x64x64xf32>
    %94 = vector.shape_cast %93 : vector<1x1x64x64xf32> to vector<64x64xf32>
    %cst_106 = arith.constant dense<0.000000e+00> : vector<4x64xf32>
    %95 = tpu.matmul %92, %94, %cst_106 {dimension_numbers = #tpu.dot_dimension_numbers<[1], [0], [0], [1], [0, 0, 1, 1], [], []>} : vector<4x64xf32>, vector<64x64xf32>, vector<4x64xf32> -> vector<4x64xf32>
    %96 = arith.addf %91, %95 : vector<4x64xf32>
    %c3 = arith.constant 3 : index
    %c0_107 = arith.constant 0 : index
    %97 = vector.load %arg3[%c3, %c0_107] : memref<21x192xf32, #tpu.memory_space<vmem>>, vector<1x64xf32>
    %98 = vector.broadcast %97 : vector<1x64xf32> to vector<4x64xf32>
    %99 = arith.addf %96, %98 : vector<4x64xf32>
    %cst_108 = arith.constant 0.000000e+00 : f32
    %100 = vector.broadcast %cst_108 : f32 to vector<4x64xf32>
    %101 = arith.maximumf %99, %100 : vector<4x64xf32>
    %c8_109 = arith.constant 8 : index
    %c0_110 = arith.constant 0 : index
    %102 = vector.load %arg12[%c8_109, %c0_110] : memref<80x256xf32, #tpu.memory_space<vmem>>, vector<4x64xf32>
    tpu.vector_store %arg12[%c8_109, %c0_110], %101 {strides = array<i32>} : memref<80x256xf32, #tpu.memory_space<vmem>>, vector<4x64xf32>,
    %cst_111 = arith.constant 0.000000e+00 : f32
    %103 = vector.broadcast %cst_111 : f32 to vector<4x64xf32>
    %c7_112 = arith.constant 7 : index
    %c0_113 = arith.constant 0 : index
    %104 = vector.load %arg12[%c7_112, %c0_113] : memref<80x256xf32, #tpu.memory_space<vmem>>, vector<4x64xf32>
    %c2_114 = arith.constant 2 : index
    %c0_115 = arith.constant 0 : index
    %c0_116 = arith.constant 0 : index
    %c0_117 = arith.constant 0 : index
    %105 = vector.load %arg5[%c2_114, %c0_115, %c0_116, %c0_117] : memref<9x3x64x64xf32, #tpu.memory_space<vmem>>, vector<1x1x64x64xf32>
    %106 = vector.shape_cast %105 : vector<1x1x64x64xf32> to vector<64x64xf32>
    %cst_118 = arith.constant dense<0.000000e+00> : vector<4x64xf32>
    %107 = tpu.matmul %104, %106, %cst_118 {dimension_numbers = #tpu.dot_dimension_numbers<[1], [0], [0], [1], [0, 0, 1, 1], [], []>} : vector<4x64xf32>, vector<64x64xf32>, vector<4x64xf32> -> vector<4x64xf32>
    %108 = arith.addf %103, %107 : vector<4x64xf32>
    %c8_119 = arith.constant 8 : index
    %c0_120 = arith.constant 0 : index
    %109 = vector.load %arg12[%c8_119, %c0_120] : memref<80x256xf32, #tpu.memory_space<vmem>>, vector<4x64xf32>
    %c2_121 = arith.constant 2 : index
    %c1_122 = arith.constant 1 : index
    %c0_123 = arith.constant 0 : index
    %c0_124 = arith.constant 0 : index
    %110 = vector.load %arg5[%c2_121, %c1_122, %c0_123, %c0_124] : memref<9x3x64x64xf32, #tpu.memory_space<vmem>>, vector<1x1x64x64xf32>
    %111 = vector.shape_cast %110 : vector<1x1x64x64xf32> to vector<64x64xf32>
    %cst_125 = arith.constant dense<0.000000e+00> : vector<4x64xf32>
    %112 = tpu.matmul %109, %111, %cst_125 {dimension_numbers = #tpu.dot_dimension_numbers<[1], [0], [0], [1], [0, 0, 1, 1], [], []>} : vector<4x64xf32>, vector<64x64xf32>, vector<4x64xf32> -> vector<4x64xf32>
    %113 = arith.addf %108, %112 : vector<4x64xf32>
    %c9_126 = arith.constant 9 : index
    %c0_127 = arith.constant 0 : index
    %114 = vector.load %arg12[%c9_126, %c0_127] : memref<80x256xf32, #tpu.memory_space<vmem>>, vector<4x64xf32>
    %c2_128 = arith.constant 2 : index
    %c2_129 = arith.constant 2 : index
    %c0_130 = arith.constant 0 : index
    %c0_131 = arith.constant 0 : index
    %115 = vector.load %arg5[%c2_128, %c2_129, %c0_130, %c0_131] : memref<9x3x64x64xf32, #tpu.memory_space<vmem>>, vector<1x1x64x64xf32>
    %116 = vector.shape_cast %115 : vector<1x1x64x64xf32> to vector<64x64xf32>
    %cst_132 = arith.constant dense<0.000000e+00> : vector<4x64xf32>
    %117 = tpu.matmul %114, %116, %cst_132 {dimension_numbers = #tpu.dot_dimension_numbers<[1], [0], [0], [1], [0, 0, 1, 1], [], []>} : vector<4x64xf32>, vector<64x64xf32>, vector<4x64xf32> -> vector<4x64xf32>
    %118 = arith.addf %113, %117 : vector<4x64xf32>
    %c4 = arith.constant 4 : index
    %c0_133 = arith.constant 0 : index
    %119 = vector.load %arg3[%c4, %c0_133] : memref<21x192xf32, #tpu.memory_space<vmem>>, vector<1x64xf32>
    %120 = vector.broadcast %119 : vector<1x64xf32> to vector<4x64xf32>
    %121 = arith.addf %118, %120 : vector<4x64xf32>
    %122 = arith.addf %121, %79 : vector<4x64xf32>
    %cst_134 = arith.constant 0.000000e+00 : f32
    %123 = vector.broadcast %cst_134 : f32 to vector<4x64xf32>
    %124 = arith.maximumf %122, %123 : vector<4x64xf32>
    %c1_135 = arith.constant 1 : index
    %c0_136 = arith.constant 0 : index
    %c0_137 = arith.constant 0 : index
    %125 = vector.load %arg7[%c1_135, %c0_136, %c0_137] : memref<3x64x32xf32, #tpu.memory_space<vmem>>, vector<1x64x32xf32>
    %126 = vector.shape_cast %125 : vector<1x64x32xf32> to vector<64x32xf32>
    %cst_138 = arith.constant dense<0.000000e+00> : vector<4x32xf32>
    %127 = tpu.matmul %124, %126, %cst_138 {dimension_numbers = #tpu.dot_dimension_numbers<[1], [0], [0], [1], [0, 0, 1, 1], [], []>} : vector<4x64xf32>, vector<64x32xf32>, vector<4x32xf32> -> vector<4x32xf32>
    %c18 = arith.constant 18 : index
    %c0_139 = arith.constant 0 : index
    %128 = vector.load %arg3[%c18, %c0_139] : memref<21x192xf32, #tpu.memory_space<vmem>>, vector<1x32xf32>
    %129 = vector.broadcast %128 : vector<1x32xf32> to vector<4x32xf32>
    %130 = arith.addf %127, %129 : vector<4x32xf32>
    %c2_140 = arith.constant 2 : index
    %c0_141 = arith.constant 0 : index
    %c0_142 = arith.constant 0 : index
    %131 = vector.load %arg9[%c2_140, %c0_141, %c0_142] : memref<4x128x256xf32, #tpu.memory_space<vmem>>, vector<1x32x64xf32>
    %132 = vector.shape_cast %131 : vector<1x32x64xf32> to vector<32x64xf32>
    %cst_143 = arith.constant dense<0.000000e+00> : vector<4x64xf32>
    %133 = tpu.matmul %130, %132, %cst_143 {dimension_numbers = #tpu.dot_dimension_numbers<[1], [0], [0], [1], [0, 0, 1, 1], [], []>} : vector<4x32xf32>, vector<32x64xf32>, vector<4x64xf32> -> vector<4x64xf32>
    %c0_144 = arith.constant 0 : index
    %c0_145 = arith.constant 0 : index
    %134 = vector.load %arg10[%c0_144, %c0_145] : memref<64x32xf32, #tpu.memory_space<vmem>>, vector<8x4xf32>
    %cst_146 = arith.constant dense<0.000000e+00> : vector<8x64xf32>
    %135 = tpu.matmul %134, %133, %cst_146 {dimension_numbers = #tpu.dot_dimension_numbers<[1], [0], [0], [1], [0, 0, 1, 1], [], []>} : vector<8x4xf32>, vector<4x64xf32>, vector<8x64xf32> -> vector<8x64xf32>
    %c1_147 = arith.constant 1 : index
    %c0_148 = arith.constant 0 : index
    %c0_149 = arith.constant 0 : index
    %136 = vector.load %arg9[%c1_147, %c0_148, %c0_149] : memref<4x128x256xf32, #tpu.memory_space<vmem>>, vector<1x64x128xf32>
    %137 = vector.shape_cast %136 : vector<1x64x128xf32> to vector<64x128xf32>
    %cst_150 = arith.constant dense<0.000000e+00> : vector<4x128xf32>
    %138 = tpu.matmul %124, %137, %cst_150 {dimension_numbers = #tpu.dot_dimension_numbers<[1], [0], [0], [1], [0, 0, 1, 1], [], []>} : vector<4x64xf32>, vector<64x128xf32>, vector<4x128xf32> -> vector<4x128xf32>
    %c0_151 = arith.constant 0 : index
    %c0_152 = arith.constant 0 : index
    %139 = vector.load %arg10[%c0_151, %c0_152] : memref<64x32xf32, #tpu.memory_space<vmem>>, vector<8x4xf32>
    %cst_153 = arith.constant dense<0.000000e+00> : vector<8x128xf32>
    %140 = tpu.matmul %139, %138, %cst_153 {dimension_numbers = #tpu.dot_dimension_numbers<[1], [0], [0], [1], [0, 0, 1, 1], [], []>} : vector<8x4xf32>, vector<4x128xf32>, vector<8x128xf32> -> vector<8x128xf32>
    %c8_154 = arith.constant 8 : index
    %c0_155 = arith.constant 0 : index
    %141 = vector.load %arg12[%c8_154, %c0_155] : memref<80x256xf32, #tpu.memory_space<vmem>>, vector<8x128xf32>
    tpu.vector_store %arg12[%c8_154, %c0_155], %140 {strides = array<i32>} : memref<80x256xf32, #tpu.memory_space<vmem>>, vector<8x128xf32>,
    %cst_156 = arith.constant 0.000000e+00 : f32
    %142 = vector.broadcast %cst_156 : f32 to vector<8x64xf32>
    %c7_157 = arith.constant 7 : index
    %c0_158 = arith.constant 0 : index
    %143 = vector.load %arg12[%c7_157, %c0_158] : memref<80x256xf32, #tpu.memory_space<vmem>>, vector<8x128xf32>
    %c1_159 = arith.constant 1 : index
    %c0_160 = arith.constant 0 : index
    %c0_161 = arith.constant 0 : index
    %c0_162 = arith.constant 0 : index
    %144 = vector.load %arg4[%c1_159, %c0_160, %c0_161, %c0_162] : memref<3x3x128x64xf32, #tpu.memory_space<vmem>>, vector<1x1x128x64xf32>
    %145 = vector.shape_cast %144 : vector<1x1x128x64xf32> to vector<128x64xf32>
    %cst_163 = arith.constant dense<0.000000e+00> : vector<8x64xf32>
    %146 = tpu.matmul %143, %145, %cst_163 {dimension_numbers = #tpu.dot_dimension_numbers<[1], [0], [0], [1], [0, 0, 1, 1], [], []>} : vector<8x128xf32>, vector<128x64xf32>, vector<8x64xf32> -> vector<8x64xf32>
    %147 = arith.addf %142, %146 : vector<8x64xf32>
    %c8_164 = arith.constant 8 : index
    %c0_165 = arith.constant 0 : index
    %148 = vector.load %arg12[%c8_164, %c0_165] : memref<80x256xf32, #tpu.memory_space<vmem>>, vector<8x128xf32>
    %c1_166 = arith.constant 1 : index
    %c1_167 = arith.constant 1 : index
    %c0_168 = arith.constant 0 : index
    %c0_169 = arith.constant 0 : index
    %149 = vector.load %arg4[%c1_166, %c1_167, %c0_168, %c0_169] : memref<3x3x128x64xf32, #tpu.memory_space<vmem>>, vector<1x1x128x64xf32>
    %150 = vector.shape_cast %149 : vector<1x1x128x64xf32> to vector<128x64xf32>
    %cst_170 = arith.constant dense<0.000000e+00> : vector<8x64xf32>
    %151 = tpu.matmul %148, %150, %cst_170 {dimension_numbers = #tpu.dot_dimension_numbers<[1], [0], [0], [1], [0, 0, 1, 1], [], []>} : vector<8x128xf32>, vector<128x64xf32>, vector<8x64xf32> -> vector<8x64xf32>
    %152 = arith.addf %147, %151 : vector<8x64xf32>
    %c9_171 = arith.constant 9 : index
    %c0_172 = arith.constant 0 : index
    %153 = vector.load %arg12[%c9_171, %c0_172] : memref<80x256xf32, #tpu.memory_space<vmem>>, vector<8x128xf32>
    %c1_173 = arith.constant 1 : index
    %c2_174 = arith.constant 2 : index
    %c0_175 = arith.constant 0 : index
    %c0_176 = arith.constant 0 : index
    %154 = vector.load %arg4[%c1_173, %c2_174, %c0_175, %c0_176] : memref<3x3x128x64xf32, #tpu.memory_space<vmem>>, vector<1x1x128x64xf32>
    %155 = vector.shape_cast %154 : vector<1x1x128x64xf32> to vector<128x64xf32>
    %cst_177 = arith.constant dense<0.000000e+00> : vector<8x64xf32>
    %156 = tpu.matmul %153, %155, %cst_177 {dimension_numbers = #tpu.dot_dimension_numbers<[1], [0], [0], [1], [0, 0, 1, 1], [], []>} : vector<8x128xf32>, vector<128x64xf32>, vector<8x64xf32> -> vector<8x64xf32>
    %157 = arith.addf %152, %156 : vector<8x64xf32>
    %c5_178 = arith.constant 5 : index
    %c0_179 = arith.constant 0 : index
    %158 = vector.load %arg3[%c5_178, %c0_179] : memref<21x192xf32, #tpu.memory_space<vmem>>, vector<1x64xf32>
    %159 = vector.broadcast %158 : vector<1x64xf32> to vector<8x64xf32>
    %160 = arith.addf %157, %159 : vector<8x64xf32>
    %cst_180 = arith.constant 0.000000e+00 : f32
    %161 = vector.broadcast %cst_180 : f32 to vector<8x64xf32>
    %162 = arith.maximumf %160, %161 : vector<8x64xf32>
    %c8_181 = arith.constant 8 : index
    %c0_182 = arith.constant 0 : index
    %163 = vector.load %arg12[%c8_181, %c0_182] : memref<80x256xf32, #tpu.memory_space<vmem>>, vector<8x64xf32>
    tpu.vector_store %arg12[%c8_181, %c0_182], %162 {strides = array<i32>} : memref<80x256xf32, #tpu.memory_space<vmem>>, vector<8x64xf32>,
    %cst_183 = arith.constant 0.000000e+00 : f32
    %164 = vector.broadcast %cst_183 : f32 to vector<8x64xf32>
    %c7_184 = arith.constant 7 : index
    %c0_185 = arith.constant 0 : index
    %165 = vector.load %arg12[%c7_184, %c0_185] : memref<80x256xf32, #tpu.memory_space<vmem>>, vector<8x64xf32>
    %c3_186 = arith.constant 3 : index
    %c0_187 = arith.constant 0 : index
    %c0_188 = arith.constant 0 : index
    %c0_189 = arith.constant 0 : index
    %166 = vector.load %arg5[%c3_186, %c0_187, %c0_188, %c0_189] : memref<9x3x64x64xf32, #tpu.memory_space<vmem>>, vector<1x1x64x64xf32>
    %167 = vector.shape_cast %166 : vector<1x1x64x64xf32> to vector<64x64xf32>
    %cst_190 = arith.constant dense<0.000000e+00> : vector<8x64xf32>
    %168 = tpu.matmul %165, %167, %cst_190 {dimension_numbers = #tpu.dot_dimension_numbers<[1], [0], [0], [1], [0, 0, 1, 1], [], []>} : vector<8x64xf32>, vector<64x64xf32>, vector<8x64xf32> -> vector<8x64xf32>
    %169 = arith.addf %164, %168 : vector<8x64xf32>
    %c8_191 = arith.constant 8 : index
    %c0_192 = arith.constant 0 : index
    %170 = vector.load %arg12[%c8_191, %c0_192] : memref<80x256xf32, #tpu.memory_space<vmem>>, vector<8x64xf32>
    %c3_193 = arith.constant 3 : index
    %c1_194 = arith.constant 1 : index
    %c0_195 = arith.constant 0 : index
    %c0_196 = arith.constant 0 : index
    %171 = vector.load %arg5[%c3_193, %c1_194, %c0_195, %c0_196] : memref<9x3x64x64xf32, #tpu.memory_space<vmem>>, vector<1x1x64x64xf32>
    %172 = vector.shape_cast %171 : vector<1x1x64x64xf32> to vector<64x64xf32>
    %cst_197 = arith.constant dense<0.000000e+00> : vector<8x64xf32>
    %173 = tpu.matmul %170, %172, %cst_197 {dimension_numbers = #tpu.dot_dimension_numbers<[1], [0], [0], [1], [0, 0, 1, 1], [], []>} : vector<8x64xf32>, vector<64x64xf32>, vector<8x64xf32> -> vector<8x64xf32>
    %174 = arith.addf %169, %173 : vector<8x64xf32>
    %c9_198 = arith.constant 9 : index
    %c0_199 = arith.constant 0 : index
    %175 = vector.load %arg12[%c9_198, %c0_199] : memref<80x256xf32, #tpu.memory_space<vmem>>, vector<8x64xf32>
    %c3_200 = arith.constant 3 : index
    %c2_201 = arith.constant 2 : index
    %c0_202 = arith.constant 0 : index
    %c0_203 = arith.constant 0 : index
    %176 = vector.load %arg5[%c3_200, %c2_201, %c0_202, %c0_203] : memref<9x3x64x64xf32, #tpu.memory_space<vmem>>, vector<1x1x64x64xf32>
    %177 = vector.shape_cast %176 : vector<1x1x64x64xf32> to vector<64x64xf32>
    %cst_204 = arith.constant dense<0.000000e+00> : vector<8x64xf32>
    %178 = tpu.matmul %175, %177, %cst_204 {dimension_numbers = #tpu.dot_dimension_numbers<[1], [0], [0], [1], [0, 0, 1, 1], [], []>} : vector<8x64xf32>, vector<64x64xf32>, vector<8x64xf32> -> vector<8x64xf32>
    %179 = arith.addf %174, %178 : vector<8x64xf32>
    %c6 = arith.constant 6 : index
    %c0_205 = arith.constant 0 : index
    %180 = vector.load %arg3[%c6, %c0_205] : memref<21x192xf32, #tpu.memory_space<vmem>>, vector<1x64xf32>
    %181 = vector.broadcast %180 : vector<1x64xf32> to vector<8x64xf32>
    %182 = arith.addf %179, %181 : vector<8x64xf32>
    %183 = arith.addf %182, %135 : vector<8x64xf32>
    %cst_206 = arith.constant 0.000000e+00 : f32
    %184 = vector.broadcast %cst_206 : f32 to vector<8x64xf32>
    %185 = arith.maximumf %183, %184 : vector<8x64xf32>
    %c8_207 = arith.constant 8 : index
    %c0_208 = arith.constant 0 : index
    %186 = vector.load %arg12[%c8_207, %c0_208] : memref<80x256xf32, #tpu.memory_space<vmem>>, vector<8x64xf32>
    tpu.vector_store %arg12[%c8_207, %c0_208], %185 {strides = array<i32>} : memref<80x256xf32, #tpu.memory_space<vmem>>, vector<8x64xf32>,
    %cst_209 = arith.constant 0.000000e+00 : f32
    %187 = vector.broadcast %cst_209 : f32 to vector<8x64xf32>
    %c7_210 = arith.constant 7 : index
    %c0_211 = arith.constant 0 : index
    %188 = vector.load %arg12[%c7_210, %c0_211] : memref<80x256xf32, #tpu.memory_space<vmem>>, vector<8x64xf32>
    %c4_212 = arith.constant 4 : index
    %c0_213 = arith.constant 0 : index
    %c0_214 = arith.constant 0 : index
    %c0_215 = arith.constant 0 : index
    %189 = vector.load %arg5[%c4_212, %c0_213, %c0_214, %c0_215] : memref<9x3x64x64xf32, #tpu.memory_space<vmem>>, vector<1x1x64x64xf32>
    %190 = vector.shape_cast %189 : vector<1x1x64x64xf32> to vector<64x64xf32>
    %cst_216 = arith.constant dense<0.000000e+00> : vector<8x64xf32>
    %191 = tpu.matmul %188, %190, %cst_216 {dimension_numbers = #tpu.dot_dimension_numbers<[1], [0], [0], [1], [0, 0, 1, 1], [], []>} : vector<8x64xf32>, vector<64x64xf32>, vector<8x64xf32> -> vector<8x64xf32>
    %192 = arith.addf %187, %191 : vector<8x64xf32>
    %c8_217 = arith.constant 8 : index
    %c0_218 = arith.constant 0 : index
    %193 = vector.load %arg12[%c8_217, %c0_218] : memref<80x256xf32, #tpu.memory_space<vmem>>, vector<8x64xf32>
    %c4_219 = arith.constant 4 : index
    %c1_220 = arith.constant 1 : index
    %c0_221 = arith.constant 0 : index
    %c0_222 = arith.constant 0 : index
    %194 = vector.load %arg5[%c4_219, %c1_220, %c0_221, %c0_222] : memref<9x3x64x64xf32, #tpu.memory_space<vmem>>, vector<1x1x64x64xf32>
    %195 = vector.shape_cast %194 : vector<1x1x64x64xf32> to vector<64x64xf32>
    %cst_223 = arith.constant dense<0.000000e+00> : vector<8x64xf32>
    %196 = tpu.matmul %193, %195, %cst_223 {dimension_numbers = #tpu.dot_dimension_numbers<[1], [0], [0], [1], [0, 0, 1, 1], [], []>} : vector<8x64xf32>, vector<64x64xf32>, vector<8x64xf32> -> vector<8x64xf32>
    %197 = arith.addf %192, %196 : vector<8x64xf32>
    %c9_224 = arith.constant 9 : index
    %c0_225 = arith.constant 0 : index
    %198 = vector.load %arg12[%c9_224, %c0_225] : memref<80x256xf32, #tpu.memory_space<vmem>>, vector<8x64xf32>
    %c4_226 = arith.constant 4 : index
    %c2_227 = arith.constant 2 : index
    %c0_228 = arith.constant 0 : index
    %c0_229 = arith.constant 0 : index
    %199 = vector.load %arg5[%c4_226, %c2_227, %c0_228, %c0_229] : memref<9x3x64x64xf32, #tpu.memory_space<vmem>>, vector<1x1x64x64xf32>
    %200 = vector.shape_cast %199 : vector<1x1x64x64xf32> to vector<64x64xf32>
    %cst_230 = arith.constant dense<0.000000e+00> : vector<8x64xf32>
    %201 = tpu.matmul %198, %200, %cst_230 {dimension_numbers = #tpu.dot_dimension_numbers<[1], [0], [0], [1], [0, 0, 1, 1], [], []>} : vector<8x64xf32>, vector<64x64xf32>, vector<8x64xf32> -> vector<8x64xf32>
    %202 = arith.addf %197, %201 : vector<8x64xf32>
    %c7_231 = arith.constant 7 : index
    %c0_232 = arith.constant 0 : index
    %203 = vector.load %arg3[%c7_231, %c0_232] : memref<21x192xf32, #tpu.memory_space<vmem>>, vector<1x64xf32>
    %204 = vector.broadcast %203 : vector<1x64xf32> to vector<8x64xf32>
    %205 = arith.addf %202, %204 : vector<8x64xf32>
    %cst_233 = arith.constant 0.000000e+00 : f32
    %206 = vector.broadcast %cst_233 : f32 to vector<8x64xf32>
    %207 = arith.maximumf %205, %206 : vector<8x64xf32>
    %c8_234 = arith.constant 8 : index
    %c0_235 = arith.constant 0 : index
    %208 = vector.load %arg12[%c8_234, %c0_235] : memref<80x256xf32, #tpu.memory_space<vmem>>, vector<8x64xf32>
    tpu.vector_store %arg12[%c8_234, %c0_235], %207 {strides = array<i32>} : memref<80x256xf32, #tpu.memory_space<vmem>>, vector<8x64xf32>,
    %cst_236 = arith.constant 0.000000e+00 : f32
    %209 = vector.broadcast %cst_236 : f32 to vector<8x64xf32>
    %c7_237 = arith.constant 7 : index
    %c0_238 = arith.constant 0 : index
    %210 = vector.load %arg12[%c7_237, %c0_238] : memref<80x256xf32, #tpu.memory_space<vmem>>, vector<8x64xf32>
    %c5_239 = arith.constant 5 : index
    %c0_240 = arith.constant 0 : index
    %c0_241 = arith.constant 0 : index
    %c0_242 = arith.constant 0 : index
    %211 = vector.load %arg5[%c5_239, %c0_240, %c0_241, %c0_242] : memref<9x3x64x64xf32, #tpu.memory_space<vmem>>, vector<1x1x64x64xf32>
    %212 = vector.shape_cast %211 : vector<1x1x64x64xf32> to vector<64x64xf32>
    %cst_243 = arith.constant dense<0.000000e+00> : vector<8x64xf32>
    %213 = tpu.matmul %210, %212, %cst_243 {dimension_numbers = #tpu.dot_dimension_numbers<[1], [0], [0], [1], [0, 0, 1, 1], [], []>} : vector<8x64xf32>, vector<64x64xf32>, vector<8x64xf32> -> vector<8x64xf32>
    %214 = arith.addf %209, %213 : vector<8x64xf32>
    %c8_244 = arith.constant 8 : index
    %c0_245 = arith.constant 0 : index
    %215 = vector.load %arg12[%c8_244, %c0_245] : memref<80x256xf32, #tpu.memory_space<vmem>>, vector<8x64xf32>
    %c5_246 = arith.constant 5 : index
    %c1_247 = arith.constant 1 : index
    %c0_248 = arith.constant 0 : index
    %c0_249 = arith.constant 0 : index
    %216 = vector.load %arg5[%c5_246, %c1_247, %c0_248, %c0_249] : memref<9x3x64x64xf32, #tpu.memory_space<vmem>>, vector<1x1x64x64xf32>
    %217 = vector.shape_cast %216 : vector<1x1x64x64xf32> to vector<64x64xf32>
    %cst_250 = arith.constant dense<0.000000e+00> : vector<8x64xf32>
    %218 = tpu.matmul %215, %217, %cst_250 {dimension_numbers = #tpu.dot_dimension_numbers<[1], [0], [0], [1], [0, 0, 1, 1], [], []>} : vector<8x64xf32>, vector<64x64xf32>, vector<8x64xf32> -> vector<8x64xf32>
    %219 = arith.addf %214, %218 : vector<8x64xf32>
    %c9_251 = arith.constant 9 : index
    %c0_252 = arith.constant 0 : index
    %220 = vector.load %arg12[%c9_251, %c0_252] : memref<80x256xf32, #tpu.memory_space<vmem>>, vector<8x64xf32>
    %c5_253 = arith.constant 5 : index
    %c2_254 = arith.constant 2 : index
    %c0_255 = arith.constant 0 : index
    %c0_256 = arith.constant 0 : index
    %221 = vector.load %arg5[%c5_253, %c2_254, %c0_255, %c0_256] : memref<9x3x64x64xf32, #tpu.memory_space<vmem>>, vector<1x1x64x64xf32>
    %222 = vector.shape_cast %221 : vector<1x1x64x64xf32> to vector<64x64xf32>
    %cst_257 = arith.constant dense<0.000000e+00> : vector<8x64xf32>
    %223 = tpu.matmul %220, %222, %cst_257 {dimension_numbers = #tpu.dot_dimension_numbers<[1], [0], [0], [1], [0, 0, 1, 1], [], []>} : vector<8x64xf32>, vector<64x64xf32>, vector<8x64xf32> -> vector<8x64xf32>
    %224 = arith.addf %219, %223 : vector<8x64xf32>
    %c8_258 = arith.constant 8 : index
    %c0_259 = arith.constant 0 : index
    %225 = vector.load %arg3[%c8_258, %c0_259] : memref<21x192xf32, #tpu.memory_space<vmem>>, vector<1x64xf32>
    %226 = vector.broadcast %225 : vector<1x64xf32> to vector<8x64xf32>
    %227 = arith.addf %224, %226 : vector<8x64xf32>
    %228 = arith.addf %227, %185 : vector<8x64xf32>
    %cst_260 = arith.constant 0.000000e+00 : f32
    %229 = vector.broadcast %cst_260 : f32 to vector<8x64xf32>
    %230 = arith.maximumf %228, %229 : vector<8x64xf32>
    %c2_261 = arith.constant 2 : index
    %c0_262 = arith.constant 0 : index
    %c0_263 = arith.constant 0 : index
    %231 = vector.load %arg7[%c2_261, %c0_262, %c0_263] : memref<3x64x32xf32, #tpu.memory_space<vmem>>, vector<1x64x32xf32>
    %232 = vector.shape_cast %231 : vector<1x64x32xf32> to vector<64x32xf32>
    %cst_264 = arith.constant dense<0.000000e+00> : vector<8x32xf32>
    %233 = tpu.matmul %230, %232, %cst_264 {dimension_numbers = #tpu.dot_dimension_numbers<[1], [0], [0], [1], [0, 0, 1, 1], [], []>} : vector<8x64xf32>, vector<64x32xf32>, vector<8x32xf32> -> vector<8x32xf32>
    %c19 = arith.constant 19 : index
    %c0_265 = arith.constant 0 : index
    %234 = vector.load %arg3[%c19, %c0_265] : memref<21x192xf32, #tpu.memory_space<vmem>>, vector<1x32xf32>
    %235 = vector.broadcast %234 : vector<1x32xf32> to vector<8x32xf32>
    %236 = arith.addf %233, %235 : vector<8x32xf32>
    %c3_266 = arith.constant 3 : index
    %c0_267 = arith.constant 0 : index
    %c0_268 = arith.constant 0 : index
    %237 = vector.load %arg9[%c3_266, %c0_267, %c0_268] : memref<4x128x256xf32, #tpu.memory_space<vmem>>, vector<1x32x64xf32>
    %238 = vector.shape_cast %237 : vector<1x32x64xf32> to vector<32x64xf32>
    %cst_269 = arith.constant dense<0.000000e+00> : vector<8x64xf32>
    %239 = tpu.matmul %236, %238, %cst_269 {dimension_numbers = #tpu.dot_dimension_numbers<[1], [0], [0], [1], [0, 0, 1, 1], [], []>} : vector<8x32xf32>, vector<32x64xf32>, vector<8x64xf32> -> vector<8x64xf32>
    %c0_270 = arith.constant 0 : index
    %c0_271 = arith.constant 0 : index
    %240 = vector.load %arg10[%c0_270, %c0_271] : memref<64x32xf32, #tpu.memory_space<vmem>>, vector<16x8xf32>
    %cst_272 = arith.constant dense<0.000000e+00> : vector<16x64xf32>
    %241 = tpu.matmul %240, %239, %cst_272 {dimension_numbers = #tpu.dot_dimension_numbers<[1], [0], [0], [1], [0, 0, 1, 1], [], []>} : vector<16x8xf32>, vector<8x64xf32>, vector<16x64xf32> -> vector<16x64xf32>
    %c2_273 = arith.constant 2 : index
    %c0_274 = arith.constant 0 : index
    %c0_275 = arith.constant 0 : index
    %242 = vector.load %arg9[%c2_273, %c0_274, %c0_275] : memref<4x128x256xf32, #tpu.memory_space<vmem>>, vector<1x64x128xf32>
    %243 = vector.shape_cast %242 : vector<1x64x128xf32> to vector<64x128xf32>
    %cst_276 = arith.constant dense<0.000000e+00> : vector<8x128xf32>
    %244 = tpu.matmul %230, %243, %cst_276 {dimension_numbers = #tpu.dot_dimension_numbers<[1], [0], [0], [1], [0, 0, 1, 1], [], []>} : vector<8x64xf32>, vector<64x128xf32>, vector<8x128xf32> -> vector<8x128xf32>
    %c0_277 = arith.constant 0 : index
    %c0_278 = arith.constant 0 : index
    %245 = vector.load %arg10[%c0_277, %c0_278] : memref<64x32xf32, #tpu.memory_space<vmem>>, vector<16x8xf32>
    %cst_279 = arith.constant dense<0.000000e+00> : vector<16x128xf32>
    %246 = tpu.matmul %245, %244, %cst_279 {dimension_numbers = #tpu.dot_dimension_numbers<[1], [0], [0], [1], [0, 0, 1, 1], [], []>} : vector<16x8xf32>, vector<8x128xf32>, vector<16x128xf32> -> vector<16x128xf32>
    %c8_280 = arith.constant 8 : index
    %c0_281 = arith.constant 0 : index
    %247 = vector.load %arg12[%c8_280, %c0_281] : memref<80x256xf32, #tpu.memory_space<vmem>>, vector<16x128xf32>
    tpu.vector_store %arg12[%c8_280, %c0_281], %246 {strides = array<i32>} : memref<80x256xf32, #tpu.memory_space<vmem>>, vector<16x128xf32>,
    %cst_282 = arith.constant 0.000000e+00 : f32
    %248 = vector.broadcast %cst_282 : f32 to vector<16x64xf32>
    %c7_283 = arith.constant 7 : index
    %c0_284 = arith.constant 0 : index
    %249 = vector.load %arg12[%c7_283, %c0_284] : memref<80x256xf32, #tpu.memory_space<vmem>>, vector<16x128xf32>
    %c2_285 = arith.constant 2 : index
    %c0_286 = arith.constant 0 : index
    %c0_287 = arith.constant 0 : index
    %c0_288 = arith.constant 0 : index
    %250 = vector.load %arg4[%c2_285, %c0_286, %c0_287, %c0_288] : memref<3x3x128x64xf32, #tpu.memory_space<vmem>>, vector<1x1x128x64xf32>
    %251 = vector.shape_cast %250 : vector<1x1x128x64xf32> to vector<128x64xf32>
    %cst_289 = arith.constant dense<0.000000e+00> : vector<16x64xf32>
    %252 = tpu.matmul %249, %251, %cst_289 {dimension_numbers = #tpu.dot_dimension_numbers<[1], [0], [0], [1], [0, 0, 1, 1], [], []>} : vector<16x128xf32>, vector<128x64xf32>, vector<16x64xf32> -> vector<16x64xf32>
    %253 = arith.addf %248, %252 : vector<16x64xf32>
    %c8_290 = arith.constant 8 : index
    %c0_291 = arith.constant 0 : index
    %254 = vector.load %arg12[%c8_290, %c0_291] : memref<80x256xf32, #tpu.memory_space<vmem>>, vector<16x128xf32>
    %c2_292 = arith.constant 2 : index
    %c1_293 = arith.constant 1 : index
    %c0_294 = arith.constant 0 : index
    %c0_295 = arith.constant 0 : index
    %255 = vector.load %arg4[%c2_292, %c1_293, %c0_294, %c0_295] : memref<3x3x128x64xf32, #tpu.memory_space<vmem>>, vector<1x1x128x64xf32>
    %256 = vector.shape_cast %255 : vector<1x1x128x64xf32> to vector<128x64xf32>
    %cst_296 = arith.constant dense<0.000000e+00> : vector<16x64xf32>
    %257 = tpu.matmul %254, %256, %cst_296 {dimension_numbers = #tpu.dot_dimension_numbers<[1], [0], [0], [1], [0, 0, 1, 1], [], []>} : vector<16x128xf32>, vector<128x64xf32>, vector<16x64xf32> -> vector<16x64xf32>
    %258 = arith.addf %253, %257 : vector<16x64xf32>
    %c9_297 = arith.constant 9 : index
    %c0_298 = arith.constant 0 : index
    %259 = vector.load %arg12[%c9_297, %c0_298] : memref<80x256xf32, #tpu.memory_space<vmem>>, vector<16x128xf32>
    %c2_299 = arith.constant 2 : index
    %c2_300 = arith.constant 2 : index
    %c0_301 = arith.constant 0 : index
    %c0_302 = arith.constant 0 : index
    %260 = vector.load %arg4[%c2_299, %c2_300, %c0_301, %c0_302] : memref<3x3x128x64xf32, #tpu.memory_space<vmem>>, vector<1x1x128x64xf32>
    %261 = vector.shape_cast %260 : vector<1x1x128x64xf32> to vector<128x64xf32>
    %cst_303 = arith.constant dense<0.000000e+00> : vector<16x64xf32>
    %262 = tpu.matmul %259, %261, %cst_303 {dimension_numbers = #tpu.dot_dimension_numbers<[1], [0], [0], [1], [0, 0, 1, 1], [], []>} : vector<16x128xf32>, vector<128x64xf32>, vector<16x64xf32> -> vector<16x64xf32>
    %263 = arith.addf %258, %262 : vector<16x64xf32>
    %c9_304 = arith.constant 9 : index
    %c0_305 = arith.constant 0 : index
    %264 = vector.load %arg3[%c9_304, %c0_305] : memref<21x192xf32, #tpu.memory_space<vmem>>, vector<1x64xf32>
    %265 = vector.broadcast %264 : vector<1x64xf32> to vector<16x64xf32>
    %266 = arith.addf %263, %265 : vector<16x64xf32>
    %cst_306 = arith.constant 0.000000e+00 : f32
    %267 = vector.broadcast %cst_306 : f32 to vector<16x64xf32>
    %268 = arith.maximumf %266, %267 : vector<16x64xf32>
    %c8_307 = arith.constant 8 : index
    %c0_308 = arith.constant 0 : index
    %269 = vector.load %arg12[%c8_307, %c0_308] : memref<80x256xf32, #tpu.memory_space<vmem>>, vector<16x64xf32>
    tpu.vector_store %arg12[%c8_307, %c0_308], %268 {strides = array<i32>} : memref<80x256xf32, #tpu.memory_space<vmem>>, vector<16x64xf32>,
    %cst_309 = arith.constant 0.000000e+00 : f32
    %270 = vector.broadcast %cst_309 : f32 to vector<16x64xf32>
    %c7_310 = arith.constant 7 : index
    %c0_311 = arith.constant 0 : index
    %271 = vector.load %arg12[%c7_310, %c0_311] : memref<80x256xf32, #tpu.memory_space<vmem>>, vector<16x64xf32>
    %c6_312 = arith.constant 6 : index
    %c0_313 = arith.constant 0 : index
    %c0_314 = arith.constant 0 : index
    %c0_315 = arith.constant 0 : index
    %272 = vector.load %arg5[%c6_312, %c0_313, %c0_314, %c0_315] : memref<9x3x64x64xf32, #tpu.memory_space<vmem>>, vector<1x1x64x64xf32>
    %273 = vector.shape_cast %272 : vector<1x1x64x64xf32> to vector<64x64xf32>
    %cst_316 = arith.constant dense<0.000000e+00> : vector<16x64xf32>
    %274 = tpu.matmul %271, %273, %cst_316 {dimension_numbers = #tpu.dot_dimension_numbers<[1], [0], [0], [1], [0, 0, 1, 1], [], []>} : vector<16x64xf32>, vector<64x64xf32>, vector<16x64xf32> -> vector<16x64xf32>
    %275 = arith.addf %270, %274 : vector<16x64xf32>
    %c8_317 = arith.constant 8 : index
    %c0_318 = arith.constant 0 : index
    %276 = vector.load %arg12[%c8_317, %c0_318] : memref<80x256xf32, #tpu.memory_space<vmem>>, vector<16x64xf32>
    %c6_319 = arith.constant 6 : index
    %c1_320 = arith.constant 1 : index
    %c0_321 = arith.constant 0 : index
    %c0_322 = arith.constant 0 : index
    %277 = vector.load %arg5[%c6_319, %c1_320, %c0_321, %c0_322] : memref<9x3x64x64xf32, #tpu.memory_space<vmem>>, vector<1x1x64x64xf32>
    %278 = vector.shape_cast %277 : vector<1x1x64x64xf32> to vector<64x64xf32>
    %cst_323 = arith.constant dense<0.000000e+00> : vector<16x64xf32>
    %279 = tpu.matmul %276, %278, %cst_323 {dimension_numbers = #tpu.dot_dimension_numbers<[1], [0], [0], [1], [0, 0, 1, 1], [], []>} : vector<16x64xf32>, vector<64x64xf32>, vector<16x64xf32> -> vector<16x64xf32>
    %280 = arith.addf %275, %279 : vector<16x64xf32>
    %c9_324 = arith.constant 9 : index
    %c0_325 = arith.constant 0 : index
    %281 = vector.load %arg12[%c9_324, %c0_325] : memref<80x256xf32, #tpu.memory_space<vmem>>, vector<16x64xf32>
    %c6_326 = arith.constant 6 : index
    %c2_327 = arith.constant 2 : index
    %c0_328 = arith.constant 0 : index
    %c0_329 = arith.constant 0 : index
    %282 = vector.load %arg5[%c6_326, %c2_327, %c0_328, %c0_329] : memref<9x3x64x64xf32, #tpu.memory_space<vmem>>, vector<1x1x64x64xf32>
    %283 = vector.shape_cast %282 : vector<1x1x64x64xf32> to vector<64x64xf32>
    %cst_330 = arith.constant dense<0.000000e+00> : vector<16x64xf32>
    %284 = tpu.matmul %281, %283, %cst_330 {dimension_numbers = #tpu.dot_dimension_numbers<[1], [0], [0], [1], [0, 0, 1, 1], [], []>} : vector<16x64xf32>, vector<64x64xf32>, vector<16x64xf32> -> vector<16x64xf32>
    %285 = arith.addf %280, %284 : vector<16x64xf32>
    %c10 = arith.constant 10 : index
    %c0_331 = arith.constant 0 : index
    %286 = vector.load %arg3[%c10, %c0_331] : memref<21x192xf32, #tpu.memory_space<vmem>>, vector<1x64xf32>
    %287 = vector.broadcast %286 : vector<1x64xf32> to vector<16x64xf32>
    %288 = arith.addf %285, %287 : vector<16x64xf32>
    %289 = arith.addf %288, %241 : vector<16x64xf32>
    %cst_332 = arith.constant 0.000000e+00 : f32
    %290 = vector.broadcast %cst_332 : f32 to vector<16x64xf32>
    %291 = arith.maximumf %289, %290 : vector<16x64xf32>
    %c8_333 = arith.constant 8 : index
    %c0_334 = arith.constant 0 : index
    %292 = vector.load %arg12[%c8_333, %c0_334] : memref<80x256xf32, #tpu.memory_space<vmem>>, vector<16x64xf32>
    tpu.vector_store %arg12[%c8_333, %c0_334], %291 {strides = array<i32>} : memref<80x256xf32, #tpu.memory_space<vmem>>, vector<16x64xf32>,
    %cst_335 = arith.constant 0.000000e+00 : f32
    %293 = vector.broadcast %cst_335 : f32 to vector<16x64xf32>
    %c7_336 = arith.constant 7 : index
    %c0_337 = arith.constant 0 : index
    %294 = vector.load %arg12[%c7_336, %c0_337] : memref<80x256xf32, #tpu.memory_space<vmem>>, vector<16x64xf32>
    %c7_338 = arith.constant 7 : index
    %c0_339 = arith.constant 0 : index
    %c0_340 = arith.constant 0 : index
    %c0_341 = arith.constant 0 : index
    %295 = vector.load %arg5[%c7_338, %c0_339, %c0_340, %c0_341] : memref<9x3x64x64xf32, #tpu.memory_space<vmem>>, vector<1x1x64x64xf32>
    %296 = vector.shape_cast %295 : vector<1x1x64x64xf32> to vector<64x64xf32>
    %cst_342 = arith.constant dense<0.000000e+00> : vector<16x64xf32>
    %297 = tpu.matmul %294, %296, %cst_342 {dimension_numbers = #tpu.dot_dimension_numbers<[1], [0], [0], [1], [0, 0, 1, 1], [], []>} : vector<16x64xf32>, vector<64x64xf32>, vector<16x64xf32> -> vector<16x64xf32>
    %298 = arith.addf %293, %297 : vector<16x64xf32>
    %c8_343 = arith.constant 8 : index
    %c0_344 = arith.constant 0 : index
    %299 = vector.load %arg12[%c8_343, %c0_344] : memref<80x256xf32, #tpu.memory_space<vmem>>, vector<16x64xf32>
    %c7_345 = arith.constant 7 : index
    %c1_346 = arith.constant 1 : index
    %c0_347 = arith.constant 0 : index
    %c0_348 = arith.constant 0 : index
    %300 = vector.load %arg5[%c7_345, %c1_346, %c0_347, %c0_348] : memref<9x3x64x64xf32, #tpu.memory_space<vmem>>, vector<1x1x64x64xf32>
    %301 = vector.shape_cast %300 : vector<1x1x64x64xf32> to vector<64x64xf32>
    %cst_349 = arith.constant dense<0.000000e+00> : vector<16x64xf32>
    %302 = tpu.matmul %299, %301, %cst_349 {dimension_numbers = #tpu.dot_dimension_numbers<[1], [0], [0], [1], [0, 0, 1, 1], [], []>} : vector<16x64xf32>, vector<64x64xf32>, vector<16x64xf32> -> vector<16x64xf32>
    %303 = arith.addf %298, %302 : vector<16x64xf32>
    %c9_350 = arith.constant 9 : index
    %c0_351 = arith.constant 0 : index
    %304 = vector.load %arg12[%c9_350, %c0_351] : memref<80x256xf32, #tpu.memory_space<vmem>>, vector<16x64xf32>
    %c7_352 = arith.constant 7 : index
    %c2_353 = arith.constant 2 : index
    %c0_354 = arith.constant 0 : index
    %c0_355 = arith.constant 0 : index
    %305 = vector.load %arg5[%c7_352, %c2_353, %c0_354, %c0_355] : memref<9x3x64x64xf32, #tpu.memory_space<vmem>>, vector<1x1x64x64xf32>
    %306 = vector.shape_cast %305 : vector<1x1x64x64xf32> to vector<64x64xf32>
    %cst_356 = arith.constant dense<0.000000e+00> : vector<16x64xf32>
    %307 = tpu.matmul %304, %306, %cst_356 {dimension_numbers = #tpu.dot_dimension_numbers<[1], [0], [0], [1], [0, 0, 1, 1], [], []>} : vector<16x64xf32>, vector<64x64xf32>, vector<16x64xf32> -> vector<16x64xf32>
    %308 = arith.addf %303, %307 : vector<16x64xf32>
    %c11 = arith.constant 11 : index
    %c0_357 = arith.constant 0 : index
    %309 = vector.load %arg3[%c11, %c0_357] : memref<21x192xf32, #tpu.memory_space<vmem>>, vector<1x64xf32>
    %310 = vector.broadcast %309 : vector<1x64xf32> to vector<16x64xf32>
    %311 = arith.addf %308, %310 : vector<16x64xf32>
    %cst_358 = arith.constant 0.000000e+00 : f32
    %312 = vector.broadcast %cst_358 : f32 to vector<16x64xf32>
    %313 = arith.maximumf %311, %312 : vector<16x64xf32>
    %c8_359 = arith.constant 8 : index
    %c0_360 = arith.constant 0 : index
    %314 = vector.load %arg12[%c8_359, %c0_360] : memref<80x256xf32, #tpu.memory_space<vmem>>, vector<16x64xf32>
    tpu.vector_store %arg12[%c8_359, %c0_360], %313 {strides = array<i32>} : memref<80x256xf32, #tpu.memory_space<vmem>>, vector<16x64xf32>,
    %cst_361 = arith.constant 0.000000e+00 : f32
    %315 = vector.broadcast %cst_361 : f32 to vector<16x64xf32>
    %c7_362 = arith.constant 7 : index
    %c0_363 = arith.constant 0 : index
    %316 = vector.load %arg12[%c7_362, %c0_363] : memref<80x256xf32, #tpu.memory_space<vmem>>, vector<16x64xf32>
    %c8_364 = arith.constant 8 : index
    %c0_365 = arith.constant 0 : index
    %c0_366 = arith.constant 0 : index
    %c0_367 = arith.constant 0 : index
    %317 = vector.load %arg5[%c8_364, %c0_365, %c0_366, %c0_367] : memref<9x3x64x64xf32, #tpu.memory_space<vmem>>, vector<1x1x64x64xf32>
    %318 = vector.shape_cast %317 : vector<1x1x64x64xf32> to vector<64x64xf32>
    %cst_368 = arith.constant dense<0.000000e+00> : vector<16x64xf32>
    %319 = tpu.matmul %316, %318, %cst_368 {dimension_numbers = #tpu.dot_dimension_numbers<[1], [0], [0], [1], [0, 0, 1, 1], [], []>} : vector<16x64xf32>, vector<64x64xf32>, vector<16x64xf32> -> vector<16x64xf32>
    %320 = arith.addf %315, %319 : vector<16x64xf32>
    %c8_369 = arith.constant 8 : index
    %c0_370 = arith.constant 0 : index
    %321 = vector.load %arg12[%c8_369, %c0_370] : memref<80x256xf32, #tpu.memory_space<vmem>>, vector<16x64xf32>
    %c8_371 = arith.constant 8 : index
    %c1_372 = arith.constant 1 : index
    %c0_373 = arith.constant 0 : index
    %c0_374 = arith.constant 0 : index
    %322 = vector.load %arg5[%c8_371, %c1_372, %c0_373, %c0_374] : memref<9x3x64x64xf32, #tpu.memory_space<vmem>>, vector<1x1x64x64xf32>
    %323 = vector.shape_cast %322 : vector<1x1x64x64xf32> to vector<64x64xf32>
    %cst_375 = arith.constant dense<0.000000e+00> : vector<16x64xf32>
    %324 = tpu.matmul %321, %323, %cst_375 {dimension_numbers = #tpu.dot_dimension_numbers<[1], [0], [0], [1], [0, 0, 1, 1], [], []>} : vector<16x64xf32>, vector<64x64xf32>, vector<16x64xf32> -> vector<16x64xf32>
    %325 = arith.addf %320, %324 : vector<16x64xf32>
    %c9_376 = arith.constant 9 : index
    %c0_377 = arith.constant 0 : index
    %326 = vector.load %arg12[%c9_376, %c0_377] : memref<80x256xf32, #tpu.memory_space<vmem>>, vector<16x64xf32>
    %c8_378 = arith.constant 8 : index
    %c2_379 = arith.constant 2 : index
    %c0_380 = arith.constant 0 : index
    %c0_381 = arith.constant 0 : index
    %327 = vector.load %arg5[%c8_378, %c2_379, %c0_380, %c0_381] : memref<9x3x64x64xf32, #tpu.memory_space<vmem>>, vector<1x1x64x64xf32>
    %328 = vector.shape_cast %327 : vector<1x1x64x64xf32> to vector<64x64xf32>
    %cst_382 = arith.constant dense<0.000000e+00> : vector<16x64xf32>
    %329 = tpu.matmul %326, %328, %cst_382 {dimension_numbers = #tpu.dot_dimension_numbers<[1], [0], [0], [1], [0, 0, 1, 1], [], []>} : vector<16x64xf32>, vector<64x64xf32>, vector<16x64xf32> -> vector<16x64xf32>
    %330 = arith.addf %325, %329 : vector<16x64xf32>
    %c12_383 = arith.constant 12 : index
    %c0_384 = arith.constant 0 : index
    %331 = vector.load %arg3[%c12_383, %c0_384] : memref<21x192xf32, #tpu.memory_space<vmem>>, vector<1x64xf32>
    %332 = vector.broadcast %331 : vector<1x64xf32> to vector<16x64xf32>
    %333 = arith.addf %330, %332 : vector<16x64xf32>
    %334 = arith.addf %333, %291 : vector<16x64xf32>
    %cst_385 = arith.constant 0.000000e+00 : f32
    %335 = vector.broadcast %cst_385 : f32 to vector<16x64xf32>
    %336 = arith.maximumf %334, %335 : vector<16x64xf32>
    %c3_386 = arith.constant 3 : index
    %c0_387 = arith.constant 0 : index
    %c0_388 = arith.constant 0 : index
    %337 = vector.load %arg9[%c3_386, %c0_387, %c0_388] : memref<4x128x256xf32, #tpu.memory_space<vmem>>, vector<1x64x128xf32>
    %338 = vector.shape_cast %337 : vector<1x64x128xf32> to vector<64x128xf32>
    %cst_389 = arith.constant dense<0.000000e+00> : vector<16x128xf32>
    %339 = tpu.matmul %336, %338, %cst_389 {dimension_numbers = #tpu.dot_dimension_numbers<[1], [0], [0], [1], [0, 0, 1, 1], [], []>} : vector<16x64xf32>, vector<64x128xf32>, vector<16x128xf32> -> vector<16x128xf32>
    %c0_390 = arith.constant 0 : index
    %c0_391 = arith.constant 0 : index
    %340 = vector.load %arg10[%c0_390, %c0_391] : memref<64x32xf32, #tpu.memory_space<vmem>>, vector<32x16xf32>
    %cst_392 = arith.constant dense<0.000000e+00> : vector<32x128xf32>
    %341 = tpu.matmul %340, %339, %cst_392 {dimension_numbers = #tpu.dot_dimension_numbers<[1], [0], [0], [1], [0, 0, 1, 1], [], []>} : vector<32x16xf32>, vector<16x128xf32>, vector<32x128xf32> -> vector<32x128xf32>
    %c8_393 = arith.constant 8 : index
    %c0_394 = arith.constant 0 : index
    %342 = vector.load %arg12[%c8_393, %c0_394] : memref<80x256xf32, #tpu.memory_space<vmem>>, vector<32x128xf32>
    tpu.vector_store %arg12[%c8_393, %c0_394], %341 {strides = array<i32>} : memref<80x256xf32, #tpu.memory_space<vmem>>, vector<32x128xf32>,
    %cst_395 = arith.constant 0.000000e+00 : f32
    %343 = vector.broadcast %cst_395 : f32 to vector<32x128xf32>
    %c7_396 = arith.constant 7 : index
    %c0_397 = arith.constant 0 : index
    %344 = vector.load %arg12[%c7_396, %c0_397] : memref<80x256xf32, #tpu.memory_space<vmem>>, vector<32x128xf32>
    %c0_398 = arith.constant 0 : index
    %c0_399 = arith.constant 0 : index
    %c0_400 = arith.constant 0 : index
    %c0_401 = arith.constant 0 : index
    %345 = vector.load %arg6[%c0_398, %c0_399, %c0_400, %c0_401] : memref<4x3x128x128xf32, #tpu.memory_space<vmem>>, vector<1x1x128x128xf32>
    %346 = vector.shape_cast %345 : vector<1x1x128x128xf32> to vector<128x128xf32>
    %cst_402 = arith.constant dense<0.000000e+00> : vector<32x128xf32>
    %347 = tpu.matmul %344, %346, %cst_402 {dimension_numbers = #tpu.dot_dimension_numbers<[1], [0], [0], [1], [0, 0, 1, 1], [], []>} : vector<32x128xf32>, vector<128x128xf32>, vector<32x128xf32> -> vector<32x128xf32>
    %348 = arith.addf %343, %347 : vector<32x128xf32>
    %c8_403 = arith.constant 8 : index
    %c0_404 = arith.constant 0 : index
    %349 = vector.load %arg12[%c8_403, %c0_404] : memref<80x256xf32, #tpu.memory_space<vmem>>, vector<32x128xf32>
    %c0_405 = arith.constant 0 : index
    %c1_406 = arith.constant 1 : index
    %c0_407 = arith.constant 0 : index
    %c0_408 = arith.constant 0 : index
    %350 = vector.load %arg6[%c0_405, %c1_406, %c0_407, %c0_408] : memref<4x3x128x128xf32, #tpu.memory_space<vmem>>, vector<1x1x128x128xf32>
    %351 = vector.shape_cast %350 : vector<1x1x128x128xf32> to vector<128x128xf32>
    %cst_409 = arith.constant dense<0.000000e+00> : vector<32x128xf32>
    %352 = tpu.matmul %349, %351, %cst_409 {dimension_numbers = #tpu.dot_dimension_numbers<[1], [0], [0], [1], [0, 0, 1, 1], [], []>} : vector<32x128xf32>, vector<128x128xf32>, vector<32x128xf32> -> vector<32x128xf32>
    %353 = arith.addf %348, %352 : vector<32x128xf32>
    %c9_410 = arith.constant 9 : index
    %c0_411 = arith.constant 0 : index
    %354 = vector.load %arg12[%c9_410, %c0_411] : memref<80x256xf32, #tpu.memory_space<vmem>>, vector<32x128xf32>
    %c0_412 = arith.constant 0 : index
    %c2_413 = arith.constant 2 : index
    %c0_414 = arith.constant 0 : index
    %c0_415 = arith.constant 0 : index
    %355 = vector.load %arg6[%c0_412, %c2_413, %c0_414, %c0_415] : memref<4x3x128x128xf32, #tpu.memory_space<vmem>>, vector<1x1x128x128xf32>
    %356 = vector.shape_cast %355 : vector<1x1x128x128xf32> to vector<128x128xf32>
    %cst_416 = arith.constant dense<0.000000e+00> : vector<32x128xf32>
    %357 = tpu.matmul %354, %356, %cst_416 {dimension_numbers = #tpu.dot_dimension_numbers<[1], [0], [0], [1], [0, 0, 1, 1], [], []>} : vector<32x128xf32>, vector<128x128xf32>, vector<32x128xf32> -> vector<32x128xf32>
    %358 = arith.addf %353, %357 : vector<32x128xf32>
    %c13 = arith.constant 13 : index
    %c0_417 = arith.constant 0 : index
    %359 = vector.load %arg3[%c13, %c0_417] : memref<21x192xf32, #tpu.memory_space<vmem>>, vector<1x128xf32>
    %360 = vector.broadcast %359 : vector<1x128xf32> to vector<32x128xf32>
    %361 = arith.addf %358, %360 : vector<32x128xf32>
    %cst_418 = arith.constant 0.000000e+00 : f32
    %362 = vector.broadcast %cst_418 : f32 to vector<32x128xf32>
    %363 = arith.maximumf %361, %362 : vector<32x128xf32>
    %c8_419 = arith.constant 8 : index
    %c0_420 = arith.constant 0 : index
    %364 = vector.load %arg12[%c8_419, %c0_420] : memref<80x256xf32, #tpu.memory_space<vmem>>, vector<32x128xf32>
    tpu.vector_store %arg12[%c8_419, %c0_420], %363 {strides = array<i32>} : memref<80x256xf32, #tpu.memory_space<vmem>>, vector<32x128xf32>,
    %cst_421 = arith.constant 0.000000e+00 : f32
    %365 = vector.broadcast %cst_421 : f32 to vector<32x128xf32>
    %c7_422 = arith.constant 7 : index
    %c0_423 = arith.constant 0 : index
    %366 = vector.load %arg12[%c7_422, %c0_423] : memref<80x256xf32, #tpu.memory_space<vmem>>, vector<32x128xf32>
    %c1_424 = arith.constant 1 : index
    %c0_425 = arith.constant 0 : index
    %c0_426 = arith.constant 0 : index
    %c0_427 = arith.constant 0 : index
    %367 = vector.load %arg6[%c1_424, %c0_425, %c0_426, %c0_427] : memref<4x3x128x128xf32, #tpu.memory_space<vmem>>, vector<1x1x128x128xf32>
    %368 = vector.shape_cast %367 : vector<1x1x128x128xf32> to vector<128x128xf32>
    %cst_428 = arith.constant dense<0.000000e+00> : vector<32x128xf32>
    %369 = tpu.matmul %366, %368, %cst_428 {dimension_numbers = #tpu.dot_dimension_numbers<[1], [0], [0], [1], [0, 0, 1, 1], [], []>} : vector<32x128xf32>, vector<128x128xf32>, vector<32x128xf32> -> vector<32x128xf32>
    %370 = arith.addf %365, %369 : vector<32x128xf32>
    %c8_429 = arith.constant 8 : index
    %c0_430 = arith.constant 0 : index
    %371 = vector.load %arg12[%c8_429, %c0_430] : memref<80x256xf32, #tpu.memory_space<vmem>>, vector<32x128xf32>
    %c1_431 = arith.constant 1 : index
    %c1_432 = arith.constant 1 : index
    %c0_433 = arith.constant 0 : index
    %c0_434 = arith.constant 0 : index
    %372 = vector.load %arg6[%c1_431, %c1_432, %c0_433, %c0_434] : memref<4x3x128x128xf32, #tpu.memory_space<vmem>>, vector<1x1x128x128xf32>
    %373 = vector.shape_cast %372 : vector<1x1x128x128xf32> to vector<128x128xf32>
    %cst_435 = arith.constant dense<0.000000e+00> : vector<32x128xf32>
    %374 = tpu.matmul %371, %373, %cst_435 {dimension_numbers = #tpu.dot_dimension_numbers<[1], [0], [0], [1], [0, 0, 1, 1], [], []>} : vector<32x128xf32>, vector<128x128xf32>, vector<32x128xf32> -> vector<32x128xf32>
    %375 = arith.addf %370, %374 : vector<32x128xf32>
    %c9_436 = arith.constant 9 : index
    %c0_437 = arith.constant 0 : index
    %376 = vector.load %arg12[%c9_436, %c0_437] : memref<80x256xf32, #tpu.memory_space<vmem>>, vector<32x128xf32>
    %c1_438 = arith.constant 1 : index
    %c2_439 = arith.constant 2 : index
    %c0_440 = arith.constant 0 : index
    %c0_441 = arith.constant 0 : index
    %377 = vector.load %arg6[%c1_438, %c2_439, %c0_440, %c0_441] : memref<4x3x128x128xf32, #tpu.memory_space<vmem>>, vector<1x1x128x128xf32>
    %378 = vector.shape_cast %377 : vector<1x1x128x128xf32> to vector<128x128xf32>
    %cst_442 = arith.constant dense<0.000000e+00> : vector<32x128xf32>
    %379 = tpu.matmul %376, %378, %cst_442 {dimension_numbers = #tpu.dot_dimension_numbers<[1], [0], [0], [1], [0, 0, 1, 1], [], []>} : vector<32x128xf32>, vector<128x128xf32>, vector<32x128xf32> -> vector<32x128xf32>
    %380 = arith.addf %375, %379 : vector<32x128xf32>
    %c14 = arith.constant 14 : index
    %c0_443 = arith.constant 0 : index
    %381 = vector.load %arg3[%c14, %c0_443] : memref<21x192xf32, #tpu.memory_space<vmem>>, vector<1x128xf32>
    %382 = vector.broadcast %381 : vector<1x128xf32> to vector<32x128xf32>
    %383 = arith.addf %380, %382 : vector<32x128xf32>
    %384 = arith.addf %383, %341 : vector<32x128xf32>
    %cst_444 = arith.constant 0.000000e+00 : f32
    %385 = vector.broadcast %cst_444 : f32 to vector<32x128xf32>
    %386 = arith.maximumf %384, %385 : vector<32x128xf32>
    %c8_445 = arith.constant 8 : index
    %c0_446 = arith.constant 0 : index
    %387 = vector.load %arg12[%c8_445, %c0_446] : memref<80x256xf32, #tpu.memory_space<vmem>>, vector<32x128xf32>
    tpu.vector_store %arg12[%c8_445, %c0_446], %386 {strides = array<i32>} : memref<80x256xf32, #tpu.memory_space<vmem>>, vector<32x128xf32>,
    %cst_447 = arith.constant 0.000000e+00 : f32
    %388 = vector.broadcast %cst_447 : f32 to vector<32x128xf32>
    %c7_448 = arith.constant 7 : index
    %c0_449 = arith.constant 0 : index
    %389 = vector.load %arg12[%c7_448, %c0_449] : memref<80x256xf32, #tpu.memory_space<vmem>>, vector<32x128xf32>
    %c2_450 = arith.constant 2 : index
    %c0_451 = arith.constant 0 : index
    %c0_452 = arith.constant 0 : index
    %c0_453 = arith.constant 0 : index
    %390 = vector.load %arg6[%c2_450, %c0_451, %c0_452, %c0_453] : memref<4x3x128x128xf32, #tpu.memory_space<vmem>>, vector<1x1x128x128xf32>
    %391 = vector.shape_cast %390 : vector<1x1x128x128xf32> to vector<128x128xf32>
    %cst_454 = arith.constant dense<0.000000e+00> : vector<32x128xf32>
    %392 = tpu.matmul %389, %391, %cst_454 {dimension_numbers = #tpu.dot_dimension_numbers<[1], [0], [0], [1], [0, 0, 1, 1], [], []>} : vector<32x128xf32>, vector<128x128xf32>, vector<32x128xf32> -> vector<32x128xf32>
    %393 = arith.addf %388, %392 : vector<32x128xf32>
    %c8_455 = arith.constant 8 : index
    %c0_456 = arith.constant 0 : index
    %394 = vector.load %arg12[%c8_455, %c0_456] : memref<80x256xf32, #tpu.memory_space<vmem>>, vector<32x128xf32>
    %c2_457 = arith.constant 2 : index
    %c1_458 = arith.constant 1 : index
    %c0_459 = arith.constant 0 : index
    %c0_460 = arith.constant 0 : index
    %395 = vector.load %arg6[%c2_457, %c1_458, %c0_459, %c0_460] : memref<4x3x128x128xf32, #tpu.memory_space<vmem>>, vector<1x1x128x128xf32>
    %396 = vector.shape_cast %395 : vector<1x1x128x128xf32> to vector<128x128xf32>
    %cst_461 = arith.constant dense<0.000000e+00> : vector<32x128xf32>
    %397 = tpu.matmul %394, %396, %cst_461 {dimension_numbers = #tpu.dot_dimension_numbers<[1], [0], [0], [1], [0, 0, 1, 1], [], []>} : vector<32x128xf32>, vector<128x128xf32>, vector<32x128xf32> -> vector<32x128xf32>
    %398 = arith.addf %393, %397 : vector<32x128xf32>
    %c9_462 = arith.constant 9 : index
    %c0_463 = arith.constant 0 : index
    %399 = vector.load %arg12[%c9_462, %c0_463] : memref<80x256xf32, #tpu.memory_space<vmem>>, vector<32x128xf32>
    %c2_464 = arith.constant 2 : index
    %c2_465 = arith.constant 2 : index
    %c0_466 = arith.constant 0 : index
    %c0_467 = arith.constant 0 : index
    %400 = vector.load %arg6[%c2_464, %c2_465, %c0_466, %c0_467] : memref<4x3x128x128xf32, #tpu.memory_space<vmem>>, vector<1x1x128x128xf32>
    %401 = vector.shape_cast %400 : vector<1x1x128x128xf32> to vector<128x128xf32>
    %cst_468 = arith.constant dense<0.000000e+00> : vector<32x128xf32>
    %402 = tpu.matmul %399, %401, %cst_468 {dimension_numbers = #tpu.dot_dimension_numbers<[1], [0], [0], [1], [0, 0, 1, 1], [], []>} : vector<32x128xf32>, vector<128x128xf32>, vector<32x128xf32> -> vector<32x128xf32>
    %403 = arith.addf %398, %402 : vector<32x128xf32>
    %c15 = arith.constant 15 : index
    %c0_469 = arith.constant 0 : index
    %404 = vector.load %arg3[%c15, %c0_469] : memref<21x192xf32, #tpu.memory_space<vmem>>, vector<1x128xf32>
    %405 = vector.broadcast %404 : vector<1x128xf32> to vector<32x128xf32>
    %406 = arith.addf %403, %405 : vector<32x128xf32>
    %cst_470 = arith.constant 0.000000e+00 : f32
    %407 = vector.broadcast %cst_470 : f32 to vector<32x128xf32>
    %408 = arith.maximumf %406, %407 : vector<32x128xf32>
    %c8_471 = arith.constant 8 : index
    %c0_472 = arith.constant 0 : index
    %409 = vector.load %arg12[%c8_471, %c0_472] : memref<80x256xf32, #tpu.memory_space<vmem>>, vector<32x128xf32>
    tpu.vector_store %arg12[%c8_471, %c0_472], %408 {strides = array<i32>} : memref<80x256xf32, #tpu.memory_space<vmem>>, vector<32x128xf32>,
    %cst_473 = arith.constant 0.000000e+00 : f32
    %410 = vector.broadcast %cst_473 : f32 to vector<32x128xf32>
    %c7_474 = arith.constant 7 : index
    %c0_475 = arith.constant 0 : index
    %411 = vector.load %arg12[%c7_474, %c0_475] : memref<80x256xf32, #tpu.memory_space<vmem>>, vector<32x128xf32>
    %c3_476 = arith.constant 3 : index
    %c0_477 = arith.constant 0 : index
    %c0_478 = arith.constant 0 : index
    %c0_479 = arith.constant 0 : index
    %412 = vector.load %arg6[%c3_476, %c0_477, %c0_478, %c0_479] : memref<4x3x128x128xf32, #tpu.memory_space<vmem>>, vector<1x1x128x128xf32>
    %413 = vector.shape_cast %412 : vector<1x1x128x128xf32> to vector<128x128xf32>
    %cst_480 = arith.constant dense<0.000000e+00> : vector<32x128xf32>
    %414 = tpu.matmul %411, %413, %cst_480 {dimension_numbers = #tpu.dot_dimension_numbers<[1], [0], [0], [1], [0, 0, 1, 1], [], []>} : vector<32x128xf32>, vector<128x128xf32>, vector<32x128xf32> -> vector<32x128xf32>
    %415 = arith.addf %410, %414 : vector<32x128xf32>
    %c8_481 = arith.constant 8 : index
    %c0_482 = arith.constant 0 : index
    %416 = vector.load %arg12[%c8_481, %c0_482] : memref<80x256xf32, #tpu.memory_space<vmem>>, vector<32x128xf32>
    %c3_483 = arith.constant 3 : index
    %c1_484 = arith.constant 1 : index
    %c0_485 = arith.constant 0 : index
    %c0_486 = arith.constant 0 : index
    %417 = vector.load %arg6[%c3_483, %c1_484, %c0_485, %c0_486] : memref<4x3x128x128xf32, #tpu.memory_space<vmem>>, vector<1x1x128x128xf32>
    %418 = vector.shape_cast %417 : vector<1x1x128x128xf32> to vector<128x128xf32>
    %cst_487 = arith.constant dense<0.000000e+00> : vector<32x128xf32>
    %419 = tpu.matmul %416, %418, %cst_487 {dimension_numbers = #tpu.dot_dimension_numbers<[1], [0], [0], [1], [0, 0, 1, 1], [], []>} : vector<32x128xf32>, vector<128x128xf32>, vector<32x128xf32> -> vector<32x128xf32>
    %420 = arith.addf %415, %419 : vector<32x128xf32>
    %c9_488 = arith.constant 9 : index
    %c0_489 = arith.constant 0 : index
    %421 = vector.load %arg12[%c9_488, %c0_489] : memref<80x256xf32, #tpu.memory_space<vmem>>, vector<32x128xf32>
    %c3_490 = arith.constant 3 : index
    %c2_491 = arith.constant 2 : index
    %c0_492 = arith.constant 0 : index
    %c0_493 = arith.constant 0 : index
    %422 = vector.load %arg6[%c3_490, %c2_491, %c0_492, %c0_493] : memref<4x3x128x128xf32, #tpu.memory_space<vmem>>, vector<1x1x128x128xf32>
    %423 = vector.shape_cast %422 : vector<1x1x128x128xf32> to vector<128x128xf32>
    %cst_494 = arith.constant dense<0.000000e+00> : vector<32x128xf32>
    %424 = tpu.matmul %421, %423, %cst_494 {dimension_numbers = #tpu.dot_dimension_numbers<[1], [0], [0], [1], [0, 0, 1, 1], [], []>} : vector<32x128xf32>, vector<128x128xf32>, vector<32x128xf32> -> vector<32x128xf32>
    %425 = arith.addf %420, %424 : vector<32x128xf32>
    %c16_495 = arith.constant 16 : index
    %c0_496 = arith.constant 0 : index
    %426 = vector.load %arg3[%c16_495, %c0_496] : memref<21x192xf32, #tpu.memory_space<vmem>>, vector<1x128xf32>
    %427 = vector.broadcast %426 : vector<1x128xf32> to vector<32x128xf32>
    %428 = arith.addf %425, %427 : vector<32x128xf32>
    %429 = arith.addf %428, %386 : vector<32x128xf32>
    %cst_497 = arith.constant 0.000000e+00 : f32
    %430 = vector.broadcast %cst_497 : f32 to vector<32x128xf32>
    %431 = arith.maximumf %429, %430 : vector<32x128xf32>
    %c3_498 = arith.constant 3 : index
    %c0_499 = arith.constant 0 : index
    %c0_500 = arith.constant 0 : index
    %432 = vector.load %arg9[%c3_498, %c0_499, %c0_500] : memref<4x128x256xf32, #tpu.memory_space<vmem>>, vector<1x128x256xf32>
    %433 = vector.shape_cast %432 : vector<1x128x256xf32> to vector<128x256xf32>
    %cst_501 = arith.constant dense<0.000000e+00> : vector<32x256xf32>
    %434 = tpu.matmul %431, %433, %cst_501 {dimension_numbers = #tpu.dot_dimension_numbers<[1], [0], [0], [1], [0, 0, 1, 1], [], []>} : vector<32x128xf32>, vector<128x256xf32>, vector<32x256xf32> -> vector<32x256xf32>
    %c0_502 = arith.constant 0 : index
    %c0_503 = arith.constant 0 : index
    %435 = vector.load %arg10[%c0_502, %c0_503] : memref<64x32xf32, #tpu.memory_space<vmem>>, vector<64x32xf32>
    %cst_504 = arith.constant dense<0.000000e+00> : vector<64x256xf32>
    %436 = tpu.matmul %435, %434, %cst_504 {dimension_numbers = #tpu.dot_dimension_numbers<[1], [0], [0], [1], [0, 0, 1, 1], [], []>} : vector<64x32xf32>, vector<32x256xf32>, vector<64x256xf32> -> vector<64x256xf32>
    %c8_505 = arith.constant 8 : index
    %c0_506 = arith.constant 0 : index
    %437 = vector.load %arg12[%c8_505, %c0_506] : memref<80x256xf32, #tpu.memory_space<vmem>>, vector<64x256xf32>
    tpu.vector_store %arg12[%c8_505, %c0_506], %436 {strides = array<i32>} : memref<80x256xf32, #tpu.memory_space<vmem>>, vector<64x256xf32>,
    %cst_507 = arith.constant 0.000000e+00 : f32
    %438 = vector.broadcast %cst_507 : f32 to vector<64x192xf32>
    %c5_508 = arith.constant 5 : index
    %c0_509 = arith.constant 0 : index
    %439 = vector.load %arg12[%c5_508, %c0_509] : memref<80x256xf32, #tpu.memory_space<vmem>>, vector<64x256xf32>
    %c0_510 = arith.constant 0 : index
    %c0_511 = arith.constant 0 : index
    %c0_512 = arith.constant 0 : index
    %440 = vector.load %arg8[%c0_510, %c0_511, %c0_512] : memref<7x256x192xf32, #tpu.memory_space<vmem>>, vector<1x256x192xf32>
    %441 = vector.shape_cast %440 : vector<1x256x192xf32> to vector<256x192xf32>
    %cst_513 = arith.constant dense<0.000000e+00> : vector<64x192xf32>
    %442 = tpu.matmul %439, %441, %cst_513 {dimension_numbers = #tpu.dot_dimension_numbers<[1], [0], [0], [1], [0, 0, 1, 1], [], []>} : vector<64x256xf32>, vector<256x192xf32>, vector<64x192xf32> -> vector<64x192xf32>
    %443 = arith.addf %438, %442 : vector<64x192xf32>
    %c6_514 = arith.constant 6 : index
    %c0_515 = arith.constant 0 : index
    %444 = vector.load %arg12[%c6_514, %c0_515] : memref<80x256xf32, #tpu.memory_space<vmem>>, vector<64x256xf32>
    %c1_516 = arith.constant 1 : index
    %c0_517 = arith.constant 0 : index
    %c0_518 = arith.constant 0 : index
    %445 = vector.load %arg8[%c1_516, %c0_517, %c0_518] : memref<7x256x192xf32, #tpu.memory_space<vmem>>, vector<1x256x192xf32>
    %446 = vector.shape_cast %445 : vector<1x256x192xf32> to vector<256x192xf32>
    %cst_519 = arith.constant dense<0.000000e+00> : vector<64x192xf32>
    %447 = tpu.matmul %444, %446, %cst_519 {dimension_numbers = #tpu.dot_dimension_numbers<[1], [0], [0], [1], [0, 0, 1, 1], [], []>} : vector<64x256xf32>, vector<256x192xf32>, vector<64x192xf32> -> vector<64x192xf32>
    %448 = arith.addf %443, %447 : vector<64x192xf32>
    %c7_520 = arith.constant 7 : index
    %c0_521 = arith.constant 0 : index
    %449 = vector.load %arg12[%c7_520, %c0_521] : memref<80x256xf32, #tpu.memory_space<vmem>>, vector<64x256xf32>
    %c2_522 = arith.constant 2 : index
    %c0_523 = arith.constant 0 : index
    %c0_524 = arith.constant 0 : index
    %450 = vector.load %arg8[%c2_522, %c0_523, %c0_524] : memref<7x256x192xf32, #tpu.memory_space<vmem>>, vector<1x256x192xf32>
    %451 = vector.shape_cast %450 : vector<1x256x192xf32> to vector<256x192xf32>
    %cst_525 = arith.constant dense<0.000000e+00> : vector<64x192xf32>
    %452 = tpu.matmul %449, %451, %cst_525 {dimension_numbers = #tpu.dot_dimension_numbers<[1], [0], [0], [1], [0, 0, 1, 1], [], []>} : vector<64x256xf32>, vector<256x192xf32>, vector<64x192xf32> -> vector<64x192xf32>
    %453 = arith.addf %448, %452 : vector<64x192xf32>
    %c8_526 = arith.constant 8 : index
    %c0_527 = arith.constant 0 : index
    %454 = vector.load %arg12[%c8_526, %c0_527] : memref<80x256xf32, #tpu.memory_space<vmem>>, vector<64x256xf32>
    %c3_528 = arith.constant 3 : index
    %c0_529 = arith.constant 0 : index
    %c0_530 = arith.constant 0 : index
    %455 = vector.load %arg8[%c3_528, %c0_529, %c0_530] : memref<7x256x192xf32, #tpu.memory_space<vmem>>, vector<1x256x192xf32>
    %456 = vector.shape_cast %455 : vector<1x256x192xf32> to vector<256x192xf32>
    %cst_531 = arith.constant dense<0.000000e+00> : vector<64x192xf32>
    %457 = tpu.matmul %454, %456, %cst_531 {dimension_numbers = #tpu.dot_dimension_numbers<[1], [0], [0], [1], [0, 0, 1, 1], [], []>} : vector<64x256xf32>, vector<256x192xf32>, vector<64x192xf32> -> vector<64x192xf32>
    %458 = arith.addf %453, %457 : vector<64x192xf32>
    %c9_532 = arith.constant 9 : index
    %c0_533 = arith.constant 0 : index
    %459 = vector.load %arg12[%c9_532, %c0_533] : memref<80x256xf32, #tpu.memory_space<vmem>>, vector<64x256xf32>
    %c4_534 = arith.constant 4 : index
    %c0_535 = arith.constant 0 : index
    %c0_536 = arith.constant 0 : index
    %460 = vector.load %arg8[%c4_534, %c0_535, %c0_536] : memref<7x256x192xf32, #tpu.memory_space<vmem>>, vector<1x256x192xf32>
    %461 = vector.shape_cast %460 : vector<1x256x192xf32> to vector<256x192xf32>
    %cst_537 = arith.constant dense<0.000000e+00> : vector<64x192xf32>
    %462 = tpu.matmul %459, %461, %cst_537 {dimension_numbers = #tpu.dot_dimension_numbers<[1], [0], [0], [1], [0, 0, 1, 1], [], []>} : vector<64x256xf32>, vector<256x192xf32>, vector<64x192xf32> -> vector<64x192xf32>
    %463 = arith.addf %458, %462 : vector<64x192xf32>
    %c10_538 = arith.constant 10 : index
    %c0_539 = arith.constant 0 : index
    %464 = vector.load %arg12[%c10_538, %c0_539] : memref<80x256xf32, #tpu.memory_space<vmem>>, vector<64x256xf32>
    %c5_540 = arith.constant 5 : index
    %c0_541 = arith.constant 0 : index
    %c0_542 = arith.constant 0 : index
    %465 = vector.load %arg8[%c5_540, %c0_541, %c0_542] : memref<7x256x192xf32, #tpu.memory_space<vmem>>, vector<1x256x192xf32>
    %466 = vector.shape_cast %465 : vector<1x256x192xf32> to vector<256x192xf32>
    %cst_543 = arith.constant dense<0.000000e+00> : vector<64x192xf32>
    %467 = tpu.matmul %464, %466, %cst_543 {dimension_numbers = #tpu.dot_dimension_numbers<[1], [0], [0], [1], [0, 0, 1, 1], [], []>} : vector<64x256xf32>, vector<256x192xf32>, vector<64x192xf32> -> vector<64x192xf32>
    %468 = arith.addf %463, %467 : vector<64x192xf32>
    %c11_544 = arith.constant 11 : index
    %c0_545 = arith.constant 0 : index
    %469 = vector.load %arg12[%c11_544, %c0_545] : memref<80x256xf32, #tpu.memory_space<vmem>>, vector<64x256xf32>
    %c6_546 = arith.constant 6 : index
    %c0_547 = arith.constant 0 : index
    %c0_548 = arith.constant 0 : index
    %470 = vector.load %arg8[%c6_546, %c0_547, %c0_548] : memref<7x256x192xf32, #tpu.memory_space<vmem>>, vector<1x256x192xf32>
    %471 = vector.shape_cast %470 : vector<1x256x192xf32> to vector<256x192xf32>
    %cst_549 = arith.constant dense<0.000000e+00> : vector<64x192xf32>
    %472 = tpu.matmul %469, %471, %cst_549 {dimension_numbers = #tpu.dot_dimension_numbers<[1], [0], [0], [1], [0, 0, 1, 1], [], []>} : vector<64x256xf32>, vector<256x192xf32>, vector<64x192xf32> -> vector<64x192xf32>
    %473 = arith.addf %468, %472 : vector<64x192xf32>
    %c20 = arith.constant 20 : index
    %c0_550 = arith.constant 0 : index
    %474 = vector.load %arg3[%c20, %c0_550] : memref<21x192xf32, #tpu.memory_space<vmem>>, vector<1x192xf32>
    %475 = vector.broadcast %474 : vector<1x192xf32> to vector<64x192xf32>
    %476 = arith.addf %473, %475 : vector<64x192xf32>
    %c0_551 = arith.constant 0 : index
    %c0_552 = arith.constant 0 : index
    %c0_553 = arith.constant 0 : index
    %477 = vector.load %arg11[%c0_551, %c0_552, %c0_553] : memref<1x64x192xf32, #tpu.memory_space<vmem>>, vector<1x64x192xf32>
    %478 = vector.shape_cast %477 : vector<1x64x192xf32> to vector<64x192xf32>
    %479 = vector.shape_cast %476 : vector<64x192xf32> to vector<1x64x192xf32>
    tpu.vector_store %arg11[%c0_551, %c0_552, %c0_553], %479 {strides = array<i32>} : memref<1x64x192xf32, #tpu.memory_space<vmem>>, vector<1x64x192xf32>,
    return
  }
  func.func @transform_0(%arg0: i32) -> (i32, i32, i32) {
    %c0_i32 = arith.constant 0 : i32
    %c0_i32_0 = arith.constant 0 : i32
    %c0_i32_1 = arith.constant 0 : i32
    return %arg0, %c0_i32, %c0_i32_0 : i32, i32, i32
  }
  func.func @transform_1(%arg0: i32) -> (i32, i32) {
    %c0_i32 = arith.constant 0 : i32
    %c0_i32_0 = arith.constant 0 : i32
    %c0_i32_1 = arith.constant 0 : i32
    return %c0_i32, %c0_i32_0 : i32, i32
  }
  func.func @transform_2(%arg0: i32) -> (i32, i32) {
    %c0_i32 = arith.constant 0 : i32
    %c0_i32_0 = arith.constant 0 : i32
    %c0_i32_1 = arith.constant 0 : i32
    return %c0_i32, %c0_i32_0 : i32, i32
  }
  func.func @transform_3(%arg0: i32) -> (i32, i32, i32, i32) {
    %c0_i32 = arith.constant 0 : i32
    %c0_i32_0 = arith.constant 0 : i32
    %c0_i32_1 = arith.constant 0 : i32
    %c0_i32_2 = arith.constant 0 : i32
    %c0_i32_3 = arith.constant 0 : i32
    return %c0_i32, %c0_i32_0, %c0_i32_1, %c0_i32_2 : i32, i32, i32, i32
  }
  func.func @transform_4(%arg0: i32) -> (i32, i32, i32, i32) {
    %c0_i32 = arith.constant 0 : i32
    %c0_i32_0 = arith.constant 0 : i32
    %c0_i32_1 = arith.constant 0 : i32
    %c0_i32_2 = arith.constant 0 : i32
    %c0_i32_3 = arith.constant 0 : i32
    return %c0_i32, %c0_i32_0, %c0_i32_1, %c0_i32_2 : i32, i32, i32, i32
  }
  func.func @transform_5(%arg0: i32) -> (i32, i32, i32, i32) {
    %c0_i32 = arith.constant 0 : i32
    %c0_i32_0 = arith.constant 0 : i32
    %c0_i32_1 = arith.constant 0 : i32
    %c0_i32_2 = arith.constant 0 : i32
    %c0_i32_3 = arith.constant 0 : i32
    return %c0_i32, %c0_i32_0, %c0_i32_1, %c0_i32_2 : i32, i32, i32, i32
  }
  func.func @transform_6(%arg0: i32) -> (i32, i32, i32) {
    %c0_i32 = arith.constant 0 : i32
    %c0_i32_0 = arith.constant 0 : i32
    %c0_i32_1 = arith.constant 0 : i32
    %c0_i32_2 = arith.constant 0 : i32
    return %c0_i32, %c0_i32_0, %c0_i32_1 : i32, i32, i32
  }
  func.func @transform_7(%arg0: i32) -> (i32, i32, i32) {
    %c0_i32 = arith.constant 0 : i32
    %c0_i32_0 = arith.constant 0 : i32
    %c0_i32_1 = arith.constant 0 : i32
    %c0_i32_2 = arith.constant 0 : i32
    return %c0_i32, %c0_i32_0, %c0_i32_1 : i32, i32, i32
  }
  func.func @transform_8(%arg0: i32) -> (i32, i32, i32) {
    %c0_i32 = arith.constant 0 : i32
    %c0_i32_0 = arith.constant 0 : i32
    %c0_i32_1 = arith.constant 0 : i32
    %c0_i32_2 = arith.constant 0 : i32
    return %c0_i32, %c0_i32_0, %c0_i32_1 : i32, i32, i32
  }
  func.func @transform_9(%arg0: i32) -> (i32, i32) {
    %c0_i32 = arith.constant 0 : i32
    %c0_i32_0 = arith.constant 0 : i32
    %c0_i32_1 = arith.constant 0 : i32
    return %c0_i32, %c0_i32_0 : i32, i32
  }
  func.func @transform_10(%arg0: i32) -> (i32, i32, i32) {
    %c0_i32 = arith.constant 0 : i32
    %c0_i32_0 = arith.constant 0 : i32
    %c0_i32_1 = arith.constant 0 : i32
    return %arg0, %c0_i32, %c0_i32_0 : i32, i32, i32
  }
}

</mosaic_0001>

<llo_original>
// kernel: resnet18_decoder_pallas.1
$region0: #{resnet18_decoder_pallas.1}
  #allocation0 [shape = 'u32[]', space=smem, size = 0x4, offset = 0x4, fixed_abs, tag = 'smem constant byte address 0x4 - core index']
  #allocation1 [shape = 'u32[144,128]{1,0:T(1,128)}', space=vmem, size = 0x12000, scoped, tag = 'internal scratch']
  #allocation2 [shape = 'f32[80,256]{1,0:T(8,128)}', space=vmem, size = 0x14000, scoped, tag = 'scratch operand']
  %s0 = inlined_call_operand.vmem [shape: f32[2,1,32], index: 0, kind: input, shape index: {}]
  %s1 = inlined_call_operand.vmem [shape: f32[32,32], index: 1, kind: input, shape index: {}]
  %s2 = inlined_call_operand.vmem [shape: f32[21,192], index: 2, kind: input, shape index: {}]
  %s3 = inlined_call_operand.vmem [shape: f32[3,3,128,64], index: 3, kind: input, shape index: {}]
  %s4 = inlined_call_operand.vmem [shape: f32[9,3,64,64], index: 4, kind: input, shape index: {}]
  %s5 = inlined_call_operand.vmem [shape: f32[4,3,128,128], index: 5, kind: input, shape index: {}]
  %s6 = inlined_call_operand.vmem [shape: f32[3,64,32], index: 6, kind: input, shape index: {}]
  %s7 = inlined_call_operand.vmem [shape: f32[7,256,192], index: 7, kind: input, shape index: {}]
  %s8 = inlined_call_operand.vmem [shape: f32[4,128,256], index: 8, kind: input, shape index: {}]
  %s9 = inlined_call_operand.vmem [shape: f32[64,32], index: 9, kind: input, shape index: {}]
  %s10 = inlined_call_operand.vmem [shape: f32[2,64,192], index: 10, kind: output, shape index: {}]
  %s11 = sld [smem:[#allocation0]]
  $region73: #{resnet18_decoder_pallas.1} parent=0
    _
  %s13 = ssub.s32 1, %s11
  %s14 = scalar_select 0, %s13, %s11
  loop: start=0, step=1, limit=4
  $region2: #{resnet18_decoder_pallas.1} parent=0 // loop_pre_header
    _
  $region3: #{resnet18_decoder_pallas.1} parent=0 // loop_header
    %s16 = sphi 0, %s20
    %p17 = scmp.ge.s32.totalorder %s16, 4
    %s26 = sphi 0, %s28
    %s29 = sphi 0, %s26
    %s30 = sphi 0, %s29
    %s46 = sphi 0, %s30
    %s50 = sphi 0, %s50
    %s52 = sphi 0, %s50
    %s53 = sphi 0, %s52
    %s67 = sphi 0, %s53
    %s71 = sphi 0, %s71
    %s73 = sphi 0, %s71
    %s74 = sphi 0, %s73
    %s88 = sphi 0, %s74
    %s92 = sphi 0, %s92
    %s94 = sphi 0, %s92
    %s95 = sphi 0, %s94
    %s109 = sphi 0, %s95
    %s113 = sphi 0, %s113
    %s115 = sphi 0, %s113
    %s116 = sphi 0, %s115
    %s130 = sphi 0, %s116
    %s134 = sphi 0, %s134
    %s136 = sphi 0, %s134
    %s137 = sphi 0, %s136
    %s151 = sphi 0, %s137
    %s155 = sphi 0, %s155
    %s157 = sphi 0, %s155
    %s158 = sphi 0, %s157
    %s172 = sphi 0, %s158
    %s176 = sphi 0, %s176
    %s178 = sphi 0, %s176
    %s179 = sphi 0, %s178
    %s193 = sphi 0, %s179
    %s197 = sphi 0, %s197
    %s199 = sphi 0, %s197
    %s200 = sphi 0, %s199
    %s214 = sphi 0, %s200
    %s218 = sphi 0, %s218
    %s220 = sphi 0, %s218
    %s221 = sphi 0, %s220
    %s235 = sphi 0, %s221
    %s241 = sphi 0, %s243
    %s244 = sphi 0, %s241
    %s245 = sphi 0, %s244
    %s261 = sphi 0, %s245
  $region4: #{resnet18_decoder_pallas.1} parent=0 // loop_header_branch
    %19 = sbr.rel (%p17) target = $region8
  $region5: #{resnet18_decoder_pallas.1} parent=0 // loop_body
    %s21 = ssub.s32 %s16, 1
    %s22 = ssub.s32 %s16, 2
    %s23 = sadd.s32 %s16, 1
    %s24 = ssub.s32 %s16, %s23
    %p25 = scmp.eq.s32.totalorder %s24, 0
    %s27 = sadd.s32 %s26, 1
    %s28 = scalar_select %p25, %s26, %s27
    %p31 = pneg %p25
    %p32 = scmp.eq.s32.totalorder %s16, 1
    %p33 = por %p31, %p32
    %p34 = scmp.ne.s32.totalorder %s26, %s29
    %p35 = scmp.eq.s32.totalorder %s16, 0
    %p36 = por %p34, %p35
    %p37 = scmp.ne.s32.totalorder %s26, %s29
    %p38 = scmp.eq.s32.totalorder %s21, 1
    %p39 = por %p37, %p38
    %p40 = scmp.ne.s32.totalorder %s29, %s30
    %p41 = scmp.eq.s32.totalorder %s21, 0
    %p42 = por %p40, %p41
    %p43 = scmp.ne.s32.totalorder %s29, %s30
    %p44 = scmp.eq.s32.totalorder %s22, 1
    %p45 = por %p43, %p44
    %p47 = scmp.ne.s32.totalorder %s30, %s46
    %p48 = scmp.eq.s32.totalorder %s22, 0
    %p49 = por %p47, %p48
    %s51 = sadd.s32 %s50, 1
    %p54 = scmp.eq.s32.totalorder %s16, 1
    %p55 = scmp.ne.s32.totalorder %s50, %s52
    %p56 = scmp.eq.s32.totalorder %s16, 0
    %p57 = por %p55, %p56
    %p58 = scmp.ne.s32.totalorder %s50, %s52
    %p59 = scmp.eq.s32.totalorder %s21, 1
    %p60 = por %p58, %p59
    %p61 = scmp.ne.s32.totalorder %s52, %s53
    %p62 = scmp.eq.s32.totalorder %s21, 0
    %p63 = por %p61, %p62
    %p64 = scmp.ne.s32.totalorder %s52, %s53
    %p65 = scmp.eq.s32.totalorder %s22, 1
    %p66 = por %p64, %p65
    %p68 = scmp.ne.s32.totalorder %s53, %s67
    %p69 = scmp.eq.s32.totalorder %s22, 0
    %p70 = por %p68, %p69
    %s72 = sadd.s32 %s71, 1
    %p75 = scmp.eq.s32.totalorder %s16, 1
    %p76 = scmp.ne.s32.totalorder %s71, %s73
    %p77 = scmp.eq.s32.totalorder %s16, 0
    %p78 = por %p76, %p77
    %p79 = scmp.ne.s32.totalorder %s71, %s73
    %p80 = scmp.eq.s32.totalorder %s21, 1
    %p81 = por %p79, %p80
    %p82 = scmp.ne.s32.totalorder %s73, %s74
    %p83 = scmp.eq.s32.totalorder %s21, 0
    %p84 = por %p82, %p83
    %p85 = scmp.ne.s32.totalorder %s73, %s74
    %p86 = scmp.eq.s32.totalorder %s22, 1
    %p87 = por %p85, %p86
    %p89 = scmp.ne.s32.totalorder %s74, %s88
    %p90 = scmp.eq.s32.totalorder %s22, 0
    %p91 = por %p89, %p90
    %s93 = sadd.s32 %s92, 1
    %p96 = scmp.eq.s32.totalorder %s16, 1
    %p97 = scmp.ne.s32.totalorder %s92, %s94
    %p98 = scmp.eq.s32.totalorder %s16, 0
    %p99 = por %p97, %p98
    %p100 = scmp.ne.s32.totalorder %s92, %s94
    %p101 = scmp.eq.s32.totalorder %s21, 1
    %p102 = por %p100, %p101
    %p103 = scmp.ne.s32.totalorder %s94, %s95
    %p104 = scmp.eq.s32.totalorder %s21, 0
    %p105 = por %p103, %p104
    %p106 = scmp.ne.s32.totalorder %s94, %s95
    %p107 = scmp.eq.s32.totalorder %s22, 1
    %p108 = por %p106, %p107
    %p110 = scmp.ne.s32.totalorder %s95, %s109
    %p111 = scmp.eq.s32.totalorder %s22, 0
    %p112 = por %p110, %p111
    %s114 = sadd.s32 %s113, 1
    %p117 = scmp.eq.s32.totalorder %s16, 1
    %p118 = scmp.ne.s32.totalorder %s113, %s115
    %p119 = scmp.eq.s32.totalorder %s16, 0
    %p120 = por %p118, %p119
    %p121 = scmp.ne.s32.totalorder %s113, %s115
    %p122 = scmp.eq.s32.totalorder %s21, 1
    %p123 = por %p121, %p122
    %p124 = scmp.ne.s32.totalorder %s115, %s116
    %p125 = scmp.eq.s32.totalorder %s21, 0
    %p126 = por %p124, %p125
    %p127 = scmp.ne.s32.totalorder %s115, %s116
    %p128 = scmp.eq.s32.totalorder %s22, 1
    %p129 = por %p127, %p128
    %p131 = scmp.ne.s32.totalorder %s116, %s130
    %p132 = scmp.eq.s32.totalorder %s22, 0
    %p133 = por %p131, %p132
    %s135 = sadd.s32 %s134, 1
    %p138 = scmp.eq.s32.totalorder %s16, 1
    %p139 = scmp.ne.s32.totalorder %s134, %s136
    %p140 = scmp.eq.s32.totalorder %s16, 0
    %p141 = por %p139, %p140
    %p142 = scmp.ne.s32.totalorder %s134, %s136
    %p143 = scmp.eq.s32.totalorder %s21, 1
    %p144 = por %p142, %p143
    %p145 = scmp.ne.s32.totalorder %s136, %s137
    %p146 = scmp.eq.s32.totalorder %s21, 0
    %p147 = por %p145, %p146
    %p148 = scmp.ne.s32.totalorder %s136, %s137
    %p149 = scmp.eq.s32.totalorder %s22, 1
    %p150 = por %p148, %p149
    %p152 = scmp.ne.s32.totalorder %s137, %s151
    %p153 = scmp.eq.s32.totalorder %s22, 0
    %p154 = por %p152, %p153
    %s156 = sadd.s32 %s155, 1
    %p159 = scmp.eq.s32.totalorder %s16, 1
    %p160 = scmp.ne.s32.totalorder %s155, %s157
    %p161 = scmp.eq.s32.totalorder %s16, 0
    %p162 = por %p160, %p161
    %p163 = scmp.ne.s32.totalorder %s155, %s157
    %p164 = scmp.eq.s32.totalorder %s21, 1
    %p165 = por %p163, %p164
    %p166 = scmp.ne.s32.totalorder %s157, %s158
    %p167 = scmp.eq.s32.totalorder %s21, 0
    %p168 = por %p166, %p167
    %p169 = scmp.ne.s32.totalorder %s157, %s158
    %p170 = scmp.eq.s32.totalorder %s22, 1
    %p171 = por %p169, %p170
    %p173 = scmp.ne.s32.totalorder %s158, %s172
    %p174 = scmp.eq.s32.totalorder %s22, 0
    %p175 = por %p173, %p174
    %s177 = sadd.s32 %s176, 1
    %p180 = scmp.eq.s32.totalorder %s16, 1
    %p181 = scmp.ne.s32.totalorder %s176, %s178
    %p182 = scmp.eq.s32.totalorder %s16, 0
    %p183 = por %p181, %p182
    %p184 = scmp.ne.s32.totalorder %s176, %s178
    %p185 = scmp.eq.s32.totalorder %s21, 1
    %p186 = por %p184, %p185
    %p187 = scmp.ne.s32.totalorder %s178, %s179
    %p188 = scmp.eq.s32.totalorder %s21, 0
    %p189 = por %p187, %p188
    %p190 = scmp.ne.s32.totalorder %s178, %s179
    %p191 = scmp.eq.s32.totalorder %s22, 1
    %p192 = por %p190, %p191
    %p194 = scmp.ne.s32.totalorder %s179, %s193
    %p195 = scmp.eq.s32.totalorder %s22, 0
    %p196 = por %p194, %p195
    %s198 = sadd.s32 %s197, 1
    %p201 = scmp.eq.s32.totalorder %s16, 1
    %p202 = scmp.ne.s32.totalorder %s197, %s199
    %p203 = scmp.eq.s32.totalorder %s16, 0
    %p204 = por %p202, %p203
    %p205 = scmp.ne.s32.totalorder %s197, %s199
    %p206 = scmp.eq.s32.totalorder %s21, 1
    %p207 = por %p205, %p206
    %p208 = scmp.ne.s32.totalorder %s199, %s200
    %p209 = scmp.eq.s32.totalorder %s21, 0
    %p210 = por %p208, %p209
    %p211 = scmp.ne.s32.totalorder %s199, %s200
    %p212 = scmp.eq.s32.totalorder %s22, 1
    %p213 = por %p211, %p212
    %p215 = scmp.ne.s32.totalorder %s200, %s214
    %p216 = scmp.eq.s32.totalorder %s22, 0
    %p217 = por %p215, %p216
    %s219 = sadd.s32 %s218, 1
    %p222 = scmp.eq.s32.totalorder %s16, 1
    %p223 = scmp.ne.s32.totalorder %s218, %s220
    %p224 = scmp.eq.s32.totalorder %s16, 0
    %p225 = por %p223, %p224
    %p226 = scmp.ne.s32.totalorder %s218, %s220
    %p227 = scmp.eq.s32.totalorder %s21, 1
    %p228 = por %p226, %p227
    %p229 = scmp.ne.s32.totalorder %s220, %s221
    %p230 = scmp.eq.s32.totalorder %s21, 0
    %p231 = por %p229, %p230
    %p232 = scmp.ne.s32.totalorder %s220, %s221
    %p233 = scmp.eq.s32.totalorder %s22, 1
    %p234 = por %p232, %p233
    %p236 = scmp.ne.s32.totalorder %s221, %s235
    %p237 = scmp.eq.s32.totalorder %s22, 0
    %p238 = por %p236, %p237
    %s239 = ssub.s32 %s16, %s23
    %p240 = scmp.eq.s32.totalorder %s239, 0
    %s242 = sadd.s32 %s241, 1
    %s243 = scalar_select %p240, %s241, %s242
    %p246 = pneg %p240
    %p247 = scmp.eq.s32.totalorder %s16, 1
    %p248 = por %p246, %p247
    %p249 = scmp.ne.s32.totalorder %s241, %s244
    %p250 = scmp.eq.s32.totalorder %s16, 0
    %p251 = por %p249, %p250
    %p252 = scmp.ne.s32.totalorder %s241, %s244
    %p253 = scmp.eq.s32.totalorder %s21, 1
    %p254 = por %p252, %p253
    %p255 = scmp.ne.s32.totalorder %s244, %s245
    %p256 = scmp.eq.s32.totalorder %s21, 0
    %p257 = por %p255, %p256
    %p258 = scmp.ne.s32.totalorder %s244, %s245
    %p259 = scmp.eq.s32.totalorder %s22, 1
    %p260 = por %p258, %p259
    %p262 = scmp.ne.s32.totalorder %s245, %s261
    %p263 = scmp.eq.s32.totalorder %s22, 0
    %p264 = por %p262, %p263
    %p265 = scmp.le.s32.totalorder 1, %s16
    %p266 = scmp.lt.s32.totalorder %s16, 3
    %p267 = pnand %p265, %p266
    %p268 = pneg %p267
    // Predicated region
    $region9: #{resnet18_decoder_pallas.1} parent=5 // pred_check
      _
    $region10: #{resnet18_decoder_pallas.1} parent=5 // pred_check_branch
      %270 = sbr.rel (%p267) target = $region12
    $region11: #{resnet18_decoder_pallas.1} parent=5 // pred_region
      %s271 = ssub.s32 %s16, 1
      // Predicated region
      $region13: #{resnet18_decoder_pallas.1} parent=11 // pred_check
        %p272 = pneg %p63
      $region14: #{resnet18_decoder_pallas.1} parent=11 // pred_check_branch
        %274 = sbr.rel (%p272) target = $region16
      $region15: #{resnet18_decoder_pallas.1} parent=11 // pred_region
        _
      $region16: #{resnet18_decoder_pallas.1} parent=11 // pred_fallthru
        _
      // Predicated region
      $region17: #{resnet18_decoder_pallas.1} parent=11 // pred_check
        %p275 = pneg %p84
      $region18: #{resnet18_decoder_pallas.1} parent=11 // pred_check_branch
        %277 = sbr.rel (%p275) target = $region20
      $region19: #{resnet18_decoder_pallas.1} parent=11 // pred_region
        _
      $region20: #{resnet18_decoder_pallas.1} parent=11 // pred_fallthru
        _
      // Predicated region
      $region21: #{resnet18_decoder_pallas.1} parent=11 // pred_check
        %p278 = pneg %p105
      $region22: #{resnet18_decoder_pallas.1} parent=11 // pred_check_branch
        %280 = sbr.rel (%p278) target = $region24
      $region23: #{resnet18_decoder_pallas.1} parent=11 // pred_region
        _
      $region24: #{resnet18_decoder_pallas.1} parent=11 // pred_fallthru
        _
      // Predicated region
      $region25: #{resnet18_decoder_pallas.1} parent=11 // pred_check
        %p281 = pneg %p126
      $region26: #{resnet18_decoder_pallas.1} parent=11 // pred_check_branch
        %283 = sbr.rel (%p281) target = $region28
      $region27: #{resnet18_decoder_pallas.1} parent=11 // pred_region
        _
      $region28: #{resnet18_decoder_pallas.1} parent=11 // pred_fallthru
        _
      // Predicated region
      $region29: #{resnet18_decoder_pallas.1} parent=11 // pred_check
        %p284 = pneg %p147
      $region30: #{resnet18_decoder_pallas.1} parent=11 // pred_check_branch
        %286 = sbr.rel (%p284) target = $region32
      $region31: #{resnet18_decoder_pallas.1} parent=11 // pred_region
        _
      $region32: #{resnet18_decoder_pallas.1} parent=11 // pred_fallthru
        _
      // Predicated region
      $region33: #{resnet18_decoder_pallas.1} parent=11 // pred_check
        %p287 = pneg %p168
      $region34: #{resnet18_decoder_pallas.1} parent=11 // pred_check_branch
        %289 = sbr.rel (%p287) target = $region36
      $region35: #{resnet18_decoder_pallas.1} parent=11 // pred_region
        _
      $region36: #{resnet18_decoder_pallas.1} parent=11 // pred_fallthru
        _
      // Predicated region
      $region37: #{resnet18_decoder_pallas.1} parent=11 // pred_check
        %p290 = pneg %p189
      $region38: #{resnet18_decoder_pallas.1} parent=11 // pred_check_branch
        %292 = sbr.rel (%p290) target = $region40
      $region39: #{resnet18_decoder_pallas.1} parent=11 // pred_region
        _
      $region40: #{resnet18_decoder_pallas.1} parent=11 // pred_fallthru
        _
      // Predicated region
      $region41: #{resnet18_decoder_pallas.1} parent=11 // pred_check
        %p293 = pneg %p210
      $region42: #{resnet18_decoder_pallas.1} parent=11 // pred_check_branch
        %295 = sbr.rel (%p293) target = $region44
      $region43: #{resnet18_decoder_pallas.1} parent=11 // pred_region
        _
      $region44: #{resnet18_decoder_pallas.1} parent=11 // pred_fallthru
        _
      // Predicated region
      $region45: #{resnet18_decoder_pallas.1} parent=11 // pred_check
        %p296 = pneg %p231
      $region46: #{resnet18_decoder_pallas.1} parent=11 // pred_check_branch
        %298 = sbr.rel (%p296) target = $region48
      $region47: #{resnet18_decoder_pallas.1} parent=11 // pred_region
        _
      $region48: #{resnet18_decoder_pallas.1} parent=11 // pred_fallthru
        _
    $region12: #{resnet18_decoder_pallas.1} parent=5 // pred_fallthru
      _
    %p299 = scmp.lt.s32.totalorder %s16, 2
    // Predicated region
    $region49: #{resnet18_decoder_pallas.1} parent=5 // pred_check
      %p300 = pneg %p299
    $region50: #{resnet18_decoder_pallas.1} parent=5 // pred_check_branch
      %302 = sbr.rel (%p300) target = $region52
    $region51: #{resnet18_decoder_pallas.1} parent=5 // pred_region
      // Predicated region
      $region53: #{resnet18_decoder_pallas.1} parent=51 // pred_check
        %p303 = pneg %p36
      $region54: #{resnet18_decoder_pallas.1} parent=51 // pred_check_branch
        %305 = sbr.rel (%p303) target = $region56
      $region55: #{resnet18_decoder_pallas.1} parent=51 // pred_region
        %p306 = scmp.lt.s32.totalorder %s16, 1
        %s307 = scalar_select %p306, %s16, 1
        %s308 = scalar_lea.vmem %s0, %s307
      $region56: #{resnet18_decoder_pallas.1} parent=51 // pred_fallthru
        _
    $region52: #{resnet18_decoder_pallas.1} parent=5 // pred_fallthru
      _
    %p309 = scmp.le.s32.totalorder 1, %s16
    %p310 = scmp.lt.s32.totalorder %s16, 3
    %p311 = pnand %p309, %p310
    %p312 = pneg %p311
    // Predicated region
    $region57: #{resnet18_decoder_pallas.1} parent=5 // pred_check
      _
    $region58: #{resnet18_decoder_pallas.1} parent=5 // pred_check_branch
      %314 = sbr.rel (%p311) target = $region60
    $region59: #{resnet18_decoder_pallas.1} parent=5 // pred_region
      %s315 = ssub.s32 %s16, 1
      %p316 = scmp.lt.s32.totalorder %s21, 1
      %s317 = scalar_select %p316, %s21, 1
      %s318 = scalar_lea.vmem %s0, %s317
      %p319 = pneg %p42
      %p320 = pneg %p39
      %p321 = pneg %p63
      %p322 = pneg %p60
      %p323 = pneg %p84
      %p324 = pneg %p81
      %p325 = pneg %p105
      %p326 = pneg %p102
      %p327 = pneg %p126
      %p328 = pneg %p123
      %p329 = pneg %p147
      %p330 = pneg %p144
      %p331 = pneg %p168
      %p332 = pneg %p165
      %p333 = pneg %p189
      %p334 = pneg %p186
      %p335 = pneg %p210
      %p336 = pneg %p207
      %p337 = pneg %p231
      %p338 = pneg %p228
      %p339 = pneg %p257
      %p340 = pneg %p254
      %p341 = scmp.lt.s32.totalorder %s21, 1
      %s342 = scalar_select %p341, %s21, 1
      %s343 = smul.addr %s342, 16
      %s344 = smul.addr %s343, 8
      %s345 = scalar_lea.vmem %s10, %s344
      %p346 = scmp.lt.s32.totalorder %s21, 1
      %s347 = scalar_select %p346, %s21, 1
      %s348 = scalar_lea.vmem %s0, %s347
      %p349 = scmp.lt.s32.totalorder %s21, 1
      %s350 = scalar_select %p349, %s21, 1
      %s351 = smul.addr %s350, 16
      %s352 = smul.addr %s351, 8
      %s353 = scalar_lea.vmem %s10, %s352
      %354 = vst [vmem:[#allocation2] sm:$0xe0] 0.0
      %355 = vst [vmem:[#allocation2 + $0x8] sm:$0xe0] 0.0
      %356 = vst [vmem:[#allocation2 + $0x90] sm:$0x7] 0.0
      %357 = vst [vmem:[#allocation2 + $0x98] sm:$0x7] 0.0
      %v358 = vlaneseq
      %vm359 = vcmp.ge.s32.totalorder %v358, 0
      %vm360 = vcmp.lt.s32.totalorder %v358, 256
      %vm361 = vmand %vm359, %vm360
      %s362 = scalar_lea.vmem [#allocation2], 20
      %363 = vst.msk [vmem:[%s362] ss:$8 sm:$0x3] %vm361, 0.0
      %364 = vst.msk [vmem:[%s362] ss:$8 sm:$0x0] %vm361, 0.0
      %s365 = scalar_lea.vmem [#allocation2], 32
      %366 = vst.msk [vmem:[%s365] ss:$8 sm:$0x3] %vm361, 0.0
      %367 = vst.msk [vmem:[%s365] ss:$8 sm:$0x0] %vm361, 0.0
      %s368 = scalar_lea.vmem [#allocation2], 48
      %369 = vst.msk [vmem:[%s368] ss:$8 sm:$0x3] %vm361, 0.0
      %370 = vst.msk [vmem:[%s368] ss:$8 sm:$0x0] %vm361, 0.0
      %s371 = scalar_lea.vmem [#allocation2], 80
      %372 = vst.msk [vmem:[%s371] ss:$8 sm:$0x3] %vm361, 0.0
      %373 = vst.msk [vmem:[%s371] ss:$8 sm:$0x0] %vm361, 0.0
      %v374 = vld [vmem:[%s348] sm:$0x1]
      %v375 = vld [vmem:[%s1] sm:$0xff]
      %v376 = vld [vmem:[%s1 + $0x8] sm:$0xff]
      %v377 = vld [vmem:[%s1 + $0x10] sm:$0xff]
      %v378 = vld [vmem:[%s1 + $0x18] sm:$0xff]
      %v379 = vld [vmem:[%s2] ss:$0 sm:$0xff]
      %vm380 = vcmask 261120
      %v382 = vsel %vm380, %v374, 0
      %384 = vmatprep.subr.mxu0 0.0
      %385 = vmatpush1.msra.mxu0 %v375
      %386 = vmatprep.subr.mxu0 0.0
      %387 = vmatpush1.msra.mxu0 %v376
      %388 = vmatprep.subr.mxu0 0.0
      %389 = vmatpush1.msra.mxu0 %v377
      %390 = vmatprep.subr.mxu0 0.0
      %391 = vmatpush1.msra.mxu0 %v378
      %392 = vmatprep.subr.mxu0 0.0
      %393 = vmatpush1.msra.mxu0 0.0
      %394 = vmatprep.subr.mxu0 0.0
      %395 = vmatpush1.msra.mxu0 0.0
      %396 = vmatprep.subr.mxu0 0.0
      %397 = vmatpush1.msra.mxu0 0.0
      %398 = vmatprep.subr.mxu0 0.0
      %399 = vmatpush1.msra.mxu0 0.0
      %400 = vmatprep.subr.mxu0 0.0
      %401 = vmatpush1.msra.mxu0 0.0
      %402 = vmatprep.subr.mxu0 0.0
      %403 = vmatpush1.msra.mxu0 0.0
      %404 = vmatprep.subr.mxu0 0.0
      %405 = vmatpush1.msra.mxu0 0.0
      %406 = vmatprep.subr.mxu0 0.0
      %407 = vmatpush1.msra.mxu0 0.0
      %408 = vmatprep.subr.mxu0 0.0
      %409 = vmatpush1.msra.mxu0 0.0
      %410 = vmatprep.subr.mxu0 0.0
      %411 = vmatpush1.msra.mxu0 0.0
      %412 = vmatprep.subr.mxu0 0.0
      %413 = vmatpush1.msra.mxu0 0.0
      %414 = vmatprep.subr.mxu0 0.0
      %415 = vmatpush1.msra.mxu0 0.0
      %416 = vmatprep.subr.mxu0 0.0
      %417 = vmatpush1.msra.mxu0 0.0
      %418 = vmatprep.subr.mxu0 0.0
      %419 = vmatpush1.msra.mxu0 0.0
      %420 = vmatprep.subr.mxu0 0.0
      %421 = vmatpush1.msra.mxu0 0.0
      %422 = vmatprep.subr.mxu0 0.0
      %423 = vmatpush1.msra.mxu0 0.0
      %424 = vmatprep.subr.mxu0 0.0
      %425 = vmatpush1.msra.mxu0 0.0
      %426 = vmatprep.subr.mxu0 0.0
      %427 = vmatpush1.msra.mxu0 0.0
      %428 = vmatprep.subr.mxu0 0.0
      %429 = vmatpush1.msra.mxu0 0.0
      %430 = vmatprep.subr.mxu0 0.0
      %431 = vmatpush1.msra.mxu0 0.0
      %432 = vmatprep.subr.mxu0 0.0
      %433 = vmatpush1.msra.mxu0 0.0
      %434 = vmatprep.subr.mxu0 0.0
      %435 = vmatpush1.msra.mxu0 0.0
      %436 = vmatprep.subr.mxu0 0.0
      %437 = vmatpush1.msra.mxu0 0.0
      %438 = vmatprep.subr.mxu0 0.0
      %439 = vmatpush1.msra.mxu0 0.0
      %440 = vmatprep.subr.mxu0 0.0
      %441 = vmatpush1.msra.mxu0 0.0
      %442 = vmatprep.subr.mxu0 0.0
      %443 = vmatpush1.msra.mxu0 0.0
      %444 = vmatprep.subr.mxu0 0.0
      %445 = vmatpush1.msra.mxu0 0.0
      %446 = vmatprep.subr.mxu0 0.0
      %447 = vmatpush1.msra.mxu0 0.0
      %448 = vmatprep.mubr.f32.mxu0 0.0
      %449 = vmatmul.mubr.f32.gmra.mrb[0].mxu0 %v382
      %v450 = vpop.f32.mrb[0].mxu0
      %v451 = vadd.f32 %v379, %v450
      %v452 = vpop.f32.mrb[0].mxu0
      %453 = vdwg.mxu0
      %v454 = vmax.f32 %v451, 0.0
      %456 = vrot.lane.b32.xlu0 %v454, 32
      %v457 = vpop.permute.xlu0 %456
      %v459 = vsel %vm380, %v454, %v457
      %v460 = vlaneseq
      %v461 = vshrl.u32 %v460, 7
      %v462 = vsub.s32 0, %v461
      %v463 = vrot.slane %v459, %v462
      %v464 = vld [vmem:[%s6] sm:$0xff]
      %v465 = vld [vmem:[%s6 + $0x8] sm:$0xff]
      %v466 = vld [vmem:[%s6 + $0x10] sm:$0xff]
      %v467 = vld [vmem:[%s6 + $0x18] sm:$0xff]
      %v468 = vld [vmem:[%s6 + $0x20] sm:$0xff]
      %v469 = vld [vmem:[%s6 + $0x28] sm:$0xff]
      %v470 = vld [vmem:[%s6 + $0x30] sm:$0xff]
      %v471 = vld [vmem:[%s6 + $0x38] sm:$0xff]
      %v472 = vld [vmem:[%s2 + $0x21] ss:$0 sm:$0xff]
      %vm473 = vcmask 523264
      %v475 = vsel %vm473, %v463, 0
      %477 = vmatprep.subr.mxu0 0.0
      %478 = vmatpush1.msra.mxu0 %v464
      %479 = vmatprep.subr.mxu0 0.0
      %480 = vmatpush1.msra.mxu0 %v465
      %481 = vmatprep.subr.mxu0 0.0
      %482 = vmatpush1.msra.mxu0 %v466
      %483 = vmatprep.subr.mxu0 0.0
      %484 = vmatpush1.msra.mxu0 %v467
      %485 = vmatprep.subr.mxu0 0.0
      %486 = vmatpush1.msra.mxu0 %v468
      %487 = vmatprep.subr.mxu0 0.0
      %488 = vmatpush1.msra.mxu0 %v469
      %489 = vmatprep.subr.mxu0 0.0
      %490 = vmatpush1.msra.mxu0 %v470
      %491 = vmatprep.subr.mxu0 0.0
      %492 = vmatpush1.msra.mxu0 %v471
      %493 = vmatprep.subr.mxu0 0.0
      %494 = vmatpush1.msra.mxu0 0.0
      %495 = vmatprep.subr.mxu0 0.0
      %496 = vmatpush1.msra.mxu0 0.0
      %497 = vmatprep.subr.mxu0 0.0
      %498 = vmatpush1.msra.mxu0 0.0
      %499 = vmatprep.subr.mxu0 0.0
      %500 = vmatpush1.msra.mxu0 0.0
      %501 = vmatprep.subr.mxu0 0.0
      %502 = vmatpush1.msra.mxu0 0.0
      %503 = vmatprep.subr.mxu0 0.0
      %504 = vmatpush1.msra.mxu0 0.0
      %505 = vmatprep.subr.mxu0 0.0
      %506 = vmatpush1.msra.mxu0 0.0
      %507 = vmatprep.subr.mxu0 0.0
      %508 = vmatpush1.msra.mxu0 0.0
      %509 = vmatprep.subr.mxu0 0.0
      %510 = vmatpush1.msra.mxu0 0.0
      %511 = vmatprep.subr.mxu0 0.0
      %512 = vmatpush1.msra.mxu0 0.0
      %513 = vmatprep.subr.mxu0 0.0
      %514 = vmatpush1.msra.mxu0 0.0
      %515 = vmatprep.subr.mxu0 0.0
      %516 = vmatpush1.msra.mxu0 0.0
      %517 = vmatprep.subr.mxu0 0.0
      %518 = vmatpush1.msra.mxu0 0.0
      %519 = vmatprep.subr.mxu0 0.0
      %520 = vmatpush1.msra.mxu0 0.0
      %521 = vmatprep.subr.mxu0 0.0
      %522 = vmatpush1.msra.mxu0 0.0
      %523 = vmatprep.subr.mxu0 0.0
      %524 = vmatpush1.msra.mxu0 0.0
      %525 = vmatprep.subr.mxu0 0.0
      %526 = vmatpush1.msra.mxu0 0.0
      %527 = vmatprep.subr.mxu0 0.0
      %528 = vmatpush1.msra.mxu0 0.0
      %529 = vmatprep.subr.mxu0 0.0
      %530 = vmatpush1.msra.mxu0 0.0
      %531 = vmatprep.subr.mxu0 0.0
      %532 = vmatpush1.msra.mxu0 0.0
      %533 = vmatprep.subr.mxu0 0.0
      %534 = vmatpush1.msra.mxu0 0.0
      %535 = vmatprep.subr.mxu0 0.0
      %536 = vmatpush1.msra.mxu0 0.0
      %537 = vmatprep.subr.mxu0 0.0
      %538 = vmatpush1.msra.mxu0 0.0
      %539 = vmatprep.subr.mxu0 0.0
      %540 = vmatpush1.msra.mxu0 0.0
      %541 = vmatprep.mubr.f32.mxu0 0.0
      %542 = vmatmul.mubr.f32.gmra.mrb[0].mxu0 %v475
      %v543 = vpop.f32.mrb[0].mxu0
      %v544 = vadd.f32 %v472, %v543
      %v545 = vpop.f32.mrb[0].mxu0
      %546 = vdwg.mxu0
      %s547 = scalar_lea.vmem %s8, 256
      %v548 = vld [vmem:[%s547] sm:$0xff]
      %v549 = vld [vmem:[%s547 + $0x10] sm:$0xff]
      %v550 = vld [vmem:[%s547 + $0x20] sm:$0xff]
      %v551 = vld [vmem:[%s547 + $0x30] sm:$0xff]
      %v553 = vsel %vm380, %v544, 0
      %555 = vmatprep.subr.mxu0 0.0
      %556 = vmatpush1.msra.mxu0 %v548
      %557 = vmatprep.subr.mxu0 0.0
      %558 = vmatpush1.msra.mxu0 %v549
      %559 = vmatprep.subr.mxu0 0.0
      %560 = vmatpush1.msra.mxu0 %v550
      %561 = vmatprep.subr.mxu0 0.0
      %562 = vmatpush1.msra.mxu0 %v551
      %563 = vmatprep.subr.mxu0 0.0
      %564 = vmatpush1.msra.mxu0 0.0
      %565 = vmatprep.subr.mxu0 0.0
      %566 = vmatpush1.msra.mxu0 0.0
      %567 = vmatprep.subr.mxu0 0.0
      %568 = vmatpush1.msra.mxu0 0.0
      %569 = vmatprep.subr.mxu0 0.0
      %570 = vmatpush1.msra.mxu0 0.0
      %571 = vmatprep.subr.mxu0 0.0
      %572 = vmatpush1.msra.mxu0 0.0
      %573 = vmatprep.subr.mxu0 0.0
      %574 = vmatpush1.msra.mxu0 0.0
      %575 = vmatprep.subr.mxu0 0.0
      %576 = vmatpush1.msra.mxu0 0.0
      %577 = vmatprep.subr.mxu0 0.0
      %578 = vmatpush1.msra.mxu0 0.0
      %579 = vmatprep.subr.mxu0 0.0
      %580 = vmatpush1.msra.mxu0 0.0
      %581 = vmatprep.subr.mxu0 0.0
      %582 = vmatpush1.msra.mxu0 0.0
      %583 = vmatprep.subr.mxu0 0.0
      %584 = vmatpush1.msra.mxu0 0.0
      %585 = vmatprep.subr.mxu0 0.0
      %586 = vmatpush1.msra.mxu0 0.0
      %587 = vmatprep.subr.mxu0 0.0
      %588 = vmatpush1.msra.mxu0 0.0
      %589 = vmatprep.subr.mxu0 0.0
      %590 = vmatpush1.msra.mxu0 0.0
      %591 = vmatprep.subr.mxu0 0.0
      %592 = vmatpush1.msra.mxu0 0.0
      %593 = vmatprep.subr.mxu0 0.0
      %594 = vmatpush1.msra.mxu0 0.0
      %595 = vmatprep.subr.mxu0 0.0
      %596 = vmatpush1.msra.mxu0 0.0
      %597 = vmatprep.subr.mxu0 0.0
      %598 = vmatpush1.msra.mxu0 0.0
      %599 = vmatprep.subr.mxu0 0.0
      %600 = vmatpush1.msra.mxu0 0.0
      %601 = vmatprep.subr.mxu0 0.0
      %602 = vmatpush1.msra.mxu0 0.0
      %603 = vmatprep.subr.mxu0 0.0
      %604 = vmatpush1.msra.mxu0 0.0
      %605 = vmatprep.subr.mxu0 0.0
      %606 = vmatpush1.msra.mxu0 0.0
      %607 = vmatprep.subr.mxu0 0.0
      %608 = vmatpush1.msra.mxu0 0.0
      %609 = vmatprep.subr.mxu0 0.0
      %610 = vmatpush1.msra.mxu0 0.0
      %611 = vmatprep.subr.mxu0 0.0
      %612 = vmatpush1.msra.mxu0 0.0
      %613 = vmatprep.subr.mxu0 0.0
      %614 = vmatpush1.msra.mxu0 0.0
      %615 = vmatprep.subr.mxu0 0.0
      %616 = vmatpush1.msra.mxu0 0.0
      %617 = vmatprep.subr.mxu0 0.0
      %618 = vmatpush1.msra.mxu0 0.0
      %619 = vmatprep.mubr.f32.mxu0 0.0
      %620 = vmatmul.mubr.f32.gmra.mrb[0].mxu0 %v553
      %v621 = vpop.f32.mrb[0].mxu0
      %v622 = vadd.f32 0.0, %v621
      %v623 = vpop.f32.mrb[0].mxu0
      %624 = vdwg.mxu0
      %v625 = vld [vmem:[%s9] sm:$0xf]
      %vm626 = vcmask 15360
      %v628 = vsel %vm626, %v625, 0
      %vm630 = vcmask 1041408
      %v632 = vsel %vm630, %v622, 0
      %634 = vmatprep.subr.mxu0 0.0
      %635 = vmatpush1.msra.mxu0 %v632
      %636 = vmatprep.subr.mxu0 0.0
      %637 = vmatpush1.msra.mxu0 0.0
      %638 = vmatprep.subr.mxu0 0.0
      %639 = vmatpush1.msra.mxu0 0.0
      %640 = vmatprep.subr.mxu0 0.0
      %641 = vmatpush1.msra.mxu0 0.0
      %642 = vmatprep.subr.mxu0 0.0
      %643 = vmatpush1.msra.mxu0 0.0
      %644 = vmatprep.subr.mxu0 0.0
      %645 = vmatpush1.msra.mxu0 0.0
      %646 = vmatprep.subr.mxu0 0.0
      %647 = vmatpush1.msra.mxu0 0.0
      %648 = vmatprep.subr.mxu0 0.0
      %649 = vmatpush1.msra.mxu0 0.0
      %650 = vmatprep.subr.mxu0 0.0
      %651 = vmatpush1.msra.mxu0 0.0
      %652 = vmatprep.subr.mxu0 0.0
      %653 = vmatpush1.msra.mxu0 0.0
      %654 = vmatprep.subr.mxu0 0.0
      %655 = vmatpush1.msra.mxu0 0.0
      %656 = vmatprep.subr.mxu0 0.0
      %657 = vmatpush1.msra.mxu0 0.0
      %658 = vmatprep.subr.mxu0 0.0
      %659 = vmatpush1.msra.mxu0 0.0
      %660 = vmatprep.subr.mxu0 0.0
      %661 = vmatpush1.msra.mxu0 0.0
      %662 = vmatprep.subr.mxu0 0.0
      %663 = vmatpush1.msra.mxu0 0.0
      %664 = vmatprep.subr.mxu0 0.0
      %665 = vmatpush1.msra.mxu0 0.0
      %666 = vmatprep.subr.mxu0 0.0
      %667 = vmatpush1.msra.mxu0 0.0
      %668 = vmatprep.subr.mxu0 0.0
      %669 = vmatpush1.msra.mxu0 0.0
      %670 = vmatprep.subr.mxu0 0.0
      %671 = vmatpush1.msra.mxu0 0.0
      %672 = vmatprep.subr.mxu0 0.0
      %673 = vmatpush1.msra.mxu0 0.0
      %674 = vmatprep.subr.mxu0 0.0
      %675 = vmatpush1.msra.mxu0 0.0
      %676 = vmatprep.subr.mxu0 0.0
      %677 = vmatpush1.msra.mxu0 0.0
      %678 = vmatprep.subr.mxu0 0.0
      %679 = vmatpush1.msra.mxu0 0.0
      %680 = vmatprep.subr.mxu0 0.0
      %681 = vmatpush1.msra.mxu0 0.0
      %682 = vmatprep.subr.mxu0 0.0
      %683 = vmatpush1.msra.mxu0 0.0
      %684 = vmatprep.subr.mxu0 0.0
      %685 = vmatpush1.msra.mxu0 0.0
      %686 = vmatprep.subr.mxu0 0.0
      %687 = vmatpush1.msra.mxu0 0.0
      %688 = vmatprep.subr.mxu0 0.0
      %689 = vmatpush1.msra.mxu0 0.0
      %690 = vmatprep.subr.mxu0 0.0
      %691 = vmatpush1.msra.mxu0 0.0
      %692 = vmatprep.subr.mxu0 0.0
      %693 = vmatpush1.msra.mxu0 0.0
      %694 = vmatprep.subr.mxu0 0.0
      %695 = vmatpush1.msra.mxu0 0.0
      %696 = vmatprep.subr.mxu0 0.0
      %697 = vmatpush1.msra.mxu0 0.0
      %698 = vmatprep.mubr.f32.mxu0 0.0
      %699 = vmatmul.mubr.f32.gmra.mrb[0].mxu0 %v628
      %v700 = vpop.f32.mrb[0].mxu0
      %v701 = vadd.f32 0.0, %v700
      %v702 = vpop.f32.mrb[0].mxu0
      %703 = vdwg.mxu0
      %v704 = vld [vmem:[%s8] sm:$0xff]
      %v705 = vld [vmem:[%s8 + $0x10] sm:$0xff]
      %v706 = vld [vmem:[%s8 + $0x20] sm:$0xff]
      %v707 = vld [vmem:[%s8 + $0x30] sm:$0xff]
      %v708 = vld [vmem:[%s8 + $0x40] sm:$0xff]
      %v709 = vld [vmem:[%s8 + $0x50] sm:$0xff]
      %v710 = vld [vmem:[%s8 + $0x60] sm:$0xff]
      %v711 = vld [vmem:[%s8 + $0x70] sm:$0xff]
      %712 = vmatprep.subr.mxu0 0.0
      %713 = vmatpush1.msra.mxu0 %v704
      %714 = vmatprep.subr.mxu0 0.0
      %715 = vmatpush1.msra.mxu0 %v705
      %716 = vmatprep.subr.mxu0 0.0
      %717 = vmatpush1.msra.mxu0 %v706
      %718 = vmatprep.subr.mxu0 0.0
      %719 = vmatpush1.msra.mxu0 %v707
      %720 = vmatprep.subr.mxu0 0.0
      %721 = vmatpush1.msra.mxu0 %v708
      %722 = vmatprep.subr.mxu0 0.0
      %723 = vmatpush1.msra.mxu0 %v709
      %724 = vmatprep.subr.mxu0 0.0
      %725 = vmatpush1.msra.mxu0 %v710
      %726 = vmatprep.subr.mxu0 0.0
      %727 = vmatpush1.msra.mxu0 %v711
      %728 = vmatprep.subr.mxu0 0.0
      %729 = vmatpush1.msra.mxu0 0.0
      %730 = vmatprep.subr.mxu0 0.0
      %731 = vmatpush1.msra.mxu0 0.0
      %732 = vmatprep.subr.mxu0 0.0
      %733 = vmatpush1.msra.mxu0 0.0
      %734 = vmatprep.subr.mxu0 0.0
      %735 = vmatpush1.msra.mxu0 0.0
      %736 = vmatprep.subr.mxu0 0.0
      %737 = vmatpush1.msra.mxu0 0.0
      %738 = vmatprep.subr.mxu0 0.0
      %739 = vmatpush1.msra.mxu0 0.0
      %740 = vmatprep.subr.mxu0 0.0
      %741 = vmatpush1.msra.mxu0 0.0
      %742 = vmatprep.subr.mxu0 0.0
      %743 = vmatpush1.msra.mxu0 0.0
      %744 = vmatprep.subr.mxu0 0.0
      %745 = vmatpush1.msra.mxu0 0.0
      %746 = vmatprep.subr.mxu0 0.0
      %747 = vmatpush1.msra.mxu0 0.0
      %748 = vmatprep.subr.mxu0 0.0
      %749 = vmatpush1.msra.mxu0 0.0
      %750 = vmatprep.subr.mxu0 0.0
      %751 = vmatpush1.msra.mxu0 0.0
      %752 = vmatprep.subr.mxu0 0.0
      %753 = vmatpush1.msra.mxu0 0.0
      %754 = vmatprep.subr.mxu0 0.0
      %755 = vmatpush1.msra.mxu0 0.0
      %756 = vmatprep.subr.mxu0 0.0
      %757 = vmatpush1.msra.mxu0 0.0
      %758 = vmatprep.subr.mxu0 0.0
      %759 = vmatpush1.msra.mxu0 0.0
      %760 = vmatprep.subr.mxu0 0.0
      %761 = vmatpush1.msra.mxu0 0.0
      %762 = vmatprep.subr.mxu0 0.0
      %763 = vmatpush1.msra.mxu0 0.0
      %764 = vmatprep.subr.mxu0 0.0
      %765 = vmatpush1.msra.mxu0 0.0
      %766 = vmatprep.subr.mxu0 0.0
      %767 = vmatpush1.msra.mxu0 0.0
      %768 = vmatprep.subr.mxu0 0.0
      %769 = vmatpush1.msra.mxu0 0.0
      %770 = vmatprep.subr.mxu0 0.0
      %771 = vmatpush1.msra.mxu0 0.0
      %772 = vmatprep.subr.mxu0 0.0
      %773 = vmatpush1.msra.mxu0 0.0
      %774 = vmatprep.subr.mxu0 0.0
      %775 = vmatpush1.msra.mxu0 0.0
      %776 = vmatprep.mubr.f32.mxu0 0.0
      %777 = vmatmul.mubr.f32.gmra.mrb[0].mxu0 %v475
      %v778 = vpop.f32.mrb[0].mxu0
      %v779 = vadd.f32 0.0, %v778
      %v780 = vpop.f32.mrb[0].mxu0
      %781 = vdwg.mxu0
      %v783 = vsel %vm630, %v779, 0
      %785 = vmatprep.subr.mxu0 0.0
      %786 = vmatpush1.msra.mxu0 %v783
      %787 = vmatprep.subr.mxu0 0.0
      %788 = vmatpush1.msra.mxu0 0.0
      %789 = vmatprep.subr.mxu0 0.0
      %790 = vmatpush1.msra.mxu0 0.0
      %791 = vmatprep.subr.mxu0 0.0
      %792 = vmatpush1.msra.mxu0 0.0
      %793 = vmatprep.subr.mxu0 0.0
      %794 = vmatpush1.msra.mxu0 0.0
      %795 = vmatprep.subr.mxu0 0.0
      %796 = vmatpush1.msra.mxu0 0.0
      %797 = vmatprep.subr.mxu0 0.0
      %798 = vmatpush1.msra.mxu0 0.0
      %799 = vmatprep.subr.mxu0 0.0
      %800 = vmatpush1.msra.mxu0 0.0
      %801 = vmatprep.subr.mxu0 0.0
      %802 = vmatpush1.msra.mxu0 0.0
      %803 = vmatprep.subr.mxu0 0.0
      %804 = vmatpush1.msra.mxu0 0.0
      %805 = vmatprep.subr.mxu0 0.0
      %806 = vmatpush1.msra.mxu0 0.0
      %807 = vmatprep.subr.mxu0 0.0
      %808 = vmatpush1.msra.mxu0 0.0
      %809 = vmatprep.subr.mxu0 0.0
      %810 = vmatpush1.msra.mxu0 0.0
      %811 = vmatprep.subr.mxu0 0.0
      %812 = vmatpush1.msra.mxu0 0.0
      %813 = vmatprep.subr.mxu0 0.0
      %814 = vmatpush1.msra.mxu0 0.0
      %815 = vmatprep.subr.mxu0 0.0
      %816 = vmatpush1.msra.mxu0 0.0
      %817 = vmatprep.subr.mxu0 0.0
      %818 = vmatpush1.msra.mxu0 0.0
      %819 = vmatprep.subr.mxu0 0.0
      %820 = vmatpush1.msra.mxu0 0.0
      %821 = vmatprep.subr.mxu0 0.0
      %822 = vmatpush1.msra.mxu0 0.0
      %823 = vmatprep.subr.mxu0 0.0
      %824 = vmatpush1.msra.mxu0 0.0
      %825 = vmatprep.subr.mxu0 0.0
      %826 = vmatpush1.msra.mxu0 0.0
      %827 = vmatprep.subr.mxu0 0.0
      %828 = vmatpush1.msra.mxu0 0.0
      %829 = vmatprep.subr.mxu0 0.0
      %830 = vmatpush1.msra.mxu0 0.0
      %831 = vmatprep.subr.mxu0 0.0
      %832 = vmatpush1.msra.mxu0 0.0
      %833 = vmatprep.subr.mxu0 0.0
      %834 = vmatpush1.msra.mxu0 0.0
      %835 = vmatprep.subr.mxu0 0.0
      %836 = vmatpush1.msra.mxu0 0.0
      %837 = vmatprep.subr.mxu0 0.0
      %838 = vmatpush1.msra.mxu0 0.0
      %839 = vmatprep.subr.mxu0 0.0
      %840 = vmatpush1.msra.mxu0 0.0
      %841 = vmatprep.subr.mxu0 0.0
      %842 = vmatpush1.msra.mxu0 0.0
      %843 = vmatprep.subr.mxu0 0.0
      %844 = vmatpush1.msra.mxu0 0.0
      %845 = vmatprep.subr.mxu0 0.0
      %846 = vmatpush1.msra.mxu0 0.0
      %847 = vmatprep.subr.mxu0 0.0
      %848 = vmatpush1.msra.mxu0 0.0
      %849 = vmatprep.mubr.f32.mxu0 0.0
      %850 = vmatmul.mubr.f32.gmra.mrb[0].mxu0 %v628
      %v851 = vpop.f32.mrb[0].mxu0
      %v852 = vadd.f32 0.0, %v851
      %v853 = vpop.f32.mrb[0].mxu0
      %854 = vdwg.mxu0
      %855 = vst [vmem:[#allocation2 + $0x10] sm:$0xf] %v852
      %v856 = vld [vmem:[#allocation2] sm:$0x80]
      %v857 = vld [vmem:[#allocation2 + $0x10] sm:$0x7]
      %v858 = vld [vmem:[%s3] sm:$0xff]
      %v859 = vld [vmem:[%s3 + $0x8] sm:$0xff]
      %v860 = vld [vmem:[%s3 + $0x10] sm:$0xff]
      %v861 = vld [vmem:[%s3 + $0x18] sm:$0xff]
      %v862 = vld [vmem:[%s3 + $0x20] sm:$0xff]
      %v863 = vld [vmem:[%s3 + $0x28] sm:$0xff]
      %v864 = vld [vmem:[%s3 + $0x30] sm:$0xff]
      %v865 = vld [vmem:[%s3 + $0x38] sm:$0xff]
      %v866 = vld [vmem:[%s3 + $0x40] sm:$0xff]
      %v867 = vld [vmem:[%s3 + $0x48] sm:$0xff]
      %v868 = vld [vmem:[%s3 + $0x50] sm:$0xff]
      %v869 = vld [vmem:[%s3 + $0x58] sm:$0xff]
      %v870 = vld [vmem:[%s3 + $0x60] sm:$0xff]
      %v871 = vld [vmem:[%s3 + $0x68] sm:$0xff]
      %v872 = vld [vmem:[%s3 + $0x70] sm:$0xff]
      %v873 = vld [vmem:[%s3 + $0x78] sm:$0xff]
      %v874 = vld [vmem:[#allocation2 + $0x10] sm:$0xf]
      %s875 = scalar_lea.vmem %s3, 128
      %v876 = vld [vmem:[%s875] sm:$0xff]
      %v877 = vld [vmem:[%s875 + $0x8] sm:$0xff]
      %v878 = vld [vmem:[%s875 + $0x10] sm:$0xff]
      %v879 = vld [vmem:[%s875 + $0x18] sm:$0xff]
      %v880 = vld [vmem:[%s875 + $0x20] sm:$0xff]
      %v881 = vld [vmem:[%s875 + $0x28] sm:$0xff]
      %v882 = vld [vmem:[%s875 + $0x30] sm:$0xff]
      %v883 = vld [vmem:[%s875 + $0x38] sm:$0xff]
      %v884 = vld [vmem:[%s875 + $0x40] sm:$0xff]
      %v885 = vld [vmem:[%s875 + $0x48] sm:$0xff]
      %v886 = vld [vmem:[%s875 + $0x50] sm:$0xff]
      %v887 = vld [vmem:[%s875 + $0x58] sm:$0xff]
      %v888 = vld [vmem:[%s875 + $0x60] sm:$0xff]
      %v889 = vld [vmem:[%s875 + $0x68] sm:$0xff]
      %v890 = vld [vmem:[%s875 + $0x70] sm:$0xff]
      %v891 = vld [vmem:[%s875 + $0x78] sm:$0xff]
      %892 = vmatprep.subr.mxu0 0.0
      %893 = vmatpush1.msra.mxu0 %v876
      %894 = vmatprep.subr.mxu0 0.0
      %895 = vmatpush1.msra.mxu0 %v877
      %896 = vmatprep.subr.mxu0 0.0
      %897 = vmatpush1.msra.mxu0 %v878
      %898 = vmatprep.subr.mxu0 0.0
      %899 = vmatpush1.msra.mxu0 %v879
      %900 = vmatprep.subr.mxu0 0.0
      %901 = vmatpush1.msra.mxu0 %v880
      %902 = vmatprep.subr.mxu0 0.0
      %903 = vmatpush1.msra.mxu0 %v881
      %904 = vmatprep.subr.mxu0 0.0
      %905 = vmatpush1.msra.mxu0 %v882
      %906 = vmatprep.subr.mxu0 0.0
      %907 = vmatpush1.msra.mxu0 %v883
      %908 = vmatprep.subr.mxu0 0.0
      %909 = vmatpush1.msra.mxu0 %v884
      %910 = vmatprep.subr.mxu0 0.0
      %911 = vmatpush1.msra.mxu0 %v885
      %912 = vmatprep.subr.mxu0 0.0
      %913 = vmatpush1.msra.mxu0 %v886
      %914 = vmatprep.subr.mxu0 0.0
      %915 = vmatpush1.msra.mxu0 %v887
      %916 = vmatprep.subr.mxu0 0.0
      %917 = vmatpush1.msra.mxu0 %v888
      %918 = vmatprep.subr.mxu0 0.0
      %919 = vmatpush1.msra.mxu0 %v889
      %920 = vmatprep.subr.mxu0 0.0
      %921 = vmatpush1.msra.mxu0 %v890
      %922 = vmatprep.subr.mxu0 0.0
      %923 = vmatpush1.msra.mxu0 %v891
      %924 = vmatprep.subr.mxu0 0.0
      %925 = vmatpush1.msra.mxu0 0.0
      %926 = vmatprep.subr.mxu0 0.0
      %927 = vmatpush1.msra.mxu0 0.0
      %928 = vmatprep.subr.mxu0 0.0
      %929 = vmatpush1.msra.mxu0 0.0
      %930 = vmatprep.subr.mxu0 0.0
      %931 = vmatpush1.msra.mxu0 0.0
      %932 = vmatprep.subr.mxu0 0.0
      %933 = vmatpush1.msra.mxu0 0.0
      %934 = vmatprep.subr.mxu0 0.0
      %935 = vmatpush1.msra.mxu0 0.0
      %936 = vmatprep.subr.mxu0 0.0
      %937 = vmatpush1.msra.mxu0 0.0
      %938 = vmatprep.subr.mxu0 0.0
      %939 = vmatpush1.msra.mxu0 0.0
      %940 = vmatprep.subr.mxu0 0.0
      %941 = vmatpush1.msra.mxu0 0.0
      %942 = vmatprep.subr.mxu0 0.0
      %943 = vmatpush1.msra.mxu0 0.0
      %944 = vmatprep.subr.mxu0 0.0
      %945 = vmatpush1.msra.mxu0 0.0
      %946 = vmatprep.subr.mxu0 0.0
      %947 = vmatpush1.msra.mxu0 0.0
      %948 = vmatprep.subr.mxu0 0.0
      %949 = vmatpush1.msra.mxu0 0.0
      %950 = vmatprep.subr.mxu0 0.0
      %951 = vmatpush1.msra.mxu0 0.0
      %952 = vmatprep.subr.mxu0 0.0
      %953 = vmatpush1.msra.mxu0 0.0
      %954 = vmatprep.subr.mxu0 0.0
      %955 = vmatpush1.msra.mxu0 0.0
      %956 = vmatprep.mubr.f32.mxu0 0.0
      %957 = vmatmul.mubr.f32.gmra.mrb[0].mxu0 %v874
      %v958 = vpop.f32.mrb[0].mxu0
      %v959 = vadd.f32 0.0, %v958
      %v960 = vpop.f32.mrb[0].mxu0
      %961 = vdwg.mxu0
      %vm964 = vcmask 1040384
      %v965 = vrot.slane %v856, 7
      %v966 = vrot.slane %v857, 7
      %v967 = vsel %vm964, %v965, %v966
      %969 = vmatprep.subr.mxu0 0.0
      %970 = vmatpush1.msra.mxu0 %v858
      %971 = vmatprep.subr.mxu0 0.0
      %972 = vmatpush1.msra.mxu0 %v859
      %973 = vmatprep.subr.mxu0 0.0
      %974 = vmatpush1.msra.mxu0 %v860
      %975 = vmatprep.subr.mxu0 0.0
      %976 = vmatpush1.msra.mxu0 %v861
      %977 = vmatprep.subr.mxu0 0.0
      %978 = vmatpush1.msra.mxu0 %v862
      %979 = vmatprep.subr.mxu0 0.0
      %980 = vmatpush1.msra.mxu0 %v863
      %981 = vmatprep.subr.mxu0 0.0
      %982 = vmatpush1.msra.mxu0 %v864
      %983 = vmatprep.subr.mxu0 0.0
      %984 = vmatpush1.msra.mxu0 %v865
      %985 = vmatprep.subr.mxu0 0.0
      %986 = vmatpush1.msra.mxu0 %v866
      %987 = vmatprep.subr.mxu0 0.0
      %988 = vmatpush1.msra.mxu0 %v867
      %989 = vmatprep.subr.mxu0 0.0
      %990 = vmatpush1.msra.mxu0 %v868
      %991 = vmatprep.subr.mxu0 0.0
      %992 = vmatpush1.msra.mxu0 %v869
      %993 = vmatprep.subr.mxu0 0.0
      %994 = vmatpush1.msra.mxu0 %v870
      %995 = vmatprep.subr.mxu0 0.0
      %996 = vmatpush1.msra.mxu0 %v871
      %997 = vmatprep.subr.mxu0 0.0
      %998 = vmatpush1.msra.mxu0 %v872
      %999 = vmatprep.subr.mxu0 0.0
      %1000 = vmatpush1.msra.mxu0 %v873
      %1001 = vmatprep.subr.mxu0 0.0
      %1002 = vmatpush1.msra.mxu0 0.0
      %1003 = vmatprep.subr.mxu0 0.0
      %1004 = vmatpush1.msra.mxu0 0.0
      %1005 = vmatprep.subr.mxu0 0.0
      %1006 = vmatpush1.msra.mxu0 0.0
      %1007 = vmatprep.subr.mxu0 0.0
      %1008 = vmatpush1.msra.mxu0 0.0
      %1009 = vmatprep.subr.mxu0 0.0
      %1010 = vmatpush1.msra.mxu0 0.0
      %1011 = vmatprep.subr.mxu0 0.0
      %1012 = vmatpush1.msra.mxu0 0.0
      %1013 = vmatprep.subr.mxu0 0.0
      %1014 = vmatpush1.msra.mxu0 0.0
      %1015 = vmatprep.subr.mxu0 0.0
      %1016 = vmatpush1.msra.mxu0 0.0
      %1017 = vmatprep.subr.mxu0 0.0
      %1018 = vmatpush1.msra.mxu0 0.0
      %1019 = vmatprep.subr.mxu0 0.0
      %1020 = vmatpush1.msra.mxu0 0.0
      %1021 = vmatprep.subr.mxu0 0.0
      %1022 = vmatpush1.msra.mxu0 0.0
      %1023 = vmatprep.subr.mxu0 0.0
      %1024 = vmatpush1.msra.mxu0 0.0
      %1025 = vmatprep.subr.mxu0 0.0
      %1026 = vmatpush1.msra.mxu0 0.0
      %1027 = vmatprep.subr.mxu0 0.0
      %1028 = vmatpush1.msra.mxu0 0.0
      %1029 = vmatprep.subr.mxu0 0.0
      %1030 = vmatpush1.msra.mxu0 0.0
      %1031 = vmatprep.subr.mxu0 0.0
      %1032 = vmatpush1.msra.mxu0 0.0
      %1033 = vmatprep.mubr.f32.mxu0 0.0
      %1034 = vmatmul.mubr.f32.gmra.mrb[0].mxu0 %v967
      %v1035 = vpop.f32.mrb[0].mxu0
      %v1036 = vadd.f32 %v959, %v1035
      %v1037 = vpop.f32.mrb[0].mxu0
      %1038 = vdwg.mxu0
      %v1039 = vld [vmem:[#allocation2 + $0x10] sm:$0x1e]
      %s1040 = scalar_lea.vmem %s3, 256
      %v1041 = vld [vmem:[%s1040] sm:$0xff]
      %v1042 = vld [vmem:[%s1040 + $0x8] sm:$0xff]
      %v1043 = vld [vmem:[%s1040 + $0x10] sm:$0xff]
      %v1044 = vld [vmem:[%s1040 + $0x18] sm:$0xff]
      %v1045 = vld [vmem:[%s1040 + $0x20] sm:$0xff]
      %v1046 = vld [vmem:[%s1040 + $0x28] sm:$0xff]
      %v1047 = vld [vmem:[%s1040 + $0x30] sm:$0xff]
      %v1048 = vld [vmem:[%s1040 + $0x38] sm:$0xff]
      %v1049 = vld [vmem:[%s1040 + $0x40] sm:$0xff]
      %v1050 = vld [vmem:[%s1040 + $0x48] sm:$0xff]
      %v1051 = vld [vmem:[%s1040 + $0x50] sm:$0xff]
      %v1052 = vld [vmem:[%s1040 + $0x58] sm:$0xff]
      %v1053 = vld [vmem:[%s1040 + $0x60] sm:$0xff]
      %v1054 = vld [vmem:[%s1040 + $0x68] sm:$0xff]
      %v1055 = vld [vmem:[%s1040 + $0x70] sm:$0xff]
      %v1056 = vld [vmem:[%s1040 + $0x78] sm:$0xff]
      %v1058 = vrot.slane %v1039, 1
      %1060 = vmatprep.subr.mxu0 0.0
      %1061 = vmatpush1.msra.mxu0 %v1041
      %1062 = vmatprep.subr.mxu0 0.0
      %1063 = vmatpush1.msra.mxu0 %v1042
      %1064 = vmatprep.subr.mxu0 0.0
      %1065 = vmatpush1.msra.mxu0 %v1043
      %1066 = vmatprep.subr.mxu0 0.0
      %1067 = vmatpush1.msra.mxu0 %v1044
      %1068 = vmatprep.subr.mxu0 0.0
      %1069 = vmatpush1.msra.mxu0 %v1045
      %1070 = vmatprep.subr.mxu0 0.0
      %1071 = vmatpush1.msra.mxu0 %v1046
      %1072 = vmatprep.subr.mxu0 0.0
      %1073 = vmatpush1.msra.mxu0 %v1047
      %1074 = vmatprep.subr.mxu0 0.0
      %1075 = vmatpush1.msra.mxu0 %v1048
      %1076 = vmatprep.subr.mxu0 0.0
      %1077 = vmatpush1.msra.mxu0 %v1049
      %1078 = vmatprep.subr.mxu0 0.0
      %1079 = vmatpush1.msra.mxu0 %v1050
      %1080 = vmatprep.subr.mxu0 0.0
      %1081 = vmatpush1.msra.mxu0 %v1051
      %1082 = vmatprep.subr.mxu0 0.0
      %1083 = vmatpush1.msra.mxu0 %v1052
      %1084 = vmatprep.subr.mxu0 0.0
      %1085 = vmatpush1.msra.mxu0 %v1053
      %1086 = vmatprep.subr.mxu0 0.0
      %1087 = vmatpush1.msra.mxu0 %v1054
      %1088 = vmatprep.subr.mxu0 0.0
      %1089 = vmatpush1.msra.mxu0 %v1055
      %1090 = vmatprep.subr.mxu0 0.0
      %1091 = vmatpush1.msra.mxu0 %v1056
      %1092 = vmatprep.subr.mxu0 0.0
      %1093 = vmatpush1.msra.mxu0 0.0
      %1094 = vmatprep.subr.mxu0 0.0
      %1095 = vmatpush1.msra.mxu0 0.0
      %1096 = vmatprep.subr.mxu0 0.0
      %1097 = vmatpush1.msra.mxu0 0.0
      %1098 = vmatprep.subr.mxu0 0.0
      %1099 = vmatpush1.msra.mxu0 0.0
      %1100 = vmatprep.subr.mxu0 0.0
      %1101 = vmatpush1.msra.mxu0 0.0
      %1102 = vmatprep.subr.mxu0 0.0
      %1103 = vmatpush1.msra.mxu0 0.0
      %1104 = vmatprep.subr.mxu0 0.0
      %1105 = vmatpush1.msra.mxu0 0.0
      %1106 = vmatprep.subr.mxu0 0.0
      %1107 = vmatpush1.msra.mxu0 0.0
      %1108 = vmatprep.subr.mxu0 0.0
      %1109 = vmatpush1.msra.mxu0 0.0
      %1110 = vmatprep.subr.mxu0 0.0
      %1111 = vmatpush1.msra.mxu0 0.0
      %1112 = vmatprep.subr.mxu0 0.0
      %1113 = vmatpush1.msra.mxu0 0.0
      %1114 = vmatprep.subr.mxu0 0.0
      %1115 = vmatpush1.msra.mxu0 0.0
      %1116 = vmatprep.subr.mxu0 0.0
      %1117 = vmatpush1.msra.mxu0 0.0
      %1118 = vmatprep.subr.mxu0 0.0
      %1119 = vmatpush1.msra.mxu0 0.0
      %1120 = vmatprep.subr.mxu0 0.0
      %1121 = vmatpush1.msra.mxu0 0.0
      %1122 = vmatprep.subr.mxu0 0.0
      %1123 = vmatpush1.msra.mxu0 0.0
      %1124 = vmatprep.mubr.f32.mxu0 0.0
      %1125 = vmatmul.mubr.f32.gmra.mrb[0].mxu0 %v1058
      %v1126 = vpop.f32.mrb[0].mxu0
      %v1127 = vadd.f32 0.0, %v1126
      %v1128 = vpop.f32.mrb[0].mxu0
      %1129 = vdwg.mxu0
      %v1130 = vadd.f32 %v1036, %v1127
      %v1131 = vld [vmem:[%s2 + $0x1] ss:$0 sm:$0xff]
      %v1132 = vadd.f32 %v1130, %v1131
      %v1133 = vmax.f32 %v1132, 0.0
      %vm1134 = vcmask 519168
      %1135 = vst.msk [vmem:[#allocation2 + $0x10] sm:$0xf] %vm1134, %v1133
      %v1136 = vld [vmem:[#allocation2] sm:$0x80]
      %v1137 = vld [vmem:[#allocation2 + $0x10] sm:$0x7]
      %v1138 = vld [vmem:[%s4] sm:$0xff]
      %v1139 = vld [vmem:[%s4 + $0x8] sm:$0xff]
      %v1140 = vld [vmem:[%s4 + $0x10] sm:$0xff]
      %v1141 = vld [vmem:[%s4 + $0x18] sm:$0xff]
      %v1142 = vld [vmem:[%s4 + $0x20] sm:$0xff]
      %v1143 = vld [vmem:[%s4 + $0x28] sm:$0xff]
      %v1144 = vld [vmem:[%s4 + $0x30] sm:$0xff]
      %v1145 = vld [vmem:[%s4 + $0x38] sm:$0xff]
      %v1146 = vld [vmem:[#allocation2 + $0x10] sm:$0xf]
      %s1147 = scalar_lea.vmem %s4, 64
      %v1148 = vld [vmem:[%s1147] sm:$0xff]
      %v1149 = vld [vmem:[%s1147 + $0x8] sm:$0xff]
      %v1150 = vld [vmem:[%s1147 + $0x10] sm:$0xff]
      %v1151 = vld [vmem:[%s1147 + $0x18] sm:$0xff]
      %v1152 = vld [vmem:[%s1147 + $0x20] sm:$0xff]
      %v1153 = vld [vmem:[%s1147 + $0x28] sm:$0xff]
      %v1154 = vld [vmem:[%s1147 + $0x30] sm:$0xff]
      %v1155 = vld [vmem:[%s1147 + $0x38] sm:$0xff]
      %v1157 = vsel %vm473, %v1146, 0
      %1159 = vmatprep.subr.mxu0 0.0
      %1160 = vmatpush1.msra.mxu0 %v1148
      %1161 = vmatprep.subr.mxu0 0.0
      %1162 = vmatpush1.msra.mxu0 %v1149
      %1163 = vmatprep.subr.mxu0 0.0
      %1164 = vmatpush1.msra.mxu0 %v1150
      %1165 = vmatprep.subr.mxu0 0.0
      %1166 = vmatpush1.msra.mxu0 %v1151
      %1167 = vmatprep.subr.mxu0 0.0
      %1168 = vmatpush1.msra.mxu0 %v1152
      %1169 = vmatprep.subr.mxu0 0.0
      %1170 = vmatpush1.msra.mxu0 %v1153
      %1171 = vmatprep.subr.mxu0 0.0
      %1172 = vmatpush1.msra.mxu0 %v1154
      %1173 = vmatprep.subr.mxu0 0.0
      %1174 = vmatpush1.msra.mxu0 %v1155
      %1175 = vmatprep.subr.mxu0 0.0
      %1176 = vmatpush1.msra.mxu0 0.0
      %1177 = vmatprep.subr.mxu0 0.0
      %1178 = vmatpush1.msra.mxu0 0.0
      %1179 = vmatprep.subr.mxu0 0.0
      %1180 = vmatpush1.msra.mxu0 0.0
      %1181 = vmatprep.subr.mxu0 0.0
      %1182 = vmatpush1.msra.mxu0 0.0
      %1183 = vmatprep.subr.mxu0 0.0
      %1184 = vmatpush1.msra.mxu0 0.0
      %1185 = vmatprep.subr.mxu0 0.0
      %1186 = vmatpush1.msra.mxu0 0.0
      %1187 = vmatprep.subr.mxu0 0.0
      %1188 = vmatpush1.msra.mxu0 0.0
      %1189 = vmatprep.subr.mxu0 0.0
      %1190 = vmatpush1.msra.mxu0 0.0
      %1191 = vmatprep.subr.mxu0 0.0
      %1192 = vmatpush1.msra.mxu0 0.0
      %1193 = vmatprep.subr.mxu0 0.0
      %1194 = vmatpush1.msra.mxu0 0.0
      %1195 = vmatprep.subr.mxu0 0.0
      %1196 = vmatpush1.msra.mxu0 0.0
      %1197 = vmatprep.subr.mxu0 0.0
      %1198 = vmatpush1.msra.mxu0 0.0
      %1199 = vmatprep.subr.mxu0 0.0
      %1200 = vmatpush1.msra.mxu0 0.0
      %1201 = vmatprep.subr.mxu0 0.0
      %1202 = vmatpush1.msra.mxu0 0.0
      %1203 = vmatprep.subr.mxu0 0.0
      %1204 = vmatpush1.msra.mxu0 0.0
      %1205 = vmatprep.subr.mxu0 0.0
      %1206 = vmatpush1.msra.mxu0 0.0
      %1207 = vmatprep.subr.mxu0 0.0
      %1208 = vmatpush1.msra.mxu0 0.0
      %1209 = vmatprep.subr.mxu0 0.0
      %1210 = vmatpush1.msra.mxu0 0.0
      %1211 = vmatprep.subr.mxu0 0.0
      %1212 = vmatpush1.msra.mxu0 0.0
      %1213 = vmatprep.subr.mxu0 0.0
      %1214 = vmatpush1.msra.mxu0 0.0
      %1215 = vmatprep.subr.mxu0 0.0
      %1216 = vmatpush1.msra.mxu0 0.0
      %1217 = vmatprep.subr.mxu0 0.0
      %1218 = vmatpush1.msra.mxu0 0.0
      %1219 = vmatprep.subr.mxu0 0.0
      %1220 = vmatpush1.msra.mxu0 0.0
      %1221 = vmatprep.subr.mxu0 0.0
      %1222 = vmatpush1.msra.mxu0 0.0
      %1223 = vmatprep.mubr.f32.mxu0 0.0
      %1224 = vmatmul.mubr.f32.gmra.mrb[0].mxu0 %v1157
      %v1225 = vpop.f32.mrb[0].mxu0
      %v1226 = vadd.f32 0.0, %v1225
      %v1227 = vpop.f32.mrb[0].mxu0
      %1228 = vdwg.mxu0
      %v1231 = vrot.slane %v1136, 7
      %v1232 = vrot.slane %v1137, 7
      %v1233 = vsel %vm964, %v1231, %v1232
      %v1234 = vsel %vm473, %v1233, 0
      %1236 = vmatprep.subr.mxu0 0.0
      %1237 = vmatpush1.msra.mxu0 %v1138
      %1238 = vmatprep.subr.mxu0 0.0
      %1239 = vmatpush1.msra.mxu0 %v1139
      %1240 = vmatprep.subr.mxu0 0.0
      %1241 = vmatpush1.msra.mxu0 %v1140
      %1242 = vmatprep.subr.mxu0 0.0
      %1243 = vmatpush1.msra.mxu0 %v1141
      %1244 = vmatprep.subr.mxu0 0.0
      %1245 = vmatpush1.msra.mxu0 %v1142
      %1246 = vmatprep.subr.mxu0 0.0
      %1247 = vmatpush1.msra.mxu0 %v1143
      %1248 = vmatprep.subr.mxu0 0.0
      %1249 = vmatpush1.msra.mxu0 %v1144
      %1250 = vmatprep.subr.mxu0 0.0
      %1251 = vmatpush1.msra.mxu0 %v1145
      %1252 = vmatprep.subr.mxu0 0.0
      %1253 = vmatpush1.msra.mxu0 0.0
      %1254 = vmatprep.subr.mxu0 0.0
      %1255 = vmatpush1.msra.mxu0 0.0
      %1256 = vmatprep.subr.mxu0 0.0
      %1257 = vmatpush1.msra.mxu0 0.0
      %1258 = vmatprep.subr.mxu0 0.0
      %1259 = vmatpush1.msra.mxu0 0.0
      %1260 = vmatprep.subr.mxu0 0.0
      %1261 = vmatpush1.msra.mxu0 0.0
      %1262 = vmatprep.subr.mxu0 0.0
      %1263 = vmatpush1.msra.mxu0 0.0
      %1264 = vmatprep.subr.mxu0 0.0
      %1265 = vmatpush1.msra.mxu0 0.0
      %1266 = vmatprep.subr.mxu0 0.0
      %1267 = vmatpush1.msra.mxu0 0.0
      %1268 = vmatprep.subr.mxu0 0.0
      %1269 = vmatpush1.msra.mxu0 0.0
      %1270 = vmatprep.subr.mxu0 0.0
      %1271 = vmatpush1.msra.mxu0 0.0
      %1272 = vmatprep.subr.mxu0 0.0
      %1273 = vmatpush1.msra.mxu0 0.0
      %1274 = vmatprep.subr.mxu0 0.0
      %1275 = vmatpush1.msra.mxu0 0.0
      %1276 = vmatprep.subr.mxu0 0.0
      %1277 = vmatpush1.msra.mxu0 0.0
      %1278 = vmatprep.subr.mxu0 0.0
      %1279 = vmatpush1.msra.mxu0 0.0
      %1280 = vmatprep.subr.mxu0 0.0
      %1281 = vmatpush1.msra.mxu0 0.0
      %1282 = vmatprep.subr.mxu0 0.0
      %1283 = vmatpush1.msra.mxu0 0.0
      %1284 = vmatprep.subr.mxu0 0.0
      %1285 = vmatpush1.msra.mxu0 0.0
      %1286 = vmatprep.subr.mxu0 0.0
      %1287 = vmatpush1.msra.mxu0 0.0
      %1288 = vmatprep.subr.mxu0 0.0
      %1289 = vmatpush1.msra.mxu0 0.0
      %1290 = vmatprep.subr.mxu0 0.0
      %1291 = vmatpush1.msra.mxu0 0.0
      %1292 = vmatprep.subr.mxu0 0.0
      %1293 = vmatpush1.msra.mxu0 0.0
      %1294 = vmatprep.subr.mxu0 0.0
      %1295 = vmatpush1.msra.mxu0 0.0
      %1296 = vmatprep.subr.mxu0 0.0
      %1297 = vmatpush1.msra.mxu0 0.0
      %1298 = vmatprep.subr.mxu0 0.0
      %1299 = vmatpush1.msra.mxu0 0.0
      %1300 = vmatprep.mubr.f32.mxu0 0.0
      %1301 = vmatmul.mubr.f32.gmra.mrb[0].mxu0 %v1234
      %v1302 = vpop.f32.mrb[0].mxu0
      %v1303 = vadd.f32 %v1226, %v1302
      %v1304 = vpop.f32.mrb[0].mxu0
      %1305 = vdwg.mxu0
      %v1306 = vld [vmem:[#allocation2 + $0x10] sm:$0x1e]
      %s1307 = scalar_lea.vmem %s4, 128
      %v1308 = vld [vmem:[%s1307] sm:$0xff]
      %v1309 = vld [vmem:[%s1307 + $0x8] sm:$0xff]
      %v1310 = vld [vmem:[%s1307 + $0x10] sm:$0xff]
      %v1311 = vld [vmem:[%s1307 + $0x18] sm:$0xff]
      %v1312 = vld [vmem:[%s1307 + $0x20] sm:$0xff]
      %v1313 = vld [vmem:[%s1307 + $0x28] sm:$0xff]
      %v1314 = vld [vmem:[%s1307 + $0x30] sm:$0xff]
      %v1315 = vld [vmem:[%s1307 + $0x38] sm:$0xff]
      %v1317 = vrot.slane %v1306, 1
      %v1318 = vsel %vm473, %v1317, 0
      %1320 = vmatprep.subr.mxu0 0.0
      %1321 = vmatpush1.msra.mxu0 %v1308
      %1322 = vmatprep.subr.mxu0 0.0
      %1323 = vmatpush1.msra.mxu0 %v1309
      %1324 = vmatprep.subr.mxu0 0.0
      %1325 = vmatpush1.msra.mxu0 %v1310
      %1326 = vmatprep.subr.mxu0 0.0
      %1327 = vmatpush1.msra.mxu0 %v1311
      %1328 = vmatprep.subr.mxu0 0.0
      %1329 = vmatpush1.msra.mxu0 %v1312
      %1330 = vmatprep.subr.mxu0 0.0
      %1331 = vmatpush1.msra.mxu0 %v1313
      %1332 = vmatprep.subr.mxu0 0.0
      %1333 = vmatpush1.msra.mxu0 %v1314
      %1334 = vmatprep.subr.mxu0 0.0
      %1335 = vmatpush1.msra.mxu0 %v1315
      %1336 = vmatprep.subr.mxu0 0.0
      %1337 = vmatpush1.msra.mxu0 0.0
      %1338 = vmatprep.subr.mxu0 0.0
      %1339 = vmatpush1.msra.mxu0 0.0
      %1340 = vmatprep.subr.mxu0 0.0
      %1341 = vmatpush1.msra.mxu0 0.0
      %1342 = vmatprep.subr.mxu0 0.0
      %1343 = vmatpush1.msra.mxu0 0.0
      %1344 = vmatprep.subr.mxu0 0.0
      %1345 = vmatpush1.msra.mxu0 0.0
      %1346 = vmatprep.subr.mxu0 0.0
      %1347 = vmatpush1.msra.mxu0 0.0
      %1348 = vmatprep.subr.mxu0 0.0
      %1349 = vmatpush1.msra.mxu0 0.0
      %1350 = vmatprep.subr.mxu0 0.0
      %1351 = vmatpush1.msra.mxu0 0.0
      %1352 = vmatprep.subr.mxu0 0.0
      %1353 = vmatpush1.msra.mxu0 0.0
      %1354 = vmatprep.subr.mxu0 0.0
      %1355 = vmatpush1.msra.mxu0 0.0
      %1356 = vmatprep.subr.mxu0 0.0
      %1357 = vmatpush1.msra.mxu0 0.0
      %1358 = vmatprep.subr.mxu0 0.0
      %1359 = vmatpush1.msra.mxu0 0.0
      %1360 = vmatprep.subr.mxu0 0.0
      %1361 = vmatpush1.msra.mxu0 0.0
      %1362 = vmatprep.subr.mxu0 0.0
      %1363 = vmatpush1.msra.mxu0 0.0
      %1364 = vmatprep.subr.mxu0 0.0
      %1365 = vmatpush1.msra.mxu0 0.0
      %1366 = vmatprep.subr.mxu0 0.0
      %1367 = vmatpush1.msra.mxu0 0.0
      %1368 = vmatprep.subr.mxu0 0.0
      %1369 = vmatpush1.msra.mxu0 0.0
      %1370 = vmatprep.subr.mxu0 0.0
      %1371 = vmatpush1.msra.mxu0 0.0
      %1372 = vmatprep.subr.mxu0 0.0
      %1373 = vmatpush1.msra.mxu0 0.0
      %1374 = vmatprep.subr.mxu0 0.0
      %1375 = vmatpush1.msra.mxu0 0.0
      %1376 = vmatprep.subr.mxu0 0.0
      %1377 = vmatpush1.msra.mxu0 0.0
      %1378 = vmatprep.subr.mxu0 0.0
      %1379 = vmatpush1.msra.mxu0 0.0
      %1380 = vmatprep.subr.mxu0 0.0
      %1381 = vmatpush1.msra.mxu0 0.0
      %1382 = vmatprep.subr.mxu0 0.0
      %1383 = vmatpush1.msra.mxu0 0.0
      %1384 = vmatprep.mubr.f32.mxu0 0.0
      %1385 = vmatmul.mubr.f32.gmra.mrb[0].mxu0 %v1318
      %v1386 = vpop.f32.mrb[0].mxu0
      %v1387 = vadd.f32 0.0, %v1386
      %v1388 = vpop.f32.mrb[0].mxu0
      %1389 = vdwg.mxu0
      %v1390 = vadd.f32 %v1303, %v1387
      %v1391 = vld [vmem:[%s2 + $0x2] ss:$0 sm:$0xff]
      %v1392 = vadd.f32 %v1390, %v1391
      %v1393 = vadd.f32 %v1392, %v701
      %v1394 = vmax.f32 %v1393, 0.0
      %1395 = vst.msk [vmem:[#allocation2 + $0x10] sm:$0xf] %vm1134, %v1394
      %v1396 = vld [vmem:[#allocation2] sm:$0x80]
      %v1397 = vld [vmem:[#allocation2 + $0x10] sm:$0x7]
      %s1398 = scalar_lea.vmem %s4, 192
      %v1399 = vld [vmem:[%s1398] sm:$0xff]
      %v1400 = vld [vmem:[%s1398 + $0x8] sm:$0xff]
      %v1401 = vld [vmem:[%s1398 + $0x10] sm:$0xff]
      %v1402 = vld [vmem:[%s1398 + $0x18] sm:$0xff]
      %v1403 = vld [vmem:[%s1398 + $0x20] sm:$0xff]
      %v1404 = vld [vmem:[%s1398 + $0x28] sm:$0xff]
      %v1405 = vld [vmem:[%s1398 + $0x30] sm:$0xff]
      %v1406 = vld [vmem:[%s1398 + $0x38] sm:$0xff]
      %v1407 = vld [vmem:[#allocation2 + $0x10] sm:$0xf]
      %s1408 = scalar_lea.vmem %s4, 256
      %v1409 = vld [vmem:[%s1408] sm:$0xff]
      %v1410 = vld [vmem:[%s1408 + $0x8] sm:$0xff]
      %v1411 = vld [vmem:[%s1408 + $0x10] sm:$0xff]
      %v1412 = vld [vmem:[%s1408 + $0x18] sm:$0xff]
      %v1413 = vld [vmem:[%s1408 + $0x20] sm:$0xff]
      %v1414 = vld [vmem:[%s1408 + $0x28] sm:$0xff]
      %v1415 = vld [vmem:[%s1408 + $0x30] sm:$0xff]
      %v1416 = vld [vmem:[%s1408 + $0x38] sm:$0xff]
      %v1418 = vsel %vm473, %v1407, 0
      %1420 = vmatprep.subr.mxu0 0.0
      %1421 = vmatpush1.msra.mxu0 %v1409
      %1422 = vmatprep.subr.mxu0 0.0
      %1423 = vmatpush1.msra.mxu0 %v1410
      %1424 = vmatprep.subr.mxu0 0.0
      %1425 = vmatpush1.msra.mxu0 %v1411
      %1426 = vmatprep.subr.mxu0 0.0
      %1427 = vmatpush1.msra.mxu0 %v1412
      %1428 = vmatprep.subr.mxu0 0.0
      %1429 = vmatpush1.msra.mxu0 %v1413
      %1430 = vmatprep.subr.mxu0 0.0
      %1431 = vmatpush1.msra.mxu0 %v1414
      %1432 = vmatprep.subr.mxu0 0.0
      %1433 = vmatpush1.msra.mxu0 %v1415
      %1434 = vmatprep.subr.mxu0 0.0
      %1435 = vmatpush1.msra.mxu0 %v1416
      %1436 = vmatprep.subr.mxu0 0.0
      %1437 = vmatpush1.msra.mxu0 0.0
      %1438 = vmatprep.subr.mxu0 0.0
      %1439 = vmatpush1.msra.mxu0 0.0
      %1440 = vmatprep.subr.mxu0 0.0
      %1441 = vmatpush1.msra.mxu0 0.0
      %1442 = vmatprep.subr.mxu0 0.0
      %1443 = vmatpush1.msra.mxu0 0.0
      %1444 = vmatprep.subr.mxu0 0.0
      %1445 = vmatpush1.msra.mxu0 0.0
      %1446 = vmatprep.subr.mxu0 0.0
      %1447 = vmatpush1.msra.mxu0 0.0
      %1448 = vmatprep.subr.mxu0 0.0
      %1449 = vmatpush1.msra.mxu0 0.0
      %1450 = vmatprep.subr.mxu0 0.0
      %1451 = vmatpush1.msra.mxu0 0.0
      %1452 = vmatprep.subr.mxu0 0.0
      %1453 = vmatpush1.msra.mxu0 0.0
      %1454 = vmatprep.subr.mxu0 0.0
      %1455 = vmatpush1.msra.mxu0 0.0
      %1456 = vmatprep.subr.mxu0 0.0
      %1457 = vmatpush1.msra.mxu0 0.0
      %1458 = vmatprep.subr.mxu0 0.0
      %1459 = vmatpush1.msra.mxu0 0.0
      %1460 = vmatprep.subr.mxu0 0.0
      %1461 = vmatpush1.msra.mxu0 0.0
      %1462 = vmatprep.subr.mxu0 0.0
      %1463 = vmatpush1.msra.mxu0 0.0
      %1464 = vmatprep.subr.mxu0 0.0
      %1465 = vmatpush1.msra.mxu0 0.0
      %1466 = vmatprep.subr.mxu0 0.0
      %1467 = vmatpush1.msra.mxu0 0.0
      %1468 = vmatprep.subr.mxu0 0.0
      %1469 = vmatpush1.msra.mxu0 0.0
      %1470 = vmatprep.subr.mxu0 0.0
      %1471 = vmatpush1.msra.mxu0 0.0
      %1472 = vmatprep.subr.mxu0 0.0
      %1473 = vmatpush1.msra.mxu0 0.0
      %1474 = vmatprep.subr.mxu0 0.0
      %1475 = vmatpush1.msra.mxu0 0.0
      %1476 = vmatprep.subr.mxu0 0.0
      %1477 = vmatpush1.msra.mxu0 0.0
      %1478 = vmatprep.subr.mxu0 0.0
      %1479 = vmatpush1.msra.mxu0 0.0
      %1480 = vmatprep.subr.mxu0 0.0
      %1481 = vmatpush1.msra.mxu0 0.0
      %1482 = vmatprep.subr.mxu0 0.0
      %1483 = vmatpush1.msra.mxu0 0.0
      %1484 = vmatprep.mubr.f32.mxu0 0.0
      %1485 = vmatmul.mubr.f32.gmra.mrb[0].mxu0 %v1418
      %v1486 = vpop.f32.mrb[0].mxu0
      %v1487 = vadd.f32 0.0, %v1486
      %v1488 = vpop.f32.mrb[0].mxu0
      %1489 = vdwg.mxu0
      %v1492 = vrot.slane %v1396, 7
      %v1493 = vrot.slane %v1397, 7
      %v1494 = vsel %vm964, %v1492, %v1493
      %v1495 = vsel %vm473, %v1494, 0
      %1497 = vmatprep.subr.mxu0 0.0
      %1498 = vmatpush1.msra.mxu0 %v1399
      %1499 = vmatprep.subr.mxu0 0.0
      %1500 = vmatpush1.msra.mxu0 %v1400
      %1501 = vmatprep.subr.mxu0 0.0
      %1502 = vmatpush1.msra.mxu0 %v1401
      %1503 = vmatprep.subr.mxu0 0.0
      %1504 = vmatpush1.msra.mxu0 %v1402
      %1505 = vmatprep.subr.mxu0 0.0
      %1506 = vmatpush1.msra.mxu0 %v1403
      %1507 = vmatprep.subr.mxu0 0.0
      %1508 = vmatpush1.msra.mxu0 %v1404
      %1509 = vmatprep.subr.mxu0 0.0
      %1510 = vmatpush1.msra.mxu0 %v1405
      %1511 = vmatprep.subr.mxu0 0.0
      %1512 = vmatpush1.msra.mxu0 %v1406
      %1513 = vmatprep.subr.mxu0 0.0
      %1514 = vmatpush1.msra.mxu0 0.0
      %1515 = vmatprep.subr.mxu0 0.0
      %1516 = vmatpush1.msra.mxu0 0.0
      %1517 = vmatprep.subr.mxu0 0.0
      %1518 = vmatpush1.msra.mxu0 0.0
      %1519 = vmatprep.subr.mxu0 0.0
      %1520 = vmatpush1.msra.mxu0 0.0
      %1521 = vmatprep.subr.mxu0 0.0
      %1522 = vmatpush1.msra.mxu0 0.0
      %1523 = vmatprep.subr.mxu0 0.0
      %1524 = vmatpush1.msra.mxu0 0.0
      %1525 = vmatprep.subr.mxu0 0.0
      %1526 = vmatpush1.msra.mxu0 0.0
      %1527 = vmatprep.subr.mxu0 0.0
      %1528 = vmatpush1.msra.mxu0 0.0
      %1529 = vmatprep.subr.mxu0 0.0
      %1530 = vmatpush1.msra.mxu0 0.0
      %1531 = vmatprep.subr.mxu0 0.0
      %1532 = vmatpush1.msra.mxu0 0.0
      %1533 = vmatprep.subr.mxu0 0.0
      %1534 = vmatpush1.msra.mxu0 0.0
      %1535 = vmatprep.subr.mxu0 0.0
      %1536 = vmatpush1.msra.mxu0 0.0
      %1537 = vmatprep.subr.mxu0 0.0
      %1538 = vmatpush1.msra.mxu0 0.0
      %1539 = vmatprep.subr.mxu0 0.0
      %1540 = vmatpush1.msra.mxu0 0.0
      %1541 = vmatprep.subr.mxu0 0.0
      %1542 = vmatpush1.msra.mxu0 0.0
      %1543 = vmatprep.subr.mxu0 0.0
      %1544 = vmatpush1.msra.mxu0 0.0
      %1545 = vmatprep.subr.mxu0 0.0
      %1546 = vmatpush1.msra.mxu0 0.0
      %1547 = vmatprep.subr.mxu0 0.0
      %1548 = vmatpush1.msra.mxu0 0.0
      %1549 = vmatprep.subr.mxu0 0.0
      %1550 = vmatpush1.msra.mxu0 0.0
      %1551 = vmatprep.subr.mxu0 0.0
      %1552 = vmatpush1.msra.mxu0 0.0
      %1553 = vmatprep.subr.mxu0 0.0
      %1554 = vmatpush1.msra.mxu0 0.0
      %1555 = vmatprep.subr.mxu0 0.0
      %1556 = vmatpush1.msra.mxu0 0.0
      %1557 = vmatprep.subr.mxu0 0.0
      %1558 = vmatpush1.msra.mxu0 0.0
      %1559 = vmatprep.subr.mxu0 0.0
      %1560 = vmatpush1.msra.mxu0 0.0
      %1561 = vmatprep.mubr.f32.mxu0 0.0
      %1562 = vmatmul.mubr.f32.gmra.mrb[0].mxu0 %v1495
      %v1563 = vpop.f32.mrb[0].mxu0
      %v1564 = vadd.f32 %v1487, %v1563
      %v1565 = vpop.f32.mrb[0].mxu0
      %1566 = vdwg.mxu0
      %v1567 = vld [vmem:[#allocation2 + $0x10] sm:$0x1e]
      %s1568 = scalar_lea.vmem %s4, 320
      %v1569 = vld [vmem:[%s1568] sm:$0xff]
      %v1570 = vld [vmem:[%s1568 + $0x8] sm:$0xff]
      %v1571 = vld [vmem:[%s1568 + $0x10] sm:$0xff]
      %v1572 = vld [vmem:[%s1568 + $0x18] sm:$0xff]
      %v1573 = vld [vmem:[%s1568 + $0x20] sm:$0xff]
      %v1574 = vld [vmem:[%s1568 + $0x28] sm:$0xff]
      %v1575 = vld [vmem:[%s1568 + $0x30] sm:$0xff]
      %v1576 = vld [vmem:[%s1568 + $0x38] sm:$0xff]
      %v1578 = vrot.slane %v1567, 1
      %v1579 = vsel %vm473, %v1578, 0
      %1581 = vmatprep.subr.mxu0 0.0
      %1582 = vmatpush1.msra.mxu0 %v1569
      %1583 = vmatprep.subr.mxu0 0.0
      %1584 = vmatpush1.msra.mxu0 %v1570
      %1585 = vmatprep.subr.mxu0 0.0
      %1586 = vmatpush1.msra.mxu0 %v1571
      %1587 = vmatprep.subr.mxu0 0.0
      %1588 = vmatpush1.msra.mxu0 %v1572
      %1589 = vmatprep.subr.mxu0 0.0
      %1590 = vmatpush1.msra.mxu0 %v1573
      %1591 = vmatprep.subr.mxu0 0.0
      %1592 = vmatpush1.msra.mxu0 %v1574
      %1593 = vmatprep.subr.mxu0 0.0
      %1594 = vmatpush1.msra.mxu0 %v1575
      %1595 = vmatprep.subr.mxu0 0.0
      %1596 = vmatpush1.msra.mxu0 %v1576
      %1597 = vmatprep.subr.mxu0 0.0
      %1598 = vmatpush1.msra.mxu0 0.0
      %1599 = vmatprep.subr.mxu0 0.0
      %1600 = vmatpush1.msra.mxu0 0.0
      %1601 = vmatprep.subr.mxu0 0.0
      %1602 = vmatpush1.msra.mxu0 0.0
      %1603 = vmatprep.subr.mxu0 0.0
      %1604 = vmatpush1.msra.mxu0 0.0
      %1605 = vmatprep.subr.mxu0 0.0
      %1606 = vmatpush1.msra.mxu0 0.0
      %1607 = vmatprep.subr.mxu0 0.0
      %1608 = vmatpush1.msra.mxu0 0.0
      %1609 = vmatprep.subr.mxu0 0.0
      %1610 = vmatpush1.msra.mxu0 0.0
      %1611 = vmatprep.subr.mxu0 0.0
      %1612 = vmatpush1.msra.mxu0 0.0
      %1613 = vmatprep.subr.mxu0 0.0
      %1614 = vmatpush1.msra.mxu0 0.0
      %1615 = vmatprep.subr.mxu0 0.0
      %1616 = vmatpush1.msra.mxu0 0.0
      %1617 = vmatprep.subr.mxu0 0.0
      %1618 = vmatpush1.msra.mxu0 0.0
      %1619 = vmatprep.subr.mxu0 0.0
      %1620 = vmatpush1.msra.mxu0 0.0
      %1621 = vmatprep.subr.mxu0 0.0
      %1622 = vmatpush1.msra.mxu0 0.0
      %1623 = vmatprep.subr.mxu0 0.0
      %1624 = vmatpush1.msra.mxu0 0.0
      %1625 = vmatprep.subr.mxu0 0.0
      %1626 = vmatpush1.msra.mxu0 0.0
      %1627 = vmatprep.subr.mxu0 0.0
      %1628 = vmatpush1.msra.mxu0 0.0
      %1629 = vmatprep.subr.mxu0 0.0
      %1630 = vmatpush1.msra.mxu0 0.0
      %1631 = vmatprep.subr.mxu0 0.0
      %1632 = vmatpush1.msra.mxu0 0.0
      %1633 = vmatprep.subr.mxu0 0.0
      %1634 = vmatpush1.msra.mxu0 0.0
      %1635 = vmatprep.subr.mxu0 0.0
      %1636 = vmatpush1.msra.mxu0 0.0
      %1637 = vmatprep.subr.mxu0 0.0
      %1638 = vmatpush1.msra.mxu0 0.0
      %1639 = vmatprep.subr.mxu0 0.0
      %1640 = vmatpush1.msra.mxu0 0.0
      %1641 = vmatprep.subr.mxu0 0.0
      %1642 = vmatpush1.msra.mxu0 0.0
      %1643 = vmatprep.subr.mxu0 0.0
      %1644 = vmatpush1.msra.mxu0 0.0
      %1645 = vmatprep.mubr.f32.mxu0 0.0
      %1646 = vmatmul.mubr.f32.gmra.mrb[0].mxu0 %v1579
      %v1647 = vpop.f32.mrb[0].mxu0
      %v1648 = vadd.f32 0.0, %v1647
      %v1649 = vpop.f32.mrb[0].mxu0
      %1650 = vdwg.mxu0
      %v1651 = vadd.f32 %v1564, %v1648
      %v1652 = vld [vmem:[%s2 + $0x3] ss:$0 sm:$0xff]
      %v1653 = vadd.f32 %v1651, %v1652
      %v1654 = vmax.f32 %v1653, 0.0
      %1655 = vst.msk [vmem:[#allocation2 + $0x10] sm:$0xf] %vm1134, %v1654
      %v1656 = vld [vmem:[#allocation2] sm:$0x80]
      %v1657 = vld [vmem:[#allocation2 + $0x10] sm:$0x7]
      %s1658 = scalar_lea.vmem %s4, 384
      %v1659 = vld [vmem:[%s1658] sm:$0xff]
      %v1660 = vld [vmem:[%s1658 + $0x8] sm:$0xff]
      %v1661 = vld [vmem:[%s1658 + $0x10] sm:$0xff]
      %v1662 = vld [vmem:[%s1658 + $0x18] sm:$0xff]
      %v1663 = vld [vmem:[%s1658 + $0x20] sm:$0xff]
      %v1664 = vld [vmem:[%s1658 + $0x28] sm:$0xff]
      %v1665 = vld [vmem:[%s1658 + $0x30] sm:$0xff]
      %v1666 = vld [vmem:[%s1658 + $0x38] sm:$0xff]
      %v1667 = vld [vmem:[#allocation2 + $0x10] sm:$0xf]
      %s1668 = scalar_lea.vmem %s4, 448
      %v1669 = vld [vmem:[%s1668] sm:$0xff]
      %v1670 = vld [vmem:[%s1668 + $0x8] sm:$0xff]
      %v1671 = vld [vmem:[%s1668 + $0x10] sm:$0xff]
      %v1672 = vld [vmem:[%s1668 + $0x18] sm:$0xff]
      %v1673 = vld [vmem:[%s1668 + $0x20] sm:$0xff]
      %v1674 = vld [vmem:[%s1668 + $0x28] sm:$0xff]
      %v1675 = vld [vmem:[%s1668 + $0x30] sm:$0xff]
      %v1676 = vld [vmem:[%s1668 + $0x38] sm:$0xff]
      %v1678 = vsel %vm473, %v1667, 0
      %1680 = vmatprep.subr.mxu0 0.0
      %1681 = vmatpush1.msra.mxu0 %v1669
      %1682 = vmatprep.subr.mxu0 0.0
      %1683 = vmatpush1.msra.mxu0 %v1670
      %1684 = vmatprep.subr.mxu0 0.0
      %1685 = vmatpush1.msra.mxu0 %v1671
      %1686 = vmatprep.subr.mxu0 0.0
      %1687 = vmatpush1.msra.mxu0 %v1672
      %1688 = vmatprep.subr.mxu0 0.0
      %1689 = vmatpush1.msra.mxu0 %v1673
      %1690 = vmatprep.subr.mxu0 0.0
      %1691 = vmatpush1.msra.mxu0 %v1674
      %1692 = vmatprep.subr.mxu0 0.0
      %1693 = vmatpush1.msra.mxu0 %v1675
      %1694 = vmatprep.subr.mxu0 0.0
      %1695 = vmatpush1.msra.mxu0 %v1676
      %1696 = vmatprep.subr.mxu0 0.0
      %1697 = vmatpush1.msra.mxu0 0.0
      %1698 = vmatprep.subr.mxu0 0.0
      %1699 = vmatpush1.msra.mxu0 0.0
      %1700 = vmatprep.subr.mxu0 0.0
      %1701 = vmatpush1.msra.mxu0 0.0
      %1702 = vmatprep.subr.mxu0 0.0
      %1703 = vmatpush1.msra.mxu0 0.0
      %1704 = vmatprep.subr.mxu0 0.0
      %1705 = vmatpush1.msra.mxu0 0.0
      %1706 = vmatprep.subr.mxu0 0.0
      %1707 = vmatpush1.msra.mxu0 0.0
      %1708 = vmatprep.subr.mxu0 0.0
      %1709 = vmatpush1.msra.mxu0 0.0
      %1710 = vmatprep.subr.mxu0 0.0
      %1711 = vmatpush1.msra.mxu0 0.0
      %1712 = vmatprep.subr.mxu0 0.0
      %1713 = vmatpush1.msra.mxu0 0.0
      %1714 = vmatprep.subr.mxu0 0.0
      %1715 = vmatpush1.msra.mxu0 0.0
      %1716 = vmatprep.subr.mxu0 0.0
      %1717 = vmatpush1.msra.mxu0 0.0
      %1718 = vmatprep.subr.mxu0 0.0
      %1719 = vmatpush1.msra.mxu0 0.0
      %1720 = vmatprep.subr.mxu0 0.0
      %1721 = vmatpush1.msra.mxu0 0.0
      %1722 = vmatprep.subr.mxu0 0.0
      %1723 = vmatpush1.msra.mxu0 0.0
      %1724 = vmatprep.subr.mxu0 0.0
      %1725 = vmatpush1.msra.mxu0 0.0
      %1726 = vmatprep.subr.mxu0 0.0
      %1727 = vmatpush1.msra.mxu0 0.0
      %1728 = vmatprep.subr.mxu0 0.0
      %1729 = vmatpush1.msra.mxu0 0.0
      %1730 = vmatprep.subr.mxu0 0.0
      %1731 = vmatpush1.msra.mxu0 0.0
      %1732 = vmatprep.subr.mxu0 0.0
      %1733 = vmatpush1.msra.mxu0 0.0
      %1734 = vmatprep.subr.mxu0 0.0
      %1735 = vmatpush1.msra.mxu0 0.0
      %1736 = vmatprep.subr.mxu0 0.0
      %1737 = vmatpush1.msra.mxu0 0.0
      %1738 = vmatprep.subr.mxu0 0.0
      %1739 = vmatpush1.msra.mxu0 0.0
      %1740 = vmatprep.subr.mxu0 0.0
      %1741 = vmatpush1.msra.mxu0 0.0
      %1742 = vmatprep.subr.mxu0 0.0
      %1743 = vmatpush1.msra.mxu0 0.0
      %1744 = vmatprep.mubr.f32.mxu0 0.0
      %1745 = vmatmul.mubr.f32.gmra.mrb[0].mxu0 %v1678
      %v1746 = vpop.f32.mrb[0].mxu0
      %v1747 = vadd.f32 0.0, %v1746
      %v1748 = vpop.f32.mrb[0].mxu0
      %1749 = vdwg.mxu0
      %v1752 = vrot.slane %v1656, 7
      %v1753 = vrot.slane %v1657, 7
      %v1754 = vsel %vm964, %v1752, %v1753
      %v1755 = vsel %vm473, %v1754, 0
      %1757 = vmatprep.subr.mxu0 0.0
      %1758 = vmatpush1.msra.mxu0 %v1659
      %1759 = vmatprep.subr.mxu0 0.0
      %1760 = vmatpush1.msra.mxu0 %v1660
      %1761 = vmatprep.subr.mxu0 0.0
      %1762 = vmatpush1.msra.mxu0 %v1661
      %1763 = vmatprep.subr.mxu0 0.0
      %1764 = vmatpush1.msra.mxu0 %v1662
      %1765 = vmatprep.subr.mxu0 0.0
      %1766 = vmatpush1.msra.mxu0 %v1663
      %1767 = vmatprep.subr.mxu0 0.0
      %1768 = vmatpush1.msra.mxu0 %v1664
      %1769 = vmatprep.subr.mxu0 0.0
      %1770 = vmatpush1.msra.mxu0 %v1665
      %1771 = vmatprep.subr.mxu0 0.0
      %1772 = vmatpush1.msra.mxu0 %v1666
      %1773 = vmatprep.subr.mxu0 0.0
      %1774 = vmatpush1.msra.mxu0 0.0
      %1775 = vmatprep.subr.mxu0 0.0
      %1776 = vmatpush1.msra.mxu0 0.0
      %1777 = vmatprep.subr.mxu0 0.0
      %1778 = vmatpush1.msra.mxu0 0.0
      %1779 = vmatprep.subr.mxu0 0.0
      %1780 = vmatpush1.msra.mxu0 0.0
      %1781 = vmatprep.subr.mxu0 0.0
      %1782 = vmatpush1.msra.mxu0 0.0
      %1783 = vmatprep.subr.mxu0 0.0
      %1784 = vmatpush1.msra.mxu0 0.0
      %1785 = vmatprep.subr.mxu0 0.0
      %1786 = vmatpush1.msra.mxu0 0.0
      %1787 = vmatprep.subr.mxu0 0.0
      %1788 = vmatpush1.msra.mxu0 0.0
      %1789 = vmatprep.subr.mxu0 0.0
      %1790 = vmatpush1.msra.mxu0 0.0
      %1791 = vmatprep.subr.mxu0 0.0
      %1792 = vmatpush1.msra.mxu0 0.0
      %1793 = vmatprep.subr.mxu0 0.0
      %1794 = vmatpush1.msra.mxu0 0.0
      %1795 = vmatprep.subr.mxu0 0.0
      %1796 = vmatpush1.msra.mxu0 0.0
      %1797 = vmatprep.subr.mxu0 0.0
      %1798 = vmatpush1.msra.mxu0 0.0
      %1799 = vmatprep.subr.mxu0 0.0
      %1800 = vmatpush1.msra.mxu0 0.0
      %1801 = vmatprep.subr.mxu0 0.0
      %1802 = vmatpush1.msra.mxu0 0.0
      %1803 = vmatprep.subr.mxu0 0.0
      %1804 = vmatpush1.msra.mxu0 0.0
      %1805 = vmatprep.subr.mxu0 0.0
      %1806 = vmatpush1.msra.mxu0 0.0
      %1807 = vmatprep.subr.mxu0 0.0
      %1808 = vmatpush1.msra.mxu0 0.0
      %1809 = vmatprep.subr.mxu0 0.0
      %1810 = vmatpush1.msra.mxu0 0.0
      %1811 = vmatprep.subr.mxu0 0.0
      %1812 = vmatpush1.msra.mxu0 0.0
      %1813 = vmatprep.subr.mxu0 0.0
      %1814 = vmatpush1.msra.mxu0 0.0
      %1815 = vmatprep.subr.mxu0 0.0
      %1816 = vmatpush1.msra.mxu0 0.0
      %1817 = vmatprep.subr.mxu0 0.0
      %1818 = vmatpush1.msra.mxu0 0.0
      %1819 = vmatprep.subr.mxu0 0.0
      %1820 = vmatpush1.msra.mxu0 0.0
      %1821 = vmatprep.mubr.f32.mxu0 0.0
      %1822 = vmatmul.mubr.f32.gmra.mrb[0].mxu0 %v1755
      %v1823 = vpop.f32.mrb[0].mxu0
      %v1824 = vadd.f32 %v1747, %v1823
      %v1825 = vpop.f32.mrb[0].mxu0
      %1826 = vdwg.mxu0
      %v1827 = vld [vmem:[#allocation2 + $0x10] sm:$0x1e]
      %s1828 = scalar_lea.vmem %s4, 512
      %v1829 = vld [vmem:[%s1828] sm:$0xff]
      %v1830 = vld [vmem:[%s1828 + $0x8] sm:$0xff]
      %v1831 = vld [vmem:[%s1828 + $0x10] sm:$0xff]
      %v1832 = vld [vmem:[%s1828 + $0x18] sm:$0xff]
      %v1833 = vld [vmem:[%s1828 + $0x20] sm:$0xff]
      %v1834 = vld [vmem:[%s1828 + $0x28] sm:$0xff]
      %v1835 = vld [vmem:[%s1828 + $0x30] sm:$0xff]
      %v1836 = vld [vmem:[%s1828 + $0x38] sm:$0xff]
      %v1838 = vrot.slane %v1827, 1
      %v1839 = vsel %vm473, %v1838, 0
      %1841 = vmatprep.subr.mxu0 0.0
      %1842 = vmatpush1.msra.mxu0 %v1829
      %1843 = vmatprep.subr.mxu0 0.0
      %1844 = vmatpush1.msra.mxu0 %v1830
      %1845 = vmatprep.subr.mxu0 0.0
      %1846 = vmatpush1.msra.mxu0 %v1831
      %1847 = vmatprep.subr.mxu0 0.0
      %1848 = vmatpush1.msra.mxu0 %v1832
      %1849 = vmatprep.subr.mxu0 0.0
      %1850 = vmatpush1.msra.mxu0 %v1833
      %1851 = vmatprep.subr.mxu0 0.0
      %1852 = vmatpush1.msra.mxu0 %v1834
      %1853 = vmatprep.subr.mxu0 0.0
      %1854 = vmatpush1.msra.mxu0 %v1835
      %1855 = vmatprep.subr.mxu0 0.0
      %1856 = vmatpush1.msra.mxu0 %v1836
      %1857 = vmatprep.subr.mxu0 0.0
      %1858 = vmatpush1.msra.mxu0 0.0
      %1859 = vmatprep.subr.mxu0 0.0
      %1860 = vmatpush1.msra.mxu0 0.0
      %1861 = vmatprep.subr.mxu0 0.0
      %1862 = vmatpush1.msra.mxu0 0.0
      %1863 = vmatprep.subr.mxu0 0.0
      %1864 = vmatpush1.msra.mxu0 0.0
      %1865 = vmatprep.subr.mxu0 0.0
      %1866 = vmatpush1.msra.mxu0 0.0
      %1867 = vmatprep.subr.mxu0 0.0
      %1868 = vmatpush1.msra.mxu0 0.0
      %1869 = vmatprep.subr.mxu0 0.0
      %1870 = vmatpush1.msra.mxu0 0.0
      %1871 = vmatprep.subr.mxu0 0.0
      %1872 = vmatpush1.msra.mxu0 0.0
      %1873 = vmatprep.subr.mxu0 0.0
      %1874 = vmatpush1.msra.mxu0 0.0
      %1875 = vmatprep.subr.mxu0 0.0
      %1876 = vmatpush1.msra.mxu0 0.0
      %1877 = vmatprep.subr.mxu0 0.0
      %1878 = vmatpush1.msra.mxu0 0.0
      %1879 = vmatprep.subr.mxu0 0.0
      %1880 = vmatpush1.msra.mxu0 0.0
      %1881 = vmatprep.subr.mxu0 0.0
      %1882 = vmatpush1.msra.mxu0 0.0
      %1883 = vmatprep.subr.mxu0 0.0
      %1884 = vmatpush1.msra.mxu0 0.0
      %1885 = vmatprep.subr.mxu0 0.0
      %1886 = vmatpush1.msra.mxu0 0.0
      %1887 = vmatprep.subr.mxu0 0.0
      %1888 = vmatpush1.msra.mxu0 0.0
      %1889 = vmatprep.subr.mxu0 0.0
      %1890 = vmatpush1.msra.mxu0 0.0
      %1891 = vmatprep.subr.mxu0 0.0
      %1892 = vmatpush1.msra.mxu0 0.0
      %1893 = vmatprep.subr.mxu0 0.0
      %1894 = vmatpush1.msra.mxu0 0.0
      %1895 = vmatprep.subr.mxu0 0.0
      %1896 = vmatpush1.msra.mxu0 0.0
      %1897 = vmatprep.subr.mxu0 0.0
      %1898 = vmatpush1.msra.mxu0 0.0
      %1899 = vmatprep.subr.mxu0 0.0
      %1900 = vmatpush1.msra.mxu0 0.0
      %1901 = vmatprep.subr.mxu0 0.0
      %1902 = vmatpush1.msra.mxu0 0.0
      %1903 = vmatprep.subr.mxu0 0.0
      %1904 = vmatpush1.msra.mxu0 0.0
      %1905 = vmatprep.mubr.f32.mxu0 0.0
      %1906 = vmatmul.mubr.f32.gmra.mrb[0].mxu0 %v1839
      %v1907 = vpop.f32.mrb[0].mxu0
      %v1908 = vadd.f32 0.0, %v1907
      %v1909 = vpop.f32.mrb[0].mxu0
      %1910 = vdwg.mxu0
      %v1911 = vadd.f32 %v1824, %v1908
      %v1912 = vld [vmem:[%s2 + $0x4] ss:$0 sm:$0xff]
      %v1913 = vadd.f32 %v1911, %v1912
      %v1914 = vadd.f32 %v1913, %v1394
      %v1915 = vmax.f32 %v1914, 0.0
      %s1916 = scalar_lea.vmem %s6, 64
      %v1917 = vld [vmem:[%s1916] sm:$0xff]
      %v1918 = vld [vmem:[%s1916 + $0x8] sm:$0xff]
      %v1919 = vld [vmem:[%s1916 + $0x10] sm:$0xff]
      %v1920 = vld [vmem:[%s1916 + $0x18] sm:$0xff]
      %v1921 = vld [vmem:[%s1916 + $0x20] sm:$0xff]
      %v1922 = vld [vmem:[%s1916 + $0x28] sm:$0xff]
      %v1923 = vld [vmem:[%s1916 + $0x30] sm:$0xff]
      %v1924 = vld [vmem:[%s1916 + $0x38] sm:$0xff]
      %v1925 = vld [vmem:[%s2 + $0x22] ss:$0 sm:$0xff]
      %v1927 = vsel %vm473, %v1915, 0
      %1929 = vmatprep.subr.mxu0 0.0
      %1930 = vmatpush1.msra.mxu0 %v1917
      %1931 = vmatprep.subr.mxu0 0.0
      %1932 = vmatpush1.msra.mxu0 %v1918
      %1933 = vmatprep.subr.mxu0 0.0
      %1934 = vmatpush1.msra.mxu0 %v1919
      %1935 = vmatprep.subr.mxu0 0.0
      %1936 = vmatpush1.msra.mxu0 %v1920
      %1937 = vmatprep.subr.mxu0 0.0
      %1938 = vmatpush1.msra.mxu0 %v1921
      %1939 = vmatprep.subr.mxu0 0.0
      %1940 = vmatpush1.msra.mxu0 %v1922
      %1941 = vmatprep.subr.mxu0 0.0
      %1942 = vmatpush1.msra.mxu0 %v1923
      %1943 = vmatprep.subr.mxu0 0.0
      %1944 = vmatpush1.msra.mxu0 %v1924
      %1945 = vmatprep.subr.mxu0 0.0
      %1946 = vmatpush1.msra.mxu0 0.0
      %1947 = vmatprep.subr.mxu0 0.0
      %1948 = vmatpush1.msra.mxu0 0.0
      %1949 = vmatprep.subr.mxu0 0.0
      %1950 = vmatpush1.msra.mxu0 0.0
      %1951 = vmatprep.subr.mxu0 0.0
      %1952 = vmatpush1.msra.mxu0 0.0
      %1953 = vmatprep.subr.mxu0 0.0
      %1954 = vmatpush1.msra.mxu0 0.0
      %1955 = vmatprep.subr.mxu0 0.0
      %1956 = vmatpush1.msra.mxu0 0.0
      %1957 = vmatprep.subr.mxu0 0.0
      %1958 = vmatpush1.msra.mxu0 0.0
      %1959 = vmatprep.subr.mxu0 0.0
      %1960 = vmatpush1.msra.mxu0 0.0
      %1961 = vmatprep.subr.mxu0 0.0
      %1962 = vmatpush1.msra.mxu0 0.0
      %1963 = vmatprep.subr.mxu0 0.0
      %1964 = vmatpush1.msra.mxu0 0.0
      %1965 = vmatprep.subr.mxu0 0.0
      %1966 = vmatpush1.msra.mxu0 0.0
      %1967 = vmatprep.subr.mxu0 0.0
      %1968 = vmatpush1.msra.mxu0 0.0
      %1969 = vmatprep.subr.mxu0 0.0
      %1970 = vmatpush1.msra.mxu0 0.0
      %1971 = vmatprep.subr.mxu0 0.0
      %1972 = vmatpush1.msra.mxu0 0.0
      %1973 = vmatprep.subr.mxu0 0.0
      %1974 = vmatpush1.msra.mxu0 0.0
      %1975 = vmatprep.subr.mxu0 0.0
      %1976 = vmatpush1.msra.mxu0 0.0
      %1977 = vmatprep.subr.mxu0 0.0
      %1978 = vmatpush1.msra.mxu0 0.0
      %1979 = vmatprep.subr.mxu0 0.0
      %1980 = vmatpush1.msra.mxu0 0.0
      %1981 = vmatprep.subr.mxu0 0.0
      %1982 = vmatpush1.msra.mxu0 0.0
      %1983 = vmatprep.subr.mxu0 0.0
      %1984 = vmatpush1.msra.mxu0 0.0
      %1985 = vmatprep.subr.mxu0 0.0
      %1986 = vmatpush1.msra.mxu0 0.0
      %1987 = vmatprep.subr.mxu0 0.0
      %1988 = vmatpush1.msra.mxu0 0.0
      %1989 = vmatprep.subr.mxu0 0.0
      %1990 = vmatpush1.msra.mxu0 0.0
      %1991 = vmatprep.subr.mxu0 0.0
      %1992 = vmatpush1.msra.mxu0 0.0
      %1993 = vmatprep.mubr.f32.mxu0 0.0
      %1994 = vmatmul.mubr.f32.gmra.mrb[0].mxu0 %v1927
      %v1995 = vpop.f32.mrb[0].mxu0
      %v1996 = vadd.f32 %v1925, %v1995
      %v1997 = vpop.f32.mrb[0].mxu0
      %1998 = vdwg.mxu0
      %s1999 = scalar_lea.vmem %s8, 512
      %v2000 = vld [vmem:[%s1999] sm:$0xff]
      %v2001 = vld [vmem:[%s1999 + $0x10] sm:$0xff]
      %v2002 = vld [vmem:[%s1999 + $0x20] sm:$0xff]
      %v2003 = vld [vmem:[%s1999 + $0x30] sm:$0xff]
      %v2005 = vsel %vm380, %v1996, 0
      %2007 = vmatprep.subr.mxu0 0.0
      %2008 = vmatpush1.msra.mxu0 %v2000
      %2009 = vmatprep.subr.mxu0 0.0
      %2010 = vmatpush1.msra.mxu0 %v2001
      %2011 = vmatprep.subr.mxu0 0.0
      %2012 = vmatpush1.msra.mxu0 %v2002
      %2013 = vmatprep.subr.mxu0 0.0
      %2014 = vmatpush1.msra.mxu0 %v2003
      %2015 = vmatprep.subr.mxu0 0.0
      %2016 = vmatpush1.msra.mxu0 0.0
      %2017 = vmatprep.subr.mxu0 0.0
      %2018 = vmatpush1.msra.mxu0 0.0
      %2019 = vmatprep.subr.mxu0 0.0
      %2020 = vmatpush1.msra.mxu0 0.0
      %2021 = vmatprep.subr.mxu0 0.0
      %2022 = vmatpush1.msra.mxu0 0.0
      %2023 = vmatprep.subr.mxu0 0.0
      %2024 = vmatpush1.msra.mxu0 0.0
      %2025 = vmatprep.subr.mxu0 0.0
      %2026 = vmatpush1.msra.mxu0 0.0
      %2027 = vmatprep.subr.mxu0 0.0
      %2028 = vmatpush1.msra.mxu0 0.0
      %2029 = vmatprep.subr.mxu0 0.0
      %2030 = vmatpush1.msra.mxu0 0.0
      %2031 = vmatprep.subr.mxu0 0.0
      %2032 = vmatpush1.msra.mxu0 0.0
      %2033 = vmatprep.subr.mxu0 0.0
      %2034 = vmatpush1.msra.mxu0 0.0
      %2035 = vmatprep.subr.mxu0 0.0
      %2036 = vmatpush1.msra.mxu0 0.0
      %2037 = vmatprep.subr.mxu0 0.0
      %2038 = vmatpush1.msra.mxu0 0.0
      %2039 = vmatprep.subr.mxu0 0.0
      %2040 = vmatpush1.msra.mxu0 0.0
      %2041 = vmatprep.subr.mxu0 0.0
      %2042 = vmatpush1.msra.mxu0 0.0
      %2043 = vmatprep.subr.mxu0 0.0
      %2044 = vmatpush1.msra.mxu0 0.0
      %2045 = vmatprep.subr.mxu0 0.0
      %2046 = vmatpush1.msra.mxu0 0.0
      %2047 = vmatprep.subr.mxu0 0.0
      %2048 = vmatpush1.msra.mxu0 0.0
      %2049 = vmatprep.subr.mxu0 0.0
      %2050 = vmatpush1.msra.mxu0 0.0
      %2051 = vmatprep.subr.mxu0 0.0
      %2052 = vmatpush1.msra.mxu0 0.0
      %2053 = vmatprep.subr.mxu0 0.0
      %2054 = vmatpush1.msra.mxu0 0.0
      %2055 = vmatprep.subr.mxu0 0.0
      %2056 = vmatpush1.msra.mxu0 0.0
      %2057 = vmatprep.subr.mxu0 0.0
      %2058 = vmatpush1.msra.mxu0 0.0
      %2059 = vmatprep.subr.mxu0 0.0
      %2060 = vmatpush1.msra.mxu0 0.0
      %2061 = vmatprep.subr.mxu0 0.0
      %2062 = vmatpush1.msra.mxu0 0.0
      %2063 = vmatprep.subr.mxu0 0.0
      %2064 = vmatpush1.msra.mxu0 0.0
      %2065 = vmatprep.subr.mxu0 0.0
      %2066 = vmatpush1.msra.mxu0 0.0
      %2067 = vmatprep.subr.mxu0 0.0
      %2068 = vmatpush1.msra.mxu0 0.0
      %2069 = vmatprep.subr.mxu0 0.0
      %2070 = vmatpush1.msra.mxu0 0.0
      %2071 = vmatprep.mubr.f32.mxu0 0.0
      %2072 = vmatmul.mubr.f32.gmra.mrb[0].mxu0 %v2005
      %v2073 = vpop.f32.mrb[0].mxu0
      %v2074 = vadd.f32 0.0, %v2073
      %v2075 = vpop.f32.mrb[0].mxu0
      %2076 = vdwg.mxu0
      %v2077 = vld [vmem:[%s9] sm:$0xff]
      %vm2078 = vcmask 31744
      %v2080 = vsel %vm2078, %v2077, 0
      %vm2082 = vcmask 1043456
      %v2084 = vsel %vm2082, %v2074, 0
      %2086 = vmatprep.subr.mxu0 0.0
      %2087 = vmatpush1.msra.mxu0 %v2084
      %2088 = vmatprep.subr.mxu0 0.0
      %2089 = vmatpush1.msra.mxu0 0.0
      %2090 = vmatprep.subr.mxu0 0.0
      %2091 = vmatpush1.msra.mxu0 0.0
      %2092 = vmatprep.subr.mxu0 0.0
      %2093 = vmatpush1.msra.mxu0 0.0
      %2094 = vmatprep.subr.mxu0 0.0
      %2095 = vmatpush1.msra.mxu0 0.0
      %2096 = vmatprep.subr.mxu0 0.0
      %2097 = vmatpush1.msra.mxu0 0.0
      %2098 = vmatprep.subr.mxu0 0.0
      %2099 = vmatpush1.msra.mxu0 0.0
      %2100 = vmatprep.subr.mxu0 0.0
      %2101 = vmatpush1.msra.mxu0 0.0
      %2102 = vmatprep.subr.mxu0 0.0
      %2103 = vmatpush1.msra.mxu0 0.0
      %2104 = vmatprep.subr.mxu0 0.0
      %2105 = vmatpush1.msra.mxu0 0.0
      %2106 = vmatprep.subr.mxu0 0.0
      %2107 = vmatpush1.msra.mxu0 0.0
      %2108 = vmatprep.subr.mxu0 0.0
      %2109 = vmatpush1.msra.mxu0 0.0
      %2110 = vmatprep.subr.mxu0 0.0
      %2111 = vmatpush1.msra.mxu0 0.0
      %2112 = vmatprep.subr.mxu0 0.0
      %2113 = vmatpush1.msra.mxu0 0.0
      %2114 = vmatprep.subr.mxu0 0.0
      %2115 = vmatpush1.msra.mxu0 0.0
      %2116 = vmatprep.subr.mxu0 0.0
      %2117 = vmatpush1.msra.mxu0 0.0
      %2118 = vmatprep.subr.mxu0 0.0
      %2119 = vmatpush1.msra.mxu0 0.0
      %2120 = vmatprep.subr.mxu0 0.0
      %2121 = vmatpush1.msra.mxu0 0.0
      %2122 = vmatprep.subr.mxu0 0.0
      %2123 = vmatpush1.msra.mxu0 0.0
      %2124 = vmatprep.subr.mxu0 0.0
      %2125 = vmatpush1.msra.mxu0 0.0
      %2126 = vmatprep.subr.mxu0 0.0
      %2127 = vmatpush1.msra.mxu0 0.0
      %2128 = vmatprep.subr.mxu0 0.0
      %2129 = vmatpush1.msra.mxu0 0.0
      %2130 = vmatprep.subr.mxu0 0.0
      %2131 = vmatpush1.msra.mxu0 0.0
      %2132 = vmatprep.subr.mxu0 0.0
      %2133 = vmatpush1.msra.mxu0 0.0
      %2134 = vmatprep.subr.mxu0 0.0
      %2135 = vmatpush1.msra.mxu0 0.0
      %2136 = vmatprep.subr.mxu0 0.0
      %2137 = vmatpush1.msra.mxu0 0.0
      %2138 = vmatprep.subr.mxu0 0.0
      %2139 = vmatpush1.msra.mxu0 0.0
      %2140 = vmatprep.subr.mxu0 0.0
      %2141 = vmatpush1.msra.mxu0 0.0
      %2142 = vmatprep.subr.mxu0 0.0
      %2143 = vmatpush1.msra.mxu0 0.0
      %2144 = vmatprep.subr.mxu0 0.0
      %2145 = vmatpush1.msra.mxu0 0.0
      %2146 = vmatprep.subr.mxu0 0.0
      %2147 = vmatpush1.msra.mxu0 0.0
      %2148 = vmatprep.subr.mxu0 0.0
      %2149 = vmatpush1.msra.mxu0 0.0
      %2150 = vmatprep.mubr.f32.mxu0 0.0
      %2151 = vmatmul.mubr.f32.gmra.mrb[0].mxu0 %v2080
      %v2152 = vpop.f32.mrb[0].mxu0
      %v2153 = vadd.f32 0.0, %v2152
      %v2154 = vpop.f32.mrb[0].mxu0
      %2155 = vdwg.mxu0
      %v2156 = vld [vmem:[%s547] sm:$0xff]
      %v2157 = vld [vmem:[%s547 + $0x10] sm:$0xff]
      %v2158 = vld [vmem:[%s547 + $0x20] sm:$0xff]
      %v2159 = vld [vmem:[%s547 + $0x30] sm:$0xff]
      %v2160 = vld [vmem:[%s547 + $0x40] sm:$0xff]
      %v2161 = vld [vmem:[%s547 + $0x50] sm:$0xff]
      %v2162 = vld [vmem:[%s547 + $0x60] sm:$0xff]
      %v2163 = vld [vmem:[%s547 + $0x70] sm:$0xff]
      %2164 = vmatprep.subr.mxu0 0.0
      %2165 = vmatpush1.msra.mxu0 %v2156
      %2166 = vmatprep.subr.mxu0 0.0
      %2167 = vmatpush1.msra.mxu0 %v2157
      %2168 = vmatprep.subr.mxu0 0.0
      %2169 = vmatpush1.msra.mxu0 %v2158
      %2170 = vmatprep.subr.mxu0 0.0
      %2171 = vmatpush1.msra.mxu0 %v2159
      %2172 = vmatprep.subr.mxu0 0.0
      %2173 = vmatpush1.msra.mxu0 %v2160
      %2174 = vmatprep.subr.mxu0 0.0
      %2175 = vmatpush1.msra.mxu0 %v2161
      %2176 = vmatprep.subr.mxu0 0.0
      %2177 = vmatpush1.msra.mxu0 %v2162
      %2178 = vmatprep.subr.mxu0 0.0
      %2179 = vmatpush1.msra.mxu0 %v2163
      %2180 = vmatprep.subr.mxu0 0.0
      %2181 = vmatpush1.msra.mxu0 0.0
      %2182 = vmatprep.subr.mxu0 0.0
      %2183 = vmatpush1.msra.mxu0 0.0
      %2184 = vmatprep.subr.mxu0 0.0
      %2185 = vmatpush1.msra.mxu0 0.0
      %2186 = vmatprep.subr.mxu0 0.0
      %2187 = vmatpush1.msra.mxu0 0.0
      %2188 = vmatprep.subr.mxu0 0.0
      %2189 = vmatpush1.msra.mxu0 0.0
      %2190 = vmatprep.subr.mxu0 0.0
      %2191 = vmatpush1.msra.mxu0 0.0
      %2192 = vmatprep.subr.mxu0 0.0
      %2193 = vmatpush1.msra.mxu0 0.0
      %2194 = vmatprep.subr.mxu0 0.0
      %2195 = vmatpush1.msra.mxu0 0.0
      %2196 = vmatprep.subr.mxu0 0.0
      %2197 = vmatpush1.msra.mxu0 0.0
      %2198 = vmatprep.subr.mxu0 0.0
      %2199 = vmatpush1.msra.mxu0 0.0
      %2200 = vmatprep.subr.mxu0 0.0
      %2201 = vmatpush1.msra.mxu0 0.0
      %2202 = vmatprep.subr.mxu0 0.0
      %2203 = vmatpush1.msra.mxu0 0.0
      %2204 = vmatprep.subr.mxu0 0.0
      %2205 = vmatpush1.msra.mxu0 0.0
      %2206 = vmatprep.subr.mxu0 0.0
      %2207 = vmatpush1.msra.mxu0 0.0
      %2208 = vmatprep.subr.mxu0 0.0
      %2209 = vmatpush1.msra.mxu0 0.0
      %2210 = vmatprep.subr.mxu0 0.0
      %2211 = vmatpush1.msra.mxu0 0.0
      %2212 = vmatprep.subr.mxu0 0.0
      %2213 = vmatpush1.msra.mxu0 0.0
      %2214 = vmatprep.subr.mxu0 0.0
      %2215 = vmatpush1.msra.mxu0 0.0
      %2216 = vmatprep.subr.mxu0 0.0
      %2217 = vmatpush1.msra.mxu0 0.0
      %2218 = vmatprep.subr.mxu0 0.0
      %2219 = vmatpush1.msra.mxu0 0.0
      %2220 = vmatprep.subr.mxu0 0.0
      %2221 = vmatpush1.msra.mxu0 0.0
      %2222 = vmatprep.subr.mxu0 0.0
      %2223 = vmatpush1.msra.mxu0 0.0
      %2224 = vmatprep.subr.mxu0 0.0
      %2225 = vmatpush1.msra.mxu0 0.0
      %2226 = vmatprep.subr.mxu0 0.0
      %2227 = vmatpush1.msra.mxu0 0.0
      %2228 = vmatprep.mubr.f32.mxu0 0.0
      %2229 = vmatmul.mubr.f32.gmra.mrb[0].mxu0 %v1927
      %v2230 = vpop.f32.mrb[0].mxu0
      %v2231 = vadd.f32 0.0, %v2230
      %v2232 = vpop.f32.mrb[0].mxu0
      %2233 = vdwg.mxu0
      %v2235 = vsel %vm2082, %v2231, 0
      %2237 = vmatprep.subr.mxu0 0.0
      %2238 = vmatpush1.msra.mxu0 %v2235
      %2239 = vmatprep.subr.mxu0 0.0
      %2240 = vmatpush1.msra.mxu0 0.0
      %2241 = vmatprep.subr.mxu0 0.0
      %2242 = vmatpush1.msra.mxu0 0.0
      %2243 = vmatprep.subr.mxu0 0.0
      %2244 = vmatpush1.msra.mxu0 0.0
      %2245 = vmatprep.subr.mxu0 0.0
      %2246 = vmatpush1.msra.mxu0 0.0
      %2247 = vmatprep.subr.mxu0 0.0
      %2248 = vmatpush1.msra.mxu0 0.0
      %2249 = vmatprep.subr.mxu0 0.0
      %2250 = vmatpush1.msra.mxu0 0.0
      %2251 = vmatprep.subr.mxu0 0.0
      %2252 = vmatpush1.msra.mxu0 0.0
      %2253 = vmatprep.subr.mxu0 0.0
      %2254 = vmatpush1.msra.mxu0 0.0
      %2255 = vmatprep.subr.mxu0 0.0
      %2256 = vmatpush1.msra.mxu0 0.0
      %2257 = vmatprep.subr.mxu0 0.0
      %2258 = vmatpush1.msra.mxu0 0.0
      %2259 = vmatprep.subr.mxu0 0.0
      %2260 = vmatpush1.msra.mxu0 0.0
      %2261 = vmatprep.subr.mxu0 0.0
      %2262 = vmatpush1.msra.mxu0 0.0
      %2263 = vmatprep.subr.mxu0 0.0
      %2264 = vmatpush1.msra.mxu0 0.0
      %2265 = vmatprep.subr.mxu0 0.0
      %2266 = vmatpush1.msra.mxu0 0.0
      %2267 = vmatprep.subr.mxu0 0.0
      %2268 = vmatpush1.msra.mxu0 0.0
      %2269 = vmatprep.subr.mxu0 0.0
      %2270 = vmatpush1.msra.mxu0 0.0
      %2271 = vmatprep.subr.mxu0 0.0
      %2272 = vmatpush1.msra.mxu0 0.0
      %2273 = vmatprep.subr.mxu0 0.0
      %2274 = vmatpush1.msra.mxu0 0.0
      %2275 = vmatprep.subr.mxu0 0.0
      %2276 = vmatpush1.msra.mxu0 0.0
      %2277 = vmatprep.subr.mxu0 0.0
      %2278 = vmatpush1.msra.mxu0 0.0
      %2279 = vmatprep.subr.mxu0 0.0
      %2280 = vmatpush1.msra.mxu0 0.0
      %2281 = vmatprep.subr.mxu0 0.0
      %2282 = vmatpush1.msra.mxu0 0.0
      %2283 = vmatprep.subr.mxu0 0.0
      %2284 = vmatpush1.msra.mxu0 0.0
      %2285 = vmatprep.subr.mxu0 0.0
      %2286 = vmatpush1.msra.mxu0 0.0
      %2287 = vmatprep.subr.mxu0 0.0
      %2288 = vmatpush1.msra.mxu0 0.0
      %2289 = vmatprep.subr.mxu0 0.0
      %2290 = vmatpush1.msra.mxu0 0.0
      %2291 = vmatprep.subr.mxu0 0.0
      %2292 = vmatpush1.msra.mxu0 0.0
      %2293 = vmatprep.subr.mxu0 0.0
      %2294 = vmatpush1.msra.mxu0 0.0
      %2295 = vmatprep.subr.mxu0 0.0
      %2296 = vmatpush1.msra.mxu0 0.0
      %2297 = vmatprep.subr.mxu0 0.0
      %2298 = vmatpush1.msra.mxu0 0.0
      %2299 = vmatprep.subr.mxu0 0.0
      %2300 = vmatpush1.msra.mxu0 0.0
      %2301 = vmatprep.mubr.f32.mxu0 0.0
      %2302 = vmatmul.mubr.f32.gmra.mrb[0].mxu0 %v2080
      %v2303 = vpop.f32.mrb[0].mxu0
      %v2304 = vadd.f32 0.0, %v2303
      %v2305 = vpop.f32.mrb[0].mxu0
      %2306 = vdwg.mxu0
      %2307 = vst [vmem:[#allocation2 + $0x10] sm:$0xff] %v2304
      %v2308 = vld [vmem:[#allocation2] sm:$0x80]
      %v2309 = vld [vmem:[#allocation2 + $0x10] sm:$0x7f]
      %s2310 = scalar_lea.vmem %s3, 384
      %v2311 = vld [vmem:[%s2310] sm:$0xff]
      %v2312 = vld [vmem:[%s2310 + $0x8] sm:$0xff]
      %v2313 = vld [vmem:[%s2310 + $0x10] sm:$0xff]
      %v2314 = vld [vmem:[%s2310 + $0x18] sm:$0xff]
      %v2315 = vld [vmem:[%s2310 + $0x20] sm:$0xff]
      %v2316 = vld [vmem:[%s2310 + $0x28] sm:$0xff]
      %v2317 = vld [vmem:[%s2310 + $0x30] sm:$0xff]
      %v2318 = vld [vmem:[%s2310 + $0x38] sm:$0xff]
      %v2319 = vld [vmem:[%s2310 + $0x40] sm:$0xff]
      %v2320 = vld [vmem:[%s2310 + $0x48] sm:$0xff]
      %v2321 = vld [vmem:[%s2310 + $0x50] sm:$0xff]
      %v2322 = vld [vmem:[%s2310 + $0x58] sm:$0xff]
      %v2323 = vld [vmem:[%s2310 + $0x60] sm:$0xff]
      %v2324 = vld [vmem:[%s2310 + $0x68] sm:$0xff]
      %v2325 = vld [vmem:[%s2310 + $0x70] sm:$0xff]
      %v2326 = vld [vmem:[%s2310 + $0x78] sm:$0xff]
      %v2327 = vld [vmem:[#allocation2 + $0x10] sm:$0xff]
      %s2328 = scalar_lea.vmem %s3, 512
      %v2329 = vld [vmem:[%s2328] sm:$0xff]
      %v2330 = vld [vmem:[%s2328 + $0x8] sm:$0xff]
      %v2331 = vld [vmem:[%s2328 + $0x10] sm:$0xff]
      %v2332 = vld [vmem:[%s2328 + $0x18] sm:$0xff]
      %v2333 = vld [vmem:[%s2328 + $0x20] sm:$0xff]
      %v2334 = vld [vmem:[%s2328 + $0x28] sm:$0xff]
      %v2335 = vld [vmem:[%s2328 + $0x30] sm:$0xff]
      %v2336 = vld [vmem:[%s2328 + $0x38] sm:$0xff]
      %v2337 = vld [vmem:[%s2328 + $0x40] sm:$0xff]
      %v2338 = vld [vmem:[%s2328 + $0x48] sm:$0xff]
      %v2339 = vld [vmem:[%s2328 + $0x50] sm:$0xff]
      %v2340 = vld [vmem:[%s2328 + $0x58] sm:$0xff]
      %v2341 = vld [vmem:[%s2328 + $0x60] sm:$0xff]
      %v2342 = vld [vmem:[%s2328 + $0x68] sm:$0xff]
      %v2343 = vld [vmem:[%s2328 + $0x70] sm:$0xff]
      %v2344 = vld [vmem:[%s2328 + $0x78] sm:$0xff]
      %2345 = vmatprep.subr.mxu0 0.0
      %2346 = vmatpush1.msra.mxu0 %v2329
      %2347 = vmatprep.subr.mxu0 0.0
      %2348 = vmatpush1.msra.mxu0 %v2330
      %2349 = vmatprep.subr.mxu0 0.0
      %2350 = vmatpush1.msra.mxu0 %v2331
      %2351 = vmatprep.subr.mxu0 0.0
      %2352 = vmatpush1.msra.mxu0 %v2332
      %2353 = vmatprep.subr.mxu0 0.0
      %2354 = vmatpush1.msra.mxu0 %v2333
      %2355 = vmatprep.subr.mxu0 0.0
      %2356 = vmatpush1.msra.mxu0 %v2334
      %2357 = vmatprep.subr.mxu0 0.0
      %2358 = vmatpush1.msra.mxu0 %v2335
      %2359 = vmatprep.subr.mxu0 0.0
      %2360 = vmatpush1.msra.mxu0 %v2336
      %2361 = vmatprep.subr.mxu0 0.0
      %2362 = vmatpush1.msra.mxu0 %v2337
      %2363 = vmatprep.subr.mxu0 0.0
      %2364 = vmatpush1.msra.mxu0 %v2338
      %2365 = vmatprep.subr.mxu0 0.0
      %2366 = vmatpush1.msra.mxu0 %v2339
      %2367 = vmatprep.subr.mxu0 0.0
      %2368 = vmatpush1.msra.mxu0 %v2340
      %2369 = vmatprep.subr.mxu0 0.0
      %2370 = vmatpush1.msra.mxu0 %v2341
      %2371 = vmatprep.subr.mxu0 0.0
      %2372 = vmatpush1.msra.mxu0 %v2342
      %2373 = vmatprep.subr.mxu0 0.0
      %2374 = vmatpush1.msra.mxu0 %v2343
      %2375 = vmatprep.subr.mxu0 0.0
      %2376 = vmatpush1.msra.mxu0 %v2344
      %2377 = vmatprep.subr.mxu0 0.0
      %2378 = vmatpush1.msra.mxu0 0.0
      %2379 = vmatprep.subr.mxu0 0.0
      %2380 = vmatpush1.msra.mxu0 0.0
      %2381 = vmatprep.subr.mxu0 0.0
      %2382 = vmatpush1.msra.mxu0 0.0
      %2383 = vmatprep.subr.mxu0 0.0
      %2384 = vmatpush1.msra.mxu0 0.0
      %2385 = vmatprep.subr.mxu0 0.0
      %2386 = vmatpush1.msra.mxu0 0.0
      %2387 = vmatprep.subr.mxu0 0.0
      %2388 = vmatpush1.msra.mxu0 0.0
      %2389 = vmatprep.subr.mxu0 0.0
      %2390 = vmatpush1.msra.mxu0 0.0
      %2391 = vmatprep.subr.mxu0 0.0
      %2392 = vmatpush1.msra.mxu0 0.0
      %2393 = vmatprep.subr.mxu0 0.0
      %2394 = vmatpush1.msra.mxu0 0.0
      %2395 = vmatprep.subr.mxu0 0.0
      %2396 = vmatpush1.msra.mxu0 0.0
      %2397 = vmatprep.subr.mxu0 0.0
      %2398 = vmatpush1.msra.mxu0 0.0
      %2399 = vmatprep.subr.mxu0 0.0
      %2400 = vmatpush1.msra.mxu0 0.0
      %2401 = vmatprep.subr.mxu0 0.0
      %2402 = vmatpush1.msra.mxu0 0.0
      %2403 = vmatprep.subr.mxu0 0.0
      %2404 = vmatpush1.msra.mxu0 0.0
      %2405 = vmatprep.subr.mxu0 0.0
      %2406 = vmatpush1.msra.mxu0 0.0
      %2407 = vmatprep.subr.mxu0 0.0
      %2408 = vmatpush1.msra.mxu0 0.0
      %2409 = vmatprep.mubr.f32.mxu0 0.0
      %2410 = vmatmul.mubr.f32.gmra.mrb[0].mxu0 %v2327
      %v2411 = vpop.f32.mrb[0].mxu0
      %v2412 = vadd.f32 0.0, %v2411
      %v2413 = vpop.f32.mrb[0].mxu0
      %2414 = vdwg.mxu0
      %v2417 = vrot.slane %v2308, 7
      %v2418 = vrot.slane %v2309, 7
      %v2419 = vsel %vm964, %v2417, %v2418
      %2421 = vmatprep.subr.mxu0 0.0
      %2422 = vmatpush1.msra.mxu0 %v2311
      %2423 = vmatprep.subr.mxu0 0.0
      %2424 = vmatpush1.msra.mxu0 %v2312
      %2425 = vmatprep.subr.mxu0 0.0
      %2426 = vmatpush1.msra.mxu0 %v2313
      %2427 = vmatprep.subr.mxu0 0.0
      %2428 = vmatpush1.msra.mxu0 %v2314
      %2429 = vmatprep.subr.mxu0 0.0
      %2430 = vmatpush1.msra.mxu0 %v2315
      %2431 = vmatprep.subr.mxu0 0.0
      %2432 = vmatpush1.msra.mxu0 %v2316
      %2433 = vmatprep.subr.mxu0 0.0
      %2434 = vmatpush1.msra.mxu0 %v2317
      %2435 = vmatprep.subr.mxu0 0.0
      %2436 = vmatpush1.msra.mxu0 %v2318
      %2437 = vmatprep.subr.mxu0 0.0
      %2438 = vmatpush1.msra.mxu0 %v2319
      %2439 = vmatprep.subr.mxu0 0.0
      %2440 = vmatpush1.msra.mxu0 %v2320
      %2441 = vmatprep.subr.mxu0 0.0
      %2442 = vmatpush1.msra.mxu0 %v2321
      %2443 = vmatprep.subr.mxu0 0.0
      %2444 = vmatpush1.msra.mxu0 %v2322
      %2445 = vmatprep.subr.mxu0 0.0
      %2446 = vmatpush1.msra.mxu0 %v2323
      %2447 = vmatprep.subr.mxu0 0.0
      %2448 = vmatpush1.msra.mxu0 %v2324
      %2449 = vmatprep.subr.mxu0 0.0
      %2450 = vmatpush1.msra.mxu0 %v2325
      %2451 = vmatprep.subr.mxu0 0.0
      %2452 = vmatpush1.msra.mxu0 %v2326
      %2453 = vmatprep.subr.mxu0 0.0
      %2454 = vmatpush1.msra.mxu0 0.0
      %2455 = vmatprep.subr.mxu0 0.0
      %2456 = vmatpush1.msra.mxu0 0.0
      %2457 = vmatprep.subr.mxu0 0.0
      %2458 = vmatpush1.msra.mxu0 0.0
      %2459 = vmatprep.subr.mxu0 0.0
      %2460 = vmatpush1.msra.mxu0 0.0
      %2461 = vmatprep.subr.mxu0 0.0
      %2462 = vmatpush1.msra.mxu0 0.0
      %2463 = vmatprep.subr.mxu0 0.0
      %2464 = vmatpush1.msra.mxu0 0.0
      %2465 = vmatprep.subr.mxu0 0.0
      %2466 = vmatpush1.msra.mxu0 0.0
      %2467 = vmatprep.subr.mxu0 0.0
      %2468 = vmatpush1.msra.mxu0 0.0
      %2469 = vmatprep.subr.mxu0 0.0
      %2470 = vmatpush1.msra.mxu0 0.0
      %2471 = vmatprep.subr.mxu0 0.0
      %2472 = vmatpush1.msra.mxu0 0.0
      %2473 = vmatprep.subr.mxu0 0.0
      %2474 = vmatpush1.msra.mxu0 0.0
      %2475 = vmatprep.subr.mxu0 0.0
      %2476 = vmatpush1.msra.mxu0 0.0
      %2477 = vmatprep.subr.mxu0 0.0
      %2478 = vmatpush1.msra.mxu0 0.0
      %2479 = vmatprep.subr.mxu0 0.0
      %2480 = vmatpush1.msra.mxu0 0.0
      %2481 = vmatprep.subr.mxu0 0.0
      %2482 = vmatpush1.msra.mxu0 0.0
      %2483 = vmatprep.subr.mxu0 0.0
      %2484 = vmatpush1.msra.mxu0 0.0
      %2485 = vmatprep.mubr.f32.mxu0 0.0
      %2486 = vmatmul.mubr.f32.gmra.mrb[0].mxu0 %v2419
      %v2487 = vpop.f32.mrb[0].mxu0
      %v2488 = vadd.f32 %v2412, %v2487
      %v2489 = vpop.f32.mrb[0].mxu0
      %2490 = vdwg.mxu0
      %v2491 = vld [vmem:[#allocation2 + $0x10] sm:$0xfe]
      %v2492 = vld [vmem:[#allocation2 + $0x20] sm:$0x1]
      %s2493 = scalar_lea.vmem %s3, 640
      %v2494 = vld [vmem:[%s2493] sm:$0xff]
      %v2495 = vld [vmem:[%s2493 + $0x8] sm:$0xff]
      %v2496 = vld [vmem:[%s2493 + $0x10] sm:$0xff]
      %v2497 = vld [vmem:[%s2493 + $0x18] sm:$0xff]
      %v2498 = vld [vmem:[%s2493 + $0x20] sm:$0xff]
      %v2499 = vld [vmem:[%s2493 + $0x28] sm:$0xff]
      %v2500 = vld [vmem:[%s2493 + $0x30] sm:$0xff]
      %v2501 = vld [vmem:[%s2493 + $0x38] sm:$0xff]
      %v2502 = vld [vmem:[%s2493 + $0x40] sm:$0xff]
      %v2503 = vld [vmem:[%s2493 + $0x48] sm:$0xff]
      %v2504 = vld [vmem:[%s2493 + $0x50] sm:$0xff]
      %v2505 = vld [vmem:[%s2493 + $0x58] sm:$0xff]
      %v2506 = vld [vmem:[%s2493 + $0x60] sm:$0xff]
      %v2507 = vld [vmem:[%s2493 + $0x68] sm:$0xff]
      %v2508 = vld [vmem:[%s2493 + $0x70] sm:$0xff]
      %v2509 = vld [vmem:[%s2493 + $0x78] sm:$0xff]
      %vm2512 = vcmask 1046528
      %v2513 = vrot.slane %v2491, 1
      %v2514 = vrot.slane %v2492, 1
      %v2515 = vsel %vm2512, %v2513, %v2514
      %2517 = vmatprep.subr.mxu0 0.0
      %2518 = vmatpush1.msra.mxu0 %v2494
      %2519 = vmatprep.subr.mxu0 0.0
      %2520 = vmatpush1.msra.mxu0 %v2495
      %2521 = vmatprep.subr.mxu0 0.0
      %2522 = vmatpush1.msra.mxu0 %v2496
      %2523 = vmatprep.subr.mxu0 0.0
      %2524 = vmatpush1.msra.mxu0 %v2497
      %2525 = vmatprep.subr.mxu0 0.0
      %2526 = vmatpush1.msra.mxu0 %v2498
      %2527 = vmatprep.subr.mxu0 0.0
      %2528 = vmatpush1.msra.mxu0 %v2499
      %2529 = vmatprep.subr.mxu0 0.0
      %2530 = vmatpush1.msra.mxu0 %v2500
      %2531 = vmatprep.subr.mxu0 0.0
      %2532 = vmatpush1.msra.mxu0 %v2501
      %2533 = vmatprep.subr.mxu0 0.0
      %2534 = vmatpush1.msra.mxu0 %v2502
      %2535 = vmatprep.subr.mxu0 0.0
      %2536 = vmatpush1.msra.mxu0 %v2503
      %2537 = vmatprep.subr.mxu0 0.0
      %2538 = vmatpush1.msra.mxu0 %v2504
      %2539 = vmatprep.subr.mxu0 0.0
      %2540 = vmatpush1.msra.mxu0 %v2505
      %2541 = vmatprep.subr.mxu0 0.0
      %2542 = vmatpush1.msra.mxu0 %v2506
      %2543 = vmatprep.subr.mxu0 0.0
      %2544 = vmatpush1.msra.mxu0 %v2507
      %2545 = vmatprep.subr.mxu0 0.0
      %2546 = vmatpush1.msra.mxu0 %v2508
      %2547 = vmatprep.subr.mxu0 0.0
      %2548 = vmatpush1.msra.mxu0 %v2509
      %2549 = vmatprep.subr.mxu0 0.0
      %2550 = vmatpush1.msra.mxu0 0.0
      %2551 = vmatprep.subr.mxu0 0.0
      %2552 = vmatpush1.msra.mxu0 0.0
      %2553 = vmatprep.subr.mxu0 0.0
      %2554 = vmatpush1.msra.mxu0 0.0
      %2555 = vmatprep.subr.mxu0 0.0
      %2556 = vmatpush1.msra.mxu0 0.0
      %2557 = vmatprep.subr.mxu0 0.0
      %2558 = vmatpush1.msra.mxu0 0.0
      %2559 = vmatprep.subr.mxu0 0.0
      %2560 = vmatpush1.msra.mxu0 0.0
      %2561 = vmatprep.subr.mxu0 0.0
      %2562 = vmatpush1.msra.mxu0 0.0
      %2563 = vmatprep.subr.mxu0 0.0
      %2564 = vmatpush1.msra.mxu0 0.0
      %2565 = vmatprep.subr.mxu0 0.0
      %2566 = vmatpush1.msra.mxu0 0.0
      %2567 = vmatprep.subr.mxu0 0.0
      %2568 = vmatpush1.msra.mxu0 0.0
      %2569 = vmatprep.subr.mxu0 0.0
      %2570 = vmatpush1.msra.mxu0 0.0
      %2571 = vmatprep.subr.mxu0 0.0
      %2572 = vmatpush1.msra.mxu0 0.0
      %2573 = vmatprep.subr.mxu0 0.0
      %2574 = vmatpush1.msra.mxu0 0.0
      %2575 = vmatprep.subr.mxu0 0.0
      %2576 = vmatpush1.msra.mxu0 0.0
      %2577 = vmatprep.subr.mxu0 0.0
      %2578 = vmatpush1.msra.mxu0 0.0
      %2579 = vmatprep.subr.mxu0 0.0
      %2580 = vmatpush1.msra.mxu0 0.0
      %2581 = vmatprep.mubr.f32.mxu0 0.0
      %2582 = vmatmul.mubr.f32.gmra.mrb[0].mxu0 %v2515
      %v2583 = vpop.f32.mrb[0].mxu0
      %v2584 = vadd.f32 0.0, %v2583
      %v2585 = vpop.f32.mrb[0].mxu0
      %2586 = vdwg.mxu0
      %v2587 = vadd.f32 %v2488, %v2584
      %v2588 = vld [vmem:[%s2 + $0x5] ss:$0 sm:$0xff]
      %v2589 = vadd.f32 %v2587, %v2588
      %v2590 = vmax.f32 %v2589, 0.0
      %2591 = vst.msk [vmem:[#allocation2 + $0x10] sm:$0xff] %vm473, %v2590
      %v2592 = vld [vmem:[#allocation2] sm:$0x80]
      %v2593 = vld [vmem:[#allocation2 + $0x10] sm:$0x7f]
      %s2594 = scalar_lea.vmem %s4, 576
      %v2595 = vld [vmem:[%s2594] sm:$0xff]
      %v2596 = vld [vmem:[%s2594 + $0x8] sm:$0xff]
      %v2597 = vld [vmem:[%s2594 + $0x10] sm:$0xff]
      %v2598 = vld [vmem:[%s2594 + $0x18] sm:$0xff]
      %v2599 = vld [vmem:[%s2594 + $0x20] sm:$0xff]
      %v2600 = vld [vmem:[%s2594 + $0x28] sm:$0xff]
      %v2601 = vld [vmem:[%s2594 + $0x30] sm:$0xff]
      %v2602 = vld [vmem:[%s2594 + $0x38] sm:$0xff]
      %v2603 = vld [vmem:[#allocation2 + $0x10] sm:$0xff]
      %s2604 = scalar_lea.vmem %s4, 640
      %v2605 = vld [vmem:[%s2604] sm:$0xff]
      %v2606 = vld [vmem:[%s2604 + $0x8] sm:$0xff]
      %v2607 = vld [vmem:[%s2604 + $0x10] sm:$0xff]
      %v2608 = vld [vmem:[%s2604 + $0x18] sm:$0xff]
      %v2609 = vld [vmem:[%s2604 + $0x20] sm:$0xff]
      %v2610 = vld [vmem:[%s2604 + $0x28] sm:$0xff]
      %v2611 = vld [vmem:[%s2604 + $0x30] sm:$0xff]
      %v2612 = vld [vmem:[%s2604 + $0x38] sm:$0xff]
      %v2614 = vsel %vm473, %v2603, 0
      %2616 = vmatprep.subr.mxu0 0.0
      %2617 = vmatpush1.msra.mxu0 %v2605
      %2618 = vmatprep.subr.mxu0 0.0
      %2619 = vmatpush1.msra.mxu0 %v2606
      %2620 = vmatprep.subr.mxu0 0.0
      %2621 = vmatpush1.msra.mxu0 %v2607
      %2622 = vmatprep.subr.mxu0 0.0
      %2623 = vmatpush1.msra.mxu0 %v2608
      %2624 = vmatprep.subr.mxu0 0.0
      %2625 = vmatpush1.msra.mxu0 %v2609
      %2626 = vmatprep.subr.mxu0 0.0
      %2627 = vmatpush1.msra.mxu0 %v2610
      %2628 = vmatprep.subr.mxu0 0.0
      %2629 = vmatpush1.msra.mxu0 %v2611
      %2630 = vmatprep.subr.mxu0 0.0
      %2631 = vmatpush1.msra.mxu0 %v2612
      %2632 = vmatprep.subr.mxu0 0.0
      %2633 = vmatpush1.msra.mxu0 0.0
      %2634 = vmatprep.subr.mxu0 0.0
      %2635 = vmatpush1.msra.mxu0 0.0
      %2636 = vmatprep.subr.mxu0 0.0
      %2637 = vmatpush1.msra.mxu0 0.0
      %2638 = vmatprep.subr.mxu0 0.0
      %2639 = vmatpush1.msra.mxu0 0.0
      %2640 = vmatprep.subr.mxu0 0.0
      %2641 = vmatpush1.msra.mxu0 0.0
      %2642 = vmatprep.subr.mxu0 0.0
      %2643 = vmatpush1.msra.mxu0 0.0
      %2644 = vmatprep.subr.mxu0 0.0
      %2645 = vmatpush1.msra.mxu0 0.0
      %2646 = vmatprep.subr.mxu0 0.0
      %2647 = vmatpush1.msra.mxu0 0.0
      %2648 = vmatprep.subr.mxu0 0.0
      %2649 = vmatpush1.msra.mxu0 0.0
      %2650 = vmatprep.subr.mxu0 0.0
      %2651 = vmatpush1.msra.mxu0 0.0
      %2652 = vmatprep.subr.mxu0 0.0
      %2653 = vmatpush1.msra.mxu0 0.0
      %2654 = vmatprep.subr.mxu0 0.0
      %2655 = vmatpush1.msra.mxu0 0.0
      %2656 = vmatprep.subr.mxu0 0.0
      %2657 = vmatpush1.msra.mxu0 0.0
      %2658 = vmatprep.subr.mxu0 0.0
      %2659 = vmatpush1.msra.mxu0 0.0
      %2660 = vmatprep.subr.mxu0 0.0
      %2661 = vmatpush1.msra.mxu0 0.0
      %2662 = vmatprep.subr.mxu0 0.0
      %2663 = vmatpush1.msra.mxu0 0.0
      %2664 = vmatprep.subr.mxu0 0.0
      %2665 = vmatpush1.msra.mxu0 0.0
      %2666 = vmatprep.subr.mxu0 0.0
      %2667 = vmatpush1.msra.mxu0 0.0
      %2668 = vmatprep.subr.mxu0 0.0
      %2669 = vmatpush1.msra.mxu0 0.0
      %2670 = vmatprep.subr.mxu0 0.0
      %2671 = vmatpush1.msra.mxu0 0.0
      %2672 = vmatprep.subr.mxu0 0.0
      %2673 = vmatpush1.msra.mxu0 0.0
      %2674 = vmatprep.subr.mxu0 0.0
      %2675 = vmatpush1.msra.mxu0 0.0
      %2676 = vmatprep.subr.mxu0 0.0
      %2677 = vmatpush1.msra.mxu0 0.0
      %2678 = vmatprep.subr.mxu0 0.0
      %2679 = vmatpush1.msra.mxu0 0.0
      %2680 = vmatprep.mubr.f32.mxu0 0.0
      %2681 = vmatmul.mubr.f32.gmra.mrb[0].mxu0 %v2614
      %v2682 = vpop.f32.mrb[0].mxu0
      %v2683 = vadd.f32 0.0, %v2682
      %v2684 = vpop.f32.mrb[0].mxu0
      %2685 = vdwg.mxu0
      %v2688 = vrot.slane %v2592, 7
      %v2689 = vrot.slane %v2593, 7
      %v2690 = vsel %vm964, %v2688, %v2689
      %v2691 = vsel %vm473, %v2690, 0
      %2693 = vmatprep.subr.mxu0 0.0
      %2694 = vmatpush1.msra.mxu0 %v2595
      %2695 = vmatprep.subr.mxu0 0.0
      %2696 = vmatpush1.msra.mxu0 %v2596
      %2697 = vmatprep.subr.mxu0 0.0
      %2698 = vmatpush1.msra.mxu0 %v2597
      %2699 = vmatprep.subr.mxu0 0.0
      %2700 = vmatpush1.msra.mxu0 %v2598
      %2701 = vmatprep.subr.mxu0 0.0
      %2702 = vmatpush1.msra.mxu0 %v2599
      %2703 = vmatprep.subr.mxu0 0.0
      %2704 = vmatpush1.msra.mxu0 %v2600
      %2705 = vmatprep.subr.mxu0 0.0
      %2706 = vmatpush1.msra.mxu0 %v2601
      %2707 = vmatprep.subr.mxu0 0.0
      %2708 = vmatpush1.msra.mxu0 %v2602
      %2709 = vmatprep.subr.mxu0 0.0
      %2710 = vmatpush1.msra.mxu0 0.0
      %2711 = vmatprep.subr.mxu0 0.0
      %2712 = vmatpush1.msra.mxu0 0.0
      %2713 = vmatprep.subr.mxu0 0.0
      %2714 = vmatpush1.msra.mxu0 0.0
      %2715 = vmatprep.subr.mxu0 0.0
      %2716 = vmatpush1.msra.mxu0 0.0
      %2717 = vmatprep.subr.mxu0 0.0
      %2718 = vmatpush1.msra.mxu0 0.0
      %2719 = vmatprep.subr.mxu0 0.0
      %2720 = vmatpush1.msra.mxu0 0.0
      %2721 = vmatprep.subr.mxu0 0.0
      %2722 = vmatpush1.msra.mxu0 0.0
      %2723 = vmatprep.subr.mxu0 0.0
      %2724 = vmatpush1.msra.mxu0 0.0
      %2725 = vmatprep.subr.mxu0 0.0
      %2726 = vmatpush1.msra.mxu0 0.0
      %2727 = vmatprep.subr.mxu0 0.0
      %2728 = vmatpush1.msra.mxu0 0.0
      %2729 = vmatprep.subr.mxu0 0.0
      %2730 = vmatpush1.msra.mxu0 0.0
      %2731 = vmatprep.subr.mxu0 0.0
      %2732 = vmatpush1.msra.mxu0 0.0
      %2733 = vmatprep.subr.mxu0 0.0
      %2734 = vmatpush1.msra.mxu0 0.0
      %2735 = vmatprep.subr.mxu0 0.0
      %2736 = vmatpush1.msra.mxu0 0.0
      %2737 = vmatprep.subr.mxu0 0.0
      %2738 = vmatpush1.msra.mxu0 0.0
      %2739 = vmatprep.subr.mxu0 0.0
      %2740 = vmatpush1.msra.mxu0 0.0
      %2741 = vmatprep.subr.mxu0 0.0
      %2742 = vmatpush1.msra.mxu0 0.0
      %2743 = vmatprep.subr.mxu0 0.0
      %2744 = vmatpush1.msra.mxu0 0.0
      %2745 = vmatprep.subr.mxu0 0.0
      %2746 = vmatpush1.msra.mxu0 0.0
      %2747 = vmatprep.subr.mxu0 0.0
      %2748 = vmatpush1.msra.mxu0 0.0
      %2749 = vmatprep.subr.mxu0 0.0
      %2750 = vmatpush1.msra.mxu0 0.0
      %2751 = vmatprep.subr.mxu0 0.0
      %2752 = vmatpush1.msra.mxu0 0.0
      %2753 = vmatprep.subr.mxu0 0.0
      %2754 = vmatpush1.msra.mxu0 0.0
      %2755 = vmatprep.subr.mxu0 0.0
      %2756 = vmatpush1.msra.mxu0 0.0
      %2757 = vmatprep.mubr.f32.mxu0 0.0
      %2758 = vmatmul.mubr.f32.gmra.mrb[0].mxu0 %v2691
      %v2759 = vpop.f32.mrb[0].mxu0
      %v2760 = vadd.f32 %v2683, %v2759
      %v2761 = vpop.f32.mrb[0].mxu0
      %2762 = vdwg.mxu0
      %v2763 = vld [vmem:[#allocation2 + $0x10] sm:$0xfe]
      %v2764 = vld [vmem:[#allocation2 + $0x20] sm:$0x1]
      %s2765 = scalar_lea.vmem %s4, 704
      %v2766 = vld [vmem:[%s2765] sm:$0xff]
      %v2767 = vld [vmem:[%s2765 + $0x8] sm:$0xff]
      %v2768 = vld [vmem:[%s2765 + $0x10] sm:$0xff]
      %v2769 = vld [vmem:[%s2765 + $0x18] sm:$0xff]
      %v2770 = vld [vmem:[%s2765 + $0x20] sm:$0xff]
      %v2771 = vld [vmem:[%s2765 + $0x28] sm:$0xff]
      %v2772 = vld [vmem:[%s2765 + $0x30] sm:$0xff]
      %v2773 = vld [vmem:[%s2765 + $0x38] sm:$0xff]
      %v2776 = vrot.slane %v2763, 1
      %v2777 = vrot.slane %v2764, 1
      %v2778 = vsel %vm2512, %v2776, %v2777
      %v2779 = vsel %vm473, %v2778, 0
      %2781 = vmatprep.subr.mxu0 0.0
      %2782 = vmatpush1.msra.mxu0 %v2766
      %2783 = vmatprep.subr.mxu0 0.0
      %2784 = vmatpush1.msra.mxu0 %v2767
      %2785 = vmatprep.subr.mxu0 0.0
      %2786 = vmatpush1.msra.mxu0 %v2768
      %2787 = vmatprep.subr.mxu0 0.0
      %2788 = vmatpush1.msra.mxu0 %v2769
      %2789 = vmatprep.subr.mxu0 0.0
      %2790 = vmatpush1.msra.mxu0 %v2770
      %2791 = vmatprep.subr.mxu0 0.0
      %2792 = vmatpush1.msra.mxu0 %v2771
      %2793 = vmatprep.subr.mxu0 0.0
      %2794 = vmatpush1.msra.mxu0 %v2772
      %2795 = vmatprep.subr.mxu0 0.0
      %2796 = vmatpush1.msra.mxu0 %v2773
      %2797 = vmatprep.subr.mxu0 0.0
      %2798 = vmatpush1.msra.mxu0 0.0
      %2799 = vmatprep.subr.mxu0 0.0
      %2800 = vmatpush1.msra.mxu0 0.0
      %2801 = vmatprep.subr.mxu0 0.0
      %2802 = vmatpush1.msra.mxu0 0.0
      %2803 = vmatprep.subr.mxu0 0.0
      %2804 = vmatpush1.msra.mxu0 0.0
      %2805 = vmatprep.subr.mxu0 0.0
      %2806 = vmatpush1.msra.mxu0 0.0
      %2807 = vmatprep.subr.mxu0 0.0
      %2808 = vmatpush1.msra.mxu0 0.0
      %2809 = vmatprep.subr.mxu0 0.0
      %2810 = vmatpush1.msra.mxu0 0.0
      %2811 = vmatprep.subr.mxu0 0.0
      %2812 = vmatpush1.msra.mxu0 0.0
      %2813 = vmatprep.subr.mxu0 0.0
      %2814 = vmatpush1.msra.mxu0 0.0
      %2815 = vmatprep.subr.mxu0 0.0
      %2816 = vmatpush1.msra.mxu0 0.0
      %2817 = vmatprep.subr.mxu0 0.0
      %2818 = vmatpush1.msra.mxu0 0.0
      %2819 = vmatprep.subr.mxu0 0.0
      %2820 = vmatpush1.msra.mxu0 0.0
      %2821 = vmatprep.subr.mxu0 0.0
      %2822 = vmatpush1.msra.mxu0 0.0
      %2823 = vmatprep.subr.mxu0 0.0
      %2824 = vmatpush1.msra.mxu0 0.0
      %2825 = vmatprep.subr.mxu0 0.0
      %2826 = vmatpush1.msra.mxu0 0.0
      %2827 = vmatprep.subr.mxu0 0.0
      %2828 = vmatpush1.msra.mxu0 0.0
      %2829 = vmatprep.subr.mxu0 0.0
      %2830 = vmatpush1.msra.mxu0 0.0
      %2831 = vmatprep.subr.mxu0 0.0
      %2832 = vmatpush1.msra.mxu0 0.0
      %2833 = vmatprep.subr.mxu0 0.0
      %2834 = vmatpush1.msra.mxu0 0.0
      %2835 = vmatprep.subr.mxu0 0.0
      %2836 = vmatpush1.msra.mxu0 0.0
      %2837 = vmatprep.subr.mxu0 0.0
      %2838 = vmatpush1.msra.mxu0 0.0
      %2839 = vmatprep.subr.mxu0 0.0
      %2840 = vmatpush1.msra.mxu0 0.0
      %2841 = vmatprep.subr.mxu0 0.0
      %2842 = vmatpush1.msra.mxu0 0.0
      %2843 = vmatprep.subr.mxu0 0.0
      %2844 = vmatpush1.msra.mxu0 0.0
      %2845 = vmatprep.mubr.f32.mxu0 0.0
      %2846 = vmatmul.mubr.f32.gmra.mrb[0].mxu0 %v2779
      %v2847 = vpop.f32.mrb[0].mxu0
      %v2848 = vadd.f32 0.0, %v2847
      %v2849 = vpop.f32.mrb[0].mxu0
      %2850 = vdwg.mxu0
      %v2851 = vadd.f32 %v2760, %v2848
      %v2852 = vld [vmem:[%s2 + $0x6] ss:$0 sm:$0xff]
      %v2853 = vadd.f32 %v2851, %v2852
      %v2854 = vadd.f32 %v2853, %v2153
      %v2855 = vmax.f32 %v2854, 0.0
      %2856 = vst.msk [vmem:[#allocation2 + $0x10] sm:$0xff] %vm473, %v2855
      %v2857 = vld [vmem:[#allocation2] sm:$0x80]
      %v2858 = vld [vmem:[#allocation2 + $0x10] sm:$0x7f]
      %s2859 = scalar_lea.vmem %s4, 768
      %v2860 = vld [vmem:[%s2859] sm:$0xff]
      %v2861 = vld [vmem:[%s2859 + $0x8] sm:$0xff]
      %v2862 = vld [vmem:[%s2859 + $0x10] sm:$0xff]
      %v2863 = vld [vmem:[%s2859 + $0x18] sm:$0xff]
      %v2864 = vld [vmem:[%s2859 + $0x20] sm:$0xff]
      %v2865 = vld [vmem:[%s2859 + $0x28] sm:$0xff]
      %v2866 = vld [vmem:[%s2859 + $0x30] sm:$0xff]
      %v2867 = vld [vmem:[%s2859 + $0x38] sm:$0xff]
      %v2868 = vld [vmem:[#allocation2 + $0x10] sm:$0xff]
      %s2869 = scalar_lea.vmem %s4, 832
      %v2870 = vld [vmem:[%s2869] sm:$0xff]
      %v2871 = vld [vmem:[%s2869 + $0x8] sm:$0xff]
      %v2872 = vld [vmem:[%s2869 + $0x10] sm:$0xff]
      %v2873 = vld [vmem:[%s2869 + $0x18] sm:$0xff]
      %v2874 = vld [vmem:[%s2869 + $0x20] sm:$0xff]
      %v2875 = vld [vmem:[%s2869 + $0x28] sm:$0xff]
      %v2876 = vld [vmem:[%s2869 + $0x30] sm:$0xff]
      %v2877 = vld [vmem:[%s2869 + $0x38] sm:$0xff]
      %v2879 = vsel %vm473, %v2868, 0
      %2881 = vmatprep.subr.mxu0 0.0
      %2882 = vmatpush1.msra.mxu0 %v2870
      %2883 = vmatprep.subr.mxu0 0.0
      %2884 = vmatpush1.msra.mxu0 %v2871
      %2885 = vmatprep.subr.mxu0 0.0
      %2886 = vmatpush1.msra.mxu0 %v2872
      %2887 = vmatprep.subr.mxu0 0.0
      %2888 = vmatpush1.msra.mxu0 %v2873
      %2889 = vmatprep.subr.mxu0 0.0
      %2890 = vmatpush1.msra.mxu0 %v2874
      %2891 = vmatprep.subr.mxu0 0.0
      %2892 = vmatpush1.msra.mxu0 %v2875
      %2893 = vmatprep.subr.mxu0 0.0
      %2894 = vmatpush1.msra.mxu0 %v2876
      %2895 = vmatprep.subr.mxu0 0.0
      %2896 = vmatpush1.msra.mxu0 %v2877
      %2897 = vmatprep.subr.mxu0 0.0
      %2898 = vmatpush1.msra.mxu0 0.0
      %2899 = vmatprep.subr.mxu0 0.0
      %2900 = vmatpush1.msra.mxu0 0.0
      %2901 = vmatprep.subr.mxu0 0.0
      %2902 = vmatpush1.msra.mxu0 0.0
      %2903 = vmatprep.subr.mxu0 0.0
      %2904 = vmatpush1.msra.mxu0 0.0
      %2905 = vmatprep.subr.mxu0 0.0
      %2906 = vmatpush1.msra.mxu0 0.0
      %2907 = vmatprep.subr.mxu0 0.0
      %2908 = vmatpush1.msra.mxu0 0.0
      %2909 = vmatprep.subr.mxu0 0.0
      %2910 = vmatpush1.msra.mxu0 0.0
      %2911 = vmatprep.subr.mxu0 0.0
      %2912 = vmatpush1.msra.mxu0 0.0
      %2913 = vmatprep.subr.mxu0 0.0
      %2914 = vmatpush1.msra.mxu0 0.0
      %2915 = vmatprep.subr.mxu0 0.0
      %2916 = vmatpush1.msra.mxu0 0.0
      %2917 = vmatprep.subr.mxu0 0.0
      %2918 = vmatpush1.msra.mxu0 0.0
      %2919 = vmatprep.subr.mxu0 0.0
      %2920 = vmatpush1.msra.mxu0 0.0
      %2921 = vmatprep.subr.mxu0 0.0
      %2922 = vmatpush1.msra.mxu0 0.0
      %2923 = vmatprep.subr.mxu0 0.0
      %2924 = vmatpush1.msra.mxu0 0.0
      %2925 = vmatprep.subr.mxu0 0.0
      %2926 = vmatpush1.msra.mxu0 0.0
      %2927 = vmatprep.subr.mxu0 0.0
      %2928 = vmatpush1.msra.mxu0 0.0
      %2929 = vmatprep.subr.mxu0 0.0
      %2930 = vmatpush1.msra.mxu0 0.0
      %2931 = vmatprep.subr.mxu0 0.0
      %2932 = vmatpush1.msra.mxu0 0.0
      %2933 = vmatprep.subr.mxu0 0.0
      %2934 = vmatpush1.msra.mxu0 0.0
      %2935 = vmatprep.subr.mxu0 0.0
      %2936 = vmatpush1.msra.mxu0 0.0
      %2937 = vmatprep.subr.mxu0 0.0
      %2938 = vmatpush1.msra.mxu0 0.0
      %2939 = vmatprep.subr.mxu0 0.0
      %2940 = vmatpush1.msra.mxu0 0.0
      %2941 = vmatprep.subr.mxu0 0.0
      %2942 = vmatpush1.msra.mxu0 0.0
      %2943 = vmatprep.subr.mxu0 0.0
      %2944 = vmatpush1.msra.mxu0 0.0
      %2945 = vmatprep.mubr.f32.mxu0 0.0
      %2946 = vmatmul.mubr.f32.gmra.mrb[0].mxu0 %v2879
      %v2947 = vpop.f32.mrb[0].mxu0
      %v2948 = vadd.f32 0.0, %v2947
      %v2949 = vpop.f32.mrb[0].mxu0
      %2950 = vdwg.mxu0
      %v2953 = vrot.slane %v2857, 7
      %v2954 = vrot.slane %v2858, 7
      %v2955 = vsel %vm964, %v2953, %v2954
      %v2956 = vsel %vm473, %v2955, 0
      %2958 = vmatprep.subr.mxu0 0.0
      %2959 = vmatpush1.msra.mxu0 %v2860
      %2960 = vmatprep.subr.mxu0 0.0
      %2961 = vmatpush1.msra.mxu0 %v2861
      %2962 = vmatprep.subr.mxu0 0.0
      %2963 = vmatpush1.msra.mxu0 %v2862
      %2964 = vmatprep.subr.mxu0 0.0
      %2965 = vmatpush1.msra.mxu0 %v2863
      %2966 = vmatprep.subr.mxu0 0.0
      %2967 = vmatpush1.msra.mxu0 %v2864
      %2968 = vmatprep.subr.mxu0 0.0
      %2969 = vmatpush1.msra.mxu0 %v2865
      %2970 = vmatprep.subr.mxu0 0.0
      %2971 = vmatpush1.msra.mxu0 %v2866
      %2972 = vmatprep.subr.mxu0 0.0
      %2973 = vmatpush1.msra.mxu0 %v2867
      %2974 = vmatprep.subr.mxu0 0.0
      %2975 = vmatpush1.msra.mxu0 0.0
      %2976 = vmatprep.subr.mxu0 0.0
      %2977 = vmatpush1.msra.mxu0 0.0
      %2978 = vmatprep.subr.mxu0 0.0
      %2979 = vmatpush1.msra.mxu0 0.0
      %2980 = vmatprep.subr.mxu0 0.0
      %2981 = vmatpush1.msra.mxu0 0.0
      %2982 = vmatprep.subr.mxu0 0.0
      %2983 = vmatpush1.msra.mxu0 0.0
      %2984 = vmatprep.subr.mxu0 0.0
      %2985 = vmatpush1.msra.mxu0 0.0
      %2986 = vmatprep.subr.mxu0 0.0
      %2987 = vmatpush1.msra.mxu0 0.0
      %2988 = vmatprep.subr.mxu0 0.0
      %2989 = vmatpush1.msra.mxu0 0.0
      %2990 = vmatprep.subr.mxu0 0.0
      %2991 = vmatpush1.msra.mxu0 0.0
      %2992 = vmatprep.subr.mxu0 0.0
      %2993 = vmatpush1.msra.mxu0 0.0
      %2994 = vmatprep.subr.mxu0 0.0
      %2995 = vmatpush1.msra.mxu0 0.0
      %2996 = vmatprep.subr.mxu0 0.0
      %2997 = vmatpush1.msra.mxu0 0.0
      %2998 = vmatprep.subr.mxu0 0.0
      %2999 = vmatpush1.msra.mxu0 0.0
      %3000 = vmatprep.subr.mxu0 0.0
      %3001 = vmatpush1.msra.mxu0 0.0
      %3002 = vmatprep.subr.mxu0 0.0
      %3003 = vmatpush1.msra.mxu0 0.0
      %3004 = vmatprep.subr.mxu0 0.0
      %3005 = vmatpush1.msra.mxu0 0.0
      %3006 = vmatprep.subr.mxu0 0.0
      %3007 = vmatpush1.msra.mxu0 0.0
      %3008 = vmatprep.subr.mxu0 0.0
      %3009 = vmatpush1.msra.mxu0 0.0
      %3010 = vmatprep.subr.mxu0 0.0
      %3011 = vmatpush1.msra.mxu0 0.0
      %3012 = vmatprep.subr.mxu0 0.0
      %3013 = vmatpush1.msra.mxu0 0.0
      %3014 = vmatprep.subr.mxu0 0.0
      %3015 = vmatpush1.msra.mxu0 0.0
      %3016 = vmatprep.subr.mxu0 0.0
      %3017 = vmatpush1.msra.mxu0 0.0
      %3018 = vmatprep.subr.mxu0 0.0
      %3019 = vmatpush1.msra.mxu0 0.0
      %3020 = vmatprep.subr.mxu0 0.0
      %3021 = vmatpush1.msra.mxu0 0.0
      %3022 = vmatprep.mubr.f32.mxu0 0.0
      %3023 = vmatmul.mubr.f32.gmra.mrb[0].mxu0 %v2956
      %v3024 = vpop.f32.mrb[0].mxu0
      %v3025 = vadd.f32 %v2948, %v3024
      %v3026 = vpop.f32.mrb[0].mxu0
      %3027 = vdwg.mxu0
      %v3028 = vld [vmem:[#allocation2 + $0x10] sm:$0xfe]
      %v3029 = vld [vmem:[#allocation2 + $0x20] sm:$0x1]
      %s3030 = scalar_lea.vmem %s4, 896
      %v3031 = vld [vmem:[%s3030] sm:$0xff]
      %v3032 = vld [vmem:[%s3030 + $0x8] sm:$0xff]
      %v3033 = vld [vmem:[%s3030 + $0x10] sm:$0xff]
      %v3034 = vld [vmem:[%s3030 + $0x18] sm:$0xff]
      %v3035 = vld [vmem:[%s3030 + $0x20] sm:$0xff]
      %v3036 = vld [vmem:[%s3030 + $0x28] sm:$0xff]
      %v3037 = vld [vmem:[%s3030 + $0x30] sm:$0xff]
      %v3038 = vld [vmem:[%s3030 + $0x38] sm:$0xff]
      %v3041 = vrot.slane %v3028, 1
      %v3042 = vrot.slane %v3029, 1
      %v3043 = vsel %vm2512, %v3041, %v3042
      %v3044 = vsel %vm473, %v3043, 0
      %3046 = vmatprep.subr.mxu0 0.0
      %3047 = vmatpush1.msra.mxu0 %v3031
      %3048 = vmatprep.subr.mxu0 0.0
      %3049 = vmatpush1.msra.mxu0 %v3032
      %3050 = vmatprep.subr.mxu0 0.0
      %3051 = vmatpush1.msra.mxu0 %v3033
      %3052 = vmatprep.subr.mxu0 0.0
      %3053 = vmatpush1.msra.mxu0 %v3034
      %3054 = vmatprep.subr.mxu0 0.0
      %3055 = vmatpush1.msra.mxu0 %v3035
      %3056 = vmatprep.subr.mxu0 0.0
      %3057 = vmatpush1.msra.mxu0 %v3036
      %3058 = vmatprep.subr.mxu0 0.0
      %3059 = vmatpush1.msra.mxu0 %v3037
      %3060 = vmatprep.subr.mxu0 0.0
      %3061 = vmatpush1.msra.mxu0 %v3038
      %3062 = vmatprep.subr.mxu0 0.0
      %3063 = vmatpush1.msra.mxu0 0.0
      %3064 = vmatprep.subr.mxu0 0.0
      %3065 = vmatpush1.msra.mxu0 0.0
      %3066 = vmatprep.subr.mxu0 0.0
      %3067 = vmatpush1.msra.mxu0 0.0
      %3068 = vmatprep.subr.mxu0 0.0
      %3069 = vmatpush1.msra.mxu0 0.0
      %3070 = vmatprep.subr.mxu0 0.0
      %3071 = vmatpush1.msra.mxu0 0.0
      %3072 = vmatprep.subr.mxu0 0.0
      %3073 = vmatpush1.msra.mxu0 0.0
      %3074 = vmatprep.subr.mxu0 0.0
      %3075 = vmatpush1.msra.mxu0 0.0
      %3076 = vmatprep.subr.mxu0 0.0
      %3077 = vmatpush1.msra.mxu0 0.0
      %3078 = vmatprep.subr.mxu0 0.0
      %3079 = vmatpush1.msra.mxu0 0.0
      %3080 = vmatprep.subr.mxu0 0.0
      %3081 = vmatpush1.msra.mxu0 0.0
      %3082 = vmatprep.subr.mxu0 0.0
      %3083 = vmatpush1.msra.mxu0 0.0
      %3084 = vmatprep.subr.mxu0 0.0
      %3085 = vmatpush1.msra.mxu0 0.0
      %3086 = vmatprep.subr.mxu0 0.0
      %3087 = vmatpush1.msra.mxu0 0.0
      %3088 = vmatprep.subr.mxu0 0.0
      %3089 = vmatpush1.msra.mxu0 0.0
      %3090 = vmatprep.subr.mxu0 0.0
      %3091 = vmatpush1.msra.mxu0 0.0
      %3092 = vmatprep.subr.mxu0 0.0
      %3093 = vmatpush1.msra.mxu0 0.0
      %3094 = vmatprep.subr.mxu0 0.0
      %3095 = vmatpush1.msra.mxu0 0.0
      %3096 = vmatprep.subr.mxu0 0.0
      %3097 = vmatpush1.msra.mxu0 0.0
      %3098 = vmatprep.subr.mxu0 0.0
      %3099 = vmatpush1.msra.mxu0 0.0
      %3100 = vmatprep.subr.mxu0 0.0
      %3101 = vmatpush1.msra.mxu0 0.0
      %3102 = vmatprep.subr.mxu0 0.0
      %3103 = vmatpush1.msra.mxu0 0.0
      %3104 = vmatprep.subr.mxu0 0.0
      %3105 = vmatpush1.msra.mxu0 0.0
      %3106 = vmatprep.subr.mxu0 0.0
      %3107 = vmatpush1.msra.mxu0 0.0
      %3108 = vmatprep.subr.mxu0 0.0
      %3109 = vmatpush1.msra.mxu0 0.0
      %3110 = vmatprep.mubr.f32.mxu0 0.0
      %3111 = vmatmul.mubr.f32.gmra.mrb[0].mxu0 %v3044
      %v3112 = vpop.f32.mrb[0].mxu0
      %v3113 = vadd.f32 0.0, %v3112
      %v3114 = vpop.f32.mrb[0].mxu0
      %3115 = vdwg.mxu0
      %v3116 = vadd.f32 %v3025, %v3113
      %v3117 = vld [vmem:[%s2 + $0x7] ss:$0 sm:$0xff]
      %v3118 = vadd.f32 %v3116, %v3117
      %v3119 = vmax.f32 %v3118, 0.0
      %3120 = vst.msk [vmem:[#allocation2 + $0x10] sm:$0xff] %vm473, %v3119
      %v3121 = vld [vmem:[#allocation2] sm:$0x80]
      %v3122 = vld [vmem:[#allocation2 + $0x10] sm:$0x7f]
      %s3123 = scalar_lea.vmem %s4, 960
      %v3124 = vld [vmem:[%s3123] sm:$0xff]
      %v3125 = vld [vmem:[%s3123 + $0x8] sm:$0xff]
      %v3126 = vld [vmem:[%s3123 + $0x10] sm:$0xff]
      %v3127 = vld [vmem:[%s3123 + $0x18] sm:$0xff]
      %v3128 = vld [vmem:[%s3123 + $0x20] sm:$0xff]
      %v3129 = vld [vmem:[%s3123 + $0x28] sm:$0xff]
      %v3130 = vld [vmem:[%s3123 + $0x30] sm:$0xff]
      %v3131 = vld [vmem:[%s3123 + $0x38] sm:$0xff]
      %v3132 = vld [vmem:[#allocation2 + $0x10] sm:$0xff]
      %s3133 = scalar_lea.vmem %s4, 1024
      %v3134 = vld [vmem:[%s3133] sm:$0xff]
      %v3135 = vld [vmem:[%s3133 + $0x8] sm:$0xff]
      %v3136 = vld [vmem:[%s3133 + $0x10] sm:$0xff]
      %v3137 = vld [vmem:[%s3133 + $0x18] sm:$0xff]
      %v3138 = vld [vmem:[%s3133 + $0x20] sm:$0xff]
      %v3139 = vld [vmem:[%s3133 + $0x28] sm:$0xff]
      %v3140 = vld [vmem:[%s3133 + $0x30] sm:$0xff]
      %v3141 = vld [vmem:[%s3133 + $0x38] sm:$0xff]
      %v3143 = vsel %vm473, %v3132, 0
      %3145 = vmatprep.subr.mxu0 0.0
      %3146 = vmatpush1.msra.mxu0 %v3134
      %3147 = vmatprep.subr.mxu0 0.0
      %3148 = vmatpush1.msra.mxu0 %v3135
      %3149 = vmatprep.subr.mxu0 0.0
      %3150 = vmatpush1.msra.mxu0 %v3136
      %3151 = vmatprep.subr.mxu0 0.0
      %3152 = vmatpush1.msra.mxu0 %v3137
      %3153 = vmatprep.subr.mxu0 0.0
      %3154 = vmatpush1.msra.mxu0 %v3138
      %3155 = vmatprep.subr.mxu0 0.0
      %3156 = vmatpush1.msra.mxu0 %v3139
      %3157 = vmatprep.subr.mxu0 0.0
      %3158 = vmatpush1.msra.mxu0 %v3140
      %3159 = vmatprep.subr.mxu0 0.0
      %3160 = vmatpush1.msra.mxu0 %v3141
      %3161 = vmatprep.subr.mxu0 0.0
      %3162 = vmatpush1.msra.mxu0 0.0
      %3163 = vmatprep.subr.mxu0 0.0
      %3164 = vmatpush1.msra.mxu0 0.0
      %3165 = vmatprep.subr.mxu0 0.0
      %3166 = vmatpush1.msra.mxu0 0.0
      %3167 = vmatprep.subr.mxu0 0.0
      %3168 = vmatpush1.msra.mxu0 0.0
      %3169 = vmatprep.subr.mxu0 0.0
      %3170 = vmatpush1.msra.mxu0 0.0
      %3171 = vmatprep.subr.mxu0 0.0
      %3172 = vmatpush1.msra.mxu0 0.0
      %3173 = vmatprep.subr.mxu0 0.0
      %3174 = vmatpush1.msra.mxu0 0.0
      %3175 = vmatprep.subr.mxu0 0.0
      %3176 = vmatpush1.msra.mxu0 0.0
      %3177 = vmatprep.subr.mxu0 0.0
      %3178 = vmatpush1.msra.mxu0 0.0
      %3179 = vmatprep.subr.mxu0 0.0
      %3180 = vmatpush1.msra.mxu0 0.0
      %3181 = vmatprep.subr.mxu0 0.0
      %3182 = vmatpush1.msra.mxu0 0.0
      %3183 = vmatprep.subr.mxu0 0.0
      %3184 = vmatpush1.msra.mxu0 0.0
      %3185 = vmatprep.subr.mxu0 0.0
      %3186 = vmatpush1.msra.mxu0 0.0
      %3187 = vmatprep.subr.mxu0 0.0
      %3188 = vmatpush1.msra.mxu0 0.0
      %3189 = vmatprep.subr.mxu0 0.0
      %3190 = vmatpush1.msra.mxu0 0.0
      %3191 = vmatprep.subr.mxu0 0.0
      %3192 = vmatpush1.msra.mxu0 0.0
      %3193 = vmatprep.subr.mxu0 0.0
      %3194 = vmatpush1.msra.mxu0 0.0
      %3195 = vmatprep.subr.mxu0 0.0
      %3196 = vmatpush1.msra.mxu0 0.0
      %3197 = vmatprep.subr.mxu0 0.0
      %3198 = vmatpush1.msra.mxu0 0.0
      %3199 = vmatprep.subr.mxu0 0.0
      %3200 = vmatpush1.msra.mxu0 0.0
      %3201 = vmatprep.subr.mxu0 0.0
      %3202 = vmatpush1.msra.mxu0 0.0
      %3203 = vmatprep.subr.mxu0 0.0
      %3204 = vmatpush1.msra.mxu0 0.0
      %3205 = vmatprep.subr.mxu0 0.0
      %3206 = vmatpush1.msra.mxu0 0.0
      %3207 = vmatprep.subr.mxu0 0.0
      %3208 = vmatpush1.msra.mxu0 0.0
      %3209 = vmatprep.mubr.f32.mxu0 0.0
      %3210 = vmatmul.mubr.f32.gmra.mrb[0].mxu0 %v3143
      %v3211 = vpop.f32.mrb[0].mxu0
      %v3212 = vadd.f32 0.0, %v3211
      %v3213 = vpop.f32.mrb[0].mxu0
      %3214 = vdwg.mxu0
      %v3217 = vrot.slane %v3121, 7
      %v3218 = vrot.slane %v3122, 7
      %v3219 = vsel %vm964, %v3217, %v3218
      %v3220 = vsel %vm473, %v3219, 0
      %3222 = vmatprep.subr.mxu0 0.0
      %3223 = vmatpush1.msra.mxu0 %v3124
      %3224 = vmatprep.subr.mxu0 0.0
      %3225 = vmatpush1.msra.mxu0 %v3125
      %3226 = vmatprep.subr.mxu0 0.0
      %3227 = vmatpush1.msra.mxu0 %v3126
      %3228 = vmatprep.subr.mxu0 0.0
      %3229 = vmatpush1.msra.mxu0 %v3127
      %3230 = vmatprep.subr.mxu0 0.0
      %3231 = vmatpush1.msra.mxu0 %v3128
      %3232 = vmatprep.subr.mxu0 0.0
      %3233 = vmatpush1.msra.mxu0 %v3129
      %3234 = vmatprep.subr.mxu0 0.0
      %3235 = vmatpush1.msra.mxu0 %v3130
      %3236 = vmatprep.subr.mxu0 0.0
      %3237 = vmatpush1.msra.mxu0 %v3131
      %3238 = vmatprep.subr.mxu0 0.0
      %3239 = vmatpush1.msra.mxu0 0.0
      %3240 = vmatprep.subr.mxu0 0.0
      %3241 = vmatpush1.msra.mxu0 0.0
      %3242 = vmatprep.subr.mxu0 0.0
      %3243 = vmatpush1.msra.mxu0 0.0
      %3244 = vmatprep.subr.mxu0 0.0
      %3245 = vmatpush1.msra.mxu0 0.0
      %3246 = vmatprep.subr.mxu0 0.0
      %3247 = vmatpush1.msra.mxu0 0.0
      %3248 = vmatprep.subr.mxu0 0.0
      %3249 = vmatpush1.msra.mxu0 0.0
      %3250 = vmatprep.subr.mxu0 0.0
      %3251 = vmatpush1.msra.mxu0 0.0
      %3252 = vmatprep.subr.mxu0 0.0
      %3253 = vmatpush1.msra.mxu0 0.0
      %3254 = vmatprep.subr.mxu0 0.0
      %3255 = vmatpush1.msra.mxu0 0.0
      %3256 = vmatprep.subr.mxu0 0.0
      %3257 = vmatpush1.msra.mxu0 0.0
      %3258 = vmatprep.subr.mxu0 0.0
      %3259 = vmatpush1.msra.mxu0 0.0
      %3260 = vmatprep.subr.mxu0 0.0
      %3261 = vmatpush1.msra.mxu0 0.0
      %3262 = vmatprep.subr.mxu0 0.0
      %3263 = vmatpush1.msra.mxu0 0.0
      %3264 = vmatprep.subr.mxu0 0.0
      %3265 = vmatpush1.msra.mxu0 0.0
      %3266 = vmatprep.subr.mxu0 0.0
      %3267 = vmatpush1.msra.mxu0 0.0
      %3268 = vmatprep.subr.mxu0 0.0
      %3269 = vmatpush1.msra.mxu0 0.0
      %3270 = vmatprep.subr.mxu0 0.0
      %3271 = vmatpush1.msra.mxu0 0.0
      %3272 = vmatprep.subr.mxu0 0.0
      %3273 = vmatpush1.msra.mxu0 0.0
      %3274 = vmatprep.subr.mxu0 0.0
      %3275 = vmatpush1.msra.mxu0 0.0
      %3276 = vmatprep.subr.mxu0 0.0
      %3277 = vmatpush1.msra.mxu0 0.0
      %3278 = vmatprep.subr.mxu0 0.0
      %3279 = vmatpush1.msra.mxu0 0.0
      %3280 = vmatprep.subr.mxu0 0.0
      %3281 = vmatpush1.msra.mxu0 0.0
      %3282 = vmatprep.subr.mxu0 0.0
      %3283 = vmatpush1.msra.mxu0 0.0
      %3284 = vmatprep.subr.mxu0 0.0
      %3285 = vmatpush1.msra.mxu0 0.0
      %3286 = vmatprep.mubr.f32.mxu0 0.0
      %3287 = vmatmul.mubr.f32.gmra.mrb[0].mxu0 %v3220
      %v3288 = vpop.f32.mrb[0].mxu0
      %v3289 = vadd.f32 %v3212, %v3288
      %v3290 = vpop.f32.mrb[0].mxu0
      %3291 = vdwg.mxu0
      %v3292 = vld [vmem:[#allocation2 + $0x10] sm:$0xfe]
      %v3293 = vld [vmem:[#allocation2 + $0x20] sm:$0x1]
      %s3294 = scalar_lea.vmem %s4, 1088
      %v3295 = vld [vmem:[%s3294] sm:$0xff]
      %v3296 = vld [vmem:[%s3294 + $0x8] sm:$0xff]
      %v3297 = vld [vmem:[%s3294 + $0x10] sm:$0xff]
      %v3298 = vld [vmem:[%s3294 + $0x18] sm:$0xff]
      %v3299 = vld [vmem:[%s3294 + $0x20] sm:$0xff]
      %v3300 = vld [vmem:[%s3294 + $0x28] sm:$0xff]
      %v3301 = vld [vmem:[%s3294 + $0x30] sm:$0xff]
      %v3302 = vld [vmem:[%s3294 + $0x38] sm:$0xff]
      %v3305 = vrot.slane %v3292, 1
      %v3306 = vrot.slane %v3293, 1
      %v3307 = vsel %vm2512, %v3305, %v3306
      %v3308 = vsel %vm473, %v3307, 0
      %3310 = vmatprep.subr.mxu0 0.0
      %3311 = vmatpush1.msra.mxu0 %v3295
      %3312 = vmatprep.subr.mxu0 0.0
      %3313 = vmatpush1.msra.mxu0 %v3296
      %3314 = vmatprep.subr.mxu0 0.0
      %3315 = vmatpush1.msra.mxu0 %v3297
      %3316 = vmatprep.subr.mxu0 0.0
      %3317 = vmatpush1.msra.mxu0 %v3298
      %3318 = vmatprep.subr.mxu0 0.0
      %3319 = vmatpush1.msra.mxu0 %v3299
      %3320 = vmatprep.subr.mxu0 0.0
      %3321 = vmatpush1.msra.mxu0 %v3300
      %3322 = vmatprep.subr.mxu0 0.0
      %3323 = vmatpush1.msra.mxu0 %v3301
      %3324 = vmatprep.subr.mxu0 0.0
      %3325 = vmatpush1.msra.mxu0 %v3302
      %3326 = vmatprep.subr.mxu0 0.0
      %3327 = vmatpush1.msra.mxu0 0.0
      %3328 = vmatprep.subr.mxu0 0.0
      %3329 = vmatpush1.msra.mxu0 0.0
      %3330 = vmatprep.subr.mxu0 0.0
      %3331 = vmatpush1.msra.mxu0 0.0
      %3332 = vmatprep.subr.mxu0 0.0
      %3333 = vmatpush1.msra.mxu0 0.0
      %3334 = vmatprep.subr.mxu0 0.0
      %3335 = vmatpush1.msra.mxu0 0.0
      %3336 = vmatprep.subr.mxu0 0.0
      %3337 = vmatpush1.msra.mxu0 0.0
      %3338 = vmatprep.subr.mxu0 0.0
      %3339 = vmatpush1.msra.mxu0 0.0
      %3340 = vmatprep.subr.mxu0 0.0
      %3341 = vmatpush1.msra.mxu0 0.0
      %3342 = vmatprep.subr.mxu0 0.0
      %3343 = vmatpush1.msra.mxu0 0.0
      %3344 = vmatprep.subr.mxu0 0.0
      %3345 = vmatpush1.msra.mxu0 0.0
      %3346 = vmatprep.subr.mxu0 0.0
      %3347 = vmatpush1.msra.mxu0 0.0
      %3348 = vmatprep.subr.mxu0 0.0
      %3349 = vmatpush1.msra.mxu0 0.0
      %3350 = vmatprep.subr.mxu0 0.0
      %3351 = vmatpush1.msra.mxu0 0.0
      %3352 = vmatprep.subr.mxu0 0.0
      %3353 = vmatpush1.msra.mxu0 0.0
      %3354 = vmatprep.subr.mxu0 0.0
      %3355 = vmatpush1.msra.mxu0 0.0
      %3356 = vmatprep.subr.mxu0 0.0
      %3357 = vmatpush1.msra.mxu0 0.0
      %3358 = vmatprep.subr.mxu0 0.0
      %3359 = vmatpush1.msra.mxu0 0.0
      %3360 = vmatprep.subr.mxu0 0.0
      %3361 = vmatpush1.msra.mxu0 0.0
      %3362 = vmatprep.subr.mxu0 0.0
      %3363 = vmatpush1.msra.mxu0 0.0
      %3364 = vmatprep.subr.mxu0 0.0
      %3365 = vmatpush1.msra.mxu0 0.0
      %3366 = vmatprep.subr.mxu0 0.0
      %3367 = vmatpush1.msra.mxu0 0.0
      %3368 = vmatprep.subr.mxu0 0.0
      %3369 = vmatpush1.msra.mxu0 0.0
      %3370 = vmatprep.subr.mxu0 0.0
      %3371 = vmatpush1.msra.mxu0 0.0
      %3372 = vmatprep.subr.mxu0 0.0
      %3373 = vmatpush1.msra.mxu0 0.0
      %3374 = vmatprep.mubr.f32.mxu0 0.0
      %3375 = vmatmul.mubr.f32.gmra.mrb[0].mxu0 %v3308
      %v3376 = vpop.f32.mrb[0].mxu0
      %v3377 = vadd.f32 0.0, %v3376
      %v3378 = vpop.f32.mrb[0].mxu0
      %3379 = vdwg.mxu0
      %v3380 = vadd.f32 %v3289, %v3377
      %v3381 = vld [vmem:[%s2 + $0x10] ss:$0 sm:$0xff]
      %v3382 = vadd.f32 %v3380, %v3381
      %v3383 = vadd.f32 %v3382, %v2855
      %v3384 = vmax.f32 %v3383, 0.0
      %s3385 = scalar_lea.vmem %s6, 128
      %v3386 = vld [vmem:[%s3385] sm:$0xff]
      %v3387 = vld [vmem:[%s3385 + $0x8] sm:$0xff]
      %v3388 = vld [vmem:[%s3385 + $0x10] sm:$0xff]
      %v3389 = vld [vmem:[%s3385 + $0x18] sm:$0xff]
      %v3390 = vld [vmem:[%s3385 + $0x20] sm:$0xff]
      %v3391 = vld [vmem:[%s3385 + $0x28] sm:$0xff]
      %v3392 = vld [vmem:[%s3385 + $0x30] sm:$0xff]
      %v3393 = vld [vmem:[%s3385 + $0x38] sm:$0xff]
      %v3394 = vld [vmem:[%s2 + $0x23] ss:$0 sm:$0xff]
      %v3396 = vsel %vm473, %v3384, 0
      %3398 = vmatprep.subr.mxu0 0.0
      %3399 = vmatpush1.msra.mxu0 %v3386
      %3400 = vmatprep.subr.mxu0 0.0
      %3401 = vmatpush1.msra.mxu0 %v3387
      %3402 = vmatprep.subr.mxu0 0.0
      %3403 = vmatpush1.msra.mxu0 %v3388
      %3404 = vmatprep.subr.mxu0 0.0
      %3405 = vmatpush1.msra.mxu0 %v3389
      %3406 = vmatprep.subr.mxu0 0.0
      %3407 = vmatpush1.msra.mxu0 %v3390
      %3408 = vmatprep.subr.mxu0 0.0
      %3409 = vmatpush1.msra.mxu0 %v3391
      %3410 = vmatprep.subr.mxu0 0.0
      %3411 = vmatpush1.msra.mxu0 %v3392
      %3412 = vmatprep.subr.mxu0 0.0
      %3413 = vmatpush1.msra.mxu0 %v3393
      %3414 = vmatprep.subr.mxu0 0.0
      %3415 = vmatpush1.msra.mxu0 0.0
      %3416 = vmatprep.subr.mxu0 0.0
      %3417 = vmatpush1.msra.mxu0 0.0
      %3418 = vmatprep.subr.mxu0 0.0
      %3419 = vmatpush1.msra.mxu0 0.0
      %3420 = vmatprep.subr.mxu0 0.0
      %3421 = vmatpush1.msra.mxu0 0.0
      %3422 = vmatprep.subr.mxu0 0.0
      %3423 = vmatpush1.msra.mxu0 0.0
      %3424 = vmatprep.subr.mxu0 0.0
      %3425 = vmatpush1.msra.mxu0 0.0
      %3426 = vmatprep.subr.mxu0 0.0
      %3427 = vmatpush1.msra.mxu0 0.0
      %3428 = vmatprep.subr.mxu0 0.0
      %3429 = vmatpush1.msra.mxu0 0.0
      %3430 = vmatprep.subr.mxu0 0.0
      %3431 = vmatpush1.msra.mxu0 0.0
      %3432 = vmatprep.subr.mxu0 0.0
      %3433 = vmatpush1.msra.mxu0 0.0
      %3434 = vmatprep.subr.mxu0 0.0
      %3435 = vmatpush1.msra.mxu0 0.0
      %3436 = vmatprep.subr.mxu0 0.0
      %3437 = vmatpush1.msra.mxu0 0.0
      %3438 = vmatprep.subr.mxu0 0.0
      %3439 = vmatpush1.msra.mxu0 0.0
      %3440 = vmatprep.subr.mxu0 0.0
      %3441 = vmatpush1.msra.mxu0 0.0
      %3442 = vmatprep.subr.mxu0 0.0
      %3443 = vmatpush1.msra.mxu0 0.0
      %3444 = vmatprep.subr.mxu0 0.0
      %3445 = vmatpush1.msra.mxu0 0.0
      %3446 = vmatprep.subr.mxu0 0.0
      %3447 = vmatpush1.msra.mxu0 0.0
      %3448 = vmatprep.subr.mxu0 0.0
      %3449 = vmatpush1.msra.mxu0 0.0
      %3450 = vmatprep.subr.mxu0 0.0
      %3451 = vmatpush1.msra.mxu0 0.0
      %3452 = vmatprep.subr.mxu0 0.0
      %3453 = vmatpush1.msra.mxu0 0.0
      %3454 = vmatprep.subr.mxu0 0.0
      %3455 = vmatpush1.msra.mxu0 0.0
      %3456 = vmatprep.subr.mxu0 0.0
      %3457 = vmatpush1.msra.mxu0 0.0
      %3458 = vmatprep.subr.mxu0 0.0
      %3459 = vmatpush1.msra.mxu0 0.0
      %3460 = vmatprep.subr.mxu0 0.0
      %3461 = vmatpush1.msra.mxu0 0.0
      %3462 = vmatprep.mubr.f32.mxu0 0.0
      %3463 = vmatmul.mubr.f32.gmra.mrb[0].mxu0 %v3396
      %v3464 = vpop.f32.mrb[0].mxu0
      %v3465 = vadd.f32 %v3394, %v3464
      %v3466 = vpop.f32.mrb[0].mxu0
      %3467 = vdwg.mxu0
      %s3468 = scalar_lea.vmem %s8, 768
      %v3469 = vld [vmem:[%s3468] sm:$0xff]
      %v3470 = vld [vmem:[%s3468 + $0x10] sm:$0xff]
      %v3471 = vld [vmem:[%s3468 + $0x20] sm:$0xff]
      %v3472 = vld [vmem:[%s3468 + $0x30] sm:$0xff]
      %v3474 = vsel %vm380, %v3465, 0
      %3476 = vmatprep.subr.mxu0 0.0
      %3477 = vmatpush1.msra.mxu0 %v3469
      %3478 = vmatprep.subr.mxu0 0.0
      %3479 = vmatpush1.msra.mxu0 %v3470
      %3480 = vmatprep.subr.mxu0 0.0
      %3481 = vmatpush1.msra.mxu0 %v3471
      %3482 = vmatprep.subr.mxu0 0.0
      %3483 = vmatpush1.msra.mxu0 %v3472
      %3484 = vmatprep.subr.mxu0 0.0
      %3485 = vmatpush1.msra.mxu0 0.0
      %3486 = vmatprep.subr.mxu0 0.0
      %3487 = vmatpush1.msra.mxu0 0.0
      %3488 = vmatprep.subr.mxu0 0.0
      %3489 = vmatpush1.msra.mxu0 0.0
      %3490 = vmatprep.subr.mxu0 0.0
      %3491 = vmatpush1.msra.mxu0 0.0
      %3492 = vmatprep.subr.mxu0 0.0
      %3493 = vmatpush1.msra.mxu0 0.0
      %3494 = vmatprep.subr.mxu0 0.0
      %3495 = vmatpush1.msra.mxu0 0.0
      %3496 = vmatprep.subr.mxu0 0.0
      %3497 = vmatpush1.msra.mxu0 0.0
      %3498 = vmatprep.subr.mxu0 0.0
      %3499 = vmatpush1.msra.mxu0 0.0
      %3500 = vmatprep.subr.mxu0 0.0
      %3501 = vmatpush1.msra.mxu0 0.0
      %3502 = vmatprep.subr.mxu0 0.0
      %3503 = vmatpush1.msra.mxu0 0.0
      %3504 = vmatprep.subr.mxu0 0.0
      %3505 = vmatpush1.msra.mxu0 0.0
      %3506 = vmatprep.subr.mxu0 0.0
      %3507 = vmatpush1.msra.mxu0 0.0
      %3508 = vmatprep.subr.mxu0 0.0
      %3509 = vmatpush1.msra.mxu0 0.0
      %3510 = vmatprep.subr.mxu0 0.0
      %3511 = vmatpush1.msra.mxu0 0.0
      %3512 = vmatprep.subr.mxu0 0.0
      %3513 = vmatpush1.msra.mxu0 0.0
      %3514 = vmatprep.subr.mxu0 0.0
      %3515 = vmatpush1.msra.mxu0 0.0
      %3516 = vmatprep.subr.mxu0 0.0
      %3517 = vmatpush1.msra.mxu0 0.0
      %3518 = vmatprep.subr.mxu0 0.0
      %3519 = vmatpush1.msra.mxu0 0.0
      %3520 = vmatprep.subr.mxu0 0.0
      %3521 = vmatpush1.msra.mxu0 0.0
      %3522 = vmatprep.subr.mxu0 0.0
      %3523 = vmatpush1.msra.mxu0 0.0
      %3524 = vmatprep.subr.mxu0 0.0
      %3525 = vmatpush1.msra.mxu0 0.0
      %3526 = vmatprep.subr.mxu0 0.0
      %3527 = vmatpush1.msra.mxu0 0.0
      %3528 = vmatprep.subr.mxu0 0.0
      %3529 = vmatpush1.msra.mxu0 0.0
      %3530 = vmatprep.subr.mxu0 0.0
      %3531 = vmatpush1.msra.mxu0 0.0
      %3532 = vmatprep.subr.mxu0 0.0
      %3533 = vmatpush1.msra.mxu0 0.0
      %3534 = vmatprep.subr.mxu0 0.0
      %3535 = vmatpush1.msra.mxu0 0.0
      %3536 = vmatprep.subr.mxu0 0.0
      %3537 = vmatpush1.msra.mxu0 0.0
      %3538 = vmatprep.subr.mxu0 0.0
      %3539 = vmatpush1.msra.mxu0 0.0
      %3540 = vmatprep.mubr.f32.mxu0 0.0
      %3541 = vmatmul.mubr.f32.gmra.mrb[0].mxu0 %v3474
      %v3542 = vpop.f32.mrb[0].mxu0
      %v3543 = vadd.f32 0.0, %v3542
      %v3544 = vpop.f32.mrb[0].mxu0
      %3545 = vdwg.mxu0
      %v3546 = vld [vmem:[%s9] sm:$0xff]
      %v3547 = vld [vmem:[%s9 + $0x8] sm:$0xff]
      %vm3548 = vcmask 64512
      %v3550 = vsel %vm3548, %v3546, 0
      %v3553 = vsel %vm3548, %v3547, 0
      %3555 = vmatprep.subr.mxu0 0.0
      %3556 = vmatpush1.msra.mxu0 %v3543
      %3557 = vmatprep.subr.mxu0 0.0
      %3558 = vmatpush1.msra.mxu0 0.0
      %3559 = vmatprep.subr.mxu0 0.0
      %3560 = vmatpush1.msra.mxu0 0.0
      %3561 = vmatprep.subr.mxu0 0.0
      %3562 = vmatpush1.msra.mxu0 0.0
      %3563 = vmatprep.subr.mxu0 0.0
      %3564 = vmatpush1.msra.mxu0 0.0
      %3565 = vmatprep.subr.mxu0 0.0
      %3566 = vmatpush1.msra.mxu0 0.0
      %3567 = vmatprep.subr.mxu0 0.0
      %3568 = vmatpush1.msra.mxu0 0.0
      %3569 = vmatprep.subr.mxu0 0.0
      %3570 = vmatpush1.msra.mxu0 0.0
      %3571 = vmatprep.subr.mxu0 0.0
      %3572 = vmatpush1.msra.mxu0 0.0
      %3573 = vmatprep.subr.mxu0 0.0
      %3574 = vmatpush1.msra.mxu0 0.0
      %3575 = vmatprep.subr.mxu0 0.0
      %3576 = vmatpush1.msra.mxu0 0.0
      %3577 = vmatprep.subr.mxu0 0.0
      %3578 = vmatpush1.msra.mxu0 0.0
      %3579 = vmatprep.subr.mxu0 0.0
      %3580 = vmatpush1.msra.mxu0 0.0
      %3581 = vmatprep.subr.mxu0 0.0
      %3582 = vmatpush1.msra.mxu0 0.0
      %3583 = vmatprep.subr.mxu0 0.0
      %3584 = vmatpush1.msra.mxu0 0.0
      %3585 = vmatprep.subr.mxu0 0.0
      %3586 = vmatpush1.msra.mxu0 0.0
      %3587 = vmatprep.subr.mxu0 0.0
      %3588 = vmatpush1.msra.mxu0 0.0
      %3589 = vmatprep.subr.mxu0 0.0
      %3590 = vmatpush1.msra.mxu0 0.0
      %3591 = vmatprep.subr.mxu0 0.0
      %3592 = vmatpush1.msra.mxu0 0.0
      %3593 = vmatprep.subr.mxu0 0.0
      %3594 = vmatpush1.msra.mxu0 0.0
      %3595 = vmatprep.subr.mxu0 0.0
      %3596 = vmatpush1.msra.mxu0 0.0
      %3597 = vmatprep.subr.mxu0 0.0
      %3598 = vmatpush1.msra.mxu0 0.0
      %3599 = vmatprep.subr.mxu0 0.0
      %3600 = vmatpush1.msra.mxu0 0.0
      %3601 = vmatprep.subr.mxu0 0.0
      %3602 = vmatpush1.msra.mxu0 0.0
      %3603 = vmatprep.subr.mxu0 0.0
      %3604 = vmatpush1.msra.mxu0 0.0
      %3605 = vmatprep.subr.mxu0 0.0
      %3606 = vmatpush1.msra.mxu0 0.0
      %3607 = vmatprep.subr.mxu0 0.0
      %3608 = vmatpush1.msra.mxu0 0.0
      %3609 = vmatprep.subr.mxu0 0.0
      %3610 = vmatpush1.msra.mxu0 0.0
      %3611 = vmatprep.subr.mxu0 0.0
      %3612 = vmatpush1.msra.mxu0 0.0
      %3613 = vmatprep.subr.mxu0 0.0
      %3614 = vmatpush1.msra.mxu0 0.0
      %3615 = vmatprep.subr.mxu0 0.0
      %3616 = vmatpush1.msra.mxu0 0.0
      %3617 = vmatprep.subr.mxu0 0.0
      %3618 = vmatpush1.msra.mxu0 0.0
      %3619 = vmatprep.mubr.f32.mxu0 0.0
      %3620 = vmatmul.mubr.f32.gmra.mrb[0].mxu0 %v3550
      %v3621 = vpop.f32.mrb[0].mxu0
      %v3622 = vadd.f32 0.0, %v3621
      %v3623 = vpop.f32.mrb[0].mxu0
      %3624 = vmatprep.mubr.f32.mxu0 0.0
      %3625 = vmatmul.mubr.f32.gmra.mrb[0].mxu0 %v3553
      %v3626 = vpop.f32.mrb[0].mxu0
      %v3627 = vadd.f32 0.0, %v3626
      %v3628 = vpop.f32.mrb[0].mxu0
      %3629 = vdwg.mxu0
      %v3630 = vld [vmem:[%s1999] sm:$0xff]
      %v3631 = vld [vmem:[%s1999 + $0x10] sm:$0xff]
      %v3632 = vld [vmem:[%s1999 + $0x20] sm:$0xff]
      %v3633 = vld [vmem:[%s1999 + $0x30] sm:$0xff]
      %v3634 = vld [vmem:[%s1999 + $0x40] sm:$0xff]
      %v3635 = vld [vmem:[%s1999 + $0x50] sm:$0xff]
      %v3636 = vld [vmem:[%s1999 + $0x60] sm:$0xff]
      %v3637 = vld [vmem:[%s1999 + $0x70] sm:$0xff]
      %3638 = vmatprep.subr.mxu0 0.0
      %3639 = vmatpush1.msra.mxu0 %v3630
      %3640 = vmatprep.subr.mxu0 0.0
      %3641 = vmatpush1.msra.mxu0 %v3631
      %3642 = vmatprep.subr.mxu0 0.0
      %3643 = vmatpush1.msra.mxu0 %v3632
      %3644 = vmatprep.subr.mxu0 0.0
      %3645 = vmatpush1.msra.mxu0 %v3633
      %3646 = vmatprep.subr.mxu0 0.0
      %3647 = vmatpush1.msra.mxu0 %v3634
      %3648 = vmatprep.subr.mxu0 0.0
      %3649 = vmatpush1.msra.mxu0 %v3635
      %3650 = vmatprep.subr.mxu0 0.0
      %3651 = vmatpush1.msra.mxu0 %v3636
      %3652 = vmatprep.subr.mxu0 0.0
      %3653 = vmatpush1.msra.mxu0 %v3637
      %3654 = vmatprep.subr.mxu0 0.0
      %3655 = vmatpush1.msra.mxu0 0.0
      %3656 = vmatprep.subr.mxu0 0.0
      %3657 = vmatpush1.msra.mxu0 0.0
      %3658 = vmatprep.subr.mxu0 0.0
      %3659 = vmatpush1.msra.mxu0 0.0
      %3660 = vmatprep.subr.mxu0 0.0
      %3661 = vmatpush1.msra.mxu0 0.0
      %3662 = vmatprep.subr.mxu0 0.0
      %3663 = vmatpush1.msra.mxu0 0.0
      %3664 = vmatprep.subr.mxu0 0.0
      %3665 = vmatpush1.msra.mxu0 0.0
      %3666 = vmatprep.subr.mxu0 0.0
      %3667 = vmatpush1.msra.mxu0 0.0
      %3668 = vmatprep.subr.mxu0 0.0
      %3669 = vmatpush1.msra.mxu0 0.0
      %3670 = vmatprep.subr.mxu0 0.0
      %3671 = vmatpush1.msra.mxu0 0.0
      %3672 = vmatprep.subr.mxu0 0.0
      %3673 = vmatpush1.msra.mxu0 0.0
      %3674 = vmatprep.subr.mxu0 0.0
      %3675 = vmatpush1.msra.mxu0 0.0
      %3676 = vmatprep.subr.mxu0 0.0
      %3677 = vmatpush1.msra.mxu0 0.0
      %3678 = vmatprep.subr.mxu0 0.0
      %3679 = vmatpush1.msra.mxu0 0.0
      %3680 = vmatprep.subr.mxu0 0.0
      %3681 = vmatpush1.msra.mxu0 0.0
      %3682 = vmatprep.subr.mxu0 0.0
      %3683 = vmatpush1.msra.mxu0 0.0
      %3684 = vmatprep.subr.mxu0 0.0
      %3685 = vmatpush1.msra.mxu0 0.0
      %3686 = vmatprep.subr.mxu0 0.0
      %3687 = vmatpush1.msra.mxu0 0.0
      %3688 = vmatprep.subr.mxu0 0.0
      %3689 = vmatpush1.msra.mxu0 0.0
      %3690 = vmatprep.subr.mxu0 0.0
      %3691 = vmatpush1.msra.mxu0 0.0
      %3692 = vmatprep.subr.mxu0 0.0
      %3693 = vmatpush1.msra.mxu0 0.0
      %3694 = vmatprep.subr.mxu0 0.0
      %3695 = vmatpush1.msra.mxu0 0.0
      %3696 = vmatprep.subr.mxu0 0.0
      %3697 = vmatpush1.msra.mxu0 0.0
      %3698 = vmatprep.subr.mxu0 0.0
      %3699 = vmatpush1.msra.mxu0 0.0
      %3700 = vmatprep.subr.mxu0 0.0
      %3701 = vmatpush1.msra.mxu0 0.0
      %3702 = vmatprep.mubr.f32.mxu0 0.0
      %3703 = vmatmul.mubr.f32.gmra.mrb[0].mxu0 %v3396
      %v3704 = vpop.f32.mrb[0].mxu0
      %v3705 = vadd.f32 0.0, %v3704
      %v3706 = vpop.f32.mrb[0].mxu0
      %3707 = vdwg.mxu0
      %3708 = vmatprep.subr.mxu0 0.0
      %3709 = vmatpush1.msra.mxu0 %v3705
      %3710 = vmatprep.subr.mxu0 0.0
      %3711 = vmatpush1.msra.mxu0 0.0
      %3712 = vmatprep.subr.mxu0 0.0
      %3713 = vmatpush1.msra.mxu0 0.0
      %3714 = vmatprep.subr.mxu0 0.0
      %3715 = vmatpush1.msra.mxu0 0.0
      %3716 = vmatprep.subr.mxu0 0.0
      %3717 = vmatpush1.msra.mxu0 0.0
      %3718 = vmatprep.subr.mxu0 0.0
      %3719 = vmatpush1.msra.mxu0 0.0
      %3720 = vmatprep.subr.mxu0 0.0
      %3721 = vmatpush1.msra.mxu0 0.0
      %3722 = vmatprep.subr.mxu0 0.0
      %3723 = vmatpush1.msra.mxu0 0.0
      %3724 = vmatprep.subr.mxu0 0.0
      %3725 = vmatpush1.msra.mxu0 0.0
      %3726 = vmatprep.subr.mxu0 0.0
      %3727 = vmatpush1.msra.mxu0 0.0
      %3728 = vmatprep.subr.mxu0 0.0
      %3729 = vmatpush1.msra.mxu0 0.0
      %3730 = vmatprep.subr.mxu0 0.0
      %3731 = vmatpush1.msra.mxu0 0.0
      %3732 = vmatprep.subr.mxu0 0.0
      %3733 = vmatpush1.msra.mxu0 0.0
      %3734 = vmatprep.subr.mxu0 0.0
      %3735 = vmatpush1.msra.mxu0 0.0
      %3736 = vmatprep.subr.mxu0 0.0
      %3737 = vmatpush1.msra.mxu0 0.0
      %3738 = vmatprep.subr.mxu0 0.0
      %3739 = vmatpush1.msra.mxu0 0.0
      %3740 = vmatprep.subr.mxu0 0.0
      %3741 = vmatpush1.msra.mxu0 0.0
      %3742 = vmatprep.subr.mxu0 0.0
      %3743 = vmatpush1.msra.mxu0 0.0
      %3744 = vmatprep.subr.mxu0 0.0
      %3745 = vmatpush1.msra.mxu0 0.0
      %3746 = vmatprep.subr.mxu0 0.0
      %3747 = vmatpush1.msra.mxu0 0.0
      %3748 = vmatprep.subr.mxu0 0.0
      %3749 = vmatpush1.msra.mxu0 0.0
      %3750 = vmatprep.subr.mxu0 0.0
      %3751 = vmatpush1.msra.mxu0 0.0
      %3752 = vmatprep.subr.mxu0 0.0
      %3753 = vmatpush1.msra.mxu0 0.0
      %3754 = vmatprep.subr.mxu0 0.0
      %3755 = vmatpush1.msra.mxu0 0.0
      %3756 = vmatprep.subr.mxu0 0.0
      %3757 = vmatpush1.msra.mxu0 0.0
      %3758 = vmatprep.subr.mxu0 0.0
      %3759 = vmatpush1.msra.mxu0 0.0
      %3760 = vmatprep.subr.mxu0 0.0
      %3761 = vmatpush1.msra.mxu0 0.0
      %3762 = vmatprep.subr.mxu0 0.0
      %3763 = vmatpush1.msra.mxu0 0.0
      %3764 = vmatprep.subr.mxu0 0.0
      %3765 = vmatpush1.msra.mxu0 0.0
      %3766 = vmatprep.subr.mxu0 0.0
      %3767 = vmatpush1.msra.mxu0 0.0
      %3768 = vmatprep.subr.mxu0 0.0
      %3769 = vmatpush1.msra.mxu0 0.0
      %3770 = vmatprep.subr.mxu0 0.0
      %3771 = vmatpush1.msra.mxu0 0.0
      %3772 = vmatprep.mubr.f32.mxu0 0.0
      %3773 = vmatmul.mubr.f32.gmra.mrb[0].mxu0 %v3550
      %v3774 = vpop.f32.mrb[0].mxu0
      %v3775 = vadd.f32 0.0, %v3774
      %v3776 = vpop.f32.mrb[0].mxu0
      %3777 = vmatprep.mubr.f32.mxu0 0.0
      %3778 = vmatmul.mubr.f32.gmra.mrb[0].mxu0 %v3553
      %v3779 = vpop.f32.mrb[0].mxu0
      %v3780 = vadd.f32 0.0, %v3779
      %v3781 = vpop.f32.mrb[0].mxu0
      %3782 = vdwg.mxu0
      %3783 = vst [vmem:[#allocation2 + $0x10] sm:$0xff] %v3775
      %3784 = vst [vmem:[#allocation2 + $0x20] sm:$0xff] %v3780
      %v3785 = vld [vmem:[#allocation2] sm:$0x80]
      %v3786 = vld [vmem:[#allocation2 + $0x10] sm:$0xff]
      %v3787 = vld [vmem:[#allocation2 + $0x20] sm:$0x7f]
      %s3788 = scalar_lea.vmem %s3, 768
      %v3789 = vld [vmem:[%s3788] sm:$0xff]
      %v3790 = vld [vmem:[%s3788 + $0x8] sm:$0xff]
      %v3791 = vld [vmem:[%s3788 + $0x10] sm:$0xff]
      %v3792 = vld [vmem:[%s3788 + $0x18] sm:$0xff]
      %v3793 = vld [vmem:[%s3788 + $0x20] sm:$0xff]
      %v3794 = vld [vmem:[%s3788 + $0x28] sm:$0xff]
      %v3795 = vld [vmem:[%s3788 + $0x30] sm:$0xff]
      %v3796 = vld [vmem:[%s3788 + $0x38] sm:$0xff]
      %v3797 = vld [vmem:[%s3788 + $0x40] sm:$0xff]
      %v3798 = vld [vmem:[%s3788 + $0x48] sm:$0xff]
      %v3799 = vld [vmem:[%s3788 + $0x50] sm:$0xff]
      %v3800 = vld [vmem:[%s3788 + $0x58] sm:$0xff]
      %v3801 = vld [vmem:[%s3788 + $0x60] sm:$0xff]
      %v3802 = vld [vmem:[%s3788 + $0x68] sm:$0xff]
      %v3803 = vld [vmem:[%s3788 + $0x70] sm:$0xff]
      %v3804 = vld [vmem:[%s3788 + $0x78] sm:$0xff]
      %v3805 = vld [vmem:[#allocation2 + $0x20] sm:$0xff]
      %s3806 = scalar_lea.vmem %s3, 896
      %v3807 = vld [vmem:[%s3806] sm:$0xff]
      %v3808 = vld [vmem:[%s3806 + $0x8] sm:$0xff]
      %v3809 = vld [vmem:[%s3806 + $0x10] sm:$0xff]
      %v3810 = vld [vmem:[%s3806 + $0x18] sm:$0xff]
      %v3811 = vld [vmem:[%s3806 + $0x20] sm:$0xff]
      %v3812 = vld [vmem:[%s3806 + $0x28] sm:$0xff]
      %v3813 = vld [vmem:[%s3806 + $0x30] sm:$0xff]
      %v3814 = vld [vmem:[%s3806 + $0x38] sm:$0xff]
      %v3815 = vld [vmem:[%s3806 + $0x40] sm:$0xff]
      %v3816 = vld [vmem:[%s3806 + $0x48] sm:$0xff]
      %v3817 = vld [vmem:[%s3806 + $0x50] sm:$0xff]
      %v3818 = vld [vmem:[%s3806 + $0x58] sm:$0xff]
      %v3819 = vld [vmem:[%s3806 + $0x60] sm:$0xff]
      %v3820 = vld [vmem:[%s3806 + $0x68] sm:$0xff]
      %v3821 = vld [vmem:[%s3806 + $0x70] sm:$0xff]
      %v3822 = vld [vmem:[%s3806 + $0x78] sm:$0xff]
      %3823 = vmatprep.subr.mxu0 0.0
      %3824 = vmatpush1.msra.mxu0 %v3807
      %3825 = vmatprep.subr.mxu0 0.0
      %3826 = vmatpush1.msra.mxu0 %v3808
      %3827 = vmatprep.subr.mxu0 0.0
      %3828 = vmatpush1.msra.mxu0 %v3809
      %3829 = vmatprep.subr.mxu0 0.0
      %3830 = vmatpush1.msra.mxu0 %v3810
      %3831 = vmatprep.subr.mxu0 0.0
      %3832 = vmatpush1.msra.mxu0 %v3811
      %3833 = vmatprep.subr.mxu0 0.0
      %3834 = vmatpush1.msra.mxu0 %v3812
      %3835 = vmatprep.subr.mxu0 0.0
      %3836 = vmatpush1.msra.mxu0 %v3813
      %3837 = vmatprep.subr.mxu0 0.0
      %3838 = vmatpush1.msra.mxu0 %v3814
      %3839 = vmatprep.subr.mxu0 0.0
      %3840 = vmatpush1.msra.mxu0 %v3815
      %3841 = vmatprep.subr.mxu0 0.0
      %3842 = vmatpush1.msra.mxu0 %v3816
      %3843 = vmatprep.subr.mxu0 0.0
      %3844 = vmatpush1.msra.mxu0 %v3817
      %3845 = vmatprep.subr.mxu0 0.0
      %3846 = vmatpush1.msra.mxu0 %v3818
      %3847 = vmatprep.subr.mxu0 0.0
      %3848 = vmatpush1.msra.mxu0 %v3819
      %3849 = vmatprep.subr.mxu0 0.0
      %3850 = vmatpush1.msra.mxu0 %v3820
      %3851 = vmatprep.subr.mxu0 0.0
      %3852 = vmatpush1.msra.mxu0 %v3821
      %3853 = vmatprep.subr.mxu0 0.0
      %3854 = vmatpush1.msra.mxu0 %v3822
      %3855 = vmatprep.subr.mxu0 0.0
      %3856 = vmatpush1.msra.mxu0 0.0
      %3857 = vmatprep.subr.mxu0 0.0
      %3858 = vmatpush1.msra.mxu0 0.0
      %3859 = vmatprep.subr.mxu0 0.0
      %3860 = vmatpush1.msra.mxu0 0.0
      %3861 = vmatprep.subr.mxu0 0.0
      %3862 = vmatpush1.msra.mxu0 0.0
      %3863 = vmatprep.subr.mxu0 0.0
      %3864 = vmatpush1.msra.mxu0 0.0
      %3865 = vmatprep.subr.mxu0 0.0
      %3866 = vmatpush1.msra.mxu0 0.0
      %3867 = vmatprep.subr.mxu0 0.0
      %3868 = vmatpush1.msra.mxu0 0.0
      %3869 = vmatprep.subr.mxu0 0.0
      %3870 = vmatpush1.msra.mxu0 0.0
      %3871 = vmatprep.subr.mxu0 0.0
      %3872 = vmatpush1.msra.mxu0 0.0
      %3873 = vmatprep.subr.mxu0 0.0
      %3874 = vmatpush1.msra.mxu0 0.0
      %3875 = vmatprep.subr.mxu0 0.0
      %3876 = vmatpush1.msra.mxu0 0.0
      %3877 = vmatprep.subr.mxu0 0.0
      %3878 = vmatpush1.msra.mxu0 0.0
      %3879 = vmatprep.subr.mxu0 0.0
      %3880 = vmatpush1.msra.mxu0 0.0
      %3881 = vmatprep.subr.mxu0 0.0
      %3882 = vmatpush1.msra.mxu0 0.0
      %3883 = vmatprep.subr.mxu0 0.0
      %3884 = vmatpush1.msra.mxu0 0.0
      %3885 = vmatprep.subr.mxu0 0.0
      %3886 = vmatpush1.msra.mxu0 0.0
      %3887 = vmatprep.mubr.f32.mxu0 0.0
      %3888 = vmatmul.mubr.f32.gmra.mrb[0].mxu0 %v3786
      %v3889 = vpop.f32.mrb[0].mxu0
      %v3890 = vadd.f32 0.0, %v3889
      %v3891 = vpop.f32.mrb[0].mxu0
      %3892 = vmatprep.mubr.f32.mxu0 0.0
      %3893 = vmatmul.mubr.f32.gmra.mrb[0].mxu0 %v3805
      %v3894 = vpop.f32.mrb[0].mxu0
      %v3895 = vadd.f32 0.0, %v3894
      %v3896 = vpop.f32.mrb[0].mxu0
      %3897 = vdwg.mxu0
      %v3901 = vrot.slane %v3785, 7
      %v3902 = vrot.slane %v3786, 7
      %v3903 = vsel %vm964, %v3901, %v3902
      %v3904 = vrot.slane %v3787, 7
      %v3905 = vsel %vm964, %v3902, %v3904
      %3908 = vmatprep.subr.mxu0 0.0
      %3909 = vmatpush1.msra.mxu0 %v3789
      %3910 = vmatprep.subr.mxu0 0.0
      %3911 = vmatpush1.msra.mxu0 %v3790
      %3912 = vmatprep.subr.mxu0 0.0
      %3913 = vmatpush1.msra.mxu0 %v3791
      %3914 = vmatprep.subr.mxu0 0.0
      %3915 = vmatpush1.msra.mxu0 %v3792
      %3916 = vmatprep.subr.mxu0 0.0
      %3917 = vmatpush1.msra.mxu0 %v3793
      %3918 = vmatprep.subr.mxu0 0.0
      %3919 = vmatpush1.msra.mxu0 %v3794
      %3920 = vmatprep.subr.mxu0 0.0
      %3921 = vmatpush1.msra.mxu0 %v3795
      %3922 = vmatprep.subr.mxu0 0.0
      %3923 = vmatpush1.msra.mxu0 %v3796
      %3924 = vmatprep.subr.mxu0 0.0
      %3925 = vmatpush1.msra.mxu0 %v3797
      %3926 = vmatprep.subr.mxu0 0.0
      %3927 = vmatpush1.msra.mxu0 %v3798
      %3928 = vmatprep.subr.mxu0 0.0
      %3929 = vmatpush1.msra.mxu0 %v3799
      %3930 = vmatprep.subr.mxu0 0.0
      %3931 = vmatpush1.msra.mxu0 %v3800
      %3932 = vmatprep.subr.mxu0 0.0
      %3933 = vmatpush1.msra.mxu0 %v3801
      %3934 = vmatprep.subr.mxu0 0.0
      %3935 = vmatpush1.msra.mxu0 %v3802
      %3936 = vmatprep.subr.mxu0 0.0
      %3937 = vmatpush1.msra.mxu0 %v3803
      %3938 = vmatprep.subr.mxu0 0.0
      %3939 = vmatpush1.msra.mxu0 %v3804
      %3940 = vmatprep.subr.mxu0 0.0
      %3941 = vmatpush1.msra.mxu0 0.0
      %3942 = vmatprep.subr.mxu0 0.0
      %3943 = vmatpush1.msra.mxu0 0.0
      %3944 = vmatprep.subr.mxu0 0.0
      %3945 = vmatpush1.msra.mxu0 0.0
      %3946 = vmatprep.subr.mxu0 0.0
      %3947 = vmatpush1.msra.mxu0 0.0
      %3948 = vmatprep.subr.mxu0 0.0
      %3949 = vmatpush1.msra.mxu0 0.0
      %3950 = vmatprep.subr.mxu0 0.0
      %3951 = vmatpush1.msra.mxu0 0.0
      %3952 = vmatprep.subr.mxu0 0.0
      %3953 = vmatpush1.msra.mxu0 0.0
      %3954 = vmatprep.subr.mxu0 0.0
      %3955 = vmatpush1.msra.mxu0 0.0
      %3956 = vmatprep.subr.mxu0 0.0
      %3957 = vmatpush1.msra.mxu0 0.0
      %3958 = vmatprep.subr.mxu0 0.0
      %3959 = vmatpush1.msra.mxu0 0.0
      %3960 = vmatprep.subr.mxu0 0.0
      %3961 = vmatpush1.msra.mxu0 0.0
      %3962 = vmatprep.subr.mxu0 0.0
      %3963 = vmatpush1.msra.mxu0 0.0
      %3964 = vmatprep.subr.mxu0 0.0
      %3965 = vmatpush1.msra.mxu0 0.0
      %3966 = vmatprep.subr.mxu0 0.0
      %3967 = vmatpush1.msra.mxu0 0.0
      %3968 = vmatprep.subr.mxu0 0.0
      %3969 = vmatpush1.msra.mxu0 0.0
      %3970 = vmatprep.subr.mxu0 0.0
      %3971 = vmatpush1.msra.mxu0 0.0
      %3972 = vmatprep.mubr.f32.mxu0 0.0
      %3973 = vmatmul.mubr.f32.gmra.mrb[0].mxu0 %v3903
      %v3974 = vpop.f32.mrb[0].mxu0
      %v3975 = vadd.f32 %v3890, %v3974
      %v3976 = vpop.f32.mrb[0].mxu0
      %3977 = vmatprep.mubr.f32.mxu0 0.0
      %3978 = vmatmul.mubr.f32.gmra.mrb[0].mxu0 %v3905
      %v3979 = vpop.f32.mrb[0].mxu0
      %v3980 = vadd.f32 %v3895, %v3979
      %v3981 = vpop.f32.mrb[0].mxu0
      %3982 = vdwg.mxu0
      %v3983 = vld [vmem:[#allocation2 + $0x10] sm:$0xfe]
      %v3984 = vld [vmem:[#allocation2 + $0x20] sm:$0xff]
      %v3985 = vld [vmem:[#allocation2 + $0x30] sm:$0x1]
      %s3986 = scalar_lea.vmem %s3, 1024
      %v3987 = vld [vmem:[%s3986] sm:$0xff]
      %v3988 = vld [vmem:[%s3986 + $0x8] sm:$0xff]
      %v3989 = vld [vmem:[%s3986 + $0x10] sm:$0xff]
      %v3990 = vld [vmem:[%s3986 + $0x18] sm:$0xff]
      %v3991 = vld [vmem:[%s3986 + $0x20] sm:$0xff]
      %v3992 = vld [vmem:[%s3986 + $0x28] sm:$0xff]
      %v3993 = vld [vmem:[%s3986 + $0x30] sm:$0xff]
      %v3994 = vld [vmem:[%s3986 + $0x38] sm:$0xff]
      %v3995 = vld [vmem:[%s3986 + $0x40] sm:$0xff]
      %v3996 = vld [vmem:[%s3986 + $0x48] sm:$0xff]
      %v3997 = vld [vmem:[%s3986 + $0x50] sm:$0xff]
      %v3998 = vld [vmem:[%s3986 + $0x58] sm:$0xff]
      %v3999 = vld [vmem:[%s3986 + $0x60] sm:$0xff]
      %v4000 = vld [vmem:[%s3986 + $0x68] sm:$0xff]
      %v4001 = vld [vmem:[%s3986 + $0x70] sm:$0xff]
      %v4002 = vld [vmem:[%s3986 + $0x78] sm:$0xff]
      %v4006 = vrot.slane %v3983, 1
      %v4007 = vrot.slane %v3984, 1
      %v4008 = vsel %vm2512, %v4006, %v4007
      %v4009 = vrot.slane %v3985, 1
      %v4010 = vsel %vm2512, %v4007, %v4009
      %4013 = vmatprep.subr.mxu0 0.0
      %4014 = vmatpush1.msra.mxu0 %v3987
      %4015 = vmatprep.subr.mxu0 0.0
      %4016 = vmatpush1.msra.mxu0 %v3988
      %4017 = vmatprep.subr.mxu0 0.0
      %4018 = vmatpush1.msra.mxu0 %v3989
      %4019 = vmatprep.subr.mxu0 0.0
      %4020 = vmatpush1.msra.mxu0 %v3990
      %4021 = vmatprep.subr.mxu0 0.0
      %4022 = vmatpush1.msra.mxu0 %v3991
      %4023 = vmatprep.subr.mxu0 0.0
      %4024 = vmatpush1.msra.mxu0 %v3992
      %4025 = vmatprep.subr.mxu0 0.0
      %4026 = vmatpush1.msra.mxu0 %v3993
      %4027 = vmatprep.subr.mxu0 0.0
      %4028 = vmatpush1.msra.mxu0 %v3994
      %4029 = vmatprep.subr.mxu0 0.0
      %4030 = vmatpush1.msra.mxu0 %v3995
      %4031 = vmatprep.subr.mxu0 0.0
      %4032 = vmatpush1.msra.mxu0 %v3996
      %4033 = vmatprep.subr.mxu0 0.0
      %4034 = vmatpush1.msra.mxu0 %v3997
      %4035 = vmatprep.subr.mxu0 0.0
      %4036 = vmatpush1.msra.mxu0 %v3998
      %4037 = vmatprep.subr.mxu0 0.0
      %4038 = vmatpush1.msra.mxu0 %v3999
      %4039 = vmatprep.subr.mxu0 0.0
      %4040 = vmatpush1.msra.mxu0 %v4000
      %4041 = vmatprep.subr.mxu0 0.0
      %4042 = vmatpush1.msra.mxu0 %v4001
      %4043 = vmatprep.subr.mxu0 0.0
      %4044 = vmatpush1.msra.mxu0 %v4002
      %4045 = vmatprep.subr.mxu0 0.0
      %4046 = vmatpush1.msra.mxu0 0.0
      %4047 = vmatprep.subr.mxu0 0.0
      %4048 = vmatpush1.msra.mxu0 0.0
      %4049 = vmatprep.subr.mxu0 0.0
      %4050 = vmatpush1.msra.mxu0 0.0
      %4051 = vmatprep.subr.mxu0 0.0
      %4052 = vmatpush1.msra.mxu0 0.0
      %4053 = vmatprep.subr.mxu0 0.0
      %4054 = vmatpush1.msra.mxu0 0.0
      %4055 = vmatprep.subr.mxu0 0.0
      %4056 = vmatpush1.msra.mxu0 0.0
      %4057 = vmatprep.subr.mxu0 0.0
      %4058 = vmatpush1.msra.mxu0 0.0
      %4059 = vmatprep.subr.mxu0 0.0
      %4060 = vmatpush1.msra.mxu0 0.0
      %4061 = vmatprep.subr.mxu0 0.0
      %4062 = vmatpush1.msra.mxu0 0.0
      %4063 = vmatprep.subr.mxu0 0.0
      %4064 = vmatpush1.msra.mxu0 0.0
      %4065 = vmatprep.subr.mxu0 0.0
      %4066 = vmatpush1.msra.mxu0 0.0
      %4067 = vmatprep.subr.mxu0 0.0
      %4068 = vmatpush1.msra.mxu0 0.0
      %4069 = vmatprep.subr.mxu0 0.0
      %4070 = vmatpush1.msra.mxu0 0.0
      %4071 = vmatprep.subr.mxu0 0.0
      %4072 = vmatpush1.msra.mxu0 0.0
      %4073 = vmatprep.subr.mxu0 0.0
      %4074 = vmatpush1.msra.mxu0 0.0
      %4075 = vmatprep.subr.mxu0 0.0
      %4076 = vmatpush1.msra.mxu0 0.0
      %4077 = vmatprep.mubr.f32.mxu0 0.0
      %4078 = vmatmul.mubr.f32.gmra.mrb[0].mxu0 %v4008
      %v4079 = vpop.f32.mrb[0].mxu0
      %v4080 = vadd.f32 0.0, %v4079
      %v4081 = vpop.f32.mrb[0].mxu0
      %4082 = vmatprep.mubr.f32.mxu0 0.0
      %4083 = vmatmul.mubr.f32.gmra.mrb[0].mxu0 %v4010
      %v4084 = vpop.f32.mrb[0].mxu0
      %v4085 = vadd.f32 0.0, %v4084
      %v4086 = vpop.f32.mrb[0].mxu0
      %4087 = vdwg.mxu0
      %v4088 = vadd.f32 %v3975, %v4080
      %v4089 = vadd.f32 %v3980, %v4085
      %v4090 = vld [vmem:[%s2 + $0x11] ss:$0 sm:$0xff]
      %v4091 = vadd.f32 %v4088, %v4090
      %v4092 = vadd.f32 %v4089, %v4090
      %v4093 = vmax.f32 %v4091, 0.0
      %v4094 = vmax.f32 %v4092, 0.0
      %4095 = vst.msk [vmem:[#allocation2 + $0x10] sm:$0xff] %vm473, %v4093
      %4096 = vst.msk [vmem:[#allocation2 + $0x20] sm:$0xff] %vm473, %v4094
      %v4097 = vld [vmem:[#allocation2] sm:$0x80]
      %v4098 = vld [vmem:[#allocation2 + $0x10] sm:$0xff]
      %v4099 = vld [vmem:[#allocation2 + $0x20] sm:$0x7f]
      %s4100 = scalar_lea.vmem %s4, 1152
      %v4101 = vld [vmem:[%s4100] sm:$0xff]
      %v4102 = vld [vmem:[%s4100 + $0x8] sm:$0xff]
      %v4103 = vld [vmem:[%s4100 + $0x10] sm:$0xff]
      %v4104 = vld [vmem:[%s4100 + $0x18] sm:$0xff]
      %v4105 = vld [vmem:[%s4100 + $0x20] sm:$0xff]
      %v4106 = vld [vmem:[%s4100 + $0x28] sm:$0xff]
      %v4107 = vld [vmem:[%s4100 + $0x30] sm:$0xff]
      %v4108 = vld [vmem:[%s4100 + $0x38] sm:$0xff]
      %v4109 = vld [vmem:[#allocation2 + $0x20] sm:$0xff]
      %s4110 = scalar_lea.vmem %s4, 1216
      %v4111 = vld [vmem:[%s4110] sm:$0xff]
      %v4112 = vld [vmem:[%s4110 + $0x8] sm:$0xff]
      %v4113 = vld [vmem:[%s4110 + $0x10] sm:$0xff]
      %v4114 = vld [vmem:[%s4110 + $0x18] sm:$0xff]
      %v4115 = vld [vmem:[%s4110 + $0x20] sm:$0xff]
      %v4116 = vld [vmem:[%s4110 + $0x28] sm:$0xff]
      %v4117 = vld [vmem:[%s4110 + $0x30] sm:$0xff]
      %v4118 = vld [vmem:[%s4110 + $0x38] sm:$0xff]
      %v4120 = vsel %vm473, %v4098, 0
      %v4123 = vsel %vm473, %v4109, 0
      %4125 = vmatprep.subr.mxu0 0.0
      %4126 = vmatpush1.msra.mxu0 %v4111
      %4127 = vmatprep.subr.mxu0 0.0
      %4128 = vmatpush1.msra.mxu0 %v4112
      %4129 = vmatprep.subr.mxu0 0.0
      %4130 = vmatpush1.msra.mxu0 %v4113
      %4131 = vmatprep.subr.mxu0 0.0
      %4132 = vmatpush1.msra.mxu0 %v4114
      %4133 = vmatprep.subr.mxu0 0.0
      %4134 = vmatpush1.msra.mxu0 %v4115
      %4135 = vmatprep.subr.mxu0 0.0
      %4136 = vmatpush1.msra.mxu0 %v4116
      %4137 = vmatprep.subr.mxu0 0.0
      %4138 = vmatpush1.msra.mxu0 %v4117
      %4139 = vmatprep.subr.mxu0 0.0
      %4140 = vmatpush1.msra.mxu0 %v4118
      %4141 = vmatprep.subr.mxu0 0.0
      %4142 = vmatpush1.msra.mxu0 0.0
      %4143 = vmatprep.subr.mxu0 0.0
      %4144 = vmatpush1.msra.mxu0 0.0
      %4145 = vmatprep.subr.mxu0 0.0
      %4146 = vmatpush1.msra.mxu0 0.0
      %4147 = vmatprep.subr.mxu0 0.0
      %4148 = vmatpush1.msra.mxu0 0.0
      %4149 = vmatprep.subr.mxu0 0.0
      %4150 = vmatpush1.msra.mxu0 0.0
      %4151 = vmatprep.subr.mxu0 0.0
      %4152 = vmatpush1.msra.mxu0 0.0
      %4153 = vmatprep.subr.mxu0 0.0
      %4154 = vmatpush1.msra.mxu0 0.0
      %4155 = vmatprep.subr.mxu0 0.0
      %4156 = vmatpush1.msra.mxu0 0.0
      %4157 = vmatprep.subr.mxu0 0.0
      %4158 = vmatpush1.msra.mxu0 0.0
      %4159 = vmatprep.subr.mxu0 0.0
      %4160 = vmatpush1.msra.mxu0 0.0
      %4161 = vmatprep.subr.mxu0 0.0
      %4162 = vmatpush1.msra.mxu0 0.0
      %4163 = vmatprep.subr.mxu0 0.0
      %4164 = vmatpush1.msra.mxu0 0.0
      %4165 = vmatprep.subr.mxu0 0.0
      %4166 = vmatpush1.msra.mxu0 0.0
      %4167 = vmatprep.subr.mxu0 0.0
      %4168 = vmatpush1.msra.mxu0 0.0
      %4169 = vmatprep.subr.mxu0 0.0
      %4170 = vmatpush1.msra.mxu0 0.0
      %4171 = vmatprep.subr.mxu0 0.0
      %4172 = vmatpush1.msra.mxu0 0.0
      %4173 = vmatprep.subr.mxu0 0.0
      %4174 = vmatpush1.msra.mxu0 0.0
      %4175 = vmatprep.subr.mxu0 0.0
      %4176 = vmatpush1.msra.mxu0 0.0
      %4177 = vmatprep.subr.mxu0 0.0
      %4178 = vmatpush1.msra.mxu0 0.0
      %4179 = vmatprep.subr.mxu0 0.0
      %4180 = vmatpush1.msra.mxu0 0.0
      %4181 = vmatprep.subr.mxu0 0.0
      %4182 = vmatpush1.msra.mxu0 0.0
      %4183 = vmatprep.subr.mxu0 0.0
      %4184 = vmatpush1.msra.mxu0 0.0
      %4185 = vmatprep.subr.mxu0 0.0
      %4186 = vmatpush1.msra.mxu0 0.0
      %4187 = vmatprep.subr.mxu0 0.0
      %4188 = vmatpush1.msra.mxu0 0.0
      %4189 = vmatprep.mubr.f32.mxu0 0.0
      %4190 = vmatmul.mubr.f32.gmra.mrb[0].mxu0 %v4120
      %v4191 = vpop.f32.mrb[0].mxu0
      %v4192 = vadd.f32 0.0, %v4191
      %v4193 = vpop.f32.mrb[0].mxu0
      %4194 = vmatprep.mubr.f32.mxu0 0.0
      %4195 = vmatmul.mubr.f32.gmra.mrb[0].mxu0 %v4123
      %v4196 = vpop.f32.mrb[0].mxu0
      %v4197 = vadd.f32 0.0, %v4196
      %v4198 = vpop.f32.mrb[0].mxu0
      %4199 = vdwg.mxu0
      %v4202 = vrot.slane %v4097, 7
      %v4203 = vrot.slane %v4098, 7
      %v4204 = vsel %vm964, %v4202, %v4203
      %v4205 = vrot.slane %v4099, 7
      %v4206 = vsel %vm964, %v4203, %v4205
      %v4207 = vsel %vm473, %v4204, 0
      %v4209 = vsel %vm473, %v4206, 0
      %4211 = vmatprep.subr.mxu0 0.0
      %4212 = vmatpush1.msra.mxu0 %v4101
      %4213 = vmatprep.subr.mxu0 0.0
      %4214 = vmatpush1.msra.mxu0 %v4102
      %4215 = vmatprep.subr.mxu0 0.0
      %4216 = vmatpush1.msra.mxu0 %v4103
      %4217 = vmatprep.subr.mxu0 0.0
      %4218 = vmatpush1.msra.mxu0 %v4104
      %4219 = vmatprep.subr.mxu0 0.0
      %4220 = vmatpush1.msra.mxu0 %v4105
      %4221 = vmatprep.subr.mxu0 0.0
      %4222 = vmatpush1.msra.mxu0 %v4106
      %4223 = vmatprep.subr.mxu0 0.0
      %4224 = vmatpush1.msra.mxu0 %v4107
      %4225 = vmatprep.subr.mxu0 0.0
      %4226 = vmatpush1.msra.mxu0 %v4108
      %4227 = vmatprep.subr.mxu0 0.0
      %4228 = vmatpush1.msra.mxu0 0.0
      %4229 = vmatprep.subr.mxu0 0.0
      %4230 = vmatpush1.msra.mxu0 0.0
      %4231 = vmatprep.subr.mxu0 0.0
      %4232 = vmatpush1.msra.mxu0 0.0
      %4233 = vmatprep.subr.mxu0 0.0
      %4234 = vmatpush1.msra.mxu0 0.0
      %4235 = vmatprep.subr.mxu0 0.0
      %4236 = vmatpush1.msra.mxu0 0.0
      %4237 = vmatprep.subr.mxu0 0.0
      %4238 = vmatpush1.msra.mxu0 0.0
      %4239 = vmatprep.subr.mxu0 0.0
      %4240 = vmatpush1.msra.mxu0 0.0
      %4241 = vmatprep.subr.mxu0 0.0
      %4242 = vmatpush1.msra.mxu0 0.0
      %4243 = vmatprep.subr.mxu0 0.0
      %4244 = vmatpush1.msra.mxu0 0.0
      %4245 = vmatprep.subr.mxu0 0.0
      %4246 = vmatpush1.msra.mxu0 0.0
      %4247 = vmatprep.subr.mxu0 0.0
      %4248 = vmatpush1.msra.mxu0 0.0
      %4249 = vmatprep.subr.mxu0 0.0
      %4250 = vmatpush1.msra.mxu0 0.0
      %4251 = vmatprep.subr.mxu0 0.0
      %4252 = vmatpush1.msra.mxu0 0.0
      %4253 = vmatprep.subr.mxu0 0.0
      %4254 = vmatpush1.msra.mxu0 0.0
      %4255 = vmatprep.subr.mxu0 0.0
      %4256 = vmatpush1.msra.mxu0 0.0
      %4257 = vmatprep.subr.mxu0 0.0
      %4258 = vmatpush1.msra.mxu0 0.0
      %4259 = vmatprep.subr.mxu0 0.0
      %4260 = vmatpush1.msra.mxu0 0.0
      %4261 = vmatprep.subr.mxu0 0.0
      %4262 = vmatpush1.msra.mxu0 0.0
      %4263 = vmatprep.subr.mxu0 0.0
      %4264 = vmatpush1.msra.mxu0 0.0
      %4265 = vmatprep.subr.mxu0 0.0
      %4266 = vmatpush1.msra.mxu0 0.0
      %4267 = vmatprep.subr.mxu0 0.0
      %4268 = vmatpush1.msra.mxu0 0.0
      %4269 = vmatprep.subr.mxu0 0.0
      %4270 = vmatpush1.msra.mxu0 0.0
      %4271 = vmatprep.subr.mxu0 0.0
      %4272 = vmatpush1.msra.mxu0 0.0
      %4273 = vmatprep.subr.mxu0 0.0
      %4274 = vmatpush1.msra.mxu0 0.0
      %4275 = vmatprep.mubr.f32.mxu0 0.0
      %4276 = vmatmul.mubr.f32.gmra.mrb[0].mxu0 %v4207
      %v4277 = vpop.f32.mrb[0].mxu0
      %v4278 = vadd.f32 %v4192, %v4277
      %v4279 = vpop.f32.mrb[0].mxu0
      %4280 = vmatprep.mubr.f32.mxu0 0.0
      %4281 = vmatmul.mubr.f32.gmra.mrb[0].mxu0 %v4209
      %v4282 = vpop.f32.mrb[0].mxu0
      %v4283 = vadd.f32 %v4197, %v4282
      %v4284 = vpop.f32.mrb[0].mxu0
      %4285 = vdwg.mxu0
      %v4286 = vld [vmem:[#allocation2 + $0x10] sm:$0xfe]
      %v4287 = vld [vmem:[#allocation2 + $0x20] sm:$0xff]
      %v4288 = vld [vmem:[#allocation2 + $0x30] sm:$0x1]
      %s4289 = scalar_lea.vmem %s4, 1280
      %v4290 = vld [vmem:[%s4289] sm:$0xff]
      %v4291 = vld [vmem:[%s4289 + $0x8] sm:$0xff]
      %v4292 = vld [vmem:[%s4289 + $0x10] sm:$0xff]
      %v4293 = vld [vmem:[%s4289 + $0x18] sm:$0xff]
      %v4294 = vld [vmem:[%s4289 + $0x20] sm:$0xff]
      %v4295 = vld [vmem:[%s4289 + $0x28] sm:$0xff]
      %v4296 = vld [vmem:[%s4289 + $0x30] sm:$0xff]
      %v4297 = vld [vmem:[%s4289 + $0x38] sm:$0xff]
      %v4301 = vrot.slane %v4286, 1
      %v4302 = vrot.slane %v4287, 1
      %v4303 = vsel %vm2512, %v4301, %v4302
      %v4304 = vrot.slane %v4288, 1
      %v4305 = vsel %vm2512, %v4302, %v4304
      %v4306 = vsel %vm473, %v4303, 0
      %v4308 = vsel %vm473, %v4305, 0
      %4310 = vmatprep.subr.mxu0 0.0
      %4311 = vmatpush1.msra.mxu0 %v4290
      %4312 = vmatprep.subr.mxu0 0.0
      %4313 = vmatpush1.msra.mxu0 %v4291
      %4314 = vmatprep.subr.mxu0 0.0
      %4315 = vmatpush1.msra.mxu0 %v4292
      %4316 = vmatprep.subr.mxu0 0.0
      %4317 = vmatpush1.msra.mxu0 %v4293
      %4318 = vmatprep.subr.mxu0 0.0
      %4319 = vmatpush1.msra.mxu0 %v4294
      %4320 = vmatprep.subr.mxu0 0.0
      %4321 = vmatpush1.msra.mxu0 %v4295
      %4322 = vmatprep.subr.mxu0 0.0
      %4323 = vmatpush1.msra.mxu0 %v4296
      %4324 = vmatprep.subr.mxu0 0.0
      %4325 = vmatpush1.msra.mxu0 %v4297
      %4326 = vmatprep.subr.mxu0 0.0
      %4327 = vmatpush1.msra.mxu0 0.0
      %4328 = vmatprep.subr.mxu0 0.0
      %4329 = vmatpush1.msra.mxu0 0.0
      %4330 = vmatprep.subr.mxu0 0.0
      %4331 = vmatpush1.msra.mxu0 0.0
      %4332 = vmatprep.subr.mxu0 0.0
      %4333 = vmatpush1.msra.mxu0 0.0
      %4334 = vmatprep.subr.mxu0 0.0
      %4335 = vmatpush1.msra.mxu0 0.0
      %4336 = vmatprep.subr.mxu0 0.0
      %4337 = vmatpush1.msra.mxu0 0.0
      %4338 = vmatprep.subr.mxu0 0.0
      %4339 = vmatpush1.msra.mxu0 0.0
      %4340 = vmatprep.subr.mxu0 0.0
      %4341 = vmatpush1.msra.mxu0 0.0
      %4342 = vmatprep.subr.mxu0 0.0
      %4343 = vmatpush1.msra.mxu0 0.0
      %4344 = vmatprep.subr.mxu0 0.0
      %4345 = vmatpush1.msra.mxu0 0.0
      %4346 = vmatprep.subr.mxu0 0.0
      %4347 = vmatpush1.msra.mxu0 0.0
      %4348 = vmatprep.subr.mxu0 0.0
      %4349 = vmatpush1.msra.mxu0 0.0
      %4350 = vmatprep.subr.mxu0 0.0
      %4351 = vmatpush1.msra.mxu0 0.0
      %4352 = vmatprep.subr.mxu0 0.0
      %4353 = vmatpush1.msra.mxu0 0.0
      %4354 = vmatprep.subr.mxu0 0.0
      %4355 = vmatpush1.msra.mxu0 0.0
      %4356 = vmatprep.subr.mxu0 0.0
      %4357 = vmatpush1.msra.mxu0 0.0
      %4358 = vmatprep.subr.mxu0 0.0
      %4359 = vmatpush1.msra.mxu0 0.0
      %4360 = vmatprep.subr.mxu0 0.0
      %4361 = vmatpush1.msra.mxu0 0.0
      %4362 = vmatprep.subr.mxu0 0.0
      %4363 = vmatpush1.msra.mxu0 0.0
      %4364 = vmatprep.subr.mxu0 0.0
      %4365 = vmatpush1.msra.mxu0 0.0
      %4366 = vmatprep.subr.mxu0 0.0
      %4367 = vmatpush1.msra.mxu0 0.0
      %4368 = vmatprep.subr.mxu0 0.0
      %4369 = vmatpush1.msra.mxu0 0.0
      %4370 = vmatprep.subr.mxu0 0.0
      %4371 = vmatpush1.msra.mxu0 0.0
      %4372 = vmatprep.subr.mxu0 0.0
      %4373 = vmatpush1.msra.mxu0 0.0
      %4374 = vmatprep.mubr.f32.mxu0 0.0
      %4375 = vmatmul.mubr.f32.gmra.mrb[0].mxu0 %v4306
      %v4376 = vpop.f32.mrb[0].mxu0
      %v4377 = vadd.f32 0.0, %v4376
      %v4378 = vpop.f32.mrb[0].mxu0
      %4379 = vmatprep.mubr.f32.mxu0 0.0
      %4380 = vmatmul.mubr.f32.gmra.mrb[0].mxu0 %v4308
      %v4381 = vpop.f32.mrb[0].mxu0
      %v4382 = vadd.f32 0.0, %v4381
      %v4383 = vpop.f32.mrb[0].mxu0
      %4384 = vdwg.mxu0
      %v4385 = vadd.f32 %v4278, %v4377
      %v4386 = vadd.f32 %v4283, %v4382
      %v4387 = vld [vmem:[%s2 + $0x12] ss:$0 sm:$0xff]
      %v4388 = vadd.f32 %v4385, %v4387
      %v4389 = vadd.f32 %v4386, %v4387
      %v4390 = vadd.f32 %v4388, %v3622
      %v4391 = vadd.f32 %v4389, %v3627
      %v4392 = vmax.f32 %v4390, 0.0
      %v4393 = vmax.f32 %v4391, 0.0
      %4394 = vst.msk [vmem:[#allocation2 + $0x10] sm:$0xff] %vm473, %v4392
      %4395 = vst.msk [vmem:[#allocation2 + $0x20] sm:$0xff] %vm473, %v4393
      %v4396 = vld [vmem:[#allocation2] sm:$0x80]
      %v4397 = vld [vmem:[#allocation2 + $0x10] sm:$0xff]
      %v4398 = vld [vmem:[#allocation2 + $0x20] sm:$0x7f]
      %s4399 = scalar_lea.vmem %s4, 1344
      %v4400 = vld [vmem:[%s4399] sm:$0xff]
      %v4401 = vld [vmem:[%s4399 + $0x8] sm:$0xff]
      %v4402 = vld [vmem:[%s4399 + $0x10] sm:$0xff]
      %v4403 = vld [vmem:[%s4399 + $0x18] sm:$0xff]
      %v4404 = vld [vmem:[%s4399 + $0x20] sm:$0xff]
      %v4405 = vld [vmem:[%s4399 + $0x28] sm:$0xff]
      %v4406 = vld [vmem:[%s4399 + $0x30] sm:$0xff]
      %v4407 = vld [vmem:[%s4399 + $0x38] sm:$0xff]
      %v4408 = vld [vmem:[#allocation2 + $0x20] sm:$0xff]
      %s4409 = scalar_lea.vmem %s4, 1408
      %v4410 = vld [vmem:[%s4409] sm:$0xff]
      %v4411 = vld [vmem:[%s4409 + $0x8] sm:$0xff]
      %v4412 = vld [vmem:[%s4409 + $0x10] sm:$0xff]
      %v4413 = vld [vmem:[%s4409 + $0x18] sm:$0xff]
      %v4414 = vld [vmem:[%s4409 + $0x20] sm:$0xff]
      %v4415 = vld [vmem:[%s4409 + $0x28] sm:$0xff]
      %v4416 = vld [vmem:[%s4409 + $0x30] sm:$0xff]
      %v4417 = vld [vmem:[%s4409 + $0x38] sm:$0xff]
      %v4419 = vsel %vm473, %v4397, 0
      %v4422 = vsel %vm473, %v4408, 0
      %4424 = vmatprep.subr.mxu0 0.0
      %4425 = vmatpush1.msra.mxu0 %v4410
      %4426 = vmatprep.subr.mxu0 0.0
      %4427 = vmatpush1.msra.mxu0 %v4411
      %4428 = vmatprep.subr.mxu0 0.0
      %4429 = vmatpush1.msra.mxu0 %v4412
      %4430 = vmatprep.subr.mxu0 0.0
      %4431 = vmatpush1.msra.mxu0 %v4413
      %4432 = vmatprep.subr.mxu0 0.0
      %4433 = vmatpush1.msra.mxu0 %v4414
      %4434 = vmatprep.subr.mxu0 0.0
      %4435 = vmatpush1.msra.mxu0 %v4415
      %4436 = vmatprep.subr.mxu0 0.0
      %4437 = vmatpush1.msra.mxu0 %v4416
      %4438 = vmatprep.subr.mxu0 0.0
      %4439 = vmatpush1.msra.mxu0 %v4417
      %4440 = vmatprep.subr.mxu0 0.0
      %4441 = vmatpush1.msra.mxu0 0.0
      %4442 = vmatprep.subr.mxu0 0.0
      %4443 = vmatpush1.msra.mxu0 0.0
      %4444 = vmatprep.subr.mxu0 0.0
      %4445 = vmatpush1.msra.mxu0 0.0
      %4446 = vmatprep.subr.mxu0 0.0
      %4447 = vmatpush1.msra.mxu0 0.0
      %4448 = vmatprep.subr.mxu0 0.0
      %4449 = vmatpush1.msra.mxu0 0.0
      %4450 = vmatprep.subr.mxu0 0.0
      %4451 = vmatpush1.msra.mxu0 0.0
      %4452 = vmatprep.subr.mxu0 0.0
      %4453 = vmatpush1.msra.mxu0 0.0
      %4454 = vmatprep.subr.mxu0 0.0
      %4455 = vmatpush1.msra.mxu0 0.0
      %4456 = vmatprep.subr.mxu0 0.0
      %4457 = vmatpush1.msra.mxu0 0.0
      %4458 = vmatprep.subr.mxu0 0.0
      %4459 = vmatpush1.msra.mxu0 0.0
      %4460 = vmatprep.subr.mxu0 0.0
      %4461 = vmatpush1.msra.mxu0 0.0
      %4462 = vmatprep.subr.mxu0 0.0
      %4463 = vmatpush1.msra.mxu0 0.0
      %4464 = vmatprep.subr.mxu0 0.0
      %4465 = vmatpush1.msra.mxu0 0.0
      %4466 = vmatprep.subr.mxu0 0.0
      %4467 = vmatpush1.msra.mxu0 0.0
      %4468 = vmatprep.subr.mxu0 0.0
      %4469 = vmatpush1.msra.mxu0 0.0
      %4470 = vmatprep.subr.mxu0 0.0
      %4471 = vmatpush1.msra.mxu0 0.0
      %4472 = vmatprep.subr.mxu0 0.0
      %4473 = vmatpush1.msra.mxu0 0.0
      %4474 = vmatprep.subr.mxu0 0.0
      %4475 = vmatpush1.msra.mxu0 0.0
      %4476 = vmatprep.subr.mxu0 0.0
      %4477 = vmatpush1.msra.mxu0 0.0
      %4478 = vmatprep.subr.mxu0 0.0
      %4479 = vmatpush1.msra.mxu0 0.0
      %4480 = vmatprep.subr.mxu0 0.0
      %4481 = vmatpush1.msra.mxu0 0.0
      %4482 = vmatprep.subr.mxu0 0.0
      %4483 = vmatpush1.msra.mxu0 0.0
      %4484 = vmatprep.subr.mxu0 0.0
      %4485 = vmatpush1.msra.mxu0 0.0
      %4486 = vmatprep.subr.mxu0 0.0
      %4487 = vmatpush1.msra.mxu0 0.0
      %4488 = vmatprep.mubr.f32.mxu0 0.0
      %4489 = vmatmul.mubr.f32.gmra.mrb[0].mxu0 %v4419
      %v4490 = vpop.f32.mrb[0].mxu0
      %v4491 = vadd.f32 0.0, %v4490
      %v4492 = vpop.f32.mrb[0].mxu0
      %4493 = vmatprep.mubr.f32.mxu0 0.0
      %4494 = vmatmul.mubr.f32.gmra.mrb[0].mxu0 %v4422
      %v4495 = vpop.f32.mrb[0].mxu0
      %v4496 = vadd.f32 0.0, %v4495
      %v4497 = vpop.f32.mrb[0].mxu0
      %4498 = vdwg.mxu0
      %v4501 = vrot.slane %v4396, 7
      %v4502 = vrot.slane %v4397, 7
      %v4503 = vsel %vm964, %v4501, %v4502
      %v4504 = vrot.slane %v4398, 7
      %v4505 = vsel %vm964, %v4502, %v4504
      %v4506 = vsel %vm473, %v4503, 0
      %v4508 = vsel %vm473, %v4505, 0
      %4510 = vmatprep.subr.mxu0 0.0
      %4511 = vmatpush1.msra.mxu0 %v4400
      %4512 = vmatprep.subr.mxu0 0.0
      %4513 = vmatpush1.msra.mxu0 %v4401
      %4514 = vmatprep.subr.mxu0 0.0
      %4515 = vmatpush1.msra.mxu0 %v4402
      %4516 = vmatprep.subr.mxu0 0.0
      %4517 = vmatpush1.msra.mxu0 %v4403
      %4518 = vmatprep.subr.mxu0 0.0
      %4519 = vmatpush1.msra.mxu0 %v4404
      %4520 = vmatprep.subr.mxu0 0.0
      %4521 = vmatpush1.msra.mxu0 %v4405
      %4522 = vmatprep.subr.mxu0 0.0
      %4523 = vmatpush1.msra.mxu0 %v4406
      %4524 = vmatprep.subr.mxu0 0.0
      %4525 = vmatpush1.msra.mxu0 %v4407
      %4526 = vmatprep.subr.mxu0 0.0
      %4527 = vmatpush1.msra.mxu0 0.0
      %4528 = vmatprep.subr.mxu0 0.0
      %4529 = vmatpush1.msra.mxu0 0.0
      %4530 = vmatprep.subr.mxu0 0.0
      %4531 = vmatpush1.msra.mxu0 0.0
      %4532 = vmatprep.subr.mxu0 0.0
      %4533 = vmatpush1.msra.mxu0 0.0
      %4534 = vmatprep.subr.mxu0 0.0
      %4535 = vmatpush1.msra.mxu0 0.0
      %4536 = vmatprep.subr.mxu0 0.0
      %4537 = vmatpush1.msra.mxu0 0.0
      %4538 = vmatprep.subr.mxu0 0.0
      %4539 = vmatpush1.msra.mxu0 0.0
      %4540 = vmatprep.subr.mxu0 0.0
      %4541 = vmatpush1.msra.mxu0 0.0
      %4542 = vmatprep.subr.mxu0 0.0
      %4543 = vmatpush1.msra.mxu0 0.0
      %4544 = vmatprep.subr.mxu0 0.0
      %4545 = vmatpush1.msra.mxu0 0.0
      %4546 = vmatprep.subr.mxu0 0.0
      %4547 = vmatpush1.msra.mxu0 0.0
      %4548 = vmatprep.subr.mxu0 0.0
      %4549 = vmatpush1.msra.mxu0 0.0
      %4550 = vmatprep.subr.mxu0 0.0
      %4551 = vmatpush1.msra.mxu0 0.0
      %4552 = vmatprep.subr.mxu0 0.0
      %4553 = vmatpush1.msra.mxu0 0.0
      %4554 = vmatprep.subr.mxu0 0.0
      %4555 = vmatpush1.msra.mxu0 0.0
      %4556 = vmatprep.subr.mxu0 0.0
      %4557 = vmatpush1.msra.mxu0 0.0
      %4558 = vmatprep.subr.mxu0 0.0
      %4559 = vmatpush1.msra.mxu0 0.0
      %4560 = vmatprep.subr.mxu0 0.0
      %4561 = vmatpush1.msra.mxu0 0.0
      %4562 = vmatprep.subr.mxu0 0.0
      %4563 = vmatpush1.msra.mxu0 0.0
      %4564 = vmatprep.subr.mxu0 0.0
      %4565 = vmatpush1.msra.mxu0 0.0
      %4566 = vmatprep.subr.mxu0 0.0
      %4567 = vmatpush1.msra.mxu0 0.0
      %4568 = vmatprep.subr.mxu0 0.0
      %4569 = vmatpush1.msra.mxu0 0.0
      %4570 = vmatprep.subr.mxu0 0.0
      %4571 = vmatpush1.msra.mxu0 0.0
      %4572 = vmatprep.subr.mxu0 0.0
      %4573 = vmatpush1.msra.mxu0 0.0
      %4574 = vmatprep.mubr.f32.mxu0 0.0
      %4575 = vmatmul.mubr.f32.gmra.mrb[0].mxu0 %v4506
      %v4576 = vpop.f32.mrb[0].mxu0
      %v4577 = vadd.f32 %v4491, %v4576
      %v4578 = vpop.f32.mrb[0].mxu0
      %4579 = vmatprep.mubr.f32.mxu0 0.0
      %4580 = vmatmul.mubr.f32.gmra.mrb[0].mxu0 %v4508
      %v4581 = vpop.f32.mrb[0].mxu0
      %v4582 = vadd.f32 %v4496, %v4581
      %v4583 = vpop.f32.mrb[0].mxu0
      %4584 = vdwg.mxu0
      %v4585 = vld [vmem:[#allocation2 + $0x10] sm:$0xfe]
      %v4586 = vld [vmem:[#allocation2 + $0x20] sm:$0xff]
      %v4587 = vld [vmem:[#allocation2 + $0x30] sm:$0x1]
      %s4588 = scalar_lea.vmem %s4, 1472
      %v4589 = vld [vmem:[%s4588] sm:$0xff]
      %v4590 = vld [vmem:[%s4588 + $0x8] sm:$0xff]
      %v4591 = vld [vmem:[%s4588 + $0x10] sm:$0xff]
      %v4592 = vld [vmem:[%s4588 + $0x18] sm:$0xff]
      %v4593 = vld [vmem:[%s4588 + $0x20] sm:$0xff]
      %v4594 = vld [vmem:[%s4588 + $0x28] sm:$0xff]
      %v4595 = vld [vmem:[%s4588 + $0x30] sm:$0xff]
      %v4596 = vld [vmem:[%s4588 + $0x38] sm:$0xff]
      %v4600 = vrot.slane %v4585, 1
      %v4601 = vrot.slane %v4586, 1
      %v4602 = vsel %vm2512, %v4600, %v4601
      %v4603 = vrot.slane %v4587, 1
      %v4604 = vsel %vm2512, %v4601, %v4603
      %v4605 = vsel %vm473, %v4602, 0
      %v4607 = vsel %vm473, %v4604, 0
      %4609 = vmatprep.subr.mxu0 0.0
      %4610 = vmatpush1.msra.mxu0 %v4589
      %4611 = vmatprep.subr.mxu0 0.0
      %4612 = vmatpush1.msra.mxu0 %v4590
      %4613 = vmatprep.subr.mxu0 0.0
      %4614 = vmatpush1.msra.mxu0 %v4591
      %4615 = vmatprep.subr.mxu0 0.0
      %4616 = vmatpush1.msra.mxu0 %v4592
      %4617 = vmatprep.subr.mxu0 0.0
      %4618 = vmatpush1.msra.mxu0 %v4593
      %4619 = vmatprep.subr.mxu0 0.0
      %4620 = vmatpush1.msra.mxu0 %v4594
      %4621 = vmatprep.subr.mxu0 0.0
      %4622 = vmatpush1.msra.mxu0 %v4595
      %4623 = vmatprep.subr.mxu0 0.0
      %4624 = vmatpush1.msra.mxu0 %v4596
      %4625 = vmatprep.subr.mxu0 0.0
      %4626 = vmatpush1.msra.mxu0 0.0
      %4627 = vmatprep.subr.mxu0 0.0
      %4628 = vmatpush1.msra.mxu0 0.0
      %4629 = vmatprep.subr.mxu0 0.0
      %4630 = vmatpush1.msra.mxu0 0.0
      %4631 = vmatprep.subr.mxu0 0.0
      %4632 = vmatpush1.msra.mxu0 0.0
      %4633 = vmatprep.subr.mxu0 0.0
      %4634 = vmatpush1.msra.mxu0 0.0
      %4635 = vmatprep.subr.mxu0 0.0
      %4636 = vmatpush1.msra.mxu0 0.0
      %4637 = vmatprep.subr.mxu0 0.0
      %4638 = vmatpush1.msra.mxu0 0.0
      %4639 = vmatprep.subr.mxu0 0.0
      %4640 = vmatpush1.msra.mxu0 0.0
      %4641 = vmatprep.subr.mxu0 0.0
      %4642 = vmatpush1.msra.mxu0 0.0
      %4643 = vmatprep.subr.mxu0 0.0
      %4644 = vmatpush1.msra.mxu0 0.0
      %4645 = vmatprep.subr.mxu0 0.0
      %4646 = vmatpush1.msra.mxu0 0.0
      %4647 = vmatprep.subr.mxu0 0.0
      %4648 = vmatpush1.msra.mxu0 0.0
      %4649 = vmatprep.subr.mxu0 0.0
      %4650 = vmatpush1.msra.mxu0 0.0
      %4651 = vmatprep.subr.mxu0 0.0
      %4652 = vmatpush1.msra.mxu0 0.0
      %4653 = vmatprep.subr.mxu0 0.0
      %4654 = vmatpush1.msra.mxu0 0.0
      %4655 = vmatprep.subr.mxu0 0.0
      %4656 = vmatpush1.msra.mxu0 0.0
      %4657 = vmatprep.subr.mxu0 0.0
      %4658 = vmatpush1.msra.mxu0 0.0
      %4659 = vmatprep.subr.mxu0 0.0
      %4660 = vmatpush1.msra.mxu0 0.0
      %4661 = vmatprep.subr.mxu0 0.0
      %4662 = vmatpush1.msra.mxu0 0.0
      %4663 = vmatprep.subr.mxu0 0.0
      %4664 = vmatpush1.msra.mxu0 0.0
      %4665 = vmatprep.subr.mxu0 0.0
      %4666 = vmatpush1.msra.mxu0 0.0
      %4667 = vmatprep.subr.mxu0 0.0
      %4668 = vmatpush1.msra.mxu0 0.0
      %4669 = vmatprep.subr.mxu0 0.0
      %4670 = vmatpush1.msra.mxu0 0.0
      %4671 = vmatprep.subr.mxu0 0.0
      %4672 = vmatpush1.msra.mxu0 0.0
      %4673 = vmatprep.mubr.f32.mxu0 0.0
      %4674 = vmatmul.mubr.f32.gmra.mrb[0].mxu0 %v4605
      %v4675 = vpop.f32.mrb[0].mxu0
      %v4676 = vadd.f32 0.0, %v4675
      %v4677 = vpop.f32.mrb[0].mxu0
      %4678 = vmatprep.mubr.f32.mxu0 0.0
      %4679 = vmatmul.mubr.f32.gmra.mrb[0].mxu0 %v4607
      %v4680 = vpop.f32.mrb[0].mxu0
      %v4681 = vadd.f32 0.0, %v4680
      %v4682 = vpop.f32.mrb[0].mxu0
      %4683 = vdwg.mxu0
      %v4684 = vadd.f32 %v4577, %v4676
      %v4685 = vadd.f32 %v4582, %v4681
      %v4686 = vld [vmem:[%s2 + $0x13] ss:$0 sm:$0xff]
      %v4687 = vadd.f32 %v4684, %v4686
      %v4688 = vadd.f32 %v4685, %v4686
      %v4689 = vmax.f32 %v4687, 0.0
      %v4690 = vmax.f32 %v4688, 0.0
      %4691 = vst.msk [vmem:[#allocation2 + $0x10] sm:$0xff] %vm473, %v4689
      %4692 = vst.msk [vmem:[#allocation2 + $0x20] sm:$0xff] %vm473, %v4690
      %v4693 = vld [vmem:[#allocation2] sm:$0x80]
      %v4694 = vld [vmem:[#allocation2 + $0x10] sm:$0xff]
      %v4695 = vld [vmem:[#allocation2 + $0x20] sm:$0x7f]
      %s4696 = scalar_lea.vmem %s4, 1536
      %v4697 = vld [vmem:[%s4696] sm:$0xff]
      %v4698 = vld [vmem:[%s4696 + $0x8] sm:$0xff]
      %v4699 = vld [vmem:[%s4696 + $0x10] sm:$0xff]
      %v4700 = vld [vmem:[%s4696 + $0x18] sm:$0xff]
      %v4701 = vld [vmem:[%s4696 + $0x20] sm:$0xff]
      %v4702 = vld [vmem:[%s4696 + $0x28] sm:$0xff]
      %v4703 = vld [vmem:[%s4696 + $0x30] sm:$0xff]
      %v4704 = vld [vmem:[%s4696 + $0x38] sm:$0xff]
      %v4705 = vld [vmem:[#allocation2 + $0x20] sm:$0xff]
      %s4706 = scalar_lea.vmem %s4, 1600
      %v4707 = vld [vmem:[%s4706] sm:$0xff]
      %v4708 = vld [vmem:[%s4706 + $0x8] sm:$0xff]
      %v4709 = vld [vmem:[%s4706 + $0x10] sm:$0xff]
      %v4710 = vld [vmem:[%s4706 + $0x18] sm:$0xff]
      %v4711 = vld [vmem:[%s4706 + $0x20] sm:$0xff]
      %v4712 = vld [vmem:[%s4706 + $0x28] sm:$0xff]
      %v4713 = vld [vmem:[%s4706 + $0x30] sm:$0xff]
      %v4714 = vld [vmem:[%s4706 + $0x38] sm:$0xff]
      %v4716 = vsel %vm473, %v4694, 0
      %v4719 = vsel %vm473, %v4705, 0
      %4721 = vmatprep.subr.mxu0 0.0
      %4722 = vmatpush1.msra.mxu0 %v4707
      %4723 = vmatprep.subr.mxu0 0.0
      %4724 = vmatpush1.msra.mxu0 %v4708
      %4725 = vmatprep.subr.mxu0 0.0
      %4726 = vmatpush1.msra.mxu0 %v4709
      %4727 = vmatprep.subr.mxu0 0.0
      %4728 = vmatpush1.msra.mxu0 %v4710
      %4729 = vmatprep.subr.mxu0 0.0
      %4730 = vmatpush1.msra.mxu0 %v4711
      %4731 = vmatprep.subr.mxu0 0.0
      %4732 = vmatpush1.msra.mxu0 %v4712
      %4733 = vmatprep.subr.mxu0 0.0
      %4734 = vmatpush1.msra.mxu0 %v4713
      %4735 = vmatprep.subr.mxu0 0.0
      %4736 = vmatpush1.msra.mxu0 %v4714
      %4737 = vmatprep.subr.mxu0 0.0
      %4738 = vmatpush1.msra.mxu0 0.0
      %4739 = vmatprep.subr.mxu0 0.0
      %4740 = vmatpush1.msra.mxu0 0.0
      %4741 = vmatprep.subr.mxu0 0.0
      %4742 = vmatpush1.msra.mxu0 0.0
      %4743 = vmatprep.subr.mxu0 0.0
      %4744 = vmatpush1.msra.mxu0 0.0
      %4745 = vmatprep.subr.mxu0 0.0
      %4746 = vmatpush1.msra.mxu0 0.0
      %4747 = vmatprep.subr.mxu0 0.0
      %4748 = vmatpush1.msra.mxu0 0.0
      %4749 = vmatprep.subr.mxu0 0.0
      %4750 = vmatpush1.msra.mxu0 0.0
      %4751 = vmatprep.subr.mxu0 0.0
      %4752 = vmatpush1.msra.mxu0 0.0
      %4753 = vmatprep.subr.mxu0 0.0
      %4754 = vmatpush1.msra.mxu0 0.0
      %4755 = vmatprep.subr.mxu0 0.0
      %4756 = vmatpush1.msra.mxu0 0.0
      %4757 = vmatprep.subr.mxu0 0.0
      %4758 = vmatpush1.msra.mxu0 0.0
      %4759 = vmatprep.subr.mxu0 0.0
      %4760 = vmatpush1.msra.mxu0 0.0
      %4761 = vmatprep.subr.mxu0 0.0
      %4762 = vmatpush1.msra.mxu0 0.0
      %4763 = vmatprep.subr.mxu0 0.0
      %4764 = vmatpush1.msra.mxu0 0.0
      %4765 = vmatprep.subr.mxu0 0.0
      %4766 = vmatpush1.msra.mxu0 0.0
      %4767 = vmatprep.subr.mxu0 0.0
      %4768 = vmatpush1.msra.mxu0 0.0
      %4769 = vmatprep.subr.mxu0 0.0
      %4770 = vmatpush1.msra.mxu0 0.0
      %4771 = vmatprep.subr.mxu0 0.0
      %4772 = vmatpush1.msra.mxu0 0.0
      %4773 = vmatprep.subr.mxu0 0.0
      %4774 = vmatpush1.msra.mxu0 0.0
      %4775 = vmatprep.subr.mxu0 0.0
      %4776 = vmatpush1.msra.mxu0 0.0
      %4777 = vmatprep.subr.mxu0 0.0
      %4778 = vmatpush1.msra.mxu0 0.0
      %4779 = vmatprep.subr.mxu0 0.0
      %4780 = vmatpush1.msra.mxu0 0.0
      %4781 = vmatprep.subr.mxu0 0.0
      %4782 = vmatpush1.msra.mxu0 0.0
      %4783 = vmatprep.subr.mxu0 0.0
      %4784 = vmatpush1.msra.mxu0 0.0
      %4785 = vmatprep.mubr.f32.mxu0 0.0
      %4786 = vmatmul.mubr.f32.gmra.mrb[0].mxu0 %v4716
      %v4787 = vpop.f32.mrb[0].mxu0
      %v4788 = vadd.f32 0.0, %v4787
      %v4789 = vpop.f32.mrb[0].mxu0
      %4790 = vmatprep.mubr.f32.mxu0 0.0
      %4791 = vmatmul.mubr.f32.gmra.mrb[0].mxu0 %v4719
      %v4792 = vpop.f32.mrb[0].mxu0
      %v4793 = vadd.f32 0.0, %v4792
      %v4794 = vpop.f32.mrb[0].mxu0
      %4795 = vdwg.mxu0
      %v4798 = vrot.slane %v4693, 7
      %v4799 = vrot.slane %v4694, 7
      %v4800 = vsel %vm964, %v4798, %v4799
      %v4801 = vrot.slane %v4695, 7
      %v4802 = vsel %vm964, %v4799, %v4801
      %v4803 = vsel %vm473, %v4800, 0
      %v4805 = vsel %vm473, %v4802, 0
      %4807 = vmatprep.subr.mxu0 0.0
      %4808 = vmatpush1.msra.mxu0 %v4697
      %4809 = vmatprep.subr.mxu0 0.0
      %4810 = vmatpush1.msra.mxu0 %v4698
      %4811 = vmatprep.subr.mxu0 0.0
      %4812 = vmatpush1.msra.mxu0 %v4699
      %4813 = vmatprep.subr.mxu0 0.0
      %4814 = vmatpush1.msra.mxu0 %v4700
      %4815 = vmatprep.subr.mxu0 0.0
      %4816 = vmatpush1.msra.mxu0 %v4701
      %4817 = vmatprep.subr.mxu0 0.0
      %4818 = vmatpush1.msra.mxu0 %v4702
      %4819 = vmatprep.subr.mxu0 0.0
      %4820 = vmatpush1.msra.mxu0 %v4703
      %4821 = vmatprep.subr.mxu0 0.0
      %4822 = vmatpush1.msra.mxu0 %v4704
      %4823 = vmatprep.subr.mxu0 0.0
      %4824 = vmatpush1.msra.mxu0 0.0
      %4825 = vmatprep.subr.mxu0 0.0
      %4826 = vmatpush1.msra.mxu0 0.0
      %4827 = vmatprep.subr.mxu0 0.0
      %4828 = vmatpush1.msra.mxu0 0.0
      %4829 = vmatprep.subr.mxu0 0.0
      %4830 = vmatpush1.msra.mxu0 0.0
      %4831 = vmatprep.subr.mxu0 0.0
      %4832 = vmatpush1.msra.mxu0 0.0
      %4833 = vmatprep.subr.mxu0 0.0
      %4834 = vmatpush1.msra.mxu0 0.0
      %4835 = vmatprep.subr.mxu0 0.0
      %4836 = vmatpush1.msra.mxu0 0.0
      %4837 = vmatprep.subr.mxu0 0.0
      %4838 = vmatpush1.msra.mxu0 0.0
      %4839 = vmatprep.subr.mxu0 0.0
      %4840 = vmatpush1.msra.mxu0 0.0
      %4841 = vmatprep.subr.mxu0 0.0
      %4842 = vmatpush1.msra.mxu0 0.0
      %4843 = vmatprep.subr.mxu0 0.0
      %4844 = vmatpush1.msra.mxu0 0.0
      %4845 = vmatprep.subr.mxu0 0.0
      %4846 = vmatpush1.msra.mxu0 0.0
      %4847 = vmatprep.subr.mxu0 0.0
      %4848 = vmatpush1.msra.mxu0 0.0
      %4849 = vmatprep.subr.mxu0 0.0
      %4850 = vmatpush1.msra.mxu0 0.0
      %4851 = vmatprep.subr.mxu0 0.0
      %4852 = vmatpush1.msra.mxu0 0.0
      %4853 = vmatprep.subr.mxu0 0.0
      %4854 = vmatpush1.msra.mxu0 0.0
      %4855 = vmatprep.subr.mxu0 0.0
      %4856 = vmatpush1.msra.mxu0 0.0
      %4857 = vmatprep.subr.mxu0 0.0
      %4858 = vmatpush1.msra.mxu0 0.0
      %4859 = vmatprep.subr.mxu0 0.0
      %4860 = vmatpush1.msra.mxu0 0.0
      %4861 = vmatprep.subr.mxu0 0.0
      %4862 = vmatpush1.msra.mxu0 0.0
      %4863 = vmatprep.subr.mxu0 0.0
      %4864 = vmatpush1.msra.mxu0 0.0
      %4865 = vmatprep.subr.mxu0 0.0
      %4866 = vmatpush1.msra.mxu0 0.0
      %4867 = vmatprep.subr.mxu0 0.0
      %4868 = vmatpush1.msra.mxu0 0.0
      %4869 = vmatprep.subr.mxu0 0.0
      %4870 = vmatpush1.msra.mxu0 0.0
      %4871 = vmatprep.mubr.f32.mxu0 0.0
      %4872 = vmatmul.mubr.f32.gmra.mrb[0].mxu0 %v4803
      %v4873 = vpop.f32.mrb[0].mxu0
      %v4874 = vadd.f32 %v4788, %v4873
      %v4875 = vpop.f32.mrb[0].mxu0
      %4876 = vmatprep.mubr.f32.mxu0 0.0
      %4877 = vmatmul.mubr.f32.gmra.mrb[0].mxu0 %v4805
      %v4878 = vpop.f32.mrb[0].mxu0
      %v4879 = vadd.f32 %v4793, %v4878
      %v4880 = vpop.f32.mrb[0].mxu0
      %4881 = vdwg.mxu0
      %v4882 = vld [vmem:[#allocation2 + $0x10] sm:$0xfe]
      %v4883 = vld [vmem:[#allocation2 + $0x20] sm:$0xff]
      %v4884 = vld [vmem:[#allocation2 + $0x30] sm:$0x1]
      %s4885 = scalar_lea.vmem %s4, 1664
      %v4886 = vld [vmem:[%s4885] sm:$0xff]
      %v4887 = vld [vmem:[%s4885 + $0x8] sm:$0xff]
      %v4888 = vld [vmem:[%s4885 + $0x10] sm:$0xff]
      %v4889 = vld [vmem:[%s4885 + $0x18] sm:$0xff]
      %v4890 = vld [vmem:[%s4885 + $0x20] sm:$0xff]
      %v4891 = vld [vmem:[%s4885 + $0x28] sm:$0xff]
      %v4892 = vld [vmem:[%s4885 + $0x30] sm:$0xff]
      %v4893 = vld [vmem:[%s4885 + $0x38] sm:$0xff]
      %v4897 = vrot.slane %v4882, 1
      %v4898 = vrot.slane %v4883, 1
      %v4899 = vsel %vm2512, %v4897, %v4898
      %v4900 = vrot.slane %v4884, 1
      %v4901 = vsel %vm2512, %v4898, %v4900
      %v4902 = vsel %vm473, %v4899, 0
      %v4904 = vsel %vm473, %v4901, 0
      %4906 = vmatprep.subr.mxu0 0.0
      %4907 = vmatpush1.msra.mxu0 %v4886
      %4908 = vmatprep.subr.mxu0 0.0
      %4909 = vmatpush1.msra.mxu0 %v4887
      %4910 = vmatprep.subr.mxu0 0.0
      %4911 = vmatpush1.msra.mxu0 %v4888
      %4912 = vmatprep.subr.mxu0 0.0
      %4913 = vmatpush1.msra.mxu0 %v4889
      %4914 = vmatprep.subr.mxu0 0.0
      %4915 = vmatpush1.msra.mxu0 %v4890
      %4916 = vmatprep.subr.mxu0 0.0
      %4917 = vmatpush1.msra.mxu0 %v4891
      %4918 = vmatprep.subr.mxu0 0.0
      %4919 = vmatpush1.msra.mxu0 %v4892
      %4920 = vmatprep.subr.mxu0 0.0
      %4921 = vmatpush1.msra.mxu0 %v4893
      %4922 = vmatprep.subr.mxu0 0.0
      %4923 = vmatpush1.msra.mxu0 0.0
      %4924 = vmatprep.subr.mxu0 0.0
      %4925 = vmatpush1.msra.mxu0 0.0
      %4926 = vmatprep.subr.mxu0 0.0
      %4927 = vmatpush1.msra.mxu0 0.0
      %4928 = vmatprep.subr.mxu0 0.0
      %4929 = vmatpush1.msra.mxu0 0.0
      %4930 = vmatprep.subr.mxu0 0.0
      %4931 = vmatpush1.msra.mxu0 0.0
      %4932 = vmatprep.subr.mxu0 0.0
      %4933 = vmatpush1.msra.mxu0 0.0
      %4934 = vmatprep.subr.mxu0 0.0
      %4935 = vmatpush1.msra.mxu0 0.0
      %4936 = vmatprep.subr.mxu0 0.0
      %4937 = vmatpush1.msra.mxu0 0.0
      %4938 = vmatprep.subr.mxu0 0.0
      %4939 = vmatpush1.msra.mxu0 0.0
      %4940 = vmatprep.subr.mxu0 0.0
      %4941 = vmatpush1.msra.mxu0 0.0
      %4942 = vmatprep.subr.mxu0 0.0
      %4943 = vmatpush1.msra.mxu0 0.0
      %4944 = vmatprep.subr.mxu0 0.0
      %4945 = vmatpush1.msra.mxu0 0.0
      %4946 = vmatprep.subr.mxu0 0.0
      %4947 = vmatpush1.msra.mxu0 0.0
      %4948 = vmatprep.subr.mxu0 0.0
      %4949 = vmatpush1.msra.mxu0 0.0
      %4950 = vmatprep.subr.mxu0 0.0
      %4951 = vmatpush1.msra.mxu0 0.0
      %4952 = vmatprep.subr.mxu0 0.0
      %4953 = vmatpush1.msra.mxu0 0.0
      %4954 = vmatprep.subr.mxu0 0.0
      %4955 = vmatpush1.msra.mxu0 0.0
      %4956 = vmatprep.subr.mxu0 0.0
      %4957 = vmatpush1.msra.mxu0 0.0
      %4958 = vmatprep.subr.mxu0 0.0
      %4959 = vmatpush1.msra.mxu0 0.0
      %4960 = vmatprep.subr.mxu0 0.0
      %4961 = vmatpush1.msra.mxu0 0.0
      %4962 = vmatprep.subr.mxu0 0.0
      %4963 = vmatpush1.msra.mxu0 0.0
      %4964 = vmatprep.subr.mxu0 0.0
      %4965 = vmatpush1.msra.mxu0 0.0
      %4966 = vmatprep.subr.mxu0 0.0
      %4967 = vmatpush1.msra.mxu0 0.0
      %4968 = vmatprep.subr.mxu0 0.0
      %4969 = vmatpush1.msra.mxu0 0.0
      %4970 = vmatprep.mubr.f32.mxu0 0.0
      %4971 = vmatmul.mubr.f32.gmra.mrb[0].mxu0 %v4902
      %v4972 = vpop.f32.mrb[0].mxu0
      %v4973 = vadd.f32 0.0, %v4972
      %v4974 = vpop.f32.mrb[0].mxu0
      %4975 = vmatprep.mubr.f32.mxu0 0.0
      %4976 = vmatmul.mubr.f32.gmra.mrb[0].mxu0 %v4904
      %v4977 = vpop.f32.mrb[0].mxu0
      %v4978 = vadd.f32 0.0, %v4977
      %v4979 = vpop.f32.mrb[0].mxu0
      %4980 = vdwg.mxu0
      %v4981 = vadd.f32 %v4874, %v4973
      %v4982 = vadd.f32 %v4879, %v4978
      %v4983 = vld [vmem:[%s2 + $0x14] ss:$0 sm:$0xff]
      %v4984 = vadd.f32 %v4981, %v4983
      %v4985 = vadd.f32 %v4982, %v4983
      %v4986 = vadd.f32 %v4984, %v4392
      %v4987 = vadd.f32 %v4985, %v4393
      %v4988 = vmax.f32 %v4986, 0.0
      %v4989 = vmax.f32 %v4987, 0.0
      %v4990 = vld [vmem:[%s3468] sm:$0xff]
      %v4991 = vld [vmem:[%s3468 + $0x10] sm:$0xff]
      %v4992 = vld [vmem:[%s3468 + $0x20] sm:$0xff]
      %v4993 = vld [vmem:[%s3468 + $0x30] sm:$0xff]
      %v4994 = vld [vmem:[%s3468 + $0x40] sm:$0xff]
      %v4995 = vld [vmem:[%s3468 + $0x50] sm:$0xff]
      %v4996 = vld [vmem:[%s3468 + $0x60] sm:$0xff]
      %v4997 = vld [vmem:[%s3468 + $0x70] sm:$0xff]
      %v4999 = vsel %vm473, %v4988, 0
      %v5002 = vsel %vm473, %v4989, 0
      %5004 = vmatprep.subr.mxu0 0.0
      %5005 = vmatpush1.msra.mxu0 %v4990
      %5006 = vmatprep.subr.mxu0 0.0
      %5007 = vmatpush1.msra.mxu0 %v4991
      %5008 = vmatprep.subr.mxu0 0.0
      %5009 = vmatpush1.msra.mxu0 %v4992
      %5010 = vmatprep.subr.mxu0 0.0
      %5011 = vmatpush1.msra.mxu0 %v4993
      %5012 = vmatprep.subr.mxu0 0.0
      %5013 = vmatpush1.msra.mxu0 %v4994
      %5014 = vmatprep.subr.mxu0 0.0
      %5015 = vmatpush1.msra.mxu0 %v4995
      %5016 = vmatprep.subr.mxu0 0.0
      %5017 = vmatpush1.msra.mxu0 %v4996
      %5018 = vmatprep.subr.mxu0 0.0
      %5019 = vmatpush1.msra.mxu0 %v4997
      %5020 = vmatprep.subr.mxu0 0.0
      %5021 = vmatpush1.msra.mxu0 0.0
      %5022 = vmatprep.subr.mxu0 0.0
      %5023 = vmatpush1.msra.mxu0 0.0
      %5024 = vmatprep.subr.mxu0 0.0
      %5025 = vmatpush1.msra.mxu0 0.0
      %5026 = vmatprep.subr.mxu0 0.0
      %5027 = vmatpush1.msra.mxu0 0.0
      %5028 = vmatprep.subr.mxu0 0.0
      %5029 = vmatpush1.msra.mxu0 0.0
      %5030 = vmatprep.subr.mxu0 0.0
      %5031 = vmatpush1.msra.mxu0 0.0
      %5032 = vmatprep.subr.mxu0 0.0
      %5033 = vmatpush1.msra.mxu0 0.0
      %5034 = vmatprep.subr.mxu0 0.0
      %5035 = vmatpush1.msra.mxu0 0.0
      %5036 = vmatprep.subr.mxu0 0.0
      %5037 = vmatpush1.msra.mxu0 0.0
      %5038 = vmatprep.subr.mxu0 0.0
      %5039 = vmatpush1.msra.mxu0 0.0
      %5040 = vmatprep.subr.mxu0 0.0
      %5041 = vmatpush1.msra.mxu0 0.0
      %5042 = vmatprep.subr.mxu0 0.0
      %5043 = vmatpush1.msra.mxu0 0.0
      %5044 = vmatprep.subr.mxu0 0.0
      %5045 = vmatpush1.msra.mxu0 0.0
      %5046 = vmatprep.subr.mxu0 0.0
      %5047 = vmatpush1.msra.mxu0 0.0
      %5048 = vmatprep.subr.mxu0 0.0
      %5049 = vmatpush1.msra.mxu0 0.0
      %5050 = vmatprep.subr.mxu0 0.0
      %5051 = vmatpush1.msra.mxu0 0.0
      %5052 = vmatprep.subr.mxu0 0.0
      %5053 = vmatpush1.msra.mxu0 0.0
      %5054 = vmatprep.subr.mxu0 0.0
      %5055 = vmatpush1.msra.mxu0 0.0
      %5056 = vmatprep.subr.mxu0 0.0
      %5057 = vmatpush1.msra.mxu0 0.0
      %5058 = vmatprep.subr.mxu0 0.0
      %5059 = vmatpush1.msra.mxu0 0.0
      %5060 = vmatprep.subr.mxu0 0.0
      %5061 = vmatpush1.msra.mxu0 0.0
      %5062 = vmatprep.subr.mxu0 0.0
      %5063 = vmatpush1.msra.mxu0 0.0
      %5064 = vmatprep.subr.mxu0 0.0
      %5065 = vmatpush1.msra.mxu0 0.0
      %5066 = vmatprep.subr.mxu0 0.0
      %5067 = vmatpush1.msra.mxu0 0.0
      %5068 = vmatprep.mubr.f32.mxu0 0.0
      %5069 = vmatmul.mubr.f32.gmra.mrb[0].mxu0 %v4999
      %v5070 = vpop.f32.mrb[0].mxu0
      %v5071 = vadd.f32 0.0, %v5070
      %v5072 = vpop.f32.mrb[0].mxu0
      %5073 = vmatprep.mubr.f32.mxu0 0.0
      %5074 = vmatmul.mubr.f32.gmra.mrb[0].mxu0 %v5002
      %v5075 = vpop.f32.mrb[0].mxu0
      %v5076 = vadd.f32 0.0, %v5075
      %v5077 = vpop.f32.mrb[0].mxu0
      %5078 = vdwg.mxu0
      %v5079 = vld [vmem:[%s9] sm:$0xff]
      %v5080 = vld [vmem:[%s9 + $0x8] sm:$0xff]
      %v5081 = vld [vmem:[%s9 + $0x10] sm:$0xff]
      %v5082 = vld [vmem:[%s9 + $0x18] sm:$0xff]
      %vm5083 = vcmask 130048
      %v5085 = vsel %vm5083, %v5079, 0
      %v5088 = vsel %vm5083, %v5080, 0
      %v5091 = vsel %vm5083, %v5081, 0
      %v5094 = vsel %vm5083, %v5082, 0
      %5096 = vmatprep.subr.mxu0 0.0
      %5097 = vmatpush1.msra.mxu0 %v5071
      %5098 = vmatprep.subr.mxu0 0.0
      %5099 = vmatpush1.msra.mxu0 %v5076
      %5100 = vmatprep.subr.mxu0 0.0
      %5101 = vmatpush1.msra.mxu0 0.0
      %5102 = vmatprep.subr.mxu0 0.0
      %5103 = vmatpush1.msra.mxu0 0.0
      %5104 = vmatprep.subr.mxu0 0.0
      %5105 = vmatpush1.msra.mxu0 0.0
      %5106 = vmatprep.subr.mxu0 0.0
      %5107 = vmatpush1.msra.mxu0 0.0
      %5108 = vmatprep.subr.mxu0 0.0
      %5109 = vmatpush1.msra.mxu0 0.0
      %5110 = vmatprep.subr.mxu0 0.0
      %5111 = vmatpush1.msra.mxu0 0.0
      %5112 = vmatprep.subr.mxu0 0.0
      %5113 = vmatpush1.msra.mxu0 0.0
      %5114 = vmatprep.subr.mxu0 0.0
      %5115 = vmatpush1.msra.mxu0 0.0
      %5116 = vmatprep.subr.mxu0 0.0
      %5117 = vmatpush1.msra.mxu0 0.0
      %5118 = vmatprep.subr.mxu0 0.0
      %5119 = vmatpush1.msra.mxu0 0.0
      %5120 = vmatprep.subr.mxu0 0.0
      %5121 = vmatpush1.msra.mxu0 0.0
      %5122 = vmatprep.subr.mxu0 0.0
      %5123 = vmatpush1.msra.mxu0 0.0
      %5124 = vmatprep.subr.mxu0 0.0
      %5125 = vmatpush1.msra.mxu0 0.0
      %5126 = vmatprep.subr.mxu0 0.0
      %5127 = vmatpush1.msra.mxu0 0.0
      %5128 = vmatprep.subr.mxu0 0.0
      %5129 = vmatpush1.msra.mxu0 0.0
      %5130 = vmatprep.subr.mxu0 0.0
      %5131 = vmatpush1.msra.mxu0 0.0
      %5132 = vmatprep.subr.mxu0 0.0
      %5133 = vmatpush1.msra.mxu0 0.0
      %5134 = vmatprep.subr.mxu0 0.0
      %5135 = vmatpush1.msra.mxu0 0.0
      %5136 = vmatprep.subr.mxu0 0.0
      %5137 = vmatpush1.msra.mxu0 0.0
      %5138 = vmatprep.subr.mxu0 0.0
      %5139 = vmatpush1.msra.mxu0 0.0
      %5140 = vmatprep.subr.mxu0 0.0
      %5141 = vmatpush1.msra.mxu0 0.0
      %5142 = vmatprep.subr.mxu0 0.0
      %5143 = vmatpush1.msra.mxu0 0.0
      %5144 = vmatprep.subr.mxu0 0.0
      %5145 = vmatpush1.msra.mxu0 0.0
      %5146 = vmatprep.subr.mxu0 0.0
      %5147 = vmatpush1.msra.mxu0 0.0
      %5148 = vmatprep.subr.mxu0 0.0
      %5149 = vmatpush1.msra.mxu0 0.0
      %5150 = vmatprep.subr.mxu0 0.0
      %5151 = vmatpush1.msra.mxu0 0.0
      %5152 = vmatprep.subr.mxu0 0.0
      %5153 = vmatpush1.msra.mxu0 0.0
      %5154 = vmatprep.subr.mxu0 0.0
      %5155 = vmatpush1.msra.mxu0 0.0
      %5156 = vmatprep.subr.mxu0 0.0
      %5157 = vmatpush1.msra.mxu0 0.0
      %5158 = vmatprep.subr.mxu0 0.0
      %5159 = vmatpush1.msra.mxu0 0.0
      %5160 = vmatprep.mubr.f32.mxu0 0.0
      %5161 = vmatmul.mubr.f32.gmra.mrb[0].mxu0 %v5085
      %v5162 = vpop.f32.mrb[0].mxu0
      %v5163 = vadd.f32 0.0, %v5162
      %v5164 = vpop.f32.mrb[0].mxu0
      %5165 = vmatprep.mubr.f32.mxu0 0.0
      %5166 = vmatmul.mubr.f32.gmra.mrb[0].mxu0 %v5088
      %v5167 = vpop.f32.mrb[0].mxu0
      %v5168 = vadd.f32 0.0, %v5167
      %v5169 = vpop.f32.mrb[0].mxu0
      %5170 = vmatprep.mubr.f32.mxu0 0.0
      %5171 = vmatmul.mubr.f32.gmra.mrb[0].mxu0 %v5091
      %v5172 = vpop.f32.mrb[0].mxu0
      %v5173 = vadd.f32 0.0, %v5172
      %v5174 = vpop.f32.mrb[0].mxu0
      %5175 = vmatprep.mubr.f32.mxu0 0.0
      %5176 = vmatmul.mubr.f32.gmra.mrb[0].mxu0 %v5094
      %v5177 = vpop.f32.mrb[0].mxu0
      %v5178 = vadd.f32 0.0, %v5177
      %v5179 = vpop.f32.mrb[0].mxu0
      %5180 = vdwg.mxu0
      %5181 = vst [vmem:[#allocation2 + $0x10] sm:$0xff] %v5163
      %5182 = vst [vmem:[#allocation2 + $0x20] sm:$0xff] %v5168
      %5183 = vst [vmem:[#allocation2 + $0x30] sm:$0xff] %v5173
      %5184 = vst [vmem:[#allocation2 + $0x40] sm:$0xff] %v5178
      %v5185 = vld [vmem:[#allocation2] sm:$0x80]
      %v5186 = vld [vmem:[#allocation2 + $0x10] sm:$0xff]
      %v5187 = vld [vmem:[#allocation2 + $0x20] sm:$0xff]
      %v5188 = vld [vmem:[#allocation2 + $0x30] sm:$0xff]
      %v5189 = vld [vmem:[#allocation2 + $0x40] sm:$0x7f]
      %v5190 = vld [vmem:[%s5] sm:$0xff]
      %v5191 = vld [vmem:[%s5 + $0x8] sm:$0xff]
      %v5192 = vld [vmem:[%s5 + $0x10] sm:$0xff]
      %v5193 = vld [vmem:[%s5 + $0x18] sm:$0xff]
      %v5194 = vld [vmem:[%s5 + $0x20] sm:$0xff]
      %v5195 = vld [vmem:[%s5 + $0x28] sm:$0xff]
      %v5196 = vld [vmem:[%s5 + $0x30] sm:$0xff]
      %v5197 = vld [vmem:[%s5 + $0x38] sm:$0xff]
      %v5198 = vld [vmem:[%s5 + $0x40] sm:$0xff]
      %v5199 = vld [vmem:[%s5 + $0x48] sm:$0xff]
      %v5200 = vld [vmem:[%s5 + $0x50] sm:$0xff]
      %v5201 = vld [vmem:[%s5 + $0x58] sm:$0xff]
      %v5202 = vld [vmem:[%s5 + $0x60] sm:$0xff]
      %v5203 = vld [vmem:[%s5 + $0x68] sm:$0xff]
      %v5204 = vld [vmem:[%s5 + $0x70] sm:$0xff]
      %v5205 = vld [vmem:[%s5 + $0x78] sm:$0xff]
      %v5206 = vld [vmem:[#allocation2 + $0x40] sm:$0xff]
      %s5207 = scalar_lea.vmem %s5, 128
      %v5208 = vld [vmem:[%s5207] sm:$0xff]
      %v5209 = vld [vmem:[%s5207 + $0x8] sm:$0xff]
      %v5210 = vld [vmem:[%s5207 + $0x10] sm:$0xff]
      %v5211 = vld [vmem:[%s5207 + $0x18] sm:$0xff]
      %v5212 = vld [vmem:[%s5207 + $0x20] sm:$0xff]
      %v5213 = vld [vmem:[%s5207 + $0x28] sm:$0xff]
      %v5214 = vld [vmem:[%s5207 + $0x30] sm:$0xff]
      %v5215 = vld [vmem:[%s5207 + $0x38] sm:$0xff]
      %v5216 = vld [vmem:[%s5207 + $0x40] sm:$0xff]
      %v5217 = vld [vmem:[%s5207 + $0x48] sm:$0xff]
      %v5218 = vld [vmem:[%s5207 + $0x50] sm:$0xff]
      %v5219 = vld [vmem:[%s5207 + $0x58] sm:$0xff]
      %v5220 = vld [vmem:[%s5207 + $0x60] sm:$0xff]
      %v5221 = vld [vmem:[%s5207 + $0x68] sm:$0xff]
      %v5222 = vld [vmem:[%s5207 + $0x70] sm:$0xff]
      %v5223 = vld [vmem:[%s5207 + $0x78] sm:$0xff]
      %5224 = vmatprep.subr.mxu0 0.0
      %5225 = vmatpush1.msra.mxu0 %v5208
      %5226 = vmatprep.subr.mxu0 0.0
      %5227 = vmatpush1.msra.mxu0 %v5209
      %5228 = vmatprep.subr.mxu0 0.0
      %5229 = vmatpush1.msra.mxu0 %v5210
      %5230 = vmatprep.subr.mxu0 0.0
      %5231 = vmatpush1.msra.mxu0 %v5211
      %5232 = vmatprep.subr.mxu0 0.0
      %5233 = vmatpush1.msra.mxu0 %v5212
      %5234 = vmatprep.subr.mxu0 0.0
      %5235 = vmatpush1.msra.mxu0 %v5213
      %5236 = vmatprep.subr.mxu0 0.0
      %5237 = vmatpush1.msra.mxu0 %v5214
      %5238 = vmatprep.subr.mxu0 0.0
      %5239 = vmatpush1.msra.mxu0 %v5215
      %5240 = vmatprep.subr.mxu0 0.0
      %5241 = vmatpush1.msra.mxu0 %v5216
      %5242 = vmatprep.subr.mxu0 0.0
      %5243 = vmatpush1.msra.mxu0 %v5217
      %5244 = vmatprep.subr.mxu0 0.0
      %5245 = vmatpush1.msra.mxu0 %v5218
      %5246 = vmatprep.subr.mxu0 0.0
      %5247 = vmatpush1.msra.mxu0 %v5219
      %5248 = vmatprep.subr.mxu0 0.0
      %5249 = vmatpush1.msra.mxu0 %v5220
      %5250 = vmatprep.subr.mxu0 0.0
      %5251 = vmatpush1.msra.mxu0 %v5221
      %5252 = vmatprep.subr.mxu0 0.0
      %5253 = vmatpush1.msra.mxu0 %v5222
      %5254 = vmatprep.subr.mxu0 0.0
      %5255 = vmatpush1.msra.mxu0 %v5223
      %5256 = vmatprep.subr.mxu0 0.0
      %5257 = vmatpush1.msra.mxu0 0.0
      %5258 = vmatprep.subr.mxu0 0.0
      %5259 = vmatpush1.msra.mxu0 0.0
      %5260 = vmatprep.subr.mxu0 0.0
      %5261 = vmatpush1.msra.mxu0 0.0
      %5262 = vmatprep.subr.mxu0 0.0
      %5263 = vmatpush1.msra.mxu0 0.0
      %5264 = vmatprep.subr.mxu0 0.0
      %5265 = vmatpush1.msra.mxu0 0.0
      %5266 = vmatprep.subr.mxu0 0.0
      %5267 = vmatpush1.msra.mxu0 0.0
      %5268 = vmatprep.subr.mxu0 0.0
      %5269 = vmatpush1.msra.mxu0 0.0
      %5270 = vmatprep.subr.mxu0 0.0
      %5271 = vmatpush1.msra.mxu0 0.0
      %5272 = vmatprep.subr.mxu0 0.0
      %5273 = vmatpush1.msra.mxu0 0.0
      %5274 = vmatprep.subr.mxu0 0.0
      %5275 = vmatpush1.msra.mxu0 0.0
      %5276 = vmatprep.subr.mxu0 0.0
      %5277 = vmatpush1.msra.mxu0 0.0
      %5278 = vmatprep.subr.mxu0 0.0
      %5279 = vmatpush1.msra.mxu0 0.0
      %5280 = vmatprep.subr.mxu0 0.0
      %5281 = vmatpush1.msra.mxu0 0.0
      %5282 = vmatprep.subr.mxu0 0.0
      %5283 = vmatpush1.msra.mxu0 0.0
      %5284 = vmatprep.subr.mxu0 0.0
      %5285 = vmatpush1.msra.mxu0 0.0
      %5286 = vmatprep.subr.mxu0 0.0
      %5287 = vmatpush1.msra.mxu0 0.0
      %5288 = vmatprep.mubr.f32.mxu0 0.0
      %5289 = vmatmul.mubr.f32.gmra.mrb[0].mxu0 %v5186
      %v5290 = vpop.f32.mrb[0].mxu0
      %v5291 = vadd.f32 0.0, %v5290
      %v5292 = vpop.f32.mrb[0].mxu0
      %5293 = vmatprep.mubr.f32.mxu0 0.0
      %5294 = vmatmul.mubr.f32.gmra.mrb[0].mxu0 %v5187
      %v5295 = vpop.f32.mrb[0].mxu0
      %v5296 = vadd.f32 0.0, %v5295
      %v5297 = vpop.f32.mrb[0].mxu0
      %5298 = vmatprep.mubr.f32.mxu0 0.0
      %5299 = vmatmul.mubr.f32.gmra.mrb[0].mxu0 %v5188
      %v5300 = vpop.f32.mrb[0].mxu0
      %v5301 = vadd.f32 0.0, %v5300
      %v5302 = vpop.f32.mrb[0].mxu0
      %5303 = vmatprep.mubr.f32.mxu0 0.0
      %5304 = vmatmul.mubr.f32.gmra.mrb[0].mxu0 %v5206
      %v5305 = vpop.f32.mrb[0].mxu0
      %v5306 = vadd.f32 0.0, %v5305
      %v5307 = vpop.f32.mrb[0].mxu0
      %5308 = vdwg.mxu0
      %v5314 = vrot.slane %v5185, 7
      %v5315 = vrot.slane %v5186, 7
      %v5316 = vsel %vm964, %v5314, %v5315
      %v5317 = vrot.slane %v5187, 7
      %v5318 = vsel %vm964, %v5315, %v5317
      %v5319 = vrot.slane %v5188, 7
      %v5320 = vsel %vm964, %v5317, %v5319
      %v5321 = vrot.slane %v5189, 7
      %v5322 = vsel %vm964, %v5319, %v5321
      %5327 = vmatprep.subr.mxu0 0.0
      %5328 = vmatpush1.msra.mxu0 %v5190
      %5329 = vmatprep.subr.mxu0 0.0
      %5330 = vmatpush1.msra.mxu0 %v5191
      %5331 = vmatprep.subr.mxu0 0.0
      %5332 = vmatpush1.msra.mxu0 %v5192
      %5333 = vmatprep.subr.mxu0 0.0
      %5334 = vmatpush1.msra.mxu0 %v5193
      %5335 = vmatprep.subr.mxu0 0.0
      %5336 = vmatpush1.msra.mxu0 %v5194
      %5337 = vmatprep.subr.mxu0 0.0
      %5338 = vmatpush1.msra.mxu0 %v5195
      %5339 = vmatprep.subr.mxu0 0.0
      %5340 = vmatpush1.msra.mxu0 %v5196
      %5341 = vmatprep.subr.mxu0 0.0
      %5342 = vmatpush1.msra.mxu0 %v5197
      %5343 = vmatprep.subr.mxu0 0.0
      %5344 = vmatpush1.msra.mxu0 %v5198
      %5345 = vmatprep.subr.mxu0 0.0
      %5346 = vmatpush1.msra.mxu0 %v5199
      %5347 = vmatprep.subr.mxu0 0.0
      %5348 = vmatpush1.msra.mxu0 %v5200
      %5349 = vmatprep.subr.mxu0 0.0
      %5350 = vmatpush1.msra.mxu0 %v5201
      %5351 = vmatprep.subr.mxu0 0.0
      %5352 = vmatpush1.msra.mxu0 %v5202
      %5353 = vmatprep.subr.mxu0 0.0
      %5354 = vmatpush1.msra.mxu0 %v5203
      %5355 = vmatprep.subr.mxu0 0.0
      %5356 = vmatpush1.msra.mxu0 %v5204
      %5357 = vmatprep.subr.mxu0 0.0
      %5358 = vmatpush1.msra.mxu0 %v5205
      %5359 = vmatprep.subr.mxu0 0.0
      %5360 = vmatpush1.msra.mxu0 0.0
      %5361 = vmatprep.subr.mxu0 0.0
      %5362 = vmatpush1.msra.mxu0 0.0
      %5363 = vmatprep.subr.mxu0 0.0
      %5364 = vmatpush1.msra.mxu0 0.0
      %5365 = vmatprep.subr.mxu0 0.0
      %5366 = vmatpush1.msra.mxu0 0.0
      %5367 = vmatprep.subr.mxu0 0.0
      %5368 = vmatpush1.msra.mxu0 0.0
      %5369 = vmatprep.subr.mxu0 0.0
      %5370 = vmatpush1.msra.mxu0 0.0
      %5371 = vmatprep.subr.mxu0 0.0
      %5372 = vmatpush1.msra.mxu0 0.0
      %5373 = vmatprep.subr.mxu0 0.0
      %5374 = vmatpush1.msra.mxu0 0.0
      %5375 = vmatprep.subr.mxu0 0.0
      %5376 = vmatpush1.msra.mxu0 0.0
      %5377 = vmatprep.subr.mxu0 0.0
      %5378 = vmatpush1.msra.mxu0 0.0
      %5379 = vmatprep.subr.mxu0 0.0
      %5380 = vmatpush1.msra.mxu0 0.0
      %5381 = vmatprep.subr.mxu0 0.0
      %5382 = vmatpush1.msra.mxu0 0.0
      %5383 = vmatprep.subr.mxu0 0.0
      %5384 = vmatpush1.msra.mxu0 0.0
      %5385 = vmatprep.subr.mxu0 0.0
      %5386 = vmatpush1.msra.mxu0 0.0
      %5387 = vmatprep.subr.mxu0 0.0
      %5388 = vmatpush1.msra.mxu0 0.0
      %5389 = vmatprep.subr.mxu0 0.0
      %5390 = vmatpush1.msra.mxu0 0.0
      %5391 = vmatprep.mubr.f32.mxu0 0.0
      %5392 = vmatmul.mubr.f32.gmra.mrb[0].mxu0 %v5316
      %v5393 = vpop.f32.mrb[0].mxu0
      %v5394 = vadd.f32 %v5291, %v5393
      %v5395 = vpop.f32.mrb[0].mxu0
      %5396 = vmatprep.mubr.f32.mxu0 0.0
      %5397 = vmatmul.mubr.f32.gmra.mrb[0].mxu0 %v5318
      %v5398 = vpop.f32.mrb[0].mxu0
      %v5399 = vadd.f32 %v5296, %v5398
      %v5400 = vpop.f32.mrb[0].mxu0
      %5401 = vmatprep.mubr.f32.mxu0 0.0
      %5402 = vmatmul.mubr.f32.gmra.mrb[0].mxu0 %v5320
      %v5403 = vpop.f32.mrb[0].mxu0
      %v5404 = vadd.f32 %v5301, %v5403
      %v5405 = vpop.f32.mrb[0].mxu0
      %5406 = vmatprep.mubr.f32.mxu0 0.0
      %5407 = vmatmul.mubr.f32.gmra.mrb[0].mxu0 %v5322
      %v5408 = vpop.f32.mrb[0].mxu0
      %v5409 = vadd.f32 %v5306, %v5408
      %v5410 = vpop.f32.mrb[0].mxu0
      %5411 = vdwg.mxu0
      %v5412 = vld [vmem:[#allocation2 + $0x10] sm:$0xfe]
      %v5413 = vld [vmem:[#allocation2 + $0x20] sm:$0xff]
      %v5414 = vld [vmem:[#allocation2 + $0x30] sm:$0xff]
      %v5415 = vld [vmem:[#allocation2 + $0x40] sm:$0xff]
      %v5416 = vld [vmem:[#allocation2 + $0x50] sm:$0x1]
      %s5417 = scalar_lea.vmem %s5, 256
      %v5418 = vld [vmem:[%s5417] sm:$0xff]
      %v5419 = vld [vmem:[%s5417 + $0x8] sm:$0xff]
      %v5420 = vld [vmem:[%s5417 + $0x10] sm:$0xff]
      %v5421 = vld [vmem:[%s5417 + $0x18] sm:$0xff]
      %v5422 = vld [vmem:[%s5417 + $0x20] sm:$0xff]
      %v5423 = vld [vmem:[%s5417 + $0x28] sm:$0xff]
      %v5424 = vld [vmem:[%s5417 + $0x30] sm:$0xff]
      %v5425 = vld [vmem:[%s5417 + $0x38] sm:$0xff]
      %v5426 = vld [vmem:[%s5417 + $0x40] sm:$0xff]
      %v5427 = vld [vmem:[%s5417 + $0x48] sm:$0xff]
      %v5428 = vld [vmem:[%s5417 + $0x50] sm:$0xff]
      %v5429 = vld [vmem:[%s5417 + $0x58] sm:$0xff]
      %v5430 = vld [vmem:[%s5417 + $0x60] sm:$0xff]
      %v5431 = vld [vmem:[%s5417 + $0x68] sm:$0xff]
      %v5432 = vld [vmem:[%s5417 + $0x70] sm:$0xff]
      %v5433 = vld [vmem:[%s5417 + $0x78] sm:$0xff]
      %v5439 = vrot.slane %v5412, 1
      %v5440 = vrot.slane %v5413, 1
      %v5441 = vsel %vm2512, %v5439, %v5440
      %v5442 = vrot.slane %v5414, 1
      %v5443 = vsel %vm2512, %v5440, %v5442
      %v5444 = vrot.slane %v5415, 1
      %v5445 = vsel %vm2512, %v5442, %v5444
      %v5446 = vrot.slane %v5416, 1
      %v5447 = vsel %vm2512, %v5444, %v5446
      %5452 = vmatprep.subr.mxu0 0.0
      %5453 = vmatpush1.msra.mxu0 %v5418
      %5454 = vmatprep.subr.mxu0 0.0
      %5455 = vmatpush1.msra.mxu0 %v5419
      %5456 = vmatprep.subr.mxu0 0.0
      %5457 = vmatpush1.msra.mxu0 %v5420
      %5458 = vmatprep.subr.mxu0 0.0
      %5459 = vmatpush1.msra.mxu0 %v5421
      %5460 = vmatprep.subr.mxu0 0.0
      %5461 = vmatpush1.msra.mxu0 %v5422
      %5462 = vmatprep.subr.mxu0 0.0
      %5463 = vmatpush1.msra.mxu0 %v5423
      %5464 = vmatprep.subr.mxu0 0.0
      %5465 = vmatpush1.msra.mxu0 %v5424
      %5466 = vmatprep.subr.mxu0 0.0
      %5467 = vmatpush1.msra.mxu0 %v5425
      %5468 = vmatprep.subr.mxu0 0.0
      %5469 = vmatpush1.msra.mxu0 %v5426
      %5470 = vmatprep.subr.mxu0 0.0
      %5471 = vmatpush1.msra.mxu0 %v5427
      %5472 = vmatprep.subr.mxu0 0.0
      %5473 = vmatpush1.msra.mxu0 %v5428
      %5474 = vmatprep.subr.mxu0 0.0
      %5475 = vmatpush1.msra.mxu0 %v5429
      %5476 = vmatprep.subr.mxu0 0.0
      %5477 = vmatpush1.msra.mxu0 %v5430
      %5478 = vmatprep.subr.mxu0 0.0
      %5479 = vmatpush1.msra.mxu0 %v5431
      %5480 = vmatprep.subr.mxu0 0.0
      %5481 = vmatpush1.msra.mxu0 %v5432
      %5482 = vmatprep.subr.mxu0 0.0
      %5483 = vmatpush1.msra.mxu0 %v5433
      %5484 = vmatprep.subr.mxu0 0.0
      %5485 = vmatpush1.msra.mxu0 0.0
      %5486 = vmatprep.subr.mxu0 0.0
      %5487 = vmatpush1.msra.mxu0 0.0
      %5488 = vmatprep.subr.mxu0 0.0
      %5489 = vmatpush1.msra.mxu0 0.0
      %5490 = vmatprep.subr.mxu0 0.0
      %5491 = vmatpush1.msra.mxu0 0.0
      %5492 = vmatprep.subr.mxu0 0.0
      %5493 = vmatpush1.msra.mxu0 0.0
      %5494 = vmatprep.subr.mxu0 0.0
      %5495 = vmatpush1.msra.mxu0 0.0
      %5496 = vmatprep.subr.mxu0 0.0
      %5497 = vmatpush1.msra.mxu0 0.0
      %5498 = vmatprep.subr.mxu0 0.0
      %5499 = vmatpush1.msra.mxu0 0.0
      %5500 = vmatprep.subr.mxu0 0.0
      %5501 = vmatpush1.msra.mxu0 0.0
      %5502 = vmatprep.subr.mxu0 0.0
      %5503 = vmatpush1.msra.mxu0 0.0
      %5504 = vmatprep.subr.mxu0 0.0
      %5505 = vmatpush1.msra.mxu0 0.0
      %5506 = vmatprep.subr.mxu0 0.0
      %5507 = vmatpush1.msra.mxu0 0.0
      %5508 = vmatprep.subr.mxu0 0.0
      %5509 = vmatpush1.msra.mxu0 0.0
      %5510 = vmatprep.subr.mxu0 0.0
      %5511 = vmatpush1.msra.mxu0 0.0
      %5512 = vmatprep.subr.mxu0 0.0
      %5513 = vmatpush1.msra.mxu0 0.0
      %5514 = vmatprep.subr.mxu0 0.0
      %5515 = vmatpush1.msra.mxu0 0.0
      %5516 = vmatprep.mubr.f32.mxu0 0.0
      %5517 = vmatmul.mubr.f32.gmra.mrb[0].mxu0 %v5441
      %v5518 = vpop.f32.mrb[0].mxu0
      %v5519 = vadd.f32 0.0, %v5518
      %v5520 = vpop.f32.mrb[0].mxu0
      %5521 = vmatprep.mubr.f32.mxu0 0.0
      %5522 = vmatmul.mubr.f32.gmra.mrb[0].mxu0 %v5443
      %v5523 = vpop.f32.mrb[0].mxu0
      %v5524 = vadd.f32 0.0, %v5523
      %v5525 = vpop.f32.mrb[0].mxu0
      %5526 = vmatprep.mubr.f32.mxu0 0.0
      %5527 = vmatmul.mubr.f32.gmra.mrb[0].mxu0 %v5445
      %v5528 = vpop.f32.mrb[0].mxu0
      %v5529 = vadd.f32 0.0, %v5528
      %v5530 = vpop.f32.mrb[0].mxu0
      %5531 = vmatprep.mubr.f32.mxu0 0.0
      %5532 = vmatmul.mubr.f32.gmra.mrb[0].mxu0 %v5447
      %v5533 = vpop.f32.mrb[0].mxu0
      %v5534 = vadd.f32 0.0, %v5533
      %v5535 = vpop.f32.mrb[0].mxu0
      %5536 = vdwg.mxu0
      %v5537 = vadd.f32 %v5394, %v5519
      %v5538 = vadd.f32 %v5399, %v5524
      %v5539 = vadd.f32 %v5404, %v5529
      %v5540 = vadd.f32 %v5409, %v5534
      %v5541 = vld [vmem:[%s2 + $0x15] ss:$0 sm:$0xff]
      %v5542 = vadd.f32 %v5537, %v5541
      %v5543 = vadd.f32 %v5538, %v5541
      %v5544 = vadd.f32 %v5539, %v5541
      %v5545 = vadd.f32 %v5540, %v5541
      %v5546 = vmax.f32 %v5542, 0.0
      %v5547 = vmax.f32 %v5543, 0.0
      %v5548 = vmax.f32 %v5544, 0.0
      %v5549 = vmax.f32 %v5545, 0.0
      %5550 = vst [vmem:[#allocation2 + $0x10] sm:$0xff] %v5546
      %5551 = vst [vmem:[#allocation2 + $0x20] sm:$0xff] %v5547
      %5552 = vst [vmem:[#allocation2 + $0x30] sm:$0xff] %v5548
      %5553 = vst [vmem:[#allocation2 + $0x40] sm:$0xff] %v5549
      %v5554 = vld [vmem:[#allocation2] sm:$0x80]
      %v5555 = vld [vmem:[#allocation2 + $0x10] sm:$0xff]
      %v5556 = vld [vmem:[#allocation2 + $0x20] sm:$0xff]
      %v5557 = vld [vmem:[#allocation2 + $0x30] sm:$0xff]
      %v5558 = vld [vmem:[#allocation2 + $0x40] sm:$0x7f]
      %s5559 = scalar_lea.vmem %s5, 384
      %v5560 = vld [vmem:[%s5559] sm:$0xff]
      %v5561 = vld [vmem:[%s5559 + $0x8] sm:$0xff]
      %v5562 = vld [vmem:[%s5559 + $0x10] sm:$0xff]
      %v5563 = vld [vmem:[%s5559 + $0x18] sm:$0xff]
      %v5564 = vld [vmem:[%s5559 + $0x20] sm:$0xff]
      %v5565 = vld [vmem:[%s5559 + $0x28] sm:$0xff]
      %v5566 = vld [vmem:[%s5559 + $0x30] sm:$0xff]
      %v5567 = vld [vmem:[%s5559 + $0x38] sm:$0xff]
      %v5568 = vld [vmem:[%s5559 + $0x40] sm:$0xff]
      %v5569 = vld [vmem:[%s5559 + $0x48] sm:$0xff]
      %v5570 = vld [vmem:[%s5559 + $0x50] sm:$0xff]
      %v5571 = vld [vmem:[%s5559 + $0x58] sm:$0xff]
      %v5572 = vld [vmem:[%s5559 + $0x60] sm:$0xff]
      %v5573 = vld [vmem:[%s5559 + $0x68] sm:$0xff]
      %v5574 = vld [vmem:[%s5559 + $0x70] sm:$0xff]
      %v5575 = vld [vmem:[%s5559 + $0x78] sm:$0xff]
      %v5576 = vld [vmem:[#allocation2 + $0x40] sm:$0xff]
      %s5577 = scalar_lea.vmem %s5, 512
      %v5578 = vld [vmem:[%s5577] sm:$0xff]
      %v5579 = vld [vmem:[%s5577 + $0x8] sm:$0xff]
      %v5580 = vld [vmem:[%s5577 + $0x10] sm:$0xff]
      %v5581 = vld [vmem:[%s5577 + $0x18] sm:$0xff]
      %v5582 = vld [vmem:[%s5577 + $0x20] sm:$0xff]
      %v5583 = vld [vmem:[%s5577 + $0x28] sm:$0xff]
      %v5584 = vld [vmem:[%s5577 + $0x30] sm:$0xff]
      %v5585 = vld [vmem:[%s5577 + $0x38] sm:$0xff]
      %v5586 = vld [vmem:[%s5577 + $0x40] sm:$0xff]
      %v5587 = vld [vmem:[%s5577 + $0x48] sm:$0xff]
      %v5588 = vld [vmem:[%s5577 + $0x50] sm:$0xff]
      %v5589 = vld [vmem:[%s5577 + $0x58] sm:$0xff]
      %v5590 = vld [vmem:[%s5577 + $0x60] sm:$0xff]
      %v5591 = vld [vmem:[%s5577 + $0x68] sm:$0xff]
      %v5592 = vld [vmem:[%s5577 + $0x70] sm:$0xff]
      %v5593 = vld [vmem:[%s5577 + $0x78] sm:$0xff]
      %5594 = vmatprep.subr.mxu0 0.0
      %5595 = vmatpush1.msra.mxu0 %v5578
      %5596 = vmatprep.subr.mxu0 0.0
      %5597 = vmatpush1.msra.mxu0 %v5579
      %5598 = vmatprep.subr.mxu0 0.0
      %5599 = vmatpush1.msra.mxu0 %v5580
      %5600 = vmatprep.subr.mxu0 0.0
      %5601 = vmatpush1.msra.mxu0 %v5581
      %5602 = vmatprep.subr.mxu0 0.0
      %5603 = vmatpush1.msra.mxu0 %v5582
      %5604 = vmatprep.subr.mxu0 0.0
      %5605 = vmatpush1.msra.mxu0 %v5583
      %5606 = vmatprep.subr.mxu0 0.0
      %5607 = vmatpush1.msra.mxu0 %v5584
      %5608 = vmatprep.subr.mxu0 0.0
      %5609 = vmatpush1.msra.mxu0 %v5585
      %5610 = vmatprep.subr.mxu0 0.0
      %5611 = vmatpush1.msra.mxu0 %v5586
      %5612 = vmatprep.subr.mxu0 0.0
      %5613 = vmatpush1.msra.mxu0 %v5587
      %5614 = vmatprep.subr.mxu0 0.0
      %5615 = vmatpush1.msra.mxu0 %v5588
      %5616 = vmatprep.subr.mxu0 0.0
      %5617 = vmatpush1.msra.mxu0 %v5589
      %5618 = vmatprep.subr.mxu0 0.0
      %5619 = vmatpush1.msra.mxu0 %v5590
      %5620 = vmatprep.subr.mxu0 0.0
      %5621 = vmatpush1.msra.mxu0 %v5591
      %5622 = vmatprep.subr.mxu0 0.0
      %5623 = vmatpush1.msra.mxu0 %v5592
      %5624 = vmatprep.subr.mxu0 0.0
      %5625 = vmatpush1.msra.mxu0 %v5593
      %5626 = vmatprep.subr.mxu0 0.0
      %5627 = vmatpush1.msra.mxu0 0.0
      %5628 = vmatprep.subr.mxu0 0.0
      %5629 = vmatpush1.msra.mxu0 0.0
      %5630 = vmatprep.subr.mxu0 0.0
      %5631 = vmatpush1.msra.mxu0 0.0
      %5632 = vmatprep.subr.mxu0 0.0
      %5633 = vmatpush1.msra.mxu0 0.0
      %5634 = vmatprep.subr.mxu0 0.0
      %5635 = vmatpush1.msra.mxu0 0.0
      %5636 = vmatprep.subr.mxu0 0.0
      %5637 = vmatpush1.msra.mxu0 0.0
      %5638 = vmatprep.subr.mxu0 0.0
      %5639 = vmatpush1.msra.mxu0 0.0
      %5640 = vmatprep.subr.mxu0 0.0
      %5641 = vmatpush1.msra.mxu0 0.0
      %5642 = vmatprep.subr.mxu0 0.0
      %5643 = vmatpush1.msra.mxu0 0.0
      %5644 = vmatprep.subr.mxu0 0.0
      %5645 = vmatpush1.msra.mxu0 0.0
      %5646 = vmatprep.subr.mxu0 0.0
      %5647 = vmatpush1.msra.mxu0 0.0
      %5648 = vmatprep.subr.mxu0 0.0
      %5649 = vmatpush1.msra.mxu0 0.0
      %5650 = vmatprep.subr.mxu0 0.0
      %5651 = vmatpush1.msra.mxu0 0.0
      %5652 = vmatprep.subr.mxu0 0.0
      %5653 = vmatpush1.msra.mxu0 0.0
      %5654 = vmatprep.subr.mxu0 0.0
      %5655 = vmatpush1.msra.mxu0 0.0
      %5656 = vmatprep.subr.mxu0 0.0
      %5657 = vmatpush1.msra.mxu0 0.0
      %5658 = vmatprep.mubr.f32.mxu0 0.0
      %5659 = vmatmul.mubr.f32.gmra.mrb[0].mxu0 %v5555
      %v5660 = vpop.f32.mrb[0].mxu0
      %v5661 = vadd.f32 0.0, %v5660
      %v5662 = vpop.f32.mrb[0].mxu0
      %5663 = vmatprep.mubr.f32.mxu0 0.0
      %5664 = vmatmul.mubr.f32.gmra.mrb[0].mxu0 %v5556
      %v5665 = vpop.f32.mrb[0].mxu0
      %v5666 = vadd.f32 0.0, %v5665
      %v5667 = vpop.f32.mrb[0].mxu0
      %5668 = vmatprep.mubr.f32.mxu0 0.0
      %5669 = vmatmul.mubr.f32.gmra.mrb[0].mxu0 %v5557
      %v5670 = vpop.f32.mrb[0].mxu0
      %v5671 = vadd.f32 0.0, %v5670
      %v5672 = vpop.f32.mrb[0].mxu0
      %5673 = vmatprep.mubr.f32.mxu0 0.0
      %5674 = vmatmul.mubr.f32.gmra.mrb[0].mxu0 %v5576
      %v5675 = vpop.f32.mrb[0].mxu0
      %v5676 = vadd.f32 0.0, %v5675
      %v5677 = vpop.f32.mrb[0].mxu0
      %5678 = vdwg.mxu0
      %v5684 = vrot.slane %v5554, 7
      %v5685 = vrot.slane %v5555, 7
      %v5686 = vsel %vm964, %v5684, %v5685
      %v5687 = vrot.slane %v5556, 7
      %v5688 = vsel %vm964, %v5685, %v5687
      %v5689 = vrot.slane %v5557, 7
      %v5690 = vsel %vm964, %v5687, %v5689
      %v5691 = vrot.slane %v5558, 7
      %v5692 = vsel %vm964, %v5689, %v5691
      %5697 = vmatprep.subr.mxu0 0.0
      %5698 = vmatpush1.msra.mxu0 %v5560
      %5699 = vmatprep.subr.mxu0 0.0
      %5700 = vmatpush1.msra.mxu0 %v5561
      %5701 = vmatprep.subr.mxu0 0.0
      %5702 = vmatpush1.msra.mxu0 %v5562
      %5703 = vmatprep.subr.mxu0 0.0
      %5704 = vmatpush1.msra.mxu0 %v5563
      %5705 = vmatprep.subr.mxu0 0.0
      %5706 = vmatpush1.msra.mxu0 %v5564
      %5707 = vmatprep.subr.mxu0 0.0
      %5708 = vmatpush1.msra.mxu0 %v5565
      %5709 = vmatprep.subr.mxu0 0.0
      %5710 = vmatpush1.msra.mxu0 %v5566
      %5711 = vmatprep.subr.mxu0 0.0
      %5712 = vmatpush1.msra.mxu0 %v5567
      %5713 = vmatprep.subr.mxu0 0.0
      %5714 = vmatpush1.msra.mxu0 %v5568
      %5715 = vmatprep.subr.mxu0 0.0
      %5716 = vmatpush1.msra.mxu0 %v5569
      %5717 = vmatprep.subr.mxu0 0.0
      %5718 = vmatpush1.msra.mxu0 %v5570
      %5719 = vmatprep.subr.mxu0 0.0
      %5720 = vmatpush1.msra.mxu0 %v5571
      %5721 = vmatprep.subr.mxu0 0.0
      %5722 = vmatpush1.msra.mxu0 %v5572
      %5723 = vmatprep.subr.mxu0 0.0
      %5724 = vmatpush1.msra.mxu0 %v5573
      %5725 = vmatprep.subr.mxu0 0.0
      %5726 = vmatpush1.msra.mxu0 %v5574
      %5727 = vmatprep.subr.mxu0 0.0
      %5728 = vmatpush1.msra.mxu0 %v5575
      %5729 = vmatprep.subr.mxu0 0.0
      %5730 = vmatpush1.msra.mxu0 0.0
      %5731 = vmatprep.subr.mxu0 0.0
      %5732 = vmatpush1.msra.mxu0 0.0
      %5733 = vmatprep.subr.mxu0 0.0
      %5734 = vmatpush1.msra.mxu0 0.0
      %5735 = vmatprep.subr.mxu0 0.0
      %5736 = vmatpush1.msra.mxu0 0.0
      %5737 = vmatprep.subr.mxu0 0.0
      %5738 = vmatpush1.msra.mxu0 0.0
      %5739 = vmatprep.subr.mxu0 0.0
      %5740 = vmatpush1.msra.mxu0 0.0
      %5741 = vmatprep.subr.mxu0 0.0
      %5742 = vmatpush1.msra.mxu0 0.0
      %5743 = vmatprep.subr.mxu0 0.0
      %5744 = vmatpush1.msra.mxu0 0.0
      %5745 = vmatprep.subr.mxu0 0.0
      %5746 = vmatpush1.msra.mxu0 0.0
      %5747 = vmatprep.subr.mxu0 0.0
      %5748 = vmatpush1.msra.mxu0 0.0
      %5749 = vmatprep.subr.mxu0 0.0
      %5750 = vmatpush1.msra.mxu0 0.0
      %5751 = vmatprep.subr.mxu0 0.0
      %5752 = vmatpush1.msra.mxu0 0.0
      %5753 = vmatprep.subr.mxu0 0.0
      %5754 = vmatpush1.msra.mxu0 0.0
      %5755 = vmatprep.subr.mxu0 0.0
      %5756 = vmatpush1.msra.mxu0 0.0
      %5757 = vmatprep.subr.mxu0 0.0
      %5758 = vmatpush1.msra.mxu0 0.0
      %5759 = vmatprep.subr.mxu0 0.0
      %5760 = vmatpush1.msra.mxu0 0.0
      %5761 = vmatprep.mubr.f32.mxu0 0.0
      %5762 = vmatmul.mubr.f32.gmra.mrb[0].mxu0 %v5686
      %v5763 = vpop.f32.mrb[0].mxu0
      %v5764 = vadd.f32 %v5661, %v5763
      %v5765 = vpop.f32.mrb[0].mxu0
      %5766 = vmatprep.mubr.f32.mxu0 0.0
      %5767 = vmatmul.mubr.f32.gmra.mrb[0].mxu0 %v5688
      %v5768 = vpop.f32.mrb[0].mxu0
      %v5769 = vadd.f32 %v5666, %v5768
      %v5770 = vpop.f32.mrb[0].mxu0
      %5771 = vmatprep.mubr.f32.mxu0 0.0
      %5772 = vmatmul.mubr.f32.gmra.mrb[0].mxu0 %v5690
      %v5773 = vpop.f32.mrb[0].mxu0
      %v5774 = vadd.f32 %v5671, %v5773
      %v5775 = vpop.f32.mrb[0].mxu0
      %5776 = vmatprep.mubr.f32.mxu0 0.0
      %5777 = vmatmul.mubr.f32.gmra.mrb[0].mxu0 %v5692
      %v5778 = vpop.f32.mrb[0].mxu0
      %v5779 = vadd.f32 %v5676, %v5778
      %v5780 = vpop.f32.mrb[0].mxu0
      %5781 = vdwg.mxu0
      %v5782 = vld [vmem:[#allocation2 + $0x10] sm:$0xfe]
      %v5783 = vld [vmem:[#allocation2 + $0x20] sm:$0xff]
      %v5784 = vld [vmem:[#allocation2 + $0x30] sm:$0xff]
      %v5785 = vld [vmem:[#allocation2 + $0x40] sm:$0xff]
      %v5786 = vld [vmem:[#allocation2 + $0x50] sm:$0x1]
      %s5787 = scalar_lea.vmem %s5, 640
      %v5788 = vld [vmem:[%s5787] sm:$0xff]
      %v5789 = vld [vmem:[%s5787 + $0x8] sm:$0xff]
      %v5790 = vld [vmem:[%s5787 + $0x10] sm:$0xff]
      %v5791 = vld [vmem:[%s5787 + $0x18] sm:$0xff]
      %v5792 = vld [vmem:[%s5787 + $0x20] sm:$0xff]
      %v5793 = vld [vmem:[%s5787 + $0x28] sm:$0xff]
      %v5794 = vld [vmem:[%s5787 + $0x30] sm:$0xff]
      %v5795 = vld [vmem:[%s5787 + $0x38] sm:$0xff]
      %v5796 = vld [vmem:[%s5787 + $0x40] sm:$0xff]
      %v5797 = vld [vmem:[%s5787 + $0x48] sm:$0xff]
      %v5798 = vld [vmem:[%s5787 + $0x50] sm:$0xff]
      %v5799 = vld [vmem:[%s5787 + $0x58] sm:$0xff]
      %v5800 = vld [vmem:[%s5787 + $0x60] sm:$0xff]
      %v5801 = vld [vmem:[%s5787 + $0x68] sm:$0xff]
      %v5802 = vld [vmem:[%s5787 + $0x70] sm:$0xff]
      %v5803 = vld [vmem:[%s5787 + $0x78] sm:$0xff]
      %v5809 = vrot.slane %v5782, 1
      %v5810 = vrot.slane %v5783, 1
      %v5811 = vsel %vm2512, %v5809, %v5810
      %v5812 = vrot.slane %v5784, 1
      %v5813 = vsel %vm2512, %v5810, %v5812
      %v5814 = vrot.slane %v5785, 1
      %v5815 = vsel %vm2512, %v5812, %v5814
      %v5816 = vrot.slane %v5786, 1
      %v5817 = vsel %vm2512, %v5814, %v5816
      %5822 = vmatprep.subr.mxu0 0.0
      %5823 = vmatpush1.msra.mxu0 %v5788
      %5824 = vmatprep.subr.mxu0 0.0
      %5825 = vmatpush1.msra.mxu0 %v5789
      %5826 = vmatprep.subr.mxu0 0.0
      %5827 = vmatpush1.msra.mxu0 %v5790
      %5828 = vmatprep.subr.mxu0 0.0
      %5829 = vmatpush1.msra.mxu0 %v5791
      %5830 = vmatprep.subr.mxu0 0.0
      %5831 = vmatpush1.msra.mxu0 %v5792
      %5832 = vmatprep.subr.mxu0 0.0
      %5833 = vmatpush1.msra.mxu0 %v5793
      %5834 = vmatprep.subr.mxu0 0.0
      %5835 = vmatpush1.msra.mxu0 %v5794
      %5836 = vmatprep.subr.mxu0 0.0
      %5837 = vmatpush1.msra.mxu0 %v5795
      %5838 = vmatprep.subr.mxu0 0.0
      %5839 = vmatpush1.msra.mxu0 %v5796
      %5840 = vmatprep.subr.mxu0 0.0
      %5841 = vmatpush1.msra.mxu0 %v5797
      %5842 = vmatprep.subr.mxu0 0.0
      %5843 = vmatpush1.msra.mxu0 %v5798
      %5844 = vmatprep.subr.mxu0 0.0
      %5845 = vmatpush1.msra.mxu0 %v5799
      %5846 = vmatprep.subr.mxu0 0.0
      %5847 = vmatpush1.msra.mxu0 %v5800
      %5848 = vmatprep.subr.mxu0 0.0
      %5849 = vmatpush1.msra.mxu0 %v5801
      %5850 = vmatprep.subr.mxu0 0.0
      %5851 = vmatpush1.msra.mxu0 %v5802
      %5852 = vmatprep.subr.mxu0 0.0
      %5853 = vmatpush1.msra.mxu0 %v5803
      %5854 = vmatprep.subr.mxu0 0.0
      %5855 = vmatpush1.msra.mxu0 0.0
      %5856 = vmatprep.subr.mxu0 0.0
      %5857 = vmatpush1.msra.mxu0 0.0
      %5858 = vmatprep.subr.mxu0 0.0
      %5859 = vmatpush1.msra.mxu0 0.0
      %5860 = vmatprep.subr.mxu0 0.0
      %5861 = vmatpush1.msra.mxu0 0.0
      %5862 = vmatprep.subr.mxu0 0.0
      %5863 = vmatpush1.msra.mxu0 0.0
      %5864 = vmatprep.subr.mxu0 0.0
      %5865 = vmatpush1.msra.mxu0 0.0
      %5866 = vmatprep.subr.mxu0 0.0
      %5867 = vmatpush1.msra.mxu0 0.0
      %5868 = vmatprep.subr.mxu0 0.0
      %5869 = vmatpush1.msra.mxu0 0.0
      %5870 = vmatprep.subr.mxu0 0.0
      %5871 = vmatpush1.msra.mxu0 0.0
      %5872 = vmatprep.subr.mxu0 0.0
      %5873 = vmatpush1.msra.mxu0 0.0
      %5874 = vmatprep.subr.mxu0 0.0
      %5875 = vmatpush1.msra.mxu0 0.0
      %5876 = vmatprep.subr.mxu0 0.0
      %5877 = vmatpush1.msra.mxu0 0.0
      %5878 = vmatprep.subr.mxu0 0.0
      %5879 = vmatpush1.msra.mxu0 0.0
      %5880 = vmatprep.subr.mxu0 0.0
      %5881 = vmatpush1.msra.mxu0 0.0
      %5882 = vmatprep.subr.mxu0 0.0
      %5883 = vmatpush1.msra.mxu0 0.0
      %5884 = vmatprep.subr.mxu0 0.0
      %5885 = vmatpush1.msra.mxu0 0.0
      %5886 = vmatprep.mubr.f32.mxu0 0.0
      %5887 = vmatmul.mubr.f32.gmra.mrb[0].mxu0 %v5811
      %v5888 = vpop.f32.mrb[0].mxu0
      %v5889 = vadd.f32 0.0, %v5888
      %v5890 = vpop.f32.mrb[0].mxu0
      %5891 = vmatprep.mubr.f32.mxu0 0.0
      %5892 = vmatmul.mubr.f32.gmra.mrb[0].mxu0 %v5813
      %v5893 = vpop.f32.mrb[0].mxu0
      %v5894 = vadd.f32 0.0, %v5893
      %v5895 = vpop.f32.mrb[0].mxu0
      %5896 = vmatprep.mubr.f32.mxu0 0.0
      %5897 = vmatmul.mubr.f32.gmra.mrb[0].mxu0 %v5815
      %v5898 = vpop.f32.mrb[0].mxu0
      %v5899 = vadd.f32 0.0, %v5898
      %v5900 = vpop.f32.mrb[0].mxu0
      %5901 = vmatprep.mubr.f32.mxu0 0.0
      %5902 = vmatmul.mubr.f32.gmra.mrb[0].mxu0 %v5817
      %v5903 = vpop.f32.mrb[0].mxu0
      %v5904 = vadd.f32 0.0, %v5903
      %v5905 = vpop.f32.mrb[0].mxu0
      %5906 = vdwg.mxu0
      %v5907 = vadd.f32 %v5764, %v5889
      %v5908 = vadd.f32 %v5769, %v5894
      %v5909 = vadd.f32 %v5774, %v5899
      %v5910 = vadd.f32 %v5779, %v5904
      %v5911 = vld [vmem:[%s2 + $0x16] ss:$0 sm:$0xff]
      %v5912 = vadd.f32 %v5907, %v5911
      %v5913 = vadd.f32 %v5908, %v5911
      %v5914 = vadd.f32 %v5909, %v5911
      %v5915 = vadd.f32 %v5910, %v5911
      %v5916 = vadd.f32 %v5912, %v5163
      %v5917 = vadd.f32 %v5913, %v5168
      %v5918 = vadd.f32 %v5914, %v5173
      %v5919 = vadd.f32 %v5915, %v5178
      %v5920 = vmax.f32 %v5916, 0.0
      %v5921 = vmax.f32 %v5917, 0.0
      %v5922 = vmax.f32 %v5918, 0.0
      %v5923 = vmax.f32 %v5919, 0.0
      %5924 = vst [vmem:[#allocation2 + $0x10] sm:$0xff] %v5920
      %5925 = vst [vmem:[#allocation2 + $0x20] sm:$0xff] %v5921
      %5926 = vst [vmem:[#allocation2 + $0x30] sm:$0xff] %v5922
      %5927 = vst [vmem:[#allocation2 + $0x40] sm:$0xff] %v5923
      %v5928 = vld [vmem:[#allocation2] sm:$0x80]
      %v5929 = vld [vmem:[#allocation2 + $0x10] sm:$0xff]
      %v5930 = vld [vmem:[#allocation2 + $0x20] sm:$0xff]
      %v5931 = vld [vmem:[#allocation2 + $0x30] sm:$0xff]
      %v5932 = vld [vmem:[#allocation2 + $0x40] sm:$0x7f]
      %s5933 = scalar_lea.vmem %s5, 768
      %v5934 = vld [vmem:[%s5933] sm:$0xff]
      %v5935 = vld [vmem:[%s5933 + $0x8] sm:$0xff]
      %v5936 = vld [vmem:[%s5933 + $0x10] sm:$0xff]
      %v5937 = vld [vmem:[%s5933 + $0x18] sm:$0xff]
      %v5938 = vld [vmem:[%s5933 + $0x20] sm:$0xff]
      %v5939 = vld [vmem:[%s5933 + $0x28] sm:$0xff]
      %v5940 = vld [vmem:[%s5933 + $0x30] sm:$0xff]
      %v5941 = vld [vmem:[%s5933 + $0x38] sm:$0xff]
      %v5942 = vld [vmem:[%s5933 + $0x40] sm:$0xff]
      %v5943 = vld [vmem:[%s5933 + $0x48] sm:$0xff]
      %v5944 = vld [vmem:[%s5933 + $0x50] sm:$0xff]
      %v5945 = vld [vmem:[%s5933 + $0x58] sm:$0xff]
      %v5946 = vld [vmem:[%s5933 + $0x60] sm:$0xff]
      %v5947 = vld [vmem:[%s5933 + $0x68] sm:$0xff]
      %v5948 = vld [vmem:[%s5933 + $0x70] sm:$0xff]
      %v5949 = vld [vmem:[%s5933 + $0x78] sm:$0xff]
      %v5950 = vld [vmem:[#allocation2 + $0x40] sm:$0xff]
      %s5951 = scalar_lea.vmem %s5, 896
      %v5952 = vld [vmem:[%s5951] sm:$0xff]
      %v5953 = vld [vmem:[%s5951 + $0x8] sm:$0xff]
      %v5954 = vld [vmem:[%s5951 + $0x10] sm:$0xff]
      %v5955 = vld [vmem:[%s5951 + $0x18] sm:$0xff]
      %v5956 = vld [vmem:[%s5951 + $0x20] sm:$0xff]
      %v5957 = vld [vmem:[%s5951 + $0x28] sm:$0xff]
      %v5958 = vld [vmem:[%s5951 + $0x30] sm:$0xff]
      %v5959 = vld [vmem:[%s5951 + $0x38] sm:$0xff]
      %v5960 = vld [vmem:[%s5951 + $0x40] sm:$0xff]
      %v5961 = vld [vmem:[%s5951 + $0x48] sm:$0xff]
      %v5962 = vld [vmem:[%s5951 + $0x50] sm:$0xff]
      %v5963 = vld [vmem:[%s5951 + $0x58] sm:$0xff]
      %v5964 = vld [vmem:[%s5951 + $0x60] sm:$0xff]
      %v5965 = vld [vmem:[%s5951 + $0x68] sm:$0xff]
      %v5966 = vld [vmem:[%s5951 + $0x70] sm:$0xff]
      %v5967 = vld [vmem:[%s5951 + $0x78] sm:$0xff]
      %5968 = vmatprep.subr.mxu0 0.0
      %5969 = vmatpush1.msra.mxu0 %v5952
      %5970 = vmatprep.subr.mxu0 0.0
      %5971 = vmatpush1.msra.mxu0 %v5953
      %5972 = vmatprep.subr.mxu0 0.0
      %5973 = vmatpush1.msra.mxu0 %v5954
      %5974 = vmatprep.subr.mxu0 0.0
      %5975 = vmatpush1.msra.mxu0 %v5955
      %5976 = vmatprep.subr.mxu0 0.0
      %5977 = vmatpush1.msra.mxu0 %v5956
      %5978 = vmatprep.subr.mxu0 0.0
      %5979 = vmatpush1.msra.mxu0 %v5957
      %5980 = vmatprep.subr.mxu0 0.0
      %5981 = vmatpush1.msra.mxu0 %v5958
      %5982 = vmatprep.subr.mxu0 0.0
      %5983 = vmatpush1.msra.mxu0 %v5959
      %5984 = vmatprep.subr.mxu0 0.0
      %5985 = vmatpush1.msra.mxu0 %v5960
      %5986 = vmatprep.subr.mxu0 0.0
      %5987 = vmatpush1.msra.mxu0 %v5961
      %5988 = vmatprep.subr.mxu0 0.0
      %5989 = vmatpush1.msra.mxu0 %v5962
      %5990 = vmatprep.subr.mxu0 0.0
      %5991 = vmatpush1.msra.mxu0 %v5963
      %5992 = vmatprep.subr.mxu0 0.0
      %5993 = vmatpush1.msra.mxu0 %v5964
      %5994 = vmatprep.subr.mxu0 0.0
      %5995 = vmatpush1.msra.mxu0 %v5965
      %5996 = vmatprep.subr.mxu0 0.0
      %5997 = vmatpush1.msra.mxu0 %v5966
      %5998 = vmatprep.subr.mxu0 0.0
      %5999 = vmatpush1.msra.mxu0 %v5967
      %6000 = vmatprep.subr.mxu0 0.0
      %6001 = vmatpush1.msra.mxu0 0.0
      %6002 = vmatprep.subr.mxu0 0.0
      %6003 = vmatpush1.msra.mxu0 0.0
      %6004 = vmatprep.subr.mxu0 0.0
      %6005 = vmatpush1.msra.mxu0 0.0
      %6006 = vmatprep.subr.mxu0 0.0
      %6007 = vmatpush1.msra.mxu0 0.0
      %6008 = vmatprep.subr.mxu0 0.0
      %6009 = vmatpush1.msra.mxu0 0.0
      %6010 = vmatprep.subr.mxu0 0.0
      %6011 = vmatpush1.msra.mxu0 0.0
      %6012 = vmatprep.subr.mxu0 0.0
      %6013 = vmatpush1.msra.mxu0 0.0
      %6014 = vmatprep.subr.mxu0 0.0
      %6015 = vmatpush1.msra.mxu0 0.0
      %6016 = vmatprep.subr.mxu0 0.0
      %6017 = vmatpush1.msra.mxu0 0.0
      %6018 = vmatprep.subr.mxu0 0.0
      %6019 = vmatpush1.msra.mxu0 0.0
      %6020 = vmatprep.subr.mxu0 0.0
      %6021 = vmatpush1.msra.mxu0 0.0
      %6022 = vmatprep.subr.mxu0 0.0
      %6023 = vmatpush1.msra.mxu0 0.0
      %6024 = vmatprep.subr.mxu0 0.0
      %6025 = vmatpush1.msra.mxu0 0.0
      %6026 = vmatprep.subr.mxu0 0.0
      %6027 = vmatpush1.msra.mxu0 0.0
      %6028 = vmatprep.subr.mxu0 0.0
      %6029 = vmatpush1.msra.mxu0 0.0
      %6030 = vmatprep.subr.mxu0 0.0
      %6031 = vmatpush1.msra.mxu0 0.0
      %6032 = vmatprep.mubr.f32.mxu0 0.0
      %6033 = vmatmul.mubr.f32.gmra.mrb[0].mxu0 %v5929
      %v6034 = vpop.f32.mrb[0].mxu0
      %v6035 = vadd.f32 0.0, %v6034
      %v6036 = vpop.f32.mrb[0].mxu0
      %6037 = vmatprep.mubr.f32.mxu0 0.0
      %6038 = vmatmul.mubr.f32.gmra.mrb[0].mxu0 %v5930
      %v6039 = vpop.f32.mrb[0].mxu0
      %v6040 = vadd.f32 0.0, %v6039
      %v6041 = vpop.f32.mrb[0].mxu0
      %6042 = vmatprep.mubr.f32.mxu0 0.0
      %6043 = vmatmul.mubr.f32.gmra.mrb[0].mxu0 %v5931
      %v6044 = vpop.f32.mrb[0].mxu0
      %v6045 = vadd.f32 0.0, %v6044
      %v6046 = vpop.f32.mrb[0].mxu0
      %6047 = vmatprep.mubr.f32.mxu0 0.0
      %6048 = vmatmul.mubr.f32.gmra.mrb[0].mxu0 %v5950
      %v6049 = vpop.f32.mrb[0].mxu0
      %v6050 = vadd.f32 0.0, %v6049
      %v6051 = vpop.f32.mrb[0].mxu0
      %6052 = vdwg.mxu0
      %v6058 = vrot.slane %v5928, 7
      %v6059 = vrot.slane %v5929, 7
      %v6060 = vsel %vm964, %v6058, %v6059
      %v6061 = vrot.slane %v5930, 7
      %v6062 = vsel %vm964, %v6059, %v6061
      %v6063 = vrot.slane %v5931, 7
      %v6064 = vsel %vm964, %v6061, %v6063
      %v6065 = vrot.slane %v5932, 7
      %v6066 = vsel %vm964, %v6063, %v6065
      %6071 = vmatprep.subr.mxu0 0.0
      %6072 = vmatpush1.msra.mxu0 %v5934
      %6073 = vmatprep.subr.mxu0 0.0
      %6074 = vmatpush1.msra.mxu0 %v5935
      %6075 = vmatprep.subr.mxu0 0.0
      %6076 = vmatpush1.msra.mxu0 %v5936
      %6077 = vmatprep.subr.mxu0 0.0
      %6078 = vmatpush1.msra.mxu0 %v5937
      %6079 = vmatprep.subr.mxu0 0.0
      %6080 = vmatpush1.msra.mxu0 %v5938
      %6081 = vmatprep.subr.mxu0 0.0
      %6082 = vmatpush1.msra.mxu0 %v5939
      %6083 = vmatprep.subr.mxu0 0.0
      %6084 = vmatpush1.msra.mxu0 %v5940
      %6085 = vmatprep.subr.mxu0 0.0
      %6086 = vmatpush1.msra.mxu0 %v5941
      %6087 = vmatprep.subr.mxu0 0.0
      %6088 = vmatpush1.msra.mxu0 %v5942
      %6089 = vmatprep.subr.mxu0 0.0
      %6090 = vmatpush1.msra.mxu0 %v5943
      %6091 = vmatprep.subr.mxu0 0.0
      %6092 = vmatpush1.msra.mxu0 %v5944
      %6093 = vmatprep.subr.mxu0 0.0
      %6094 = vmatpush1.msra.mxu0 %v5945
      %6095 = vmatprep.subr.mxu0 0.0
      %6096 = vmatpush1.msra.mxu0 %v5946
      %6097 = vmatprep.subr.mxu0 0.0
      %6098 = vmatpush1.msra.mxu0 %v5947
      %6099 = vmatprep.subr.mxu0 0.0
      %6100 = vmatpush1.msra.mxu0 %v5948
      %6101 = vmatprep.subr.mxu0 0.0
      %6102 = vmatpush1.msra.mxu0 %v5949
      %6103 = vmatprep.subr.mxu0 0.0
      %6104 = vmatpush1.msra.mxu0 0.0
      %6105 = vmatprep.subr.mxu0 0.0
      %6106 = vmatpush1.msra.mxu0 0.0
      %6107 = vmatprep.subr.mxu0 0.0
      %6108 = vmatpush1.msra.mxu0 0.0
      %6109 = vmatprep.subr.mxu0 0.0
      %6110 = vmatpush1.msra.mxu0 0.0
      %6111 = vmatprep.subr.mxu0 0.0
      %6112 = vmatpush1.msra.mxu0 0.0
      %6113 = vmatprep.subr.mxu0 0.0
      %6114 = vmatpush1.msra.mxu0 0.0
      %6115 = vmatprep.subr.mxu0 0.0
      %6116 = vmatpush1.msra.mxu0 0.0
      %6117 = vmatprep.subr.mxu0 0.0
      %6118 = vmatpush1.msra.mxu0 0.0
      %6119 = vmatprep.subr.mxu0 0.0
      %6120 = vmatpush1.msra.mxu0 0.0
      %6121 = vmatprep.subr.mxu0 0.0
      %6122 = vmatpush1.msra.mxu0 0.0
      %6123 = vmatprep.subr.mxu0 0.0
      %6124 = vmatpush1.msra.mxu0 0.0
      %6125 = vmatprep.subr.mxu0 0.0
      %6126 = vmatpush1.msra.mxu0 0.0
      %6127 = vmatprep.subr.mxu0 0.0
      %6128 = vmatpush1.msra.mxu0 0.0
      %6129 = vmatprep.subr.mxu0 0.0
      %6130 = vmatpush1.msra.mxu0 0.0
      %6131 = vmatprep.subr.mxu0 0.0
      %6132 = vmatpush1.msra.mxu0 0.0
      %6133 = vmatprep.subr.mxu0 0.0
      %6134 = vmatpush1.msra.mxu0 0.0
      %6135 = vmatprep.mubr.f32.mxu0 0.0
      %6136 = vmatmul.mubr.f32.gmra.mrb[0].mxu0 %v6060
      %v6137 = vpop.f32.mrb[0].mxu0
      %v6138 = vadd.f32 %v6035, %v6137
      %v6139 = vpop.f32.mrb[0].mxu0
      %6140 = vmatprep.mubr.f32.mxu0 0.0
      %6141 = vmatmul.mubr.f32.gmra.mrb[0].mxu0 %v6062
      %v6142 = vpop.f32.mrb[0].mxu0
      %v6143 = vadd.f32 %v6040, %v6142
      %v6144 = vpop.f32.mrb[0].mxu0
      %6145 = vmatprep.mubr.f32.mxu0 0.0
      %6146 = vmatmul.mubr.f32.gmra.mrb[0].mxu0 %v6064
      %v6147 = vpop.f32.mrb[0].mxu0
      %v6148 = vadd.f32 %v6045, %v6147
      %v6149 = vpop.f32.mrb[0].mxu0
      %6150 = vmatprep.mubr.f32.mxu0 0.0
      %6151 = vmatmul.mubr.f32.gmra.mrb[0].mxu0 %v6066
      %v6152 = vpop.f32.mrb[0].mxu0
      %v6153 = vadd.f32 %v6050, %v6152
      %v6154 = vpop.f32.mrb[0].mxu0
      %6155 = vdwg.mxu0
      %v6156 = vld [vmem:[#allocation2 + $0x10] sm:$0xfe]
      %v6157 = vld [vmem:[#allocation2 + $0x20] sm:$0xff]
      %v6158 = vld [vmem:[#allocation2 + $0x30] sm:$0xff]
      %v6159 = vld [vmem:[#allocation2 + $0x40] sm:$0xff]
      %v6160 = vld [vmem:[#allocation2 + $0x50] sm:$0x1]
      %s6161 = scalar_lea.vmem %s5, 1024
      %v6162 = vld [vmem:[%s6161] sm:$0xff]
      %v6163 = vld [vmem:[%s6161 + $0x8] sm:$0xff]
      %v6164 = vld [vmem:[%s6161 + $0x10] sm:$0xff]
      %v6165 = vld [vmem:[%s6161 + $0x18] sm:$0xff]
      %v6166 = vld [vmem:[%s6161 + $0x20] sm:$0xff]
      %v6167 = vld [vmem:[%s6161 + $0x28] sm:$0xff]
      %v6168 = vld [vmem:[%s6161 + $0x30] sm:$0xff]
      %v6169 = vld [vmem:[%s6161 + $0x38] sm:$0xff]
      %v6170 = vld [vmem:[%s6161 + $0x40] sm:$0xff]
      %v6171 = vld [vmem:[%s6161 + $0x48] sm:$0xff]
      %v6172 = vld [vmem:[%s6161 + $0x50] sm:$0xff]
      %v6173 = vld [vmem:[%s6161 + $0x58] sm:$0xff]
      %v6174 = vld [vmem:[%s6161 + $0x60] sm:$0xff]
      %v6175 = vld [vmem:[%s6161 + $0x68] sm:$0xff]
      %v6176 = vld [vmem:[%s6161 + $0x70] sm:$0xff]
      %v6177 = vld [vmem:[%s6161 + $0x78] sm:$0xff]
      %v6183 = vrot.slane %v6156, 1
      %v6184 = vrot.slane %v6157, 1
      %v6185 = vsel %vm2512, %v6183, %v6184
      %v6186 = vrot.slane %v6158, 1
      %v6187 = vsel %vm2512, %v6184, %v6186
      %v6188 = vrot.slane %v6159, 1
      %v6189 = vsel %vm2512, %v6186, %v6188
      %v6190 = vrot.slane %v6160, 1
      %v6191 = vsel %vm2512, %v6188, %v6190
      %6196 = vmatprep.subr.mxu0 0.0
      %6197 = vmatpush1.msra.mxu0 %v6162
      %6198 = vmatprep.subr.mxu0 0.0
      %6199 = vmatpush1.msra.mxu0 %v6163
      %6200 = vmatprep.subr.mxu0 0.0
      %6201 = vmatpush1.msra.mxu0 %v6164
      %6202 = vmatprep.subr.mxu0 0.0
      %6203 = vmatpush1.msra.mxu0 %v6165
      %6204 = vmatprep.subr.mxu0 0.0
      %6205 = vmatpush1.msra.mxu0 %v6166
      %6206 = vmatprep.subr.mxu0 0.0
      %6207 = vmatpush1.msra.mxu0 %v6167
      %6208 = vmatprep.subr.mxu0 0.0
      %6209 = vmatpush1.msra.mxu0 %v6168
      %6210 = vmatprep.subr.mxu0 0.0
      %6211 = vmatpush1.msra.mxu0 %v6169
      %6212 = vmatprep.subr.mxu0 0.0
      %6213 = vmatpush1.msra.mxu0 %v6170
      %6214 = vmatprep.subr.mxu0 0.0
      %6215 = vmatpush1.msra.mxu0 %v6171
      %6216 = vmatprep.subr.mxu0 0.0
      %6217 = vmatpush1.msra.mxu0 %v6172
      %6218 = vmatprep.subr.mxu0 0.0
      %6219 = vmatpush1.msra.mxu0 %v6173
      %6220 = vmatprep.subr.mxu0 0.0
      %6221 = vmatpush1.msra.mxu0 %v6174
      %6222 = vmatprep.subr.mxu0 0.0
      %6223 = vmatpush1.msra.mxu0 %v6175
      %6224 = vmatprep.subr.mxu0 0.0
      %6225 = vmatpush1.msra.mxu0 %v6176
      %6226 = vmatprep.subr.mxu0 0.0
      %6227 = vmatpush1.msra.mxu0 %v6177
      %6228 = vmatprep.subr.mxu0 0.0
      %6229 = vmatpush1.msra.mxu0 0.0
      %6230 = vmatprep.subr.mxu0 0.0
      %6231 = vmatpush1.msra.mxu0 0.0
      %6232 = vmatprep.subr.mxu0 0.0
      %6233 = vmatpush1.msra.mxu0 0.0
      %6234 = vmatprep.subr.mxu0 0.0
      %6235 = vmatpush1.msra.mxu0 0.0
      %6236 = vmatprep.subr.mxu0 0.0
      %6237 = vmatpush1.msra.mxu0 0.0
      %6238 = vmatprep.subr.mxu0 0.0
      %6239 = vmatpush1.msra.mxu0 0.0
      %6240 = vmatprep.subr.mxu0 0.0
      %6241 = vmatpush1.msra.mxu0 0.0
      %6242 = vmatprep.subr.mxu0 0.0
      %6243 = vmatpush1.msra.mxu0 0.0
      %6244 = vmatprep.subr.mxu0 0.0
      %6245 = vmatpush1.msra.mxu0 0.0
      %6246 = vmatprep.subr.mxu0 0.0
      %6247 = vmatpush1.msra.mxu0 0.0
      %6248 = vmatprep.subr.mxu0 0.0
      %6249 = vmatpush1.msra.mxu0 0.0
      %6250 = vmatprep.subr.mxu0 0.0
      %6251 = vmatpush1.msra.mxu0 0.0
      %6252 = vmatprep.subr.mxu0 0.0
      %6253 = vmatpush1.msra.mxu0 0.0
      %6254 = vmatprep.subr.mxu0 0.0
      %6255 = vmatpush1.msra.mxu0 0.0
      %6256 = vmatprep.subr.mxu0 0.0
      %6257 = vmatpush1.msra.mxu0 0.0
      %6258 = vmatprep.subr.mxu0 0.0
      %6259 = vmatpush1.msra.mxu0 0.0
      %6260 = vmatprep.mubr.f32.mxu0 0.0
      %6261 = vmatmul.mubr.f32.gmra.mrb[0].mxu0 %v6185
      %v6262 = vpop.f32.mrb[0].mxu0
      %v6263 = vadd.f32 0.0, %v6262
      %v6264 = vpop.f32.mrb[0].mxu0
      %6265 = vmatprep.mubr.f32.mxu0 0.0
      %6266 = vmatmul.mubr.f32.gmra.mrb[0].mxu0 %v6187
      %v6267 = vpop.f32.mrb[0].mxu0
      %v6268 = vadd.f32 0.0, %v6267
      %v6269 = vpop.f32.mrb[0].mxu0
      %6270 = vmatprep.mubr.f32.mxu0 0.0
      %6271 = vmatmul.mubr.f32.gmra.mrb[0].mxu0 %v6189
      %v6272 = vpop.f32.mrb[0].mxu0
      %v6273 = vadd.f32 0.0, %v6272
      %v6274 = vpop.f32.mrb[0].mxu0
      %6275 = vmatprep.mubr.f32.mxu0 0.0
      %6276 = vmatmul.mubr.f32.gmra.mrb[0].mxu0 %v6191
      %v6277 = vpop.f32.mrb[0].mxu0
      %v6278 = vadd.f32 0.0, %v6277
      %v6279 = vpop.f32.mrb[0].mxu0
      %6280 = vdwg.mxu0
      %v6281 = vadd.f32 %v6138, %v6263
      %v6282 = vadd.f32 %v6143, %v6268
      %v6283 = vadd.f32 %v6148, %v6273
      %v6284 = vadd.f32 %v6153, %v6278
      %v6285 = vld [vmem:[%s2 + $0x17] ss:$0 sm:$0xff]
      %v6286 = vadd.f32 %v6281, %v6285
      %v6287 = vadd.f32 %v6282, %v6285
      %v6288 = vadd.f32 %v6283, %v6285
      %v6289 = vadd.f32 %v6284, %v6285
      %v6290 = vmax.f32 %v6286, 0.0
      %v6291 = vmax.f32 %v6287, 0.0
      %v6292 = vmax.f32 %v6288, 0.0
      %v6293 = vmax.f32 %v6289, 0.0
      %6294 = vst [vmem:[#allocation2 + $0x10] sm:$0xff] %v6290
      %6295 = vst [vmem:[#allocation2 + $0x20] sm:$0xff] %v6291
      %6296 = vst [vmem:[#allocation2 + $0x30] sm:$0xff] %v6292
      %6297 = vst [vmem:[#allocation2 + $0x40] sm:$0xff] %v6293
      %v6298 = vld [vmem:[#allocation2] sm:$0x80]
      %v6299 = vld [vmem:[#allocation2 + $0x10] sm:$0xff]
      %v6300 = vld [vmem:[#allocation2 + $0x20] sm:$0xff]
      %v6301 = vld [vmem:[#allocation2 + $0x30] sm:$0xff]
      %v6302 = vld [vmem:[#allocation2 + $0x40] sm:$0x7f]
      %s6303 = scalar_lea.vmem %s5, 1152
      %v6304 = vld [vmem:[%s6303] sm:$0xff]
      %v6305 = vld [vmem:[%s6303 + $0x8] sm:$0xff]
      %v6306 = vld [vmem:[%s6303 + $0x10] sm:$0xff]
      %v6307 = vld [vmem:[%s6303 + $0x18] sm:$0xff]
      %v6308 = vld [vmem:[%s6303 + $0x20] sm:$0xff]
      %v6309 = vld [vmem:[%s6303 + $0x28] sm:$0xff]
      %v6310 = vld [vmem:[%s6303 + $0x30] sm:$0xff]
      %v6311 = vld [vmem:[%s6303 + $0x38] sm:$0xff]
      %v6312 = vld [vmem:[%s6303 + $0x40] sm:$0xff]
      %v6313 = vld [vmem:[%s6303 + $0x48] sm:$0xff]
      %v6314 = vld [vmem:[%s6303 + $0x50] sm:$0xff]
      %v6315 = vld [vmem:[%s6303 + $0x58] sm:$0xff]
      %v6316 = vld [vmem:[%s6303 + $0x60] sm:$0xff]
      %v6317 = vld [vmem:[%s6303 + $0x68] sm:$0xff]
      %v6318 = vld [vmem:[%s6303 + $0x70] sm:$0xff]
      %v6319 = vld [vmem:[%s6303 + $0x78] sm:$0xff]
      %v6320 = vld [vmem:[#allocation2 + $0x40] sm:$0xff]
      %s6321 = scalar_lea.vmem %s5, 1280
      %v6322 = vld [vmem:[%s6321] sm:$0xff]
      %v6323 = vld [vmem:[%s6321 + $0x8] sm:$0xff]
      %v6324 = vld [vmem:[%s6321 + $0x10] sm:$0xff]
      %v6325 = vld [vmem:[%s6321 + $0x18] sm:$0xff]
      %v6326 = vld [vmem:[%s6321 + $0x20] sm:$0xff]
      %v6327 = vld [vmem:[%s6321 + $0x28] sm:$0xff]
      %v6328 = vld [vmem:[%s6321 + $0x30] sm:$0xff]
      %v6329 = vld [vmem:[%s6321 + $0x38] sm:$0xff]
      %v6330 = vld [vmem:[%s6321 + $0x40] sm:$0xff]
      %v6331 = vld [vmem:[%s6321 + $0x48] sm:$0xff]
      %v6332 = vld [vmem:[%s6321 + $0x50] sm:$0xff]
      %v6333 = vld [vmem:[%s6321 + $0x58] sm:$0xff]
      %v6334 = vld [vmem:[%s6321 + $0x60] sm:$0xff]
      %v6335 = vld [vmem:[%s6321 + $0x68] sm:$0xff]
      %v6336 = vld [vmem:[%s6321 + $0x70] sm:$0xff]
      %v6337 = vld [vmem:[%s6321 + $0x78] sm:$0xff]
      %6338 = vmatprep.subr.mxu0 0.0
      %6339 = vmatpush1.msra.mxu0 %v6322
      %6340 = vmatprep.subr.mxu0 0.0
      %6341 = vmatpush1.msra.mxu0 %v6323
      %6342 = vmatprep.subr.mxu0 0.0
      %6343 = vmatpush1.msra.mxu0 %v6324
      %6344 = vmatprep.subr.mxu0 0.0
      %6345 = vmatpush1.msra.mxu0 %v6325
      %6346 = vmatprep.subr.mxu0 0.0
      %6347 = vmatpush1.msra.mxu0 %v6326
      %6348 = vmatprep.subr.mxu0 0.0
      %6349 = vmatpush1.msra.mxu0 %v6327
      %6350 = vmatprep.subr.mxu0 0.0
      %6351 = vmatpush1.msra.mxu0 %v6328
      %6352 = vmatprep.subr.mxu0 0.0
      %6353 = vmatpush1.msra.mxu0 %v6329
      %6354 = vmatprep.subr.mxu0 0.0
      %6355 = vmatpush1.msra.mxu0 %v6330
      %6356 = vmatprep.subr.mxu0 0.0
      %6357 = vmatpush1.msra.mxu0 %v6331
      %6358 = vmatprep.subr.mxu0 0.0
      %6359 = vmatpush1.msra.mxu0 %v6332
      %6360 = vmatprep.subr.mxu0 0.0
      %6361 = vmatpush1.msra.mxu0 %v6333
      %6362 = vmatprep.subr.mxu0 0.0
      %6363 = vmatpush1.msra.mxu0 %v6334
      %6364 = vmatprep.subr.mxu0 0.0
      %6365 = vmatpush1.msra.mxu0 %v6335
      %6366 = vmatprep.subr.mxu0 0.0
      %6367 = vmatpush1.msra.mxu0 %v6336
      %6368 = vmatprep.subr.mxu0 0.0
      %6369 = vmatpush1.msra.mxu0 %v6337
      %6370 = vmatprep.subr.mxu0 0.0
      %6371 = vmatpush1.msra.mxu0 0.0
      %6372 = vmatprep.subr.mxu0 0.0
      %6373 = vmatpush1.msra.mxu0 0.0
      %6374 = vmatprep.subr.mxu0 0.0
      %6375 = vmatpush1.msra.mxu0 0.0
      %6376 = vmatprep.subr.mxu0 0.0
      %6377 = vmatpush1.msra.mxu0 0.0
      %6378 = vmatprep.subr.mxu0 0.0
      %6379 = vmatpush1.msra.mxu0 0.0
      %6380 = vmatprep.subr.mxu0 0.0
      %6381 = vmatpush1.msra.mxu0 0.0
      %6382 = vmatprep.subr.mxu0 0.0
      %6383 = vmatpush1.msra.mxu0 0.0
      %6384 = vmatprep.subr.mxu0 0.0
      %6385 = vmatpush1.msra.mxu0 0.0
      %6386 = vmatprep.subr.mxu0 0.0
      %6387 = vmatpush1.msra.mxu0 0.0
      %6388 = vmatprep.subr.mxu0 0.0
      %6389 = vmatpush1.msra.mxu0 0.0
      %6390 = vmatprep.subr.mxu0 0.0
      %6391 = vmatpush1.msra.mxu0 0.0
      %6392 = vmatprep.subr.mxu0 0.0
      %6393 = vmatpush1.msra.mxu0 0.0
      %6394 = vmatprep.subr.mxu0 0.0
      %6395 = vmatpush1.msra.mxu0 0.0
      %6396 = vmatprep.subr.mxu0 0.0
      %6397 = vmatpush1.msra.mxu0 0.0
      %6398 = vmatprep.subr.mxu0 0.0
      %6399 = vmatpush1.msra.mxu0 0.0
      %6400 = vmatprep.subr.mxu0 0.0
      %6401 = vmatpush1.msra.mxu0 0.0
      %6402 = vmatprep.mubr.f32.mxu0 0.0
      %6403 = vmatmul.mubr.f32.gmra.mrb[0].mxu0 %v6299
      %v6404 = vpop.f32.mrb[0].mxu0
      %v6405 = vadd.f32 0.0, %v6404
      %v6406 = vpop.f32.mrb[0].mxu0
      %6407 = vmatprep.mubr.f32.mxu0 0.0
      %6408 = vmatmul.mubr.f32.gmra.mrb[0].mxu0 %v6300
      %v6409 = vpop.f32.mrb[0].mxu0
      %v6410 = vadd.f32 0.0, %v6409
      %v6411 = vpop.f32.mrb[0].mxu0
      %6412 = vmatprep.mubr.f32.mxu0 0.0
      %6413 = vmatmul.mubr.f32.gmra.mrb[0].mxu0 %v6301
      %v6414 = vpop.f32.mrb[0].mxu0
      %v6415 = vadd.f32 0.0, %v6414
      %v6416 = vpop.f32.mrb[0].mxu0
      %6417 = vmatprep.mubr.f32.mxu0 0.0
      %6418 = vmatmul.mubr.f32.gmra.mrb[0].mxu0 %v6320
      %v6419 = vpop.f32.mrb[0].mxu0
      %v6420 = vadd.f32 0.0, %v6419
      %v6421 = vpop.f32.mrb[0].mxu0
      %6422 = vdwg.mxu0
      %v6428 = vrot.slane %v6298, 7
      %v6429 = vrot.slane %v6299, 7
      %v6430 = vsel %vm964, %v6428, %v6429
      %v6431 = vrot.slane %v6300, 7
      %v6432 = vsel %vm964, %v6429, %v6431
      %v6433 = vrot.slane %v6301, 7
      %v6434 = vsel %vm964, %v6431, %v6433
      %v6435 = vrot.slane %v6302, 7
      %v6436 = vsel %vm964, %v6433, %v6435
      %6441 = vmatprep.subr.mxu0 0.0
      %6442 = vmatpush1.msra.mxu0 %v6304
      %6443 = vmatprep.subr.mxu0 0.0
      %6444 = vmatpush1.msra.mxu0 %v6305
      %6445 = vmatprep.subr.mxu0 0.0
      %6446 = vmatpush1.msra.mxu0 %v6306
      %6447 = vmatprep.subr.mxu0 0.0
      %6448 = vmatpush1.msra.mxu0 %v6307
      %6449 = vmatprep.subr.mxu0 0.0
      %6450 = vmatpush1.msra.mxu0 %v6308
      %6451 = vmatprep.subr.mxu0 0.0
      %6452 = vmatpush1.msra.mxu0 %v6309
      %6453 = vmatprep.subr.mxu0 0.0
      %6454 = vmatpush1.msra.mxu0 %v6310
      %6455 = vmatprep.subr.mxu0 0.0
      %6456 = vmatpush1.msra.mxu0 %v6311
      %6457 = vmatprep.subr.mxu0 0.0
      %6458 = vmatpush1.msra.mxu0 %v6312
      %6459 = vmatprep.subr.mxu0 0.0
      %6460 = vmatpush1.msra.mxu0 %v6313
      %6461 = vmatprep.subr.mxu0 0.0
      %6462 = vmatpush1.msra.mxu0 %v6314
      %6463 = vmatprep.subr.mxu0 0.0
      %6464 = vmatpush1.msra.mxu0 %v6315
      %6465 = vmatprep.subr.mxu0 0.0
      %6466 = vmatpush1.msra.mxu0 %v6316
      %6467 = vmatprep.subr.mxu0 0.0
      %6468 = vmatpush1.msra.mxu0 %v6317
      %6469 = vmatprep.subr.mxu0 0.0
      %6470 = vmatpush1.msra.mxu0 %v6318
      %6471 = vmatprep.subr.mxu0 0.0
      %6472 = vmatpush1.msra.mxu0 %v6319
      %6473 = vmatprep.subr.mxu0 0.0
      %6474 = vmatpush1.msra.mxu0 0.0
      %6475 = vmatprep.subr.mxu0 0.0
      %6476 = vmatpush1.msra.mxu0 0.0
      %6477 = vmatprep.subr.mxu0 0.0
      %6478 = vmatpush1.msra.mxu0 0.0
      %6479 = vmatprep.subr.mxu0 0.0
      %6480 = vmatpush1.msra.mxu0 0.0
      %6481 = vmatprep.subr.mxu0 0.0
      %6482 = vmatpush1.msra.mxu0 0.0
      %6483 = vmatprep.subr.mxu0 0.0
      %6484 = vmatpush1.msra.mxu0 0.0
      %6485 = vmatprep.subr.mxu0 0.0
      %6486 = vmatpush1.msra.mxu0 0.0
      %6487 = vmatprep.subr.mxu0 0.0
      %6488 = vmatpush1.msra.mxu0 0.0
      %6489 = vmatprep.subr.mxu0 0.0
      %6490 = vmatpush1.msra.mxu0 0.0
      %6491 = vmatprep.subr.mxu0 0.0
      %6492 = vmatpush1.msra.mxu0 0.0
      %6493 = vmatprep.subr.mxu0 0.0
      %6494 = vmatpush1.msra.mxu0 0.0
      %6495 = vmatprep.subr.mxu0 0.0
      %6496 = vmatpush1.msra.mxu0 0.0
      %6497 = vmatprep.subr.mxu0 0.0
      %6498 = vmatpush1.msra.mxu0 0.0
      %6499 = vmatprep.subr.mxu0 0.0
      %6500 = vmatpush1.msra.mxu0 0.0
      %6501 = vmatprep.subr.mxu0 0.0
      %6502 = vmatpush1.msra.mxu0 0.0
      %6503 = vmatprep.subr.mxu0 0.0
      %6504 = vmatpush1.msra.mxu0 0.0
      %6505 = vmatprep.mubr.f32.mxu0 0.0
      %6506 = vmatmul.mubr.f32.gmra.mrb[0].mxu0 %v6430
      %v6507 = vpop.f32.mrb[0].mxu0
      %v6508 = vadd.f32 %v6405, %v6507
      %v6509 = vpop.f32.mrb[0].mxu0
      %6510 = vmatprep.mubr.f32.mxu0 0.0
      %6511 = vmatmul.mubr.f32.gmra.mrb[0].mxu0 %v6432
      %v6512 = vpop.f32.mrb[0].mxu0
      %v6513 = vadd.f32 %v6410, %v6512
      %v6514 = vpop.f32.mrb[0].mxu0
      %6515 = vmatprep.mubr.f32.mxu0 0.0
      %6516 = vmatmul.mubr.f32.gmra.mrb[0].mxu0 %v6434
      %v6517 = vpop.f32.mrb[0].mxu0
      %v6518 = vadd.f32 %v6415, %v6517
      %v6519 = vpop.f32.mrb[0].mxu0
      %6520 = vmatprep.mubr.f32.mxu0 0.0
      %6521 = vmatmul.mubr.f32.gmra.mrb[0].mxu0 %v6436
      %v6522 = vpop.f32.mrb[0].mxu0
      %v6523 = vadd.f32 %v6420, %v6522
      %v6524 = vpop.f32.mrb[0].mxu0
      %6525 = vdwg.mxu0
      %v6526 = vld [vmem:[#allocation2 + $0x10] sm:$0xfe]
      %v6527 = vld [vmem:[#allocation2 + $0x20] sm:$0xff]
      %v6528 = vld [vmem:[#allocation2 + $0x30] sm:$0xff]
      %v6529 = vld [vmem:[#allocation2 + $0x40] sm:$0xff]
      %v6530 = vld [vmem:[#allocation2 + $0x50] sm:$0x1]
      %s6531 = scalar_lea.vmem %s5, 1408
      %v6532 = vld [vmem:[%s6531] sm:$0xff]
      %v6533 = vld [vmem:[%s6531 + $0x8] sm:$0xff]
      %v6534 = vld [vmem:[%s6531 + $0x10] sm:$0xff]
      %v6535 = vld [vmem:[%s6531 + $0x18] sm:$0xff]
      %v6536 = vld [vmem:[%s6531 + $0x20] sm:$0xff]
      %v6537 = vld [vmem:[%s6531 + $0x28] sm:$0xff]
      %v6538 = vld [vmem:[%s6531 + $0x30] sm:$0xff]
      %v6539 = vld [vmem:[%s6531 + $0x38] sm:$0xff]
      %v6540 = vld [vmem:[%s6531 + $0x40] sm:$0xff]
      %v6541 = vld [vmem:[%s6531 + $0x48] sm:$0xff]
      %v6542 = vld [vmem:[%s6531 + $0x50] sm:$0xff]
      %v6543 = vld [vmem:[%s6531 + $0x58] sm:$0xff]
      %v6544 = vld [vmem:[%s6531 + $0x60] sm:$0xff]
      %v6545 = vld [vmem:[%s6531 + $0x68] sm:$0xff]
      %v6546 = vld [vmem:[%s6531 + $0x70] sm:$0xff]
      %v6547 = vld [vmem:[%s6531 + $0x78] sm:$0xff]
      %v6553 = vrot.slane %v6526, 1
      %v6554 = vrot.slane %v6527, 1
      %v6555 = vsel %vm2512, %v6553, %v6554
      %v6556 = vrot.slane %v6528, 1
      %v6557 = vsel %vm2512, %v6554, %v6556
      %v6558 = vrot.slane %v6529, 1
      %v6559 = vsel %vm2512, %v6556, %v6558
      %v6560 = vrot.slane %v6530, 1
      %v6561 = vsel %vm2512, %v6558, %v6560
      %6566 = vmatprep.subr.mxu0 0.0
      %6567 = vmatpush1.msra.mxu0 %v6532
      %6568 = vmatprep.subr.mxu0 0.0
      %6569 = vmatpush1.msra.mxu0 %v6533
      %6570 = vmatprep.subr.mxu0 0.0
      %6571 = vmatpush1.msra.mxu0 %v6534
      %6572 = vmatprep.subr.mxu0 0.0
      %6573 = vmatpush1.msra.mxu0 %v6535
      %6574 = vmatprep.subr.mxu0 0.0
      %6575 = vmatpush1.msra.mxu0 %v6536
      %6576 = vmatprep.subr.mxu0 0.0
      %6577 = vmatpush1.msra.mxu0 %v6537
      %6578 = vmatprep.subr.mxu0 0.0
      %6579 = vmatpush1.msra.mxu0 %v6538
      %6580 = vmatprep.subr.mxu0 0.0
      %6581 = vmatpush1.msra.mxu0 %v6539
      %6582 = vmatprep.subr.mxu0 0.0
      %6583 = vmatpush1.msra.mxu0 %v6540
      %6584 = vmatprep.subr.mxu0 0.0
      %6585 = vmatpush1.msra.mxu0 %v6541
      %6586 = vmatprep.subr.mxu0 0.0
      %6587 = vmatpush1.msra.mxu0 %v6542
      %6588 = vmatprep.subr.mxu0 0.0
      %6589 = vmatpush1.msra.mxu0 %v6543
      %6590 = vmatprep.subr.mxu0 0.0
      %6591 = vmatpush1.msra.mxu0 %v6544
      %6592 = vmatprep.subr.mxu0 0.0
      %6593 = vmatpush1.msra.mxu0 %v6545
      %6594 = vmatprep.subr.mxu0 0.0
      %6595 = vmatpush1.msra.mxu0 %v6546
      %6596 = vmatprep.subr.mxu0 0.0
      %6597 = vmatpush1.msra.mxu0 %v6547
      %6598 = vmatprep.subr.mxu0 0.0
      %6599 = vmatpush1.msra.mxu0 0.0
      %6600 = vmatprep.subr.mxu0 0.0
      %6601 = vmatpush1.msra.mxu0 0.0
      %6602 = vmatprep.subr.mxu0 0.0
      %6603 = vmatpush1.msra.mxu0 0.0
      %6604 = vmatprep.subr.mxu0 0.0
      %6605 = vmatpush1.msra.mxu0 0.0
      %6606 = vmatprep.subr.mxu0 0.0
      %6607 = vmatpush1.msra.mxu0 0.0
      %6608 = vmatprep.subr.mxu0 0.0
      %6609 = vmatpush1.msra.mxu0 0.0
      %6610 = vmatprep.subr.mxu0 0.0
      %6611 = vmatpush1.msra.mxu0 0.0
      %6612 = vmatprep.subr.mxu0 0.0
      %6613 = vmatpush1.msra.mxu0 0.0
      %6614 = vmatprep.subr.mxu0 0.0
      %6615 = vmatpush1.msra.mxu0 0.0
      %6616 = vmatprep.subr.mxu0 0.0
      %6617 = vmatpush1.msra.mxu0 0.0
      %6618 = vmatprep.subr.mxu0 0.0
      %6619 = vmatpush1.msra.mxu0 0.0
      %6620 = vmatprep.subr.mxu0 0.0
      %6621 = vmatpush1.msra.mxu0 0.0
      %6622 = vmatprep.subr.mxu0 0.0
      %6623 = vmatpush1.msra.mxu0 0.0
      %6624 = vmatprep.subr.mxu0 0.0
      %6625 = vmatpush1.msra.mxu0 0.0
      %6626 = vmatprep.subr.mxu0 0.0
      %6627 = vmatpush1.msra.mxu0 0.0
      %6628 = vmatprep.subr.mxu0 0.0
      %6629 = vmatpush1.msra.mxu0 0.0
      %6630 = vmatprep.mubr.f32.mxu0 0.0
      %6631 = vmatmul.mubr.f32.gmra.mrb[0].mxu0 %v6555
      %v6632 = vpop.f32.mrb[0].mxu0
      %v6633 = vadd.f32 0.0, %v6632
      %v6634 = vpop.f32.mrb[0].mxu0
      %6635 = vmatprep.mubr.f32.mxu0 0.0
      %6636 = vmatmul.mubr.f32.gmra.mrb[0].mxu0 %v6557
      %v6637 = vpop.f32.mrb[0].mxu0
      %v6638 = vadd.f32 0.0, %v6637
      %v6639 = vpop.f32.mrb[0].mxu0
      %6640 = vmatprep.mubr.f32.mxu0 0.0
      %6641 = vmatmul.mubr.f32.gmra.mrb[0].mxu0 %v6559
      %v6642 = vpop.f32.mrb[0].mxu0
      %v6643 = vadd.f32 0.0, %v6642
      %v6644 = vpop.f32.mrb[0].mxu0
      %6645 = vmatprep.mubr.f32.mxu0 0.0
      %6646 = vmatmul.mubr.f32.gmra.mrb[0].mxu0 %v6561
      %v6647 = vpop.f32.mrb[0].mxu0
      %v6648 = vadd.f32 0.0, %v6647
      %v6649 = vpop.f32.mrb[0].mxu0
      %6650 = vdwg.mxu0
      %v6651 = vadd.f32 %v6508, %v6633
      %v6652 = vadd.f32 %v6513, %v6638
      %v6653 = vadd.f32 %v6518, %v6643
      %v6654 = vadd.f32 %v6523, %v6648
      %v6655 = vld [vmem:[%s2 + $0x20] ss:$0 sm:$0xff]
      %v6656 = vadd.f32 %v6651, %v6655
      %v6657 = vadd.f32 %v6652, %v6655
      %v6658 = vadd.f32 %v6653, %v6655
      %v6659 = vadd.f32 %v6654, %v6655
      %v6660 = vadd.f32 %v6656, %v5920
      %v6661 = vadd.f32 %v6657, %v5921
      %v6662 = vadd.f32 %v6658, %v5922
      %v6663 = vadd.f32 %v6659, %v5923
      %v6664 = vmax.f32 %v6660, 0.0
      %v6665 = vmax.f32 %v6661, 0.0
      %v6666 = vmax.f32 %v6662, 0.0
      %v6667 = vmax.f32 %v6663, 0.0
      %v6668 = vld [vmem:[%s3468] sm:$0xff]
      %v6669 = vld [vmem:[%s3468 + $0x8] sm:$0xff]
      %v6670 = vld [vmem:[%s3468 + $0x10] sm:$0xff]
      %v6671 = vld [vmem:[%s3468 + $0x18] sm:$0xff]
      %v6672 = vld [vmem:[%s3468 + $0x20] sm:$0xff]
      %v6673 = vld [vmem:[%s3468 + $0x28] sm:$0xff]
      %v6674 = vld [vmem:[%s3468 + $0x30] sm:$0xff]
      %v6675 = vld [vmem:[%s3468 + $0x38] sm:$0xff]
      %v6676 = vld [vmem:[%s3468 + $0x40] sm:$0xff]
      %v6677 = vld [vmem:[%s3468 + $0x48] sm:$0xff]
      %v6678 = vld [vmem:[%s3468 + $0x50] sm:$0xff]
      %v6679 = vld [vmem:[%s3468 + $0x58] sm:$0xff]
      %v6680 = vld [vmem:[%s3468 + $0x60] sm:$0xff]
      %v6681 = vld [vmem:[%s3468 + $0x68] sm:$0xff]
      %v6682 = vld [vmem:[%s3468 + $0x70] sm:$0xff]
      %v6683 = vld [vmem:[%s3468 + $0x78] sm:$0xff]
      %v6684 = vld [vmem:[%s3468 + $0x80] sm:$0xff]
      %v6685 = vld [vmem:[%s3468 + $0x88] sm:$0xff]
      %v6686 = vld [vmem:[%s3468 + $0x90] sm:$0xff]
      %v6687 = vld [vmem:[%s3468 + $0x98] sm:$0xff]
      %v6688 = vld [vmem:[%s3468 + $0xa0] sm:$0xff]
      %v6689 = vld [vmem:[%s3468 + $0xa8] sm:$0xff]
      %v6690 = vld [vmem:[%s3468 + $0xb0] sm:$0xff]
      %v6691 = vld [vmem:[%s3468 + $0xb8] sm:$0xff]
      %v6692 = vld [vmem:[%s3468 + $0xc0] sm:$0xff]
      %v6693 = vld [vmem:[%s3468 + $0xc8] sm:$0xff]
      %v6694 = vld [vmem:[%s3468 + $0xd0] sm:$0xff]
      %v6695 = vld [vmem:[%s3468 + $0xd8] sm:$0xff]
      %v6696 = vld [vmem:[%s3468 + $0xe0] sm:$0xff]
      %v6697 = vld [vmem:[%s3468 + $0xe8] sm:$0xff]
      %v6698 = vld [vmem:[%s3468 + $0xf0] sm:$0xff]
      %v6699 = vld [vmem:[%s3468 + $0xf8] sm:$0xff]
      %6700 = vmatprep.subr.mxu0 %v6669
      %6701 = vmatpush1.msra.mxu0 %v6668
      %6702 = vmatprep.subr.mxu0 %v6671
      %6703 = vmatpush1.msra.mxu0 %v6670
      %6704 = vmatprep.subr.mxu0 %v6673
      %6705 = vmatpush1.msra.mxu0 %v6672
      %6706 = vmatprep.subr.mxu0 %v6675
      %6707 = vmatpush1.msra.mxu0 %v6674
      %6708 = vmatprep.subr.mxu0 %v6677
      %6709 = vmatpush1.msra.mxu0 %v6676
      %6710 = vmatprep.subr.mxu0 %v6679
      %6711 = vmatpush1.msra.mxu0 %v6678
      %6712 = vmatprep.subr.mxu0 %v6681
      %6713 = vmatpush1.msra.mxu0 %v6680
      %6714 = vmatprep.subr.mxu0 %v6683
      %6715 = vmatpush1.msra.mxu0 %v6682
      %6716 = vmatprep.subr.mxu0 %v6685
      %6717 = vmatpush1.msra.mxu0 %v6684
      %6718 = vmatprep.subr.mxu0 %v6687
      %6719 = vmatpush1.msra.mxu0 %v6686
      %6720 = vmatprep.subr.mxu0 %v6689
      %6721 = vmatpush1.msra.mxu0 %v6688
      %6722 = vmatprep.subr.mxu0 %v6691
      %6723 = vmatpush1.msra.mxu0 %v6690
      %6724 = vmatprep.subr.mxu0 %v6693
      %6725 = vmatpush1.msra.mxu0 %v6692
      %6726 = vmatprep.subr.mxu0 %v6695
      %6727 = vmatpush1.msra.mxu0 %v6694
      %6728 = vmatprep.subr.mxu0 %v6697
      %6729 = vmatpush1.msra.mxu0 %v6696
      %6730 = vmatprep.subr.mxu0 %v6699
      %6731 = vmatpush1.msra.mxu0 %v6698
      %6732 = vmatprep.subr.mxu0 0.0
      %6733 = vmatpush1.msra.mxu0 0.0
      %6734 = vmatprep.subr.mxu0 0.0
      %6735 = vmatpush1.msra.mxu0 0.0
      %6736 = vmatprep.subr.mxu0 0.0
      %6737 = vmatpush1.msra.mxu0 0.0
      %6738 = vmatprep.subr.mxu0 0.0
      %6739 = vmatpush1.msra.mxu0 0.0
      %6740 = vmatprep.subr.mxu0 0.0
      %6741 = vmatpush1.msra.mxu0 0.0
      %6742 = vmatprep.subr.mxu0 0.0
      %6743 = vmatpush1.msra.mxu0 0.0
      %6744 = vmatprep.subr.mxu0 0.0
      %6745 = vmatpush1.msra.mxu0 0.0
      %6746 = vmatprep.subr.mxu0 0.0
      %6747 = vmatpush1.msra.mxu0 0.0
      %6748 = vmatprep.subr.mxu0 0.0
      %6749 = vmatpush1.msra.mxu0 0.0
      %6750 = vmatprep.subr.mxu0 0.0
      %6751 = vmatpush1.msra.mxu0 0.0
      %6752 = vmatprep.subr.mxu0 0.0
      %6753 = vmatpush1.msra.mxu0 0.0
      %6754 = vmatprep.subr.mxu0 0.0
      %6755 = vmatpush1.msra.mxu0 0.0
      %6756 = vmatprep.subr.mxu0 0.0
      %6757 = vmatpush1.msra.mxu0 0.0
      %6758 = vmatprep.subr.mxu0 0.0
      %6759 = vmatpush1.msra.mxu0 0.0
      %6760 = vmatprep.subr.mxu0 0.0
      %6761 = vmatpush1.msra.mxu0 0.0
      %6762 = vmatprep.subr.mxu0 0.0
      %6763 = vmatpush1.msra.mxu0 0.0
      %6764 = vmatprep.mubr.f32.mxu0 0.0
      %6765 = vmatmul.mubr.f32.gmra.mrb[0].mxu0 %v6664
      %v6766 = vpop.f32.mrb[0].mxu0
      %v6767 = vadd.f32 0.0, %v6766
      %v6768 = vpop.f32.mrb[0].mxu0
      %v6769 = vadd.f32 0.0, %v6768
      %6770 = vmatprep.mubr.f32.mxu0 0.0
      %6771 = vmatmul.mubr.f32.gmra.mrb[0].mxu0 %v6665
      %v6772 = vpop.f32.mrb[0].mxu0
      %v6773 = vadd.f32 0.0, %v6772
      %v6774 = vpop.f32.mrb[0].mxu0
      %v6775 = vadd.f32 0.0, %v6774
      %6776 = vmatprep.mubr.f32.mxu0 0.0
      %6777 = vmatmul.mubr.f32.gmra.mrb[0].mxu0 %v6666
      %v6778 = vpop.f32.mrb[0].mxu0
      %v6779 = vadd.f32 0.0, %v6778
      %v6780 = vpop.f32.mrb[0].mxu0
      %v6781 = vadd.f32 0.0, %v6780
      %6782 = vmatprep.mubr.f32.mxu0 0.0
      %6783 = vmatmul.mubr.f32.gmra.mrb[0].mxu0 %v6667
      %v6784 = vpop.f32.mrb[0].mxu0
      %v6785 = vadd.f32 0.0, %v6784
      %v6786 = vpop.f32.mrb[0].mxu0
      %v6787 = vadd.f32 0.0, %v6786
      %6788 = vdwg.mxu0
      %v6789 = vld [vmem:[%s9] sm:$0xff]
      %v6790 = vld [vmem:[%s9 + $0x8] sm:$0xff]
      %v6791 = vld [vmem:[%s9 + $0x10] sm:$0xff]
      %v6792 = vld [vmem:[%s9 + $0x18] sm:$0xff]
      %v6793 = vld [vmem:[%s9 + $0x20] sm:$0xff]
      %v6794 = vld [vmem:[%s9 + $0x28] sm:$0xff]
      %v6795 = vld [vmem:[%s9 + $0x30] sm:$0xff]
      %v6796 = vld [vmem:[%s9 + $0x38] sm:$0xff]
      %v6798 = vsel %vm380, %v6789, 0
      %v6801 = vsel %vm380, %v6790, 0
      %v6804 = vsel %vm380, %v6791, 0
      %v6807 = vsel %vm380, %v6792, 0
      %v6810 = vsel %vm380, %v6793, 0
      %v6813 = vsel %vm380, %v6794, 0
      %v6816 = vsel %vm380, %v6795, 0
      %v6819 = vsel %vm380, %v6796, 0
      %6821 = vmatprep.subr.mxu0 %v6769
      %6822 = vmatpush1.msra.mxu0 %v6767
      %6823 = vmatprep.subr.mxu0 %v6775
      %6824 = vmatpush1.msra.mxu0 %v6773
      %6825 = vmatprep.subr.mxu0 %v6781
      %6826 = vmatpush1.msra.mxu0 %v6779
      %6827 = vmatprep.subr.mxu0 %v6787
      %6828 = vmatpush1.msra.mxu0 %v6785
      %6829 = vmatprep.subr.mxu0 0.0
      %6830 = vmatpush1.msra.mxu0 0.0
      %6831 = vmatprep.subr.mxu0 0.0
      %6832 = vmatpush1.msra.mxu0 0.0
      %6833 = vmatprep.subr.mxu0 0.0
      %6834 = vmatpush1.msra.mxu0 0.0
      %6835 = vmatprep.subr.mxu0 0.0
      %6836 = vmatpush1.msra.mxu0 0.0
      %6837 = vmatprep.subr.mxu0 0.0
      %6838 = vmatpush1.msra.mxu0 0.0
      %6839 = vmatprep.subr.mxu0 0.0
      %6840 = vmatpush1.msra.mxu0 0.0
      %6841 = vmatprep.subr.mxu0 0.0
      %6842 = vmatpush1.msra.mxu0 0.0
      %6843 = vmatprep.subr.mxu0 0.0
      %6844 = vmatpush1.msra.mxu0 0.0
      %6845 = vmatprep.subr.mxu0 0.0
      %6846 = vmatpush1.msra.mxu0 0.0
      %6847 = vmatprep.subr.mxu0 0.0
      %6848 = vmatpush1.msra.mxu0 0.0
      %6849 = vmatprep.subr.mxu0 0.0
      %6850 = vmatpush1.msra.mxu0 0.0
      %6851 = vmatprep.subr.mxu0 0.0
      %6852 = vmatpush1.msra.mxu0 0.0
      %6853 = vmatprep.subr.mxu0 0.0
      %6854 = vmatpush1.msra.mxu0 0.0
      %6855 = vmatprep.subr.mxu0 0.0
      %6856 = vmatpush1.msra.mxu0 0.0
      %6857 = vmatprep.subr.mxu0 0.0
      %6858 = vmatpush1.msra.mxu0 0.0
      %6859 = vmatprep.subr.mxu0 0.0
      %6860 = vmatpush1.msra.mxu0 0.0
      %6861 = vmatprep.subr.mxu0 0.0
      %6862 = vmatpush1.msra.mxu0 0.0
      %6863 = vmatprep.subr.mxu0 0.0
      %6864 = vmatpush1.msra.mxu0 0.0
      %6865 = vmatprep.subr.mxu0 0.0
      %6866 = vmatpush1.msra.mxu0 0.0
      %6867 = vmatprep.subr.mxu0 0.0
      %6868 = vmatpush1.msra.mxu0 0.0
      %6869 = vmatprep.subr.mxu0 0.0
      %6870 = vmatpush1.msra.mxu0 0.0
      %6871 = vmatprep.subr.mxu0 0.0
      %6872 = vmatpush1.msra.mxu0 0.0
      %6873 = vmatprep.subr.mxu0 0.0
      %6874 = vmatpush1.msra.mxu0 0.0
      %6875 = vmatprep.subr.mxu0 0.0
      %6876 = vmatpush1.msra.mxu0 0.0
      %6877 = vmatprep.subr.mxu0 0.0
      %6878 = vmatpush1.msra.mxu0 0.0
      %6879 = vmatprep.subr.mxu0 0.0
      %6880 = vmatpush1.msra.mxu0 0.0
      %6881 = vmatprep.subr.mxu0 0.0
      %6882 = vmatpush1.msra.mxu0 0.0
      %6883 = vmatprep.subr.mxu0 0.0
      %6884 = vmatpush1.msra.mxu0 0.0
      %6885 = vmatprep.mubr.f32.mxu0 0.0
      %6886 = vmatmul.mubr.f32.gmra.mrb[0].mxu0 %v6798
      %v6887 = vpop.f32.mrb[0].mxu0
      %v6888 = vadd.f32 0.0, %v6887
      %v6889 = vpop.f32.mrb[0].mxu0
      %v6890 = vadd.f32 0.0, %v6889
      %6891 = vmatprep.mubr.f32.mxu0 0.0
      %6892 = vmatmul.mubr.f32.gmra.mrb[0].mxu0 %v6801
      %v6893 = vpop.f32.mrb[0].mxu0
      %v6894 = vadd.f32 0.0, %v6893
      %v6895 = vpop.f32.mrb[0].mxu0
      %v6896 = vadd.f32 0.0, %v6895
      %6897 = vmatprep.mubr.f32.mxu0 0.0
      %6898 = vmatmul.mubr.f32.gmra.mrb[0].mxu0 %v6804
      %v6899 = vpop.f32.mrb[0].mxu0
      %v6900 = vadd.f32 0.0, %v6899
      %v6901 = vpop.f32.mrb[0].mxu0
      %v6902 = vadd.f32 0.0, %v6901
      %6903 = vmatprep.mubr.f32.mxu0 0.0
      %6904 = vmatmul.mubr.f32.gmra.mrb[0].mxu0 %v6807
      %v6905 = vpop.f32.mrb[0].mxu0
      %v6906 = vadd.f32 0.0, %v6905
      %v6907 = vpop.f32.mrb[0].mxu0
      %v6908 = vadd.f32 0.0, %v6907
      %6909 = vmatprep.mubr.f32.mxu0 0.0
      %6910 = vmatmul.mubr.f32.gmra.mrb[0].mxu0 %v6810
      %v6911 = vpop.f32.mrb[0].mxu0
      %v6912 = vadd.f32 0.0, %v6911
      %v6913 = vpop.f32.mrb[0].mxu0
      %v6914 = vadd.f32 0.0, %v6913
      %6915 = vmatprep.mubr.f32.mxu0 0.0
      %6916 = vmatmul.mubr.f32.gmra.mrb[0].mxu0 %v6813
      %v6917 = vpop.f32.mrb[0].mxu0
      %v6918 = vadd.f32 0.0, %v6917
      %v6919 = vpop.f32.mrb[0].mxu0
      %v6920 = vadd.f32 0.0, %v6919
      %6921 = vmatprep.mubr.f32.mxu0 0.0
      %6922 = vmatmul.mubr.f32.gmra.mrb[0].mxu0 %v6816
      %v6923 = vpop.f32.mrb[0].mxu0
      %v6924 = vadd.f32 0.0, %v6923
      %v6925 = vpop.f32.mrb[0].mxu0
      %v6926 = vadd.f32 0.0, %v6925
      %6927 = vmatprep.mubr.f32.mxu0 0.0
      %6928 = vmatmul.mubr.f32.gmra.mrb[0].mxu0 %v6819
      %v6929 = vpop.f32.mrb[0].mxu0
      %v6930 = vadd.f32 0.0, %v6929
      %v6931 = vpop.f32.mrb[0].mxu0
      %v6932 = vadd.f32 0.0, %v6931
      %6933 = vdwg.mxu0
      %6934 = vst [vmem:[#allocation2 + $0x10] sm:$0xff] %v6888
      %6935 = vst [vmem:[#allocation2 + $0x18] sm:$0xff] %v6890
      %6936 = vst [vmem:[#allocation2 + $0x20] sm:$0xff] %v6894
      %6937 = vst [vmem:[#allocation2 + $0x28] sm:$0xff] %v6896
      %6938 = vst [vmem:[#allocation2 + $0x30] sm:$0xff] %v6900
      %6939 = vst [vmem:[#allocation2 + $0x38] sm:$0xff] %v6902
      %6940 = vst [vmem:[#allocation2 + $0x40] sm:$0xff] %v6906
      %6941 = vst [vmem:[#allocation2 + $0x48] sm:$0xff] %v6908
      %6942 = vst [vmem:[#allocation2 + $0x50] sm:$0xff] %v6912
      %6943 = vst [vmem:[#allocation2 + $0x58] sm:$0xff] %v6914
      %6944 = vst [vmem:[#allocation2 + $0x60] sm:$0xff] %v6918
      %6945 = vst [vmem:[#allocation2 + $0x68] sm:$0xff] %v6920
      %6946 = vst [vmem:[#allocation2 + $0x70] sm:$0xff] %v6924
      %6947 = vst [vmem:[#allocation2 + $0x78] sm:$0xff] %v6926
      %6948 = vst [vmem:[#allocation2 + $0x80] sm:$0xff] %v6930
      %6949 = vst [vmem:[#allocation2 + $0x88] sm:$0xff] %v6932
      %v6950 = vld [vmem:[#allocation2] sm:$0xe0]
      %v6951 = vld [vmem:[#allocation2 + $0x8] sm:$0xe0]
      %v6952 = vld [vmem:[#allocation2 + $0x10] sm:$0xff]
      %v6953 = vld [vmem:[#allocation2 + $0x18] sm:$0xff]
      %v6954 = vld [vmem:[#allocation2 + $0x20] sm:$0xff]
      %v6955 = vld [vmem:[#allocation2 + $0x28] sm:$0xff]
      %v6956 = vld [vmem:[#allocation2 + $0x30] sm:$0xff]
      %v6957 = vld [vmem:[#allocation2 + $0x38] sm:$0xff]
      %v6958 = vld [vmem:[#allocation2 + $0x40] sm:$0xff]
      %v6959 = vld [vmem:[#allocation2 + $0x48] sm:$0xff]
      %v6960 = vld [vmem:[#allocation2 + $0x50] sm:$0xff]
      %v6961 = vld [vmem:[#allocation2 + $0x58] sm:$0xff]
      %v6962 = vld [vmem:[#allocation2 + $0x60] sm:$0xff]
      %v6963 = vld [vmem:[#allocation2 + $0x68] sm:$0xff]
      %v6964 = vld [vmem:[#allocation2 + $0x70] sm:$0xff]
      %v6965 = vld [vmem:[#allocation2 + $0x78] sm:$0xff]
      %v6966 = vld [vmem:[#allocation2 + $0x80] sm:$0x1f]
      %v6967 = vld [vmem:[#allocation2 + $0x88] sm:$0x1f]
      %v6968 = vld [vmem:[%s7] sm:$0xff]
      %v6969 = vld [vmem:[%s7 + $0x8] sm:$0xff]
      %v6970 = vld [vmem:[%s7 + $0x10] sm:$0xff]
      %v6971 = vld [vmem:[%s7 + $0x18] sm:$0xff]
      %v6972 = vld [vmem:[%s7 + $0x20] sm:$0xff]
      %v6973 = vld [vmem:[%s7 + $0x28] sm:$0xff]
      %v6974 = vld [vmem:[%s7 + $0x30] sm:$0xff]
      %v6975 = vld [vmem:[%s7 + $0x38] sm:$0xff]
      %v6976 = vld [vmem:[%s7 + $0x40] sm:$0xff]
      %v6977 = vld [vmem:[%s7 + $0x48] sm:$0xff]
      %v6978 = vld [vmem:[%s7 + $0x50] sm:$0xff]
      %v6979 = vld [vmem:[%s7 + $0x58] sm:$0xff]
      %v6980 = vld [vmem:[%s7 + $0x60] sm:$0xff]
      %v6981 = vld [vmem:[%s7 + $0x68] sm:$0xff]
      %v6982 = vld [vmem:[%s7 + $0x70] sm:$0xff]
      %v6983 = vld [vmem:[%s7 + $0x78] sm:$0xff]
      %v6984 = vld [vmem:[%s7 + $0x80] sm:$0xff]
      %v6985 = vld [vmem:[%s7 + $0x88] sm:$0xff]
      %v6986 = vld [vmem:[%s7 + $0x90] sm:$0xff]
      %v6987 = vld [vmem:[%s7 + $0x98] sm:$0xff]
      %v6988 = vld [vmem:[%s7 + $0xa0] sm:$0xff]
      %v6989 = vld [vmem:[%s7 + $0xa8] sm:$0xff]
      %v6990 = vld [vmem:[%s7 + $0xb0] sm:$0xff]
      %v6991 = vld [vmem:[%s7 + $0xb8] sm:$0xff]
      %v6992 = vld [vmem:[%s7 + $0xc0] sm:$0xff]
      %v6993 = vld [vmem:[%s7 + $0xc8] sm:$0xff]
      %v6994 = vld [vmem:[%s7 + $0xd0] sm:$0xff]
      %v6995 = vld [vmem:[%s7 + $0xd8] sm:$0xff]
      %v6996 = vld [vmem:[%s7 + $0xe0] sm:$0xff]
      %v6997 = vld [vmem:[%s7 + $0xe8] sm:$0xff]
      %v6998 = vld [vmem:[%s7 + $0xf0] sm:$0xff]
      %v6999 = vld [vmem:[%s7 + $0xf8] sm:$0xff]
      %v7000 = vld [vmem:[%s7 + $0x100] sm:$0xff]
      %v7001 = vld [vmem:[%s7 + $0x108] sm:$0xff]
      %v7002 = vld [vmem:[%s7 + $0x110] sm:$0xff]
      %v7003 = vld [vmem:[%s7 + $0x118] sm:$0xff]
      %v7004 = vld [vmem:[%s7 + $0x120] sm:$0xff]
      %v7005 = vld [vmem:[%s7 + $0x128] sm:$0xff]
      %v7006 = vld [vmem:[%s7 + $0x130] sm:$0xff]
      %v7007 = vld [vmem:[%s7 + $0x138] sm:$0xff]
      %v7008 = vld [vmem:[%s7 + $0x140] sm:$0xff]
      %v7009 = vld [vmem:[%s7 + $0x148] sm:$0xff]
      %v7010 = vld [vmem:[%s7 + $0x150] sm:$0xff]
      %v7011 = vld [vmem:[%s7 + $0x158] sm:$0xff]
      %v7012 = vld [vmem:[%s7 + $0x160] sm:$0xff]
      %v7013 = vld [vmem:[%s7 + $0x168] sm:$0xff]
      %v7014 = vld [vmem:[%s7 + $0x170] sm:$0xff]
      %v7015 = vld [vmem:[%s7 + $0x178] sm:$0xff]
      %v7016 = vld [vmem:[%s7 + $0x180] sm:$0xff]
      %v7017 = vld [vmem:[%s7 + $0x188] sm:$0xff]
      %v7018 = vld [vmem:[%s7 + $0x190] sm:$0xff]
      %v7019 = vld [vmem:[%s7 + $0x198] sm:$0xff]
      %v7020 = vld [vmem:[%s7 + $0x1a0] sm:$0xff]
      %v7021 = vld [vmem:[%s7 + $0x1a8] sm:$0xff]
      %v7022 = vld [vmem:[%s7 + $0x1b0] sm:$0xff]
      %v7023 = vld [vmem:[%s7 + $0x1b8] sm:$0xff]
      %v7024 = vld [vmem:[%s7 + $0x1c0] sm:$0xff]
      %v7025 = vld [vmem:[%s7 + $0x1c8] sm:$0xff]
      %v7026 = vld [vmem:[%s7 + $0x1d0] sm:$0xff]
      %v7027 = vld [vmem:[%s7 + $0x1d8] sm:$0xff]
      %v7028 = vld [vmem:[%s7 + $0x1e0] sm:$0xff]
      %v7029 = vld [vmem:[%s7 + $0x1e8] sm:$0xff]
      %v7030 = vld [vmem:[%s7 + $0x1f0] sm:$0xff]
      %v7031 = vld [vmem:[%s7 + $0x1f8] sm:$0xff]
      %v7032 = vld [vmem:[#allocation2] sm:$0xc0]
      %v7033 = vld [vmem:[#allocation2 + $0x8] sm:$0xc0]
      %v7034 = vld [vmem:[#allocation2 + $0x80] sm:$0x3f]
      %v7035 = vld [vmem:[#allocation2 + $0x88] sm:$0x3f]
      %s7036 = scalar_lea.vmem %s7, 512
      %v7037 = vld [vmem:[%s7036] sm:$0xff]
      %v7038 = vld [vmem:[%s7036 + $0x8] sm:$0xff]
      %v7039 = vld [vmem:[%s7036 + $0x10] sm:$0xff]
      %v7040 = vld [vmem:[%s7036 + $0x18] sm:$0xff]
      %v7041 = vld [vmem:[%s7036 + $0x20] sm:$0xff]
      %v7042 = vld [vmem:[%s7036 + $0x28] sm:$0xff]
      %v7043 = vld [vmem:[%s7036 + $0x30] sm:$0xff]
      %v7044 = vld [vmem:[%s7036 + $0x38] sm:$0xff]
      %v7045 = vld [vmem:[%s7036 + $0x40] sm:$0xff]
      %v7046 = vld [vmem:[%s7036 + $0x48] sm:$0xff]
      %v7047 = vld [vmem:[%s7036 + $0x50] sm:$0xff]
      %v7048 = vld [vmem:[%s7036 + $0x58] sm:$0xff]
      %v7049 = vld [vmem:[%s7036 + $0x60] sm:$0xff]
      %v7050 = vld [vmem:[%s7036 + $0x68] sm:$0xff]
      %v7051 = vld [vmem:[%s7036 + $0x70] sm:$0xff]
      %v7052 = vld [vmem:[%s7036 + $0x78] sm:$0xff]
      %v7053 = vld [vmem:[%s7036 + $0x80] sm:$0xff]
      %v7054 = vld [vmem:[%s7036 + $0x88] sm:$0xff]
      %v7055 = vld [vmem:[%s7036 + $0x90] sm:$0xff]
      %v7056 = vld [vmem:[%s7036 + $0x98] sm:$0xff]
      %v7057 = vld [vmem:[%s7036 + $0xa0] sm:$0xff]
      %v7058 = vld [vmem:[%s7036 + $0xa8] sm:$0xff]
      %v7059 = vld [vmem:[%s7036 + $0xb0] sm:$0xff]
      %v7060 = vld [vmem:[%s7036 + $0xb8] sm:$0xff]
      %v7061 = vld [vmem:[%s7036 + $0xc0] sm:$0xff]
      %v7062 = vld [vmem:[%s7036 + $0xc8] sm:$0xff]
      %v7063 = vld [vmem:[%s7036 + $0xd0] sm:$0xff]
      %v7064 = vld [vmem:[%s7036 + $0xd8] sm:$0xff]
      %v7065 = vld [vmem:[%s7036 + $0xe0] sm:$0xff]
      %v7066 = vld [vmem:[%s7036 + $0xe8] sm:$0xff]
      %v7067 = vld [vmem:[%s7036 + $0xf0] sm:$0xff]
      %v7068 = vld [vmem:[%s7036 + $0xf8] sm:$0xff]
      %v7069 = vld [vmem:[%s7036 + $0x100] sm:$0xff]
      %v7070 = vld [vmem:[%s7036 + $0x108] sm:$0xff]
      %v7071 = vld [vmem:[%s7036 + $0x110] sm:$0xff]
      %v7072 = vld [vmem:[%s7036 + $0x118] sm:$0xff]
      %v7073 = vld [vmem:[%s7036 + $0x120] sm:$0xff]
      %v7074 = vld [vmem:[%s7036 + $0x128] sm:$0xff]
      %v7075 = vld [vmem:[%s7036 + $0x130] sm:$0xff]
      %v7076 = vld [vmem:[%s7036 + $0x138] sm:$0xff]
      %v7077 = vld [vmem:[%s7036 + $0x140] sm:$0xff]
      %v7078 = vld [vmem:[%s7036 + $0x148] sm:$0xff]
      %v7079 = vld [vmem:[%s7036 + $0x150] sm:$0xff]
      %v7080 = vld [vmem:[%s7036 + $0x158] sm:$0xff]
      %v7081 = vld [vmem:[%s7036 + $0x160] sm:$0xff]
      %v7082 = vld [vmem:[%s7036 + $0x168] sm:$0xff]
      %v7083 = vld [vmem:[%s7036 + $0x170] sm:$0xff]
      %v7084 = vld [vmem:[%s7036 + $0x178] sm:$0xff]
      %v7085 = vld [vmem:[%s7036 + $0x180] sm:$0xff]
      %v7086 = vld [vmem:[%s7036 + $0x188] sm:$0xff]
      %v7087 = vld [vmem:[%s7036 + $0x190] sm:$0xff]
      %v7088 = vld [vmem:[%s7036 + $0x198] sm:$0xff]
      %v7089 = vld [vmem:[%s7036 + $0x1a0] sm:$0xff]
      %v7090 = vld [vmem:[%s7036 + $0x1a8] sm:$0xff]
      %v7091 = vld [vmem:[%s7036 + $0x1b0] sm:$0xff]
      %v7092 = vld [vmem:[%s7036 + $0x1b8] sm:$0xff]
      %v7093 = vld [vmem:[%s7036 + $0x1c0] sm:$0xff]
      %v7094 = vld [vmem:[%s7036 + $0x1c8] sm:$0xff]
      %v7095 = vld [vmem:[%s7036 + $0x1d0] sm:$0xff]
      %v7096 = vld [vmem:[%s7036 + $0x1d8] sm:$0xff]
      %v7097 = vld [vmem:[%s7036 + $0x1e0] sm:$0xff]
      %v7098 = vld [vmem:[%s7036 + $0x1e8] sm:$0xff]
      %v7099 = vld [vmem:[%s7036 + $0x1f0] sm:$0xff]
      %v7100 = vld [vmem:[%s7036 + $0x1f8] sm:$0xff]
      %v7119 = vrot.slane %v7032, 6
      %v7120 = vrot.slane %v6952, 6
      %v7121 = vsel %vm630, %v7119, %v7120
      %v7122 = vrot.slane %v7033, 6
      %v7123 = vrot.slane %v6953, 6
      %v7124 = vsel %vm630, %v7122, %v7123
      %v7125 = vrot.slane %v6954, 6
      %v7126 = vsel %vm630, %v7120, %v7125
      %v7127 = vrot.slane %v6955, 6
      %v7128 = vsel %vm630, %v7123, %v7127
      %v7129 = vrot.slane %v6956, 6
      %v7130 = vsel %vm630, %v7125, %v7129
      %v7131 = vrot.slane %v6957, 6
      %v7132 = vsel %vm630, %v7127, %v7131
      %v7133 = vrot.slane %v6958, 6
      %v7134 = vsel %vm630, %v7129, %v7133
      %v7135 = vrot.slane %v6959, 6
      %v7136 = vsel %vm630, %v7131, %v7135
      %v7137 = vrot.slane %v6960, 6
      %v7138 = vsel %vm630, %v7133, %v7137
      %v7139 = vrot.slane %v6961, 6
      %v7140 = vsel %vm630, %v7135, %v7139
      %v7141 = vrot.slane %v6962, 6
      %v7142 = vsel %vm630, %v7137, %v7141
      %v7143 = vrot.slane %v6963, 6
      %v7144 = vsel %vm630, %v7139, %v7143
      %v7145 = vrot.slane %v6964, 6
      %v7146 = vsel %vm630, %v7141, %v7145
      %v7147 = vrot.slane %v6965, 6
      %v7148 = vsel %vm630, %v7143, %v7147
      %v7149 = vrot.slane %v7034, 6
      %v7150 = vsel %vm630, %v7145, %v7149
      %v7151 = vrot.slane %v7035, 6
      %v7152 = vsel %vm630, %v7147, %v7151
      %7169 = vmatprep.subr.mxu0 %v7038
      %7170 = vmatpush1.msra.mxu0 %v7037
      %7171 = vmatprep.subr.mxu0 %v7040
      %7172 = vmatpush1.msra.mxu0 %v7039
      %7173 = vmatprep.subr.mxu0 %v7042
      %7174 = vmatpush1.msra.mxu0 %v7041
      %7175 = vmatprep.subr.mxu0 %v7044
      %7176 = vmatpush1.msra.mxu0 %v7043
      %7177 = vmatprep.subr.mxu0 %v7046
      %7178 = vmatpush1.msra.mxu0 %v7045
      %7179 = vmatprep.subr.mxu0 %v7048
      %7180 = vmatpush1.msra.mxu0 %v7047
      %7181 = vmatprep.subr.mxu0 %v7050
      %7182 = vmatpush1.msra.mxu0 %v7049
      %7183 = vmatprep.subr.mxu0 %v7052
      %7184 = vmatpush1.msra.mxu0 %v7051
      %7185 = vmatprep.subr.mxu0 %v7054
      %7186 = vmatpush1.msra.mxu0 %v7053
      %7187 = vmatprep.subr.mxu0 %v7056
      %7188 = vmatpush1.msra.mxu0 %v7055
      %7189 = vmatprep.subr.mxu0 %v7058
      %7190 = vmatpush1.msra.mxu0 %v7057
      %7191 = vmatprep.subr.mxu0 %v7060
      %7192 = vmatpush1.msra.mxu0 %v7059
      %7193 = vmatprep.subr.mxu0 %v7062
      %7194 = vmatpush1.msra.mxu0 %v7061
      %7195 = vmatprep.subr.mxu0 %v7064
      %7196 = vmatpush1.msra.mxu0 %v7063
      %7197 = vmatprep.subr.mxu0 %v7066
      %7198 = vmatpush1.msra.mxu0 %v7065
      %7199 = vmatprep.subr.mxu0 %v7068
      %7200 = vmatpush1.msra.mxu0 %v7067
      %7201 = vmatprep.subr.mxu0 %v7070
      %7202 = vmatpush1.msra.mxu0 %v7069
      %7203 = vmatprep.subr.mxu0 %v7072
      %7204 = vmatpush1.msra.mxu0 %v7071
      %7205 = vmatprep.subr.mxu0 %v7074
      %7206 = vmatpush1.msra.mxu0 %v7073
      %7207 = vmatprep.subr.mxu0 %v7076
      %7208 = vmatpush1.msra.mxu0 %v7075
      %7209 = vmatprep.subr.mxu0 %v7078
      %7210 = vmatpush1.msra.mxu0 %v7077
      %7211 = vmatprep.subr.mxu0 %v7080
      %7212 = vmatpush1.msra.mxu0 %v7079
      %7213 = vmatprep.subr.mxu0 %v7082
      %7214 = vmatpush1.msra.mxu0 %v7081
      %7215 = vmatprep.subr.mxu0 %v7084
      %7216 = vmatpush1.msra.mxu0 %v7083
      %7217 = vmatprep.subr.mxu0 %v7086
      %7218 = vmatpush1.msra.mxu0 %v7085
      %7219 = vmatprep.subr.mxu0 %v7088
      %7220 = vmatpush1.msra.mxu0 %v7087
      %7221 = vmatprep.subr.mxu0 %v7090
      %7222 = vmatpush1.msra.mxu0 %v7089
      %7223 = vmatprep.subr.mxu0 %v7092
      %7224 = vmatpush1.msra.mxu0 %v7091
      %7225 = vmatprep.subr.mxu0 %v7094
      %7226 = vmatpush1.msra.mxu0 %v7093
      %7227 = vmatprep.subr.mxu0 %v7096
      %7228 = vmatpush1.msra.mxu0 %v7095
      %7229 = vmatprep.subr.mxu0 %v7098
      %7230 = vmatpush1.msra.mxu0 %v7097
      %7231 = vmatprep.subr.mxu0 %v7100
      %7232 = vmatpush1.msra.mxu0 %v7099
      %7233 = vmatprep.mubr.f32.mxu0 %v7124
      %7234 = vmatmul.mubr.f32.gmra.mrb[0].mxu0 %v7121
      %v7235 = vpop.f32.mrb[0].mxu0
      %v7236 = vadd.f32 0.0, %v7235
      %v7237 = vpop.f32.mrb[0].mxu0
      %v7238 = vadd.f32 0.0, %v7237
      %7239 = vmatprep.mubr.f32.mxu0 %v7128
      %7240 = vmatmul.mubr.f32.gmra.mrb[0].mxu0 %v7126
      %v7241 = vpop.f32.mrb[0].mxu0
      %v7242 = vadd.f32 0.0, %v7241
      %v7243 = vpop.f32.mrb[0].mxu0
      %v7244 = vadd.f32 0.0, %v7243
      %7245 = vmatprep.mubr.f32.mxu0 %v7132
      %7246 = vmatmul.mubr.f32.gmra.mrb[0].mxu0 %v7130
      %v7247 = vpop.f32.mrb[0].mxu0
      %v7248 = vadd.f32 0.0, %v7247
      %v7249 = vpop.f32.mrb[0].mxu0
      %v7250 = vadd.f32 0.0, %v7249
      %7251 = vmatprep.mubr.f32.mxu0 %v7136
      %7252 = vmatmul.mubr.f32.gmra.mrb[0].mxu0 %v7134
      %v7253 = vpop.f32.mrb[0].mxu0
      %v7254 = vadd.f32 0.0, %v7253
      %v7255 = vpop.f32.mrb[0].mxu0
      %v7256 = vadd.f32 0.0, %v7255
      %7257 = vmatprep.mubr.f32.mxu0 %v7140
      %7258 = vmatmul.mubr.f32.gmra.mrb[0].mxu0 %v7138
      %v7259 = vpop.f32.mrb[0].mxu0
      %v7260 = vadd.f32 0.0, %v7259
      %v7261 = vpop.f32.mrb[0].mxu0
      %v7262 = vadd.f32 0.0, %v7261
      %7263 = vmatprep.mubr.f32.mxu0 %v7144
      %7264 = vmatmul.mubr.f32.gmra.mrb[0].mxu0 %v7142
      %v7265 = vpop.f32.mrb[0].mxu0
      %v7266 = vadd.f32 0.0, %v7265
      %v7267 = vpop.f32.mrb[0].mxu0
      %v7268 = vadd.f32 0.0, %v7267
      %7269 = vmatprep.mubr.f32.mxu0 %v7148
      %7270 = vmatmul.mubr.f32.gmra.mrb[0].mxu0 %v7146
      %v7271 = vpop.f32.mrb[0].mxu0
      %v7272 = vadd.f32 0.0, %v7271
      %v7273 = vpop.f32.mrb[0].mxu0
      %v7274 = vadd.f32 0.0, %v7273
      %7275 = vmatprep.mubr.f32.mxu0 %v7152
      %7276 = vmatmul.mubr.f32.gmra.mrb[0].mxu0 %v7150
      %v7277 = vpop.f32.mrb[0].mxu0
      %v7278 = vadd.f32 0.0, %v7277
      %v7279 = vpop.f32.mrb[0].mxu0
      %v7280 = vadd.f32 0.0, %v7279
      %7281 = vdwg.mxu0
      %vm7286 = vcmask 1042432
      %v7287 = vrot.slane %v6950, 5
      %v7288 = vrot.slane %v6952, 5
      %v7289 = vsel %vm7286, %v7287, %v7288
      %v7290 = vrot.slane %v6951, 5
      %v7291 = vrot.slane %v6953, 5
      %v7292 = vsel %vm7286, %v7290, %v7291
      %v7293 = vrot.slane %v6954, 5
      %v7294 = vsel %vm7286, %v7288, %v7293
      %v7295 = vrot.slane %v6955, 5
      %v7296 = vsel %vm7286, %v7291, %v7295
      %v7297 = vrot.slane %v6956, 5
      %v7298 = vsel %vm7286, %v7293, %v7297
      %v7299 = vrot.slane %v6957, 5
      %v7300 = vsel %vm7286, %v7295, %v7299
      %v7301 = vrot.slane %v6958, 5
      %v7302 = vsel %vm7286, %v7297, %v7301
      %v7303 = vrot.slane %v6959, 5
      %v7304 = vsel %vm7286, %v7299, %v7303
      %v7305 = vrot.slane %v6960, 5
      %v7306 = vsel %vm7286, %v7301, %v7305
      %v7307 = vrot.slane %v6961, 5
      %v7308 = vsel %vm7286, %v7303, %v7307
      %v7309 = vrot.slane %v6962, 5
      %v7310 = vsel %vm7286, %v7305, %v7309
      %v7311 = vrot.slane %v6963, 5
      %v7312 = vsel %vm7286, %v7307, %v7311
      %v7313 = vrot.slane %v6964, 5
      %v7314 = vsel %vm7286, %v7309, %v7313
      %v7315 = vrot.slane %v6965, 5
      %v7316 = vsel %vm7286, %v7311, %v7315
      %v7317 = vrot.slane %v6966, 5
      %v7318 = vsel %vm7286, %v7313, %v7317
      %v7319 = vrot.slane %v6967, 5
      %v7320 = vsel %vm7286, %v7315, %v7319
      %7337 = vmatprep.subr.mxu0 %v6969
      %7338 = vmatpush1.msra.mxu0 %v6968
      %7339 = vmatprep.subr.mxu0 %v6971
      %7340 = vmatpush1.msra.mxu0 %v6970
      %7341 = vmatprep.subr.mxu0 %v6973
      %7342 = vmatpush1.msra.mxu0 %v6972
      %7343 = vmatprep.subr.mxu0 %v6975
      %7344 = vmatpush1.msra.mxu0 %v6974
      %7345 = vmatprep.subr.mxu0 %v6977
      %7346 = vmatpush1.msra.mxu0 %v6976
      %7347 = vmatprep.subr.mxu0 %v6979
      %7348 = vmatpush1.msra.mxu0 %v6978
      %7349 = vmatprep.subr.mxu0 %v6981
      %7350 = vmatpush1.msra.mxu0 %v6980
      %7351 = vmatprep.subr.mxu0 %v6983
      %7352 = vmatpush1.msra.mxu0 %v6982
      %7353 = vmatprep.subr.mxu0 %v6985
      %7354 = vmatpush1.msra.mxu0 %v6984
      %7355 = vmatprep.subr.mxu0 %v6987
      %7356 = vmatpush1.msra.mxu0 %v6986
      %7357 = vmatprep.subr.mxu0 %v6989
      %7358 = vmatpush1.msra.mxu0 %v6988
      %7359 = vmatprep.subr.mxu0 %v6991
      %7360 = vmatpush1.msra.mxu0 %v6990
      %7361 = vmatprep.subr.mxu0 %v6993
      %7362 = vmatpush1.msra.mxu0 %v6992
      %7363 = vmatprep.subr.mxu0 %v6995
      %7364 = vmatpush1.msra.mxu0 %v6994
      %7365 = vmatprep.subr.mxu0 %v6997
      %7366 = vmatpush1.msra.mxu0 %v6996
      %7367 = vmatprep.subr.mxu0 %v6999
      %7368 = vmatpush1.msra.mxu0 %v6998
      %7369 = vmatprep.subr.mxu0 %v7001
      %7370 = vmatpush1.msra.mxu0 %v7000
      %7371 = vmatprep.subr.mxu0 %v7003
      %7372 = vmatpush1.msra.mxu0 %v7002
      %7373 = vmatprep.subr.mxu0 %v7005
      %7374 = vmatpush1.msra.mxu0 %v7004
      %7375 = vmatprep.subr.mxu0 %v7007
      %7376 = vmatpush1.msra.mxu0 %v7006
      %7377 = vmatprep.subr.mxu0 %v7009
      %7378 = vmatpush1.msra.mxu0 %v7008
      %7379 = vmatprep.subr.mxu0 %v7011
      %7380 = vmatpush1.msra.mxu0 %v7010
      %7381 = vmatprep.subr.mxu0 %v7013
      %7382 = vmatpush1.msra.mxu0 %v7012
      %7383 = vmatprep.subr.mxu0 %v7015
      %7384 = vmatpush1.msra.mxu0 %v7014
      %7385 = vmatprep.subr.mxu0 %v7017
      %7386 = vmatpush1.msra.mxu0 %v7016
      %7387 = vmatprep.subr.mxu0 %v7019
      %7388 = vmatpush1.msra.mxu0 %v7018
      %7389 = vmatprep.subr.mxu0 %v7021
      %7390 = vmatpush1.msra.mxu0 %v7020
      %7391 = vmatprep.subr.mxu0 %v7023
      %7392 = vmatpush1.msra.mxu0 %v7022
      %7393 = vmatprep.subr.mxu0 %v7025
      %7394 = vmatpush1.msra.mxu0 %v7024
      %7395 = vmatprep.subr.mxu0 %v7027
      %7396 = vmatpush1.msra.mxu0 %v7026
      %7397 = vmatprep.subr.mxu0 %v7029
      %7398 = vmatpush1.msra.mxu0 %v7028
      %7399 = vmatprep.subr.mxu0 %v7031
      %7400 = vmatpush1.msra.mxu0 %v7030
      %7401 = vmatprep.mubr.f32.mxu0 %v7292
      %7402 = vmatmul.mubr.f32.gmra.mrb[0].mxu0 %v7289
      %v7403 = vpop.f32.mrb[0].mxu0
      %v7404 = vadd.f32 %v7236, %v7403
      %v7405 = vpop.f32.mrb[0].mxu0
      %v7406 = vadd.f32 %v7238, %v7405
      %7407 = vmatprep.mubr.f32.mxu0 %v7296
      %7408 = vmatmul.mubr.f32.gmra.mrb[0].mxu0 %v7294
      %v7409 = vpop.f32.mrb[0].mxu0
      %v7410 = vadd.f32 %v7242, %v7409
      %v7411 = vpop.f32.mrb[0].mxu0
      %v7412 = vadd.f32 %v7244, %v7411
      %7413 = vmatprep.mubr.f32.mxu0 %v7300
      %7414 = vmatmul.mubr.f32.gmra.mrb[0].mxu0 %v7298
      %v7415 = vpop.f32.mrb[0].mxu0
      %v7416 = vadd.f32 %v7248, %v7415
      %v7417 = vpop.f32.mrb[0].mxu0
      %v7418 = vadd.f32 %v7250, %v7417
      %7419 = vmatprep.mubr.f32.mxu0 %v7304
      %7420 = vmatmul.mubr.f32.gmra.mrb[0].mxu0 %v7302
      %v7421 = vpop.f32.mrb[0].mxu0
      %v7422 = vadd.f32 %v7254, %v7421
      %v7423 = vpop.f32.mrb[0].mxu0
      %v7424 = vadd.f32 %v7256, %v7423
      %7425 = vmatprep.mubr.f32.mxu0 %v7308
      %7426 = vmatmul.mubr.f32.gmra.mrb[0].mxu0 %v7306
      %v7427 = vpop.f32.mrb[0].mxu0
      %v7428 = vadd.f32 %v7260, %v7427
      %v7429 = vpop.f32.mrb[0].mxu0
      %v7430 = vadd.f32 %v7262, %v7429
      %7431 = vmatprep.mubr.f32.mxu0 %v7312
      %7432 = vmatmul.mubr.f32.gmra.mrb[0].mxu0 %v7310
      %v7433 = vpop.f32.mrb[0].mxu0
      %v7434 = vadd.f32 %v7266, %v7433
      %v7435 = vpop.f32.mrb[0].mxu0
      %v7436 = vadd.f32 %v7268, %v7435
      %7437 = vmatprep.mubr.f32.mxu0 %v7316
      %7438 = vmatmul.mubr.f32.gmra.mrb[0].mxu0 %v7314
      %v7439 = vpop.f32.mrb[0].mxu0
      %v7440 = vadd.f32 %v7272, %v7439
      %v7441 = vpop.f32.mrb[0].mxu0
      %v7442 = vadd.f32 %v7274, %v7441
      %7443 = vmatprep.mubr.f32.mxu0 %v7320
      %7444 = vmatmul.mubr.f32.gmra.mrb[0].mxu0 %v7318
      %v7445 = vpop.f32.mrb[0].mxu0
      %v7446 = vadd.f32 %v7278, %v7445
      %v7447 = vpop.f32.mrb[0].mxu0
      %v7448 = vadd.f32 %v7280, %v7447
      %7449 = vdwg.mxu0
      %v7450 = vld [vmem:[#allocation2] sm:$0x80]
      %v7451 = vld [vmem:[#allocation2 + $0x8] sm:$0x80]
      %v7452 = vld [vmem:[#allocation2 + $0x80] sm:$0x7f]
      %v7453 = vld [vmem:[#allocation2 + $0x88] sm:$0x7f]
      %s7454 = scalar_lea.vmem %s7, 1024
      %v7455 = vld [vmem:[%s7454] sm:$0xff]
      %v7456 = vld [vmem:[%s7454 + $0x8] sm:$0xff]
      %v7457 = vld [vmem:[%s7454 + $0x10] sm:$0xff]
      %v7458 = vld [vmem:[%s7454 + $0x18] sm:$0xff]
      %v7459 = vld [vmem:[%s7454 + $0x20] sm:$0xff]
      %v7460 = vld [vmem:[%s7454 + $0x28] sm:$0xff]
      %v7461 = vld [vmem:[%s7454 + $0x30] sm:$0xff]
      %v7462 = vld [vmem:[%s7454 + $0x38] sm:$0xff]
      %v7463 = vld [vmem:[%s7454 + $0x40] sm:$0xff]
      %v7464 = vld [vmem:[%s7454 + $0x48] sm:$0xff]
      %v7465 = vld [vmem:[%s7454 + $0x50] sm:$0xff]
      %v7466 = vld [vmem:[%s7454 + $0x58] sm:$0xff]
      %v7467 = vld [vmem:[%s7454 + $0x60] sm:$0xff]
      %v7468 = vld [vmem:[%s7454 + $0x68] sm:$0xff]
      %v7469 = vld [vmem:[%s7454 + $0x70] sm:$0xff]
      %v7470 = vld [vmem:[%s7454 + $0x78] sm:$0xff]
      %v7471 = vld [vmem:[%s7454 + $0x80] sm:$0xff]
      %v7472 = vld [vmem:[%s7454 + $0x88] sm:$0xff]
      %v7473 = vld [vmem:[%s7454 + $0x90] sm:$0xff]
      %v7474 = vld [vmem:[%s7454 + $0x98] sm:$0xff]
      %v7475 = vld [vmem:[%s7454 + $0xa0] sm:$0xff]
      %v7476 = vld [vmem:[%s7454 + $0xa8] sm:$0xff]
      %v7477 = vld [vmem:[%s7454 + $0xb0] sm:$0xff]
      %v7478 = vld [vmem:[%s7454 + $0xb8] sm:$0xff]
      %v7479 = vld [vmem:[%s7454 + $0xc0] sm:$0xff]
      %v7480 = vld [vmem:[%s7454 + $0xc8] sm:$0xff]
      %v7481 = vld [vmem:[%s7454 + $0xd0] sm:$0xff]
      %v7482 = vld [vmem:[%s7454 + $0xd8] sm:$0xff]
      %v7483 = vld [vmem:[%s7454 + $0xe0] sm:$0xff]
      %v7484 = vld [vmem:[%s7454 + $0xe8] sm:$0xff]
      %v7485 = vld [vmem:[%s7454 + $0xf0] sm:$0xff]
      %v7486 = vld [vmem:[%s7454 + $0xf8] sm:$0xff]
      %v7487 = vld [vmem:[%s7454 + $0x100] sm:$0xff]
      %v7488 = vld [vmem:[%s7454 + $0x108] sm:$0xff]
      %v7489 = vld [vmem:[%s7454 + $0x110] sm:$0xff]
      %v7490 = vld [vmem:[%s7454 + $0x118] sm:$0xff]
      %v7491 = vld [vmem:[%s7454 + $0x120] sm:$0xff]
      %v7492 = vld [vmem:[%s7454 + $0x128] sm:$0xff]
      %v7493 = vld [vmem:[%s7454 + $0x130] sm:$0xff]
      %v7494 = vld [vmem:[%s7454 + $0x138] sm:$0xff]
      %v7495 = vld [vmem:[%s7454 + $0x140] sm:$0xff]
      %v7496 = vld [vmem:[%s7454 + $0x148] sm:$0xff]
      %v7497 = vld [vmem:[%s7454 + $0x150] sm:$0xff]
      %v7498 = vld [vmem:[%s7454 + $0x158] sm:$0xff]
      %v7499 = vld [vmem:[%s7454 + $0x160] sm:$0xff]
      %v7500 = vld [vmem:[%s7454 + $0x168] sm:$0xff]
      %v7501 = vld [vmem:[%s7454 + $0x170] sm:$0xff]
      %v7502 = vld [vmem:[%s7454 + $0x178] sm:$0xff]
      %v7503 = vld [vmem:[%s7454 + $0x180] sm:$0xff]
      %v7504 = vld [vmem:[%s7454 + $0x188] sm:$0xff]
      %v7505 = vld [vmem:[%s7454 + $0x190] sm:$0xff]
      %v7506 = vld [vmem:[%s7454 + $0x198] sm:$0xff]
      %v7507 = vld [vmem:[%s7454 + $0x1a0] sm:$0xff]
      %v7508 = vld [vmem:[%s7454 + $0x1a8] sm:$0xff]
      %v7509 = vld [vmem:[%s7454 + $0x1b0] sm:$0xff]
      %v7510 = vld [vmem:[%s7454 + $0x1b8] sm:$0xff]
      %v7511 = vld [vmem:[%s7454 + $0x1c0] sm:$0xff]
      %v7512 = vld [vmem:[%s7454 + $0x1c8] sm:$0xff]
      %v7513 = vld [vmem:[%s7454 + $0x1d0] sm:$0xff]
      %v7514 = vld [vmem:[%s7454 + $0x1d8] sm:$0xff]
      %v7515 = vld [vmem:[%s7454 + $0x1e0] sm:$0xff]
      %v7516 = vld [vmem:[%s7454 + $0x1e8] sm:$0xff]
      %v7517 = vld [vmem:[%s7454 + $0x1f0] sm:$0xff]
      %v7518 = vld [vmem:[%s7454 + $0x1f8] sm:$0xff]
      %v7523 = vrot.slane %v7450, 7
      %v7524 = vrot.slane %v6952, 7
      %v7525 = vsel %vm964, %v7523, %v7524
      %v7526 = vrot.slane %v7451, 7
      %v7527 = vrot.slane %v6953, 7
      %v7528 = vsel %vm964, %v7526, %v7527
      %v7529 = vrot.slane %v6954, 7
      %v7530 = vsel %vm964, %v7524, %v7529
      %v7531 = vrot.slane %v6955, 7
      %v7532 = vsel %vm964, %v7527, %v7531
      %v7533 = vrot.slane %v6956, 7
      %v7534 = vsel %vm964, %v7529, %v7533
      %v7535 = vrot.slane %v6957, 7
      %v7536 = vsel %vm964, %v7531, %v7535
      %v7537 = vrot.slane %v6958, 7
      %v7538 = vsel %vm964, %v7533, %v7537
      %v7539 = vrot.slane %v6959, 7
      %v7540 = vsel %vm964, %v7535, %v7539
      %v7541 = vrot.slane %v6960, 7
      %v7542 = vsel %vm964, %v7537, %v7541
      %v7543 = vrot.slane %v6961, 7
      %v7544 = vsel %vm964, %v7539, %v7543
      %v7545 = vrot.slane %v6962, 7
      %v7546 = vsel %vm964, %v7541, %v7545
      %v7547 = vrot.slane %v6963, 7
      %v7548 = vsel %vm964, %v7543, %v7547
      %v7549 = vrot.slane %v6964, 7
      %v7550 = vsel %vm964, %v7545, %v7549
      %v7551 = vrot.slane %v6965, 7
      %v7552 = vsel %vm964, %v7547, %v7551
      %v7553 = vrot.slane %v7452, 7
      %v7554 = vsel %vm964, %v7549, %v7553
      %v7555 = vrot.slane %v7453, 7
      %v7556 = vsel %vm964, %v7551, %v7555
      %7573 = vmatprep.subr.mxu0 %v7456
      %7574 = vmatpush1.msra.mxu0 %v7455
      %7575 = vmatprep.subr.mxu0 %v7458
      %7576 = vmatpush1.msra.mxu0 %v7457
      %7577 = vmatprep.subr.mxu0 %v7460
      %7578 = vmatpush1.msra.mxu0 %v7459
      %7579 = vmatprep.subr.mxu0 %v7462
      %7580 = vmatpush1.msra.mxu0 %v7461
      %7581 = vmatprep.subr.mxu0 %v7464
      %7582 = vmatpush1.msra.mxu0 %v7463
      %7583 = vmatprep.subr.mxu0 %v7466
      %7584 = vmatpush1.msra.mxu0 %v7465
      %7585 = vmatprep.subr.mxu0 %v7468
      %7586 = vmatpush1.msra.mxu0 %v7467
      %7587 = vmatprep.subr.mxu0 %v7470
      %7588 = vmatpush1.msra.mxu0 %v7469
      %7589 = vmatprep.subr.mxu0 %v7472
      %7590 = vmatpush1.msra.mxu0 %v7471
      %7591 = vmatprep.subr.mxu0 %v7474
      %7592 = vmatpush1.msra.mxu0 %v7473
      %7593 = vmatprep.subr.mxu0 %v7476
      %7594 = vmatpush1.msra.mxu0 %v7475
      %7595 = vmatprep.subr.mxu0 %v7478
      %7596 = vmatpush1.msra.mxu0 %v7477
      %7597 = vmatprep.subr.mxu0 %v7480
      %7598 = vmatpush1.msra.mxu0 %v7479
      %7599 = vmatprep.subr.mxu0 %v7482
      %7600 = vmatpush1.msra.mxu0 %v7481
      %7601 = vmatprep.subr.mxu0 %v7484
      %7602 = vmatpush1.msra.mxu0 %v7483
      %7603 = vmatprep.subr.mxu0 %v7486
      %7604 = vmatpush1.msra.mxu0 %v7485
      %7605 = vmatprep.subr.mxu0 %v7488
      %7606 = vmatpush1.msra.mxu0 %v7487
      %7607 = vmatprep.subr.mxu0 %v7490
      %7608 = vmatpush1.msra.mxu0 %v7489
      %7609 = vmatprep.subr.mxu0 %v7492
      %7610 = vmatpush1.msra.mxu0 %v7491
      %7611 = vmatprep.subr.mxu0 %v7494
      %7612 = vmatpush1.msra.mxu0 %v7493
      %7613 = vmatprep.subr.mxu0 %v7496
      %7614 = vmatpush1.msra.mxu0 %v7495
      %7615 = vmatprep.subr.mxu0 %v7498
      %7616 = vmatpush1.msra.mxu0 %v7497
      %7617 = vmatprep.subr.mxu0 %v7500
      %7618 = vmatpush1.msra.mxu0 %v7499
      %7619 = vmatprep.subr.mxu0 %v7502
      %7620 = vmatpush1.msra.mxu0 %v7501
      %7621 = vmatprep.subr.mxu0 %v7504
      %7622 = vmatpush1.msra.mxu0 %v7503
      %7623 = vmatprep.subr.mxu0 %v7506
      %7624 = vmatpush1.msra.mxu0 %v7505
      %7625 = vmatprep.subr.mxu0 %v7508
      %7626 = vmatpush1.msra.mxu0 %v7507
      %7627 = vmatprep.subr.mxu0 %v7510
      %7628 = vmatpush1.msra.mxu0 %v7509
      %7629 = vmatprep.subr.mxu0 %v7512
      %7630 = vmatpush1.msra.mxu0 %v7511
      %7631 = vmatprep.subr.mxu0 %v7514
      %7632 = vmatpush1.msra.mxu0 %v7513
      %7633 = vmatprep.subr.mxu0 %v7516
      %7634 = vmatpush1.msra.mxu0 %v7515
      %7635 = vmatprep.subr.mxu0 %v7518
      %7636 = vmatpush1.msra.mxu0 %v7517
      %7637 = vmatprep.mubr.f32.mxu0 %v7528
      %7638 = vmatmul.mubr.f32.gmra.mrb[0].mxu0 %v7525
      %v7639 = vpop.f32.mrb[0].mxu0
      %v7640 = vadd.f32 0.0, %v7639
      %v7641 = vpop.f32.mrb[0].mxu0
      %v7642 = vadd.f32 0.0, %v7641
      %7643 = vmatprep.mubr.f32.mxu0 %v7532
      %7644 = vmatmul.mubr.f32.gmra.mrb[0].mxu0 %v7530
      %v7645 = vpop.f32.mrb[0].mxu0
      %v7646 = vadd.f32 0.0, %v7645
      %v7647 = vpop.f32.mrb[0].mxu0
      %v7648 = vadd.f32 0.0, %v7647
      %7649 = vmatprep.mubr.f32.mxu0 %v7536
      %7650 = vmatmul.mubr.f32.gmra.mrb[0].mxu0 %v7534
      %v7651 = vpop.f32.mrb[0].mxu0
      %v7652 = vadd.f32 0.0, %v7651
      %v7653 = vpop.f32.mrb[0].mxu0
      %v7654 = vadd.f32 0.0, %v7653
      %7655 = vmatprep.mubr.f32.mxu0 %v7540
      %7656 = vmatmul.mubr.f32.gmra.mrb[0].mxu0 %v7538
      %v7657 = vpop.f32.mrb[0].mxu0
      %v7658 = vadd.f32 0.0, %v7657
      %v7659 = vpop.f32.mrb[0].mxu0
      %v7660 = vadd.f32 0.0, %v7659
      %7661 = vmatprep.mubr.f32.mxu0 %v7544
      %7662 = vmatmul.mubr.f32.gmra.mrb[0].mxu0 %v7542
      %v7663 = vpop.f32.mrb[0].mxu0
      %v7664 = vadd.f32 0.0, %v7663
      %v7665 = vpop.f32.mrb[0].mxu0
      %v7666 = vadd.f32 0.0, %v7665
      %7667 = vmatprep.mubr.f32.mxu0 %v7548
      %7668 = vmatmul.mubr.f32.gmra.mrb[0].mxu0 %v7546
      %v7669 = vpop.f32.mrb[0].mxu0
      %v7670 = vadd.f32 0.0, %v7669
      %v7671 = vpop.f32.mrb[0].mxu0
      %v7672 = vadd.f32 0.0, %v7671
      %7673 = vmatprep.mubr.f32.mxu0 %v7552
      %7674 = vmatmul.mubr.f32.gmra.mrb[0].mxu0 %v7550
      %v7675 = vpop.f32.mrb[0].mxu0
      %v7676 = vadd.f32 0.0, %v7675
      %v7677 = vpop.f32.mrb[0].mxu0
      %v7678 = vadd.f32 0.0, %v7677
      %7679 = vmatprep.mubr.f32.mxu0 %v7556
      %7680 = vmatmul.mubr.f32.gmra.mrb[0].mxu0 %v7554
      %v7681 = vpop.f32.mrb[0].mxu0
      %v7682 = vadd.f32 0.0, %v7681
      %v7683 = vpop.f32.mrb[0].mxu0
      %v7684 = vadd.f32 0.0, %v7683
      %7685 = vdwg.mxu0
      %v7686 = vadd.f32 %v7404, %v7640
      %v7687 = vadd.f32 %v7406, %v7642
      %v7688 = vadd.f32 %v7410, %v7646
      %v7689 = vadd.f32 %v7412, %v7648
      %v7690 = vadd.f32 %v7416, %v7652
      %v7691 = vadd.f32 %v7418, %v7654
      %v7692 = vadd.f32 %v7422, %v7658
      %v7693 = vadd.f32 %v7424, %v7660
      %v7694 = vadd.f32 %v7428, %v7664
      %v7695 = vadd.f32 %v7430, %v7666
      %v7696 = vadd.f32 %v7434, %v7670
      %v7697 = vadd.f32 %v7436, %v7672
      %v7698 = vadd.f32 %v7440, %v7676
      %v7699 = vadd.f32 %v7442, %v7678
      %v7700 = vadd.f32 %v7446, %v7682
      %v7701 = vadd.f32 %v7448, %v7684
      %v7702 = vld [vmem:[#allocation2 + $0x80] sm:$0xff]
      %v7703 = vld [vmem:[#allocation2 + $0x88] sm:$0xff]
      %s7704 = scalar_lea.vmem %s7, 1536
      %v7705 = vld [vmem:[%s7704] sm:$0xff]
      %v7706 = vld [vmem:[%s7704 + $0x8] sm:$0xff]
      %v7707 = vld [vmem:[%s7704 + $0x10] sm:$0xff]
      %v7708 = vld [vmem:[%s7704 + $0x18] sm:$0xff]
      %v7709 = vld [vmem:[%s7704 + $0x20] sm:$0xff]
      %v7710 = vld [vmem:[%s7704 + $0x28] sm:$0xff]
      %v7711 = vld [vmem:[%s7704 + $0x30] sm:$0xff]
      %v7712 = vld [vmem:[%s7704 + $0x38] sm:$0xff]
      %v7713 = vld [vmem:[%s7704 + $0x40] sm:$0xff]
      %v7714 = vld [vmem:[%s7704 + $0x48] sm:$0xff]
      %v7715 = vld [vmem:[%s7704 + $0x50] sm:$0xff]
      %v7716 = vld [vmem:[%s7704 + $0x58] sm:$0xff]
      %v7717 = vld [vmem:[%s7704 + $0x60] sm:$0xff]
      %v7718 = vld [vmem:[%s7704 + $0x68] sm:$0xff]
      %v7719 = vld [vmem:[%s7704 + $0x70] sm:$0xff]
      %v7720 = vld [vmem:[%s7704 + $0x78] sm:$0xff]
      %v7721 = vld [vmem:[%s7704 + $0x80] sm:$0xff]
      %v7722 = vld [vmem:[%s7704 + $0x88] sm:$0xff]
      %v7723 = vld [vmem:[%s7704 + $0x90] sm:$0xff]
      %v7724 = vld [vmem:[%s7704 + $0x98] sm:$0xff]
      %v7725 = vld [vmem:[%s7704 + $0xa0] sm:$0xff]
      %v7726 = vld [vmem:[%s7704 + $0xa8] sm:$0xff]
      %v7727 = vld [vmem:[%s7704 + $0xb0] sm:$0xff]
      %v7728 = vld [vmem:[%s7704 + $0xb8] sm:$0xff]
      %v7729 = vld [vmem:[%s7704 + $0xc0] sm:$0xff]
      %v7730 = vld [vmem:[%s7704 + $0xc8] sm:$0xff]
      %v7731 = vld [vmem:[%s7704 + $0xd0] sm:$0xff]
      %v7732 = vld [vmem:[%s7704 + $0xd8] sm:$0xff]
      %v7733 = vld [vmem:[%s7704 + $0xe0] sm:$0xff]
      %v7734 = vld [vmem:[%s7704 + $0xe8] sm:$0xff]
      %v7735 = vld [vmem:[%s7704 + $0xf0] sm:$0xff]
      %v7736 = vld [vmem:[%s7704 + $0xf8] sm:$0xff]
      %v7737 = vld [vmem:[%s7704 + $0x100] sm:$0xff]
      %v7738 = vld [vmem:[%s7704 + $0x108] sm:$0xff]
      %v7739 = vld [vmem:[%s7704 + $0x110] sm:$0xff]
      %v7740 = vld [vmem:[%s7704 + $0x118] sm:$0xff]
      %v7741 = vld [vmem:[%s7704 + $0x120] sm:$0xff]
      %v7742 = vld [vmem:[%s7704 + $0x128] sm:$0xff]
      %v7743 = vld [vmem:[%s7704 + $0x130] sm:$0xff]
      %v7744 = vld [vmem:[%s7704 + $0x138] sm:$0xff]
      %v7745 = vld [vmem:[%s7704 + $0x140] sm:$0xff]
      %v7746 = vld [vmem:[%s7704 + $0x148] sm:$0xff]
      %v7747 = vld [vmem:[%s7704 + $0x150] sm:$0xff]
      %v7748 = vld [vmem:[%s7704 + $0x158] sm:$0xff]
      %v7749 = vld [vmem:[%s7704 + $0x160] sm:$0xff]
      %v7750 = vld [vmem:[%s7704 + $0x168] sm:$0xff]
      %v7751 = vld [vmem:[%s7704 + $0x170] sm:$0xff]
      %v7752 = vld [vmem:[%s7704 + $0x178] sm:$0xff]
      %v7753 = vld [vmem:[%s7704 + $0x180] sm:$0xff]
      %v7754 = vld [vmem:[%s7704 + $0x188] sm:$0xff]
      %v7755 = vld [vmem:[%s7704 + $0x190] sm:$0xff]
      %v7756 = vld [vmem:[%s7704 + $0x198] sm:$0xff]
      %v7757 = vld [vmem:[%s7704 + $0x1a0] sm:$0xff]
      %v7758 = vld [vmem:[%s7704 + $0x1a8] sm:$0xff]
      %v7759 = vld [vmem:[%s7704 + $0x1b0] sm:$0xff]
      %v7760 = vld [vmem:[%s7704 + $0x1b8] sm:$0xff]
      %v7761 = vld [vmem:[%s7704 + $0x1c0] sm:$0xff]
      %v7762 = vld [vmem:[%s7704 + $0x1c8] sm:$0xff]
      %v7763 = vld [vmem:[%s7704 + $0x1d0] sm:$0xff]
      %v7764 = vld [vmem:[%s7704 + $0x1d8] sm:$0xff]
      %v7765 = vld [vmem:[%s7704 + $0x1e0] sm:$0xff]
      %v7766 = vld [vmem:[%s7704 + $0x1e8] sm:$0xff]
      %v7767 = vld [vmem:[%s7704 + $0x1f0] sm:$0xff]
      %v7768 = vld [vmem:[%s7704 + $0x1f8] sm:$0xff]
      %7769 = vmatprep.subr.mxu0 %v7706
      %7770 = vmatpush1.msra.mxu0 %v7705
      %7771 = vmatprep.subr.mxu0 %v7708
      %7772 = vmatpush1.msra.mxu0 %v7707
      %7773 = vmatprep.subr.mxu0 %v7710
      %7774 = vmatpush1.msra.mxu0 %v7709
      %7775 = vmatprep.subr.mxu0 %v7712
      %7776 = vmatpush1.msra.mxu0 %v7711
      %7777 = vmatprep.subr.mxu0 %v7714
      %7778 = vmatpush1.msra.mxu0 %v7713
      %7779 = vmatprep.subr.mxu0 %v7716
      %7780 = vmatpush1.msra.mxu0 %v7715
      %7781 = vmatprep.subr.mxu0 %v7718
      %7782 = vmatpush1.msra.mxu0 %v7717
      %7783 = vmatprep.subr.mxu0 %v7720
      %7784 = vmatpush1.msra.mxu0 %v7719
      %7785 = vmatprep.subr.mxu0 %v7722
      %7786 = vmatpush1.msra.mxu0 %v7721
      %7787 = vmatprep.subr.mxu0 %v7724
      %7788 = vmatpush1.msra.mxu0 %v7723
      %7789 = vmatprep.subr.mxu0 %v7726
      %7790 = vmatpush1.msra.mxu0 %v7725
      %7791 = vmatprep.subr.mxu0 %v7728
      %7792 = vmatpush1.msra.mxu0 %v7727
      %7793 = vmatprep.subr.mxu0 %v7730
      %7794 = vmatpush1.msra.mxu0 %v7729
      %7795 = vmatprep.subr.mxu0 %v7732
      %7796 = vmatpush1.msra.mxu0 %v7731
      %7797 = vmatprep.subr.mxu0 %v7734
      %7798 = vmatpush1.msra.mxu0 %v7733
      %7799 = vmatprep.subr.mxu0 %v7736
      %7800 = vmatpush1.msra.mxu0 %v7735
      %7801 = vmatprep.subr.mxu0 %v7738
      %7802 = vmatpush1.msra.mxu0 %v7737
      %7803 = vmatprep.subr.mxu0 %v7740
      %7804 = vmatpush1.msra.mxu0 %v7739
      %7805 = vmatprep.subr.mxu0 %v7742
      %7806 = vmatpush1.msra.mxu0 %v7741
      %7807 = vmatprep.subr.mxu0 %v7744
      %7808 = vmatpush1.msra.mxu0 %v7743
      %7809 = vmatprep.subr.mxu0 %v7746
      %7810 = vmatpush1.msra.mxu0 %v7745
      %7811 = vmatprep.subr.mxu0 %v7748
      %7812 = vmatpush1.msra.mxu0 %v7747
      %7813 = vmatprep.subr.mxu0 %v7750
      %7814 = vmatpush1.msra.mxu0 %v7749
      %7815 = vmatprep.subr.mxu0 %v7752
      %7816 = vmatpush1.msra.mxu0 %v7751
      %7817 = vmatprep.subr.mxu0 %v7754
      %7818 = vmatpush1.msra.mxu0 %v7753
      %7819 = vmatprep.subr.mxu0 %v7756
      %7820 = vmatpush1.msra.mxu0 %v7755
      %7821 = vmatprep.subr.mxu0 %v7758
      %7822 = vmatpush1.msra.mxu0 %v7757
      %7823 = vmatprep.subr.mxu0 %v7760
      %7824 = vmatpush1.msra.mxu0 %v7759
      %7825 = vmatprep.subr.mxu0 %v7762
      %7826 = vmatpush1.msra.mxu0 %v7761
      %7827 = vmatprep.subr.mxu0 %v7764
      %7828 = vmatpush1.msra.mxu0 %v7763
      %7829 = vmatprep.subr.mxu0 %v7766
      %7830 = vmatpush1.msra.mxu0 %v7765
      %7831 = vmatprep.subr.mxu0 %v7768
      %7832 = vmatpush1.msra.mxu0 %v7767
      %7833 = vmatprep.mubr.f32.mxu0 %v6953
      %7834 = vmatmul.mubr.f32.gmra.mrb[0].mxu0 %v6952
      %v7835 = vpop.f32.mrb[0].mxu0
      %v7836 = vadd.f32 0.0, %v7835
      %v7837 = vpop.f32.mrb[0].mxu0
      %v7838 = vadd.f32 0.0, %v7837
      %7839 = vmatprep.mubr.f32.mxu0 %v6955
      %7840 = vmatmul.mubr.f32.gmra.mrb[0].mxu0 %v6954
      %v7841 = vpop.f32.mrb[0].mxu0
      %v7842 = vadd.f32 0.0, %v7841
      %v7843 = vpop.f32.mrb[0].mxu0
      %v7844 = vadd.f32 0.0, %v7843
      %7845 = vmatprep.mubr.f32.mxu0 %v6957
      %7846 = vmatmul.mubr.f32.gmra.mrb[0].mxu0 %v6956
      %v7847 = vpop.f32.mrb[0].mxu0
      %v7848 = vadd.f32 0.0, %v7847
      %v7849 = vpop.f32.mrb[0].mxu0
      %v7850 = vadd.f32 0.0, %v7849
      %7851 = vmatprep.mubr.f32.mxu0 %v6959
      %7852 = vmatmul.mubr.f32.gmra.mrb[0].mxu0 %v6958
      %v7853 = vpop.f32.mrb[0].mxu0
      %v7854 = vadd.f32 0.0, %v7853
      %v7855 = vpop.f32.mrb[0].mxu0
      %v7856 = vadd.f32 0.0, %v7855
      %7857 = vmatprep.mubr.f32.mxu0 %v6961
      %7858 = vmatmul.mubr.f32.gmra.mrb[0].mxu0 %v6960
      %v7859 = vpop.f32.mrb[0].mxu0
      %v7860 = vadd.f32 0.0, %v7859
      %v7861 = vpop.f32.mrb[0].mxu0
      %v7862 = vadd.f32 0.0, %v7861
      %7863 = vmatprep.mubr.f32.mxu0 %v6963
      %7864 = vmatmul.mubr.f32.gmra.mrb[0].mxu0 %v6962
      %v7865 = vpop.f32.mrb[0].mxu0
      %v7866 = vadd.f32 0.0, %v7865
      %v7867 = vpop.f32.mrb[0].mxu0
      %v7868 = vadd.f32 0.0, %v7867
      %7869 = vmatprep.mubr.f32.mxu0 %v6965
      %7870 = vmatmul.mubr.f32.gmra.mrb[0].mxu0 %v6964
      %v7871 = vpop.f32.mrb[0].mxu0
      %v7872 = vadd.f32 0.0, %v7871
      %v7873 = vpop.f32.mrb[0].mxu0
      %v7874 = vadd.f32 0.0, %v7873
      %7875 = vmatprep.mubr.f32.mxu0 %v7703
      %7876 = vmatmul.mubr.f32.gmra.mrb[0].mxu0 %v7702
      %v7877 = vpop.f32.mrb[0].mxu0
      %v7878 = vadd.f32 0.0, %v7877
      %v7879 = vpop.f32.mrb[0].mxu0
      %v7880 = vadd.f32 0.0, %v7879
      %7881 = vdwg.mxu0
      %v7882 = vadd.f32 %v7686, %v7836
      %v7883 = vadd.f32 %v7687, %v7838
      %v7884 = vadd.f32 %v7688, %v7842
      %v7885 = vadd.f32 %v7689, %v7844
      %v7886 = vadd.f32 %v7690, %v7848
      %v7887 = vadd.f32 %v7691, %v7850
      %v7888 = vadd.f32 %v7692, %v7854
      %v7889 = vadd.f32 %v7693, %v7856
      %v7890 = vadd.f32 %v7694, %v7860
      %v7891 = vadd.f32 %v7695, %v7862
      %v7892 = vadd.f32 %v7696, %v7866
      %v7893 = vadd.f32 %v7697, %v7868
      %v7894 = vadd.f32 %v7698, %v7872
      %v7895 = vadd.f32 %v7699, %v7874
      %v7896 = vadd.f32 %v7700, %v7878
      %v7897 = vadd.f32 %v7701, %v7880
      %v7898 = vld [vmem:[#allocation2 + $0x10] sm:$0xfe]
      %v7899 = vld [vmem:[#allocation2 + $0x18] sm:$0xfe]
      %v7900 = vld [vmem:[#allocation2 + $0x20] sm:$0xff]
      %v7901 = vld [vmem:[#allocation2 + $0x28] sm:$0xff]
      %v7902 = vld [vmem:[#allocation2 + $0x30] sm:$0xff]
      %v7903 = vld [vmem:[#allocation2 + $0x38] sm:$0xff]
      %v7904 = vld [vmem:[#allocation2 + $0x40] sm:$0xff]
      %v7905 = vld [vmem:[#allocation2 + $0x48] sm:$0xff]
      %v7906 = vld [vmem:[#allocation2 + $0x50] sm:$0xff]
      %v7907 = vld [vmem:[#allocation2 + $0x58] sm:$0xff]
      %v7908 = vld [vmem:[#allocation2 + $0x60] sm:$0xff]
      %v7909 = vld [vmem:[#allocation2 + $0x68] sm:$0xff]
      %v7910 = vld [vmem:[#allocation2 + $0x70] sm:$0xff]
      %v7911 = vld [vmem:[#allocation2 + $0x78] sm:$0xff]
      %v7912 = vld [vmem:[#allocation2 + $0x80] sm:$0xff]
      %v7913 = vld [vmem:[#allocation2 + $0x88] sm:$0xff]
      %v7914 = vld [vmem:[#allocation2 + $0x90] sm:$0x1]
      %v7915 = vld [vmem:[#allocation2 + $0x98] sm:$0x1]
      %s7916 = scalar_lea.vmem %s7, 2048
      %v7917 = vld [vmem:[%s7916] sm:$0xff]
      %v7918 = vld [vmem:[%s7916 + $0x8] sm:$0xff]
      %v7919 = vld [vmem:[%s7916 + $0x10] sm:$0xff]
      %v7920 = vld [vmem:[%s7916 + $0x18] sm:$0xff]
      %v7921 = vld [vmem:[%s7916 + $0x20] sm:$0xff]
      %v7922 = vld [vmem:[%s7916 + $0x28] sm:$0xff]
      %v7923 = vld [vmem:[%s7916 + $0x30] sm:$0xff]
      %v7924 = vld [vmem:[%s7916 + $0x38] sm:$0xff]
      %v7925 = vld [vmem:[%s7916 + $0x40] sm:$0xff]
      %v7926 = vld [vmem:[%s7916 + $0x48] sm:$0xff]
      %v7927 = vld [vmem:[%s7916 + $0x50] sm:$0xff]
      %v7928 = vld [vmem:[%s7916 + $0x58] sm:$0xff]
      %v7929 = vld [vmem:[%s7916 + $0x60] sm:$0xff]
      %v7930 = vld [vmem:[%s7916 + $0x68] sm:$0xff]
      %v7931 = vld [vmem:[%s7916 + $0x70] sm:$0xff]
      %v7932 = vld [vmem:[%s7916 + $0x78] sm:$0xff]
      %v7933 = vld [vmem:[%s7916 + $0x80] sm:$0xff]
      %v7934 = vld [vmem:[%s7916 + $0x88] sm:$0xff]
      %v7935 = vld [vmem:[%s7916 + $0x90] sm:$0xff]
      %v7936 = vld [vmem:[%s7916 + $0x98] sm:$0xff]
      %v7937 = vld [vmem:[%s7916 + $0xa0] sm:$0xff]
      %v7938 = vld [vmem:[%s7916 + $0xa8] sm:$0xff]
      %v7939 = vld [vmem:[%s7916 + $0xb0] sm:$0xff]
      %v7940 = vld [vmem:[%s7916 + $0xb8] sm:$0xff]
      %v7941 = vld [vmem:[%s7916 + $0xc0] sm:$0xff]
      %v7942 = vld [vmem:[%s7916 + $0xc8] sm:$0xff]
      %v7943 = vld [vmem:[%s7916 + $0xd0] sm:$0xff]
      %v7944 = vld [vmem:[%s7916 + $0xd8] sm:$0xff]
      %v7945 = vld [vmem:[%s7916 + $0xe0] sm:$0xff]
      %v7946 = vld [vmem:[%s7916 + $0xe8] sm:$0xff]
      %v7947 = vld [vmem:[%s7916 + $0xf0] sm:$0xff]
      %v7948 = vld [vmem:[%s7916 + $0xf8] sm:$0xff]
      %v7949 = vld [vmem:[%s7916 + $0x100] sm:$0xff]
      %v7950 = vld [vmem:[%s7916 + $0x108] sm:$0xff]
      %v7951 = vld [vmem:[%s7916 + $0x110] sm:$0xff]
      %v7952 = vld [vmem:[%s7916 + $0x118] sm:$0xff]
      %v7953 = vld [vmem:[%s7916 + $0x120] sm:$0xff]
      %v7954 = vld [vmem:[%s7916 + $0x128] sm:$0xff]
      %v7955 = vld [vmem:[%s7916 + $0x130] sm:$0xff]
      %v7956 = vld [vmem:[%s7916 + $0x138] sm:$0xff]
      %v7957 = vld [vmem:[%s7916 + $0x140] sm:$0xff]
      %v7958 = vld [vmem:[%s7916 + $0x148] sm:$0xff]
      %v7959 = vld [vmem:[%s7916 + $0x150] sm:$0xff]
      %v7960 = vld [vmem:[%s7916 + $0x158] sm:$0xff]
      %v7961 = vld [vmem:[%s7916 + $0x160] sm:$0xff]
      %v7962 = vld [vmem:[%s7916 + $0x168] sm:$0xff]
      %v7963 = vld [vmem:[%s7916 + $0x170] sm:$0xff]
      %v7964 = vld [vmem:[%s7916 + $0x178] sm:$0xff]
      %v7965 = vld [vmem:[%s7916 + $0x180] sm:$0xff]
      %v7966 = vld [vmem:[%s7916 + $0x188] sm:$0xff]
      %v7967 = vld [vmem:[%s7916 + $0x190] sm:$0xff]
      %v7968 = vld [vmem:[%s7916 + $0x198] sm:$0xff]
      %v7969 = vld [vmem:[%s7916 + $0x1a0] sm:$0xff]
      %v7970 = vld [vmem:[%s7916 + $0x1a8] sm:$0xff]
      %v7971 = vld [vmem:[%s7916 + $0x1b0] sm:$0xff]
      %v7972 = vld [vmem:[%s7916 + $0x1b8] sm:$0xff]
      %v7973 = vld [vmem:[%s7916 + $0x1c0] sm:$0xff]
      %v7974 = vld [vmem:[%s7916 + $0x1c8] sm:$0xff]
      %v7975 = vld [vmem:[%s7916 + $0x1d0] sm:$0xff]
      %v7976 = vld [vmem:[%s7916 + $0x1d8] sm:$0xff]
      %v7977 = vld [vmem:[%s7916 + $0x1e0] sm:$0xff]
      %v7978 = vld [vmem:[%s7916 + $0x1e8] sm:$0xff]
      %v7979 = vld [vmem:[%s7916 + $0x1f0] sm:$0xff]
      %v7980 = vld [vmem:[%s7916 + $0x1f8] sm:$0xff]
      %v7999 = vrot.slane %v7898, 1
      %v8000 = vrot.slane %v7900, 1
      %v8001 = vsel %vm2512, %v7999, %v8000
      %v8002 = vrot.slane %v7899, 1
      %v8003 = vrot.slane %v7901, 1
      %v8004 = vsel %vm2512, %v8002, %v8003
      %v8005 = vrot.slane %v7902, 1
      %v8006 = vsel %vm2512, %v8000, %v8005
      %v8007 = vrot.slane %v7903, 1
      %v8008 = vsel %vm2512, %v8003, %v8007
      %v8009 = vrot.slane %v7904, 1
      %v8010 = vsel %vm2512, %v8005, %v8009
      %v8011 = vrot.slane %v7905, 1
      %v8012 = vsel %vm2512, %v8007, %v8011
      %v8013 = vrot.slane %v7906, 1
      %v8014 = vsel %vm2512, %v8009, %v8013
      %v8015 = vrot.slane %v7907, 1
      %v8016 = vsel %vm2512, %v8011, %v8015
      %v8017 = vrot.slane %v7908, 1
      %v8018 = vsel %vm2512, %v8013, %v8017
      %v8019 = vrot.slane %v7909, 1
      %v8020 = vsel %vm2512, %v8015, %v8019
      %v8021 = vrot.slane %v7910, 1
      %v8022 = vsel %vm2512, %v8017, %v8021
      %v8023 = vrot.slane %v7911, 1
      %v8024 = vsel %vm2512, %v8019, %v8023
      %v8025 = vrot.slane %v7912, 1
      %v8026 = vsel %vm2512, %v8021, %v8025
      %v8027 = vrot.slane %v7913, 1
      %v8028 = vsel %vm2512, %v8023, %v8027
      %v8029 = vrot.slane %v7914, 1
      %v8030 = vsel %vm2512, %v8025, %v8029
      %v8031 = vrot.slane %v7915, 1
      %v8032 = vsel %vm2512, %v8027, %v8031
      %8049 = vmatprep.subr.mxu0 %v7918
      %8050 = vmatpush1.msra.mxu0 %v7917
      %8051 = vmatprep.subr.mxu0 %v7920
      %8052 = vmatpush1.msra.mxu0 %v7919
      %8053 = vmatprep.subr.mxu0 %v7922
      %8054 = vmatpush1.msra.mxu0 %v7921
      %8055 = vmatprep.subr.mxu0 %v7924
      %8056 = vmatpush1.msra.mxu0 %v7923
      %8057 = vmatprep.subr.mxu0 %v7926
      %8058 = vmatpush1.msra.mxu0 %v7925
      %8059 = vmatprep.subr.mxu0 %v7928
      %8060 = vmatpush1.msra.mxu0 %v7927
      %8061 = vmatprep.subr.mxu0 %v7930
      %8062 = vmatpush1.msra.mxu0 %v7929
      %8063 = vmatprep.subr.mxu0 %v7932
      %8064 = vmatpush1.msra.mxu0 %v7931
      %8065 = vmatprep.subr.mxu0 %v7934
      %8066 = vmatpush1.msra.mxu0 %v7933
      %8067 = vmatprep.subr.mxu0 %v7936
      %8068 = vmatpush1.msra.mxu0 %v7935
      %8069 = vmatprep.subr.mxu0 %v7938
      %8070 = vmatpush1.msra.mxu0 %v7937
      %8071 = vmatprep.subr.mxu0 %v7940
      %8072 = vmatpush1.msra.mxu0 %v7939
      %8073 = vmatprep.subr.mxu0 %v7942
      %8074 = vmatpush1.msra.mxu0 %v7941
      %8075 = vmatprep.subr.mxu0 %v7944
      %8076 = vmatpush1.msra.mxu0 %v7943
      %8077 = vmatprep.subr.mxu0 %v7946
      %8078 = vmatpush1.msra.mxu0 %v7945
      %8079 = vmatprep.subr.mxu0 %v7948
      %8080 = vmatpush1.msra.mxu0 %v7947
      %8081 = vmatprep.subr.mxu0 %v7950
      %8082 = vmatpush1.msra.mxu0 %v7949
      %8083 = vmatprep.subr.mxu0 %v7952
      %8084 = vmatpush1.msra.mxu0 %v7951
      %8085 = vmatprep.subr.mxu0 %v7954
      %8086 = vmatpush1.msra.mxu0 %v7953
      %8087 = vmatprep.subr.mxu0 %v7956
      %8088 = vmatpush1.msra.mxu0 %v7955
      %8089 = vmatprep.subr.mxu0 %v7958
      %8090 = vmatpush1.msra.mxu0 %v7957
      %8091 = vmatprep.subr.mxu0 %v7960
      %8092 = vmatpush1.msra.mxu0 %v7959
      %8093 = vmatprep.subr.mxu0 %v7962
      %8094 = vmatpush1.msra.mxu0 %v7961
      %8095 = vmatprep.subr.mxu0 %v7964
      %8096 = vmatpush1.msra.mxu0 %v7963
      %8097 = vmatprep.subr.mxu0 %v7966
      %8098 = vmatpush1.msra.mxu0 %v7965
      %8099 = vmatprep.subr.mxu0 %v7968
      %8100 = vmatpush1.msra.mxu0 %v7967
      %8101 = vmatprep.subr.mxu0 %v7970
      %8102 = vmatpush1.msra.mxu0 %v7969
      %8103 = vmatprep.subr.mxu0 %v7972
      %8104 = vmatpush1.msra.mxu0 %v7971
      %8105 = vmatprep.subr.mxu0 %v7974
      %8106 = vmatpush1.msra.mxu0 %v7973
      %8107 = vmatprep.subr.mxu0 %v7976
      %8108 = vmatpush1.msra.mxu0 %v7975
      %8109 = vmatprep.subr.mxu0 %v7978
      %8110 = vmatpush1.msra.mxu0 %v7977
      %8111 = vmatprep.subr.mxu0 %v7980
      %8112 = vmatpush1.msra.mxu0 %v7979
      %8113 = vmatprep.mubr.f32.mxu0 %v8004
      %8114 = vmatmul.mubr.f32.gmra.mrb[0].mxu0 %v8001
      %v8115 = vpop.f32.mrb[0].mxu0
      %v8116 = vadd.f32 0.0, %v8115
      %v8117 = vpop.f32.mrb[0].mxu0
      %v8118 = vadd.f32 0.0, %v8117
      %8119 = vmatprep.mubr.f32.mxu0 %v8008
      %8120 = vmatmul.mubr.f32.gmra.mrb[0].mxu0 %v8006
      %v8121 = vpop.f32.mrb[0].mxu0
      %v8122 = vadd.f32 0.0, %v8121
      %v8123 = vpop.f32.mrb[0].mxu0
      %v8124 = vadd.f32 0.0, %v8123
      %8125 = vmatprep.mubr.f32.mxu0 %v8012
      %8126 = vmatmul.mubr.f32.gmra.mrb[0].mxu0 %v8010
      %v8127 = vpop.f32.mrb[0].mxu0
      %v8128 = vadd.f32 0.0, %v8127
      %v8129 = vpop.f32.mrb[0].mxu0
      %v8130 = vadd.f32 0.0, %v8129
      %8131 = vmatprep.mubr.f32.mxu0 %v8016
      %8132 = vmatmul.mubr.f32.gmra.mrb[0].mxu0 %v8014
      %v8133 = vpop.f32.mrb[0].mxu0
      %v8134 = vadd.f32 0.0, %v8133
      %v8135 = vpop.f32.mrb[0].mxu0
      %v8136 = vadd.f32 0.0, %v8135
      %8137 = vmatprep.mubr.f32.mxu0 %v8020
      %8138 = vmatmul.mubr.f32.gmra.mrb[0].mxu0 %v8018
      %v8139 = vpop.f32.mrb[0].mxu0
      %v8140 = vadd.f32 0.0, %v8139
      %v8141 = vpop.f32.mrb[0].mxu0
      %v8142 = vadd.f32 0.0, %v8141
      %8143 = vmatprep.mubr.f32.mxu0 %v8024
      %8144 = vmatmul.mubr.f32.gmra.mrb[0].mxu0 %v8022
      %v8145 = vpop.f32.mrb[0].mxu0
      %v8146 = vadd.f32 0.0, %v8145
      %v8147 = vpop.f32.mrb[0].mxu0
      %v8148 = vadd.f32 0.0, %v8147
      %8149 = vmatprep.mubr.f32.mxu0 %v8028
      %8150 = vmatmul.mubr.f32.gmra.mrb[0].mxu0 %v8026
      %v8151 = vpop.f32.mrb[0].mxu0
      %v8152 = vadd.f32 0.0, %v8151
      %v8153 = vpop.f32.mrb[0].mxu0
      %v8154 = vadd.f32 0.0, %v8153
      %8155 = vmatprep.mubr.f32.mxu0 %v8032
      %8156 = vmatmul.mubr.f32.gmra.mrb[0].mxu0 %v8030
      %v8157 = vpop.f32.mrb[0].mxu0
      %v8158 = vadd.f32 0.0, %v8157
      %v8159 = vpop.f32.mrb[0].mxu0
      %v8160 = vadd.f32 0.0, %v8159
      %8161 = vdwg.mxu0
      %v8162 = vadd.f32 %v7882, %v8116
      %v8163 = vadd.f32 %v7883, %v8118
      %v8164 = vadd.f32 %v7884, %v8122
      %v8165 = vadd.f32 %v7885, %v8124
      %v8166 = vadd.f32 %v7886, %v8128
      %v8167 = vadd.f32 %v7887, %v8130
      %v8168 = vadd.f32 %v7888, %v8134
      %v8169 = vadd.f32 %v7889, %v8136
      %v8170 = vadd.f32 %v7890, %v8140
      %v8171 = vadd.f32 %v7891, %v8142
      %v8172 = vadd.f32 %v7892, %v8146
      %v8173 = vadd.f32 %v7893, %v8148
      %v8174 = vadd.f32 %v7894, %v8152
      %v8175 = vadd.f32 %v7895, %v8154
      %v8176 = vadd.f32 %v7896, %v8158
      %v8177 = vadd.f32 %v7897, %v8160
      %v8178 = vld [vmem:[#allocation2 + $0x10] sm:$0xfc]
      %v8179 = vld [vmem:[#allocation2 + $0x18] sm:$0xfc]
      %v8180 = vld [vmem:[#allocation2 + $0x90] sm:$0x3]
      %v8181 = vld [vmem:[#allocation2 + $0x98] sm:$0x3]
      %s8182 = scalar_lea.vmem %s7, 2560
      %v8183 = vld [vmem:[%s8182] sm:$0xff]
      %v8184 = vld [vmem:[%s8182 + $0x8] sm:$0xff]
      %v8185 = vld [vmem:[%s8182 + $0x10] sm:$0xff]
      %v8186 = vld [vmem:[%s8182 + $0x18] sm:$0xff]
      %v8187 = vld [vmem:[%s8182 + $0x20] sm:$0xff]
      %v8188 = vld [vmem:[%s8182 + $0x28] sm:$0xff]
      %v8189 = vld [vmem:[%s8182 + $0x30] sm:$0xff]
      %v8190 = vld [vmem:[%s8182 + $0x38] sm:$0xff]
      %v8191 = vld [vmem:[%s8182 + $0x40] sm:$0xff]
      %v8192 = vld [vmem:[%s8182 + $0x48] sm:$0xff]
      %v8193 = vld [vmem:[%s8182 + $0x50] sm:$0xff]
      %v8194 = vld [vmem:[%s8182 + $0x58] sm:$0xff]
      %v8195 = vld [vmem:[%s8182 + $0x60] sm:$0xff]
      %v8196 = vld [vmem:[%s8182 + $0x68] sm:$0xff]
      %v8197 = vld [vmem:[%s8182 + $0x70] sm:$0xff]
      %v8198 = vld [vmem:[%s8182 + $0x78] sm:$0xff]
      %v8199 = vld [vmem:[%s8182 + $0x80] sm:$0xff]
      %v8200 = vld [vmem:[%s8182 + $0x88] sm:$0xff]
      %v8201 = vld [vmem:[%s8182 + $0x90] sm:$0xff]
      %v8202 = vld [vmem:[%s8182 + $0x98] sm:$0xff]
      %v8203 = vld [vmem:[%s8182 + $0xa0] sm:$0xff]
      %v8204 = vld [vmem:[%s8182 + $0xa8] sm:$0xff]
      %v8205 = vld [vmem:[%s8182 + $0xb0] sm:$0xff]
      %v8206 = vld [vmem:[%s8182 + $0xb8] sm:$0xff]
      %v8207 = vld [vmem:[%s8182 + $0xc0] sm:$0xff]
      %v8208 = vld [vmem:[%s8182 + $0xc8] sm:$0xff]
      %v8209 = vld [vmem:[%s8182 + $0xd0] sm:$0xff]
      %v8210 = vld [vmem:[%s8182 + $0xd8] sm:$0xff]
      %v8211 = vld [vmem:[%s8182 + $0xe0] sm:$0xff]
      %v8212 = vld [vmem:[%s8182 + $0xe8] sm:$0xff]
      %v8213 = vld [vmem:[%s8182 + $0xf0] sm:$0xff]
      %v8214 = vld [vmem:[%s8182 + $0xf8] sm:$0xff]
      %v8215 = vld [vmem:[%s8182 + $0x100] sm:$0xff]
      %v8216 = vld [vmem:[%s8182 + $0x108] sm:$0xff]
      %v8217 = vld [vmem:[%s8182 + $0x110] sm:$0xff]
      %v8218 = vld [vmem:[%s8182 + $0x118] sm:$0xff]
      %v8219 = vld [vmem:[%s8182 + $0x120] sm:$0xff]
      %v8220 = vld [vmem:[%s8182 + $0x128] sm:$0xff]
      %v8221 = vld [vmem:[%s8182 + $0x130] sm:$0xff]
      %v8222 = vld [vmem:[%s8182 + $0x138] sm:$0xff]
      %v8223 = vld [vmem:[%s8182 + $0x140] sm:$0xff]
      %v8224 = vld [vmem:[%s8182 + $0x148] sm:$0xff]
      %v8225 = vld [vmem:[%s8182 + $0x150] sm:$0xff]
      %v8226 = vld [vmem:[%s8182 + $0x158] sm:$0xff]
      %v8227 = vld [vmem:[%s8182 + $0x160] sm:$0xff]
      %v8228 = vld [vmem:[%s8182 + $0x168] sm:$0xff]
      %v8229 = vld [vmem:[%s8182 + $0x170] sm:$0xff]
      %v8230 = vld [vmem:[%s8182 + $0x178] sm:$0xff]
      %v8231 = vld [vmem:[%s8182 + $0x180] sm:$0xff]
      %v8232 = vld [vmem:[%s8182 + $0x188] sm:$0xff]
      %v8233 = vld [vmem:[%s8182 + $0x190] sm:$0xff]
      %v8234 = vld [vmem:[%s8182 + $0x198] sm:$0xff]
      %v8235 = vld [vmem:[%s8182 + $0x1a0] sm:$0xff]
      %v8236 = vld [vmem:[%s8182 + $0x1a8] sm:$0xff]
      %v8237 = vld [vmem:[%s8182 + $0x1b0] sm:$0xff]
      %v8238 = vld [vmem:[%s8182 + $0x1b8] sm:$0xff]
      %v8239 = vld [vmem:[%s8182 + $0x1c0] sm:$0xff]
      %v8240 = vld [vmem:[%s8182 + $0x1c8] sm:$0xff]
      %v8241 = vld [vmem:[%s8182 + $0x1d0] sm:$0xff]
      %v8242 = vld [vmem:[%s8182 + $0x1d8] sm:$0xff]
      %v8243 = vld [vmem:[%s8182 + $0x1e0] sm:$0xff]
      %v8244 = vld [vmem:[%s8182 + $0x1e8] sm:$0xff]
      %v8245 = vld [vmem:[%s8182 + $0x1f0] sm:$0xff]
      %v8246 = vld [vmem:[%s8182 + $0x1f8] sm:$0xff]
      %vm8251 = vcmask 1045504
      %v8252 = vrot.slane %v8178, 2
      %v8253 = vrot.slane %v7900, 2
      %v8254 = vsel %vm8251, %v8252, %v8253
      %v8255 = vrot.slane %v8179, 2
      %v8256 = vrot.slane %v7901, 2
      %v8257 = vsel %vm8251, %v8255, %v8256
      %v8258 = vrot.slane %v7902, 2
      %v8259 = vsel %vm8251, %v8253, %v8258
      %v8260 = vrot.slane %v7903, 2
      %v8261 = vsel %vm8251, %v8256, %v8260
      %v8262 = vrot.slane %v7904, 2
      %v8263 = vsel %vm8251, %v8258, %v8262
      %v8264 = vrot.slane %v7905, 2
      %v8265 = vsel %vm8251, %v8260, %v8264
      %v8266 = vrot.slane %v7906, 2
      %v8267 = vsel %vm8251, %v8262, %v8266
      %v8268 = vrot.slane %v7907, 2
      %v8269 = vsel %vm8251, %v8264, %v8268
      %v8270 = vrot.slane %v7908, 2
      %v8271 = vsel %vm8251, %v8266, %v8270
      %v8272 = vrot.slane %v7909, 2
      %v8273 = vsel %vm8251, %v8268, %v8272
      %v8274 = vrot.slane %v7910, 2
      %v8275 = vsel %vm8251, %v8270, %v8274
      %v8276 = vrot.slane %v7911, 2
      %v8277 = vsel %vm8251, %v8272, %v8276
      %v8278 = vrot.slane %v7912, 2
      %v8279 = vsel %vm8251, %v8274, %v8278
      %v8280 = vrot.slane %v7913, 2
      %v8281 = vsel %vm8251, %v8276, %v8280
      %v8282 = vrot.slane %v8180, 2
      %v8283 = vsel %vm8251, %v8278, %v8282
      %v8284 = vrot.slane %v8181, 2
      %v8285 = vsel %vm8251, %v8280, %v8284
      %8302 = vmatprep.subr.mxu0 %v8184
      %8303 = vmatpush1.msra.mxu0 %v8183
      %8304 = vmatprep.subr.mxu0 %v8186
      %8305 = vmatpush1.msra.mxu0 %v8185
      %8306 = vmatprep.subr.mxu0 %v8188
      %8307 = vmatpush1.msra.mxu0 %v8187
      %8308 = vmatprep.subr.mxu0 %v8190
      %8309 = vmatpush1.msra.mxu0 %v8189
      %8310 = vmatprep.subr.mxu0 %v8192
      %8311 = vmatpush1.msra.mxu0 %v8191
      %8312 = vmatprep.subr.mxu0 %v8194
      %8313 = vmatpush1.msra.mxu0 %v8193
      %8314 = vmatprep.subr.mxu0 %v8196
      %8315 = vmatpush1.msra.mxu0 %v8195
      %8316 = vmatprep.subr.mxu0 %v8198
      %8317 = vmatpush1.msra.mxu0 %v8197
      %8318 = vmatprep.subr.mxu0 %v8200
      %8319 = vmatpush1.msra.mxu0 %v8199
      %8320 = vmatprep.subr.mxu0 %v8202
      %8321 = vmatpush1.msra.mxu0 %v8201
      %8322 = vmatprep.subr.mxu0 %v8204
      %8323 = vmatpush1.msra.mxu0 %v8203
      %8324 = vmatprep.subr.mxu0 %v8206
      %8325 = vmatpush1.msra.mxu0 %v8205
      %8326 = vmatprep.subr.mxu0 %v8208
      %8327 = vmatpush1.msra.mxu0 %v8207
      %8328 = vmatprep.subr.mxu0 %v8210
      %8329 = vmatpush1.msra.mxu0 %v8209
      %8330 = vmatprep.subr.mxu0 %v8212
      %8331 = vmatpush1.msra.mxu0 %v8211
      %8332 = vmatprep.subr.mxu0 %v8214
      %8333 = vmatpush1.msra.mxu0 %v8213
      %8334 = vmatprep.subr.mxu0 %v8216
      %8335 = vmatpush1.msra.mxu0 %v8215
      %8336 = vmatprep.subr.mxu0 %v8218
      %8337 = vmatpush1.msra.mxu0 %v8217
      %8338 = vmatprep.subr.mxu0 %v8220
      %8339 = vmatpush1.msra.mxu0 %v8219
      %8340 = vmatprep.subr.mxu0 %v8222
      %8341 = vmatpush1.msra.mxu0 %v8221
      %8342 = vmatprep.subr.mxu0 %v8224
      %8343 = vmatpush1.msra.mxu0 %v8223
      %8344 = vmatprep.subr.mxu0 %v8226
      %8345 = vmatpush1.msra.mxu0 %v8225
      %8346 = vmatprep.subr.mxu0 %v8228
      %8347 = vmatpush1.msra.mxu0 %v8227
      %8348 = vmatprep.subr.mxu0 %v8230
      %8349 = vmatpush1.msra.mxu0 %v8229
      %8350 = vmatprep.subr.mxu0 %v8232
      %8351 = vmatpush1.msra.mxu0 %v8231
      %8352 = vmatprep.subr.mxu0 %v8234
      %8353 = vmatpush1.msra.mxu0 %v8233
      %8354 = vmatprep.subr.mxu0 %v8236
      %8355 = vmatpush1.msra.mxu0 %v8235
      %8356 = vmatprep.subr.mxu0 %v8238
      %8357 = vmatpush1.msra.mxu0 %v8237
      %8358 = vmatprep.subr.mxu0 %v8240
      %8359 = vmatpush1.msra.mxu0 %v8239
      %8360 = vmatprep.subr.mxu0 %v8242
      %8361 = vmatpush1.msra.mxu0 %v8241
      %8362 = vmatprep.subr.mxu0 %v8244
      %8363 = vmatpush1.msra.mxu0 %v8243
      %8364 = vmatprep.subr.mxu0 %v8246
      %8365 = vmatpush1.msra.mxu0 %v8245
      %8366 = vmatprep.mubr.f32.mxu0 %v8257
      %8367 = vmatmul.mubr.f32.gmra.mrb[0].mxu0 %v8254
      %v8368 = vpop.f32.mrb[0].mxu0
      %v8369 = vadd.f32 0.0, %v8368
      %v8370 = vpop.f32.mrb[0].mxu0
      %v8371 = vadd.f32 0.0, %v8370
      %8372 = vmatprep.mubr.f32.mxu0 %v8261
      %8373 = vmatmul.mubr.f32.gmra.mrb[0].mxu0 %v8259
      %v8374 = vpop.f32.mrb[0].mxu0
      %v8375 = vadd.f32 0.0, %v8374
      %v8376 = vpop.f32.mrb[0].mxu0
      %v8377 = vadd.f32 0.0, %v8376
      %8378 = vmatprep.mubr.f32.mxu0 %v8265
      %8379 = vmatmul.mubr.f32.gmra.mrb[0].mxu0 %v8263
      %v8380 = vpop.f32.mrb[0].mxu0
      %v8381 = vadd.f32 0.0, %v8380
      %v8382 = vpop.f32.mrb[0].mxu0
      %v8383 = vadd.f32 0.0, %v8382
      %8384 = vmatprep.mubr.f32.mxu0 %v8269
      %8385 = vmatmul.mubr.f32.gmra.mrb[0].mxu0 %v8267
      %v8386 = vpop.f32.mrb[0].mxu0
      %v8387 = vadd.f32 0.0, %v8386
      %v8388 = vpop.f32.mrb[0].mxu0
      %v8389 = vadd.f32 0.0, %v8388
      %8390 = vmatprep.mubr.f32.mxu0 %v8273
      %8391 = vmatmul.mubr.f32.gmra.mrb[0].mxu0 %v8271
      %v8392 = vpop.f32.mrb[0].mxu0
      %v8393 = vadd.f32 0.0, %v8392
      %v8394 = vpop.f32.mrb[0].mxu0
      %v8395 = vadd.f32 0.0, %v8394
      %8396 = vmatprep.mubr.f32.mxu0 %v8277
      %8397 = vmatmul.mubr.f32.gmra.mrb[0].mxu0 %v8275
      %v8398 = vpop.f32.mrb[0].mxu0
      %v8399 = vadd.f32 0.0, %v8398
      %v8400 = vpop.f32.mrb[0].mxu0
      %v8401 = vadd.f32 0.0, %v8400
      %8402 = vmatprep.mubr.f32.mxu0 %v8281
      %8403 = vmatmul.mubr.f32.gmra.mrb[0].mxu0 %v8279
      %v8404 = vpop.f32.mrb[0].mxu0
      %v8405 = vadd.f32 0.0, %v8404
      %v8406 = vpop.f32.mrb[0].mxu0
      %v8407 = vadd.f32 0.0, %v8406
      %8408 = vmatprep.mubr.f32.mxu0 %v8285
      %8409 = vmatmul.mubr.f32.gmra.mrb[0].mxu0 %v8283
      %v8410 = vpop.f32.mrb[0].mxu0
      %v8411 = vadd.f32 0.0, %v8410
      %v8412 = vpop.f32.mrb[0].mxu0
      %v8413 = vadd.f32 0.0, %v8412
      %8414 = vdwg.mxu0
      %v8415 = vadd.f32 %v8162, %v8369
      %v8416 = vadd.f32 %v8163, %v8371
      %v8417 = vadd.f32 %v8164, %v8375
      %v8418 = vadd.f32 %v8165, %v8377
      %v8419 = vadd.f32 %v8166, %v8381
      %v8420 = vadd.f32 %v8167, %v8383
      %v8421 = vadd.f32 %v8168, %v8387
      %v8422 = vadd.f32 %v8169, %v8389
      %v8423 = vadd.f32 %v8170, %v8393
      %v8424 = vadd.f32 %v8171, %v8395
      %v8425 = vadd.f32 %v8172, %v8399
      %v8426 = vadd.f32 %v8173, %v8401
      %v8427 = vadd.f32 %v8174, %v8405
      %v8428 = vadd.f32 %v8175, %v8407
      %v8429 = vadd.f32 %v8176, %v8411
      %v8430 = vadd.f32 %v8177, %v8413
      %v8431 = vld [vmem:[#allocation2 + $0x10] sm:$0xf8]
      %v8432 = vld [vmem:[#allocation2 + $0x18] sm:$0xf8]
      %v8433 = vld [vmem:[#allocation2 + $0x90] sm:$0x7]
      %v8434 = vld [vmem:[#allocation2 + $0x98] sm:$0x7]
      %s8435 = scalar_lea.vmem %s7, 3072
      %v8436 = vld [vmem:[%s8435] sm:$0xff]
      %v8437 = vld [vmem:[%s8435 + $0x8] sm:$0xff]
      %v8438 = vld [vmem:[%s8435 + $0x10] sm:$0xff]
      %v8439 = vld [vmem:[%s8435 + $0x18] sm:$0xff]
      %v8440 = vld [vmem:[%s8435 + $0x20] sm:$0xff]
      %v8441 = vld [vmem:[%s8435 + $0x28] sm:$0xff]
      %v8442 = vld [vmem:[%s8435 + $0x30] sm:$0xff]
      %v8443 = vld [vmem:[%s8435 + $0x38] sm:$0xff]
      %v8444 = vld [vmem:[%s8435 + $0x40] sm:$0xff]
      %v8445 = vld [vmem:[%s8435 + $0x48] sm:$0xff]
      %v8446 = vld [vmem:[%s8435 + $0x50] sm:$0xff]
      %v8447 = vld [vmem:[%s8435 + $0x58] sm:$0xff]
      %v8448 = vld [vmem:[%s8435 + $0x60] sm:$0xff]
      %v8449 = vld [vmem:[%s8435 + $0x68] sm:$0xff]
      %v8450 = vld [vmem:[%s8435 + $0x70] sm:$0xff]
      %v8451 = vld [vmem:[%s8435 + $0x78] sm:$0xff]
      %v8452 = vld [vmem:[%s8435 + $0x80] sm:$0xff]
      %v8453 = vld [vmem:[%s8435 + $0x88] sm:$0xff]
      %v8454 = vld [vmem:[%s8435 + $0x90] sm:$0xff]
      %v8455 = vld [vmem:[%s8435 + $0x98] sm:$0xff]
      %v8456 = vld [vmem:[%s8435 + $0xa0] sm:$0xff]
      %v8457 = vld [vmem:[%s8435 + $0xa8] sm:$0xff]
      %v8458 = vld [vmem:[%s8435 + $0xb0] sm:$0xff]
      %v8459 = vld [vmem:[%s8435 + $0xb8] sm:$0xff]
      %v8460 = vld [vmem:[%s8435 + $0xc0] sm:$0xff]
      %v8461 = vld [vmem:[%s8435 + $0xc8] sm:$0xff]
      %v8462 = vld [vmem:[%s8435 + $0xd0] sm:$0xff]
      %v8463 = vld [vmem:[%s8435 + $0xd8] sm:$0xff]
      %v8464 = vld [vmem:[%s8435 + $0xe0] sm:$0xff]
      %v8465 = vld [vmem:[%s8435 + $0xe8] sm:$0xff]
      %v8466 = vld [vmem:[%s8435 + $0xf0] sm:$0xff]
      %v8467 = vld [vmem:[%s8435 + $0xf8] sm:$0xff]
      %v8468 = vld [vmem:[%s8435 + $0x100] sm:$0xff]
      %v8469 = vld [vmem:[%s8435 + $0x108] sm:$0xff]
      %v8470 = vld [vmem:[%s8435 + $0x110] sm:$0xff]
      %v8471 = vld [vmem:[%s8435 + $0x118] sm:$0xff]
      %v8472 = vld [vmem:[%s8435 + $0x120] sm:$0xff]
      %v8473 = vld [vmem:[%s8435 + $0x128] sm:$0xff]
      %v8474 = vld [vmem:[%s8435 + $0x130] sm:$0xff]
      %v8475 = vld [vmem:[%s8435 + $0x138] sm:$0xff]
      %v8476 = vld [vmem:[%s8435 + $0x140] sm:$0xff]
      %v8477 = vld [vmem:[%s8435 + $0x148] sm:$0xff]
      %v8478 = vld [vmem:[%s8435 + $0x150] sm:$0xff]
      %v8479 = vld [vmem:[%s8435 + $0x158] sm:$0xff]
      %v8480 = vld [vmem:[%s8435 + $0x160] sm:$0xff]
      %v8481 = vld [vmem:[%s8435 + $0x168] sm:$0xff]
      %v8482 = vld [vmem:[%s8435 + $0x170] sm:$0xff]
      %v8483 = vld [vmem:[%s8435 + $0x178] sm:$0xff]
      %v8484 = vld [vmem:[%s8435 + $0x180] sm:$0xff]
      %v8485 = vld [vmem:[%s8435 + $0x188] sm:$0xff]
      %v8486 = vld [vmem:[%s8435 + $0x190] sm:$0xff]
      %v8487 = vld [vmem:[%s8435 + $0x198] sm:$0xff]
      %v8488 = vld [vmem:[%s8435 + $0x1a0] sm:$0xff]
      %v8489 = vld [vmem:[%s8435 + $0x1a8] sm:$0xff]
      %v8490 = vld [vmem:[%s8435 + $0x1b0] sm:$0xff]
      %v8491 = vld [vmem:[%s8435 + $0x1b8] sm:$0xff]
      %v8492 = vld [vmem:[%s8435 + $0x1c0] sm:$0xff]
      %v8493 = vld [vmem:[%s8435 + $0x1c8] sm:$0xff]
      %v8494 = vld [vmem:[%s8435 + $0x1d0] sm:$0xff]
      %v8495 = vld [vmem:[%s8435 + $0x1d8] sm:$0xff]
      %v8496 = vld [vmem:[%s8435 + $0x1e0] sm:$0xff]
      %v8497 = vld [vmem:[%s8435 + $0x1e8] sm:$0xff]
      %v8498 = vld [vmem:[%s8435 + $0x1f0] sm:$0xff]
      %v8499 = vld [vmem:[%s8435 + $0x1f8] sm:$0xff]
      %vm8504 = vcmask 1044480
      %v8505 = vrot.slane %v8431, 3
      %v8506 = vrot.slane %v7900, 3
      %v8507 = vsel %vm8504, %v8505, %v8506
      %v8508 = vrot.slane %v8432, 3
      %v8509 = vrot.slane %v7901, 3
      %v8510 = vsel %vm8504, %v8508, %v8509
      %v8511 = vrot.slane %v7902, 3
      %v8512 = vsel %vm8504, %v8506, %v8511
      %v8513 = vrot.slane %v7903, 3
      %v8514 = vsel %vm8504, %v8509, %v8513
      %v8515 = vrot.slane %v7904, 3
      %v8516 = vsel %vm8504, %v8511, %v8515
      %v8517 = vrot.slane %v7905, 3
      %v8518 = vsel %vm8504, %v8513, %v8517
      %v8519 = vrot.slane %v7906, 3
      %v8520 = vsel %vm8504, %v8515, %v8519
      %v8521 = vrot.slane %v7907, 3
      %v8522 = vsel %vm8504, %v8517, %v8521
      %v8523 = vrot.slane %v7908, 3
      %v8524 = vsel %vm8504, %v8519, %v8523
      %v8525 = vrot.slane %v7909, 3
      %v8526 = vsel %vm8504, %v8521, %v8525
      %v8527 = vrot.slane %v7910, 3
      %v8528 = vsel %vm8504, %v8523, %v8527
      %v8529 = vrot.slane %v7911, 3
      %v8530 = vsel %vm8504, %v8525, %v8529
      %v8531 = vrot.slane %v7912, 3
      %v8532 = vsel %vm8504, %v8527, %v8531
      %v8533 = vrot.slane %v7913, 3
      %v8534 = vsel %vm8504, %v8529, %v8533
      %v8535 = vrot.slane %v8433, 3
      %v8536 = vsel %vm8504, %v8531, %v8535
      %v8537 = vrot.slane %v8434, 3
      %v8538 = vsel %vm8504, %v8533, %v8537
      %8555 = vmatprep.subr.mxu0 %v8437
      %8556 = vmatpush1.msra.mxu0 %v8436
      %8557 = vmatprep.subr.mxu0 %v8439
      %8558 = vmatpush1.msra.mxu0 %v8438
      %8559 = vmatprep.subr.mxu0 %v8441
      %8560 = vmatpush1.msra.mxu0 %v8440
      %8561 = vmatprep.subr.mxu0 %v8443
      %8562 = vmatpush1.msra.mxu0 %v8442
      %8563 = vmatprep.subr.mxu0 %v8445
      %8564 = vmatpush1.msra.mxu0 %v8444
      %8565 = vmatprep.subr.mxu0 %v8447
      %8566 = vmatpush1.msra.mxu0 %v8446
      %8567 = vmatprep.subr.mxu0 %v8449
      %8568 = vmatpush1.msra.mxu0 %v8448
      %8569 = vmatprep.subr.mxu0 %v8451
      %8570 = vmatpush1.msra.mxu0 %v8450
      %8571 = vmatprep.subr.mxu0 %v8453
      %8572 = vmatpush1.msra.mxu0 %v8452
      %8573 = vmatprep.subr.mxu0 %v8455
      %8574 = vmatpush1.msra.mxu0 %v8454
      %8575 = vmatprep.subr.mxu0 %v8457
      %8576 = vmatpush1.msra.mxu0 %v8456
      %8577 = vmatprep.subr.mxu0 %v8459
      %8578 = vmatpush1.msra.mxu0 %v8458
      %8579 = vmatprep.subr.mxu0 %v8461
      %8580 = vmatpush1.msra.mxu0 %v8460
      %8581 = vmatprep.subr.mxu0 %v8463
      %8582 = vmatpush1.msra.mxu0 %v8462
      %8583 = vmatprep.subr.mxu0 %v8465
      %8584 = vmatpush1.msra.mxu0 %v8464
      %8585 = vmatprep.subr.mxu0 %v8467
      %8586 = vmatpush1.msra.mxu0 %v8466
      %8587 = vmatprep.subr.mxu0 %v8469
      %8588 = vmatpush1.msra.mxu0 %v8468
      %8589 = vmatprep.subr.mxu0 %v8471
      %8590 = vmatpush1.msra.mxu0 %v8470
      %8591 = vmatprep.subr.mxu0 %v8473
      %8592 = vmatpush1.msra.mxu0 %v8472
      %8593 = vmatprep.subr.mxu0 %v8475
      %8594 = vmatpush1.msra.mxu0 %v8474
      %8595 = vmatprep.subr.mxu0 %v8477
      %8596 = vmatpush1.msra.mxu0 %v8476
      %8597 = vmatprep.subr.mxu0 %v8479
      %8598 = vmatpush1.msra.mxu0 %v8478
      %8599 = vmatprep.subr.mxu0 %v8481
      %8600 = vmatpush1.msra.mxu0 %v8480
      %8601 = vmatprep.subr.mxu0 %v8483
      %8602 = vmatpush1.msra.mxu0 %v8482
      %8603 = vmatprep.subr.mxu0 %v8485
      %8604 = vmatpush1.msra.mxu0 %v8484
      %8605 = vmatprep.subr.mxu0 %v8487
      %8606 = vmatpush1.msra.mxu0 %v8486
      %8607 = vmatprep.subr.mxu0 %v8489
      %8608 = vmatpush1.msra.mxu0 %v8488
      %8609 = vmatprep.subr.mxu0 %v8491
      %8610 = vmatpush1.msra.mxu0 %v8490
      %8611 = vmatprep.subr.mxu0 %v8493
      %8612 = vmatpush1.msra.mxu0 %v8492
      %8613 = vmatprep.subr.mxu0 %v8495
      %8614 = vmatpush1.msra.mxu0 %v8494
      %8615 = vmatprep.subr.mxu0 %v8497
      %8616 = vmatpush1.msra.mxu0 %v8496
      %8617 = vmatprep.subr.mxu0 %v8499
      %8618 = vmatpush1.msra.mxu0 %v8498
      %8619 = vmatprep.mubr.f32.mxu0 %v8510
      %8620 = vmatmul.mubr.f32.gmra.mrb[0].mxu0 %v8507
      %v8621 = vpop.f32.mrb[0].mxu0
      %v8622 = vadd.f32 0.0, %v8621
      %v8623 = vpop.f32.mrb[0].mxu0
      %v8624 = vadd.f32 0.0, %v8623
      %8625 = vmatprep.mubr.f32.mxu0 %v8514
      %8626 = vmatmul.mubr.f32.gmra.mrb[0].mxu0 %v8512
      %v8627 = vpop.f32.mrb[0].mxu0
      %v8628 = vadd.f32 0.0, %v8627
      %v8629 = vpop.f32.mrb[0].mxu0
      %v8630 = vadd.f32 0.0, %v8629
      %8631 = vmatprep.mubr.f32.mxu0 %v8518
      %8632 = vmatmul.mubr.f32.gmra.mrb[0].mxu0 %v8516
      %v8633 = vpop.f32.mrb[0].mxu0
      %v8634 = vadd.f32 0.0, %v8633
      %v8635 = vpop.f32.mrb[0].mxu0
      %v8636 = vadd.f32 0.0, %v8635
      %8637 = vmatprep.mubr.f32.mxu0 %v8522
      %8638 = vmatmul.mubr.f32.gmra.mrb[0].mxu0 %v8520
      %v8639 = vpop.f32.mrb[0].mxu0
      %v8640 = vadd.f32 0.0, %v8639
      %v8641 = vpop.f32.mrb[0].mxu0
      %v8642 = vadd.f32 0.0, %v8641
      %8643 = vmatprep.mubr.f32.mxu0 %v8526
      %8644 = vmatmul.mubr.f32.gmra.mrb[0].mxu0 %v8524
      %v8645 = vpop.f32.mrb[0].mxu0
      %v8646 = vadd.f32 0.0, %v8645
      %v8647 = vpop.f32.mrb[0].mxu0
      %v8648 = vadd.f32 0.0, %v8647
      %8649 = vmatprep.mubr.f32.mxu0 %v8530
      %8650 = vmatmul.mubr.f32.gmra.mrb[0].mxu0 %v8528
      %v8651 = vpop.f32.mrb[0].mxu0
      %v8652 = vadd.f32 0.0, %v8651
      %v8653 = vpop.f32.mrb[0].mxu0
      %v8654 = vadd.f32 0.0, %v8653
      %8655 = vmatprep.mubr.f32.mxu0 %v8534
      %8656 = vmatmul.mubr.f32.gmra.mrb[0].mxu0 %v8532
      %v8657 = vpop.f32.mrb[0].mxu0
      %v8658 = vadd.f32 0.0, %v8657
      %v8659 = vpop.f32.mrb[0].mxu0
      %v8660 = vadd.f32 0.0, %v8659
      %8661 = vmatprep.mubr.f32.mxu0 %v8538
      %8662 = vmatmul.mubr.f32.gmra.mrb[0].mxu0 %v8536
      %v8663 = vpop.f32.mrb[0].mxu0
      %v8664 = vadd.f32 0.0, %v8663
      %v8665 = vpop.f32.mrb[0].mxu0
      %v8666 = vadd.f32 0.0, %v8665
      %8667 = vdwg.mxu0
      %v8668 = vadd.f32 %v8415, %v8622
      %v8669 = vadd.f32 %v8416, %v8624
      %v8670 = vadd.f32 %v8417, %v8628
      %v8671 = vadd.f32 %v8418, %v8630
      %v8672 = vadd.f32 %v8419, %v8634
      %v8673 = vadd.f32 %v8420, %v8636
      %v8674 = vadd.f32 %v8421, %v8640
      %v8675 = vadd.f32 %v8422, %v8642
      %v8676 = vadd.f32 %v8423, %v8646
      %v8677 = vadd.f32 %v8424, %v8648
      %v8678 = vadd.f32 %v8425, %v8652
      %v8679 = vadd.f32 %v8426, %v8654
      %v8680 = vadd.f32 %v8427, %v8658
      %v8681 = vadd.f32 %v8428, %v8660
      %v8682 = vadd.f32 %v8429, %v8664
      %v8683 = vadd.f32 %v8430, %v8666
      %s8684 = scalar_lea.vmem %s2, 36
      %v8685 = vld [vmem:[%s8684] ss:$8 sm:$0x3]
      %v8687 = vlaneseq
      %v8688 = vshrl.u32 %v8687, 7
      %v8689 = vsub.s32 0, %v8688
      %v8690 = vrot.slane %v8685, %v8689
      %v8691 = vlaneseq
      %v8692 = vshrl.u32 %v8691, 7
      %v8693 = vsub.s32 1, %v8692
      %v8694 = vrot.slane %v8685, %v8693
      %v8697 = vadd.f32 %v8668, %v8690
      %v8698 = vadd.f32 %v8669, %v8694
      %v8699 = vadd.f32 %v8670, %v8690
      %v8700 = vadd.f32 %v8671, %v8694
      %v8701 = vadd.f32 %v8672, %v8690
      %v8702 = vadd.f32 %v8673, %v8694
      %v8703 = vadd.f32 %v8674, %v8690
      %v8704 = vadd.f32 %v8675, %v8694
      %v8705 = vadd.f32 %v8676, %v8690
      %v8706 = vadd.f32 %v8677, %v8694
      %v8707 = vadd.f32 %v8678, %v8690
      %v8708 = vadd.f32 %v8679, %v8694
      %v8709 = vadd.f32 %v8680, %v8690
      %v8710 = vadd.f32 %v8681, %v8694
      %v8711 = vadd.f32 %v8682, %v8690
      %v8712 = vadd.f32 %v8683, %v8694
      %8713 = vst [vmem:[%s353] sm:$0xff] %v8697
      %8714 = vst.msk [vmem:[%s353 + $0x8] sm:$0xff] %vm473, %v8698
      %8715 = vst [vmem:[%s353 + $0x10] sm:$0xff] %v8699
      %8716 = vst.msk [vmem:[%s353 + $0x18] sm:$0xff] %vm473, %v8700
      %8717 = vst [vmem:[%s353 + $0x20] sm:$0xff] %v8701
      %8718 = vst.msk [vmem:[%s353 + $0x28] sm:$0xff] %vm473, %v8702
      %8719 = vst [vmem:[%s353 + $0x30] sm:$0xff] %v8703
      %8720 = vst.msk [vmem:[%s353 + $0x38] sm:$0xff] %vm473, %v8704
      %8721 = vst [vmem:[%s353 + $0x40] sm:$0xff] %v8705
      %8722 = vst.msk [vmem:[%s353 + $0x48] sm:$0xff] %vm473, %v8706
      %8723 = vst [vmem:[%s353 + $0x50] sm:$0xff] %v8707
      %8724 = vst.msk [vmem:[%s353 + $0x58] sm:$0xff] %vm473, %v8708
      %8725 = vst [vmem:[%s353 + $0x60] sm:$0xff] %v8709
      %8726 = vst.msk [vmem:[%s353 + $0x68] sm:$0xff] %vm473, %v8710
      %8727 = vst [vmem:[%s353 + $0x70] sm:$0xff] %v8711
      %8728 = vst.msk [vmem:[%s353 + $0x78] sm:$0xff] %vm473, %v8712
      %p8729 = scmp.lt.s32.totalorder %s21, 1
      %s8730 = scalar_select %p8729, %s21, 1
      %s8731 = smul.addr %s8730, 16
      %s8732 = smul.addr %s8731, 8
      %s8733 = scalar_lea.vmem %s10, %s8732
      // Predicated region
      $region61: #{resnet18_decoder_pallas.1} parent=59 // pred_check
        %p8734 = pneg %p254
      $region62: #{resnet18_decoder_pallas.1} parent=59 // pred_check_branch
        %8736 = sbr.rel (%p8734) target = $region64
      $region63: #{resnet18_decoder_pallas.1} parent=59 // pred_region
        _
      $region64: #{resnet18_decoder_pallas.1} parent=59 // pred_fallthru
        _
    $region60: #{resnet18_decoder_pallas.1} parent=5 // pred_fallthru
      _
    %p8737 = scmp.le.s32.totalorder 2, %s16
    // Predicated region
    $region65: #{resnet18_decoder_pallas.1} parent=5 // pred_check
      %p8738 = pneg %p8737
    $region66: #{resnet18_decoder_pallas.1} parent=5 // pred_check_branch
      %8740 = sbr.rel (%p8738) target = $region68
    $region67: #{resnet18_decoder_pallas.1} parent=5 // pred_region
      %s8741 = ssub.s32 %s16, 2
      // Predicated region
      $region69: #{resnet18_decoder_pallas.1} parent=67 // pred_check
        %p8742 = pneg %p260
      $region70: #{resnet18_decoder_pallas.1} parent=67 // pred_check_branch
        %8744 = sbr.rel (%p8742) target = $region72
      $region71: #{resnet18_decoder_pallas.1} parent=67 // pred_region
        %p8745 = scmp.lt.s32.totalorder %s22, 1
        %s8746 = scalar_select %p8745, %s22, 1
        %s8747 = smul.addr %s8746, 16
        %s8748 = smul.addr %s8747, 8
        %s8749 = scalar_lea.vmem %s10, %s8748
      $region72: #{resnet18_decoder_pallas.1} parent=67 // pred_fallthru
        _
    $region68: #{resnet18_decoder_pallas.1} parent=5 // pred_fallthru
      _
  $region6: #{resnet18_decoder_pallas.1} parent=0 // loop_footer
    %s20 = sadd.s32 1, %s16
  $region7: #{resnet18_decoder_pallas.1} parent=0 // loop_footer_branch
    %15 = sbr.rel target = $region3
  $region8: #{resnet18_decoder_pallas.1} parent=0 // loop_exit
    _

</llo_original>
